<compile_context>
chip_gen: v5e
topology: v5e:2x2
jax: 0.10.0
libtpu: 0.0.40
codegen_flags: <defaults>
</compile_context>

<pallas_src>
import numpy as np
import jax
import jax.numpy as jnp
from jax import lax
from jax.experimental import pallas as pl
from jax.experimental.pallas import tpu as pltpu

# ---- module configuration (PyTorch defaults; cin==cout so residual = Identity) ----
CIN = 4
COUT = 4
H = 16
W = 16
NUM_BLOCKS = 3
BN_EPS = 1e-5
# MaxPool2d(kernel_size=2, stride=2, padding=1)
HO = (H + 2 * 1 - 2) // 2 + 1          # 9
WO = (W + 2 * 1 - 2) // 2 + 1          # 9
HW = H * W                             # 256
OHW = HO * WO                          # 81

# Lane packing: 32 samples * 4 channels = 128 lanes (full vreg width / v5e MXU).
B_LANE = 32
BC = B_LANE * COUT                     # 128

# Tap order k = (dh+1)*3 + (dw+1), matching the OIHW->tap-major weight reshape.
TAP_OFFSETS = tuple(dh * W + dw for dh in (-1, 0, 1) for dw in (-1, 0, 1))


def _build_tap_masks():
    """(9, HW, 1) float mask: 1 where pixel (r+dh, c+dw) is inside the image."""
    m = np.zeros((9, HW, 1), np.float32)
    k = 0
    for dh in (-1, 0, 1):
        for dw in (-1, 0, 1):
            for p in range(HW):
                r, c = divmod(p, W)
                if 0 <= r + dh < H and 0 <= c + dw < W:
                    m[k, p, 0] = 1.0
            k += 1
    return jnp.asarray(m)


def _build_pool_selectors():
    """One-hot gather matrices for MaxPool2d(k=2, s=2, p=1) on an HxW image.

    For output position q = i*WO + j, tap (a,b) in {0,1}^2 reads input pixel
    (2i-1+a, 2j-1+b). Padding taps are redirected (clamped) to a valid pixel of
    the SAME 2x2 window, so the elementwise max over the 4 taps equals the
    -inf-padded reduce_window result without any additive -1e30 correction.
    """
    sel = np.zeros((4, OHW, HW), np.float32)
    for k, (a, b) in enumerate([(0, 0), (0, 1), (1, 0), (1, 1)]):
        for i in range(HO):
            for j in range(WO):
                rr = min(max(2 * i - 1 + a, 0), H - 1)
                cc = min(max(2 * j - 1 + b, 0), W - 1)
                sel[k, i * WO + j, rr * W + cc] = 1.0
    return jnp.asarray(sel)


TAP_MASKS = _build_tap_masks()
POOL_SEL = _build_pool_selectors()


def adaptive_residual_kernel(x_ref, w_ref, bns_ref, bnb_ref, mask_ref, sel_ref, o_ref):
    """One batch-group (B_LANE samples) per grid step, lane = b_local*C + c.

    x_ref:    (1, HW, BC)                        input, pixels on sublanes, (b,c) on lanes
    w_ref:    (NUM_BLOCKS, 9*BC, BC)             im2col weights (tap-major, block-diag in b)
    bns_ref:  (NUM_BLOCKS, 1, BC)                folded BN scale, tiled over batch lanes
    bnb_ref:  (NUM_BLOCKS, 1, BC)                folded BN shift, tiled over batch lanes
    mask_ref: (9, HW, 1)                         per-tap spatial validity masks
    sel_ref:  (4, OHW, HW)                       one-hot gather matrices for max-pool taps
    o_ref:    (1, OHW, BC)                       output, lane-dense
    """
    x = x_ref[0]                                             # (HW, BC) f32
    h = x

    for l in range(NUM_BLOCKS):
        # im2col: 9 shifted+masked copies of h concatenated along lanes.
        patches = []
        for k, off in enumerate(TAP_OFFSETS):
            if off == 0:
                patches.append(h)                            # center tap: mask is all-ones
            else:
                # patch[p] = h[(p + off) mod HW]; wrapped rows are exactly the
                # out-of-image positions and get zeroed by the validity mask.
                p = pltpu.roll(h, shift=(-off) % HW, axis=0)
                patches.append(p * mask_ref[k])
        patch_cat = jnp.concatenate(patches, axis=1)         # (HW, 9*BC)

        # Conv (single MXU matmul) -> folded BatchNorm (eval) -> ReLU
        # (Dropout2d is identity in eval mode).
        h = jnp.dot(patch_cat, w_ref[l], preferred_element_type=jnp.float32)
        h = h * bns_ref[l] + bnb_ref[l]
        h = jnp.maximum(h, 0.0)

    # skip connection: residual = Identity (cin == cout), Upsample(size=same) = identity
    s = h + x

    # MaxPool2d(kernel=2, stride=2, padding=1): 4 one-hot gather matmuls, padded
    # taps already redirected to a valid in-window pixel -> plain elementwise max.
    out = jnp.dot(sel_ref[0], s, preferred_element_type=jnp.float32)
    for k in range(1, 4):
        out = jnp.maximum(out, jnp.dot(sel_ref[k], s,
                                       preferred_element_type=jnp.float32))

    o_ref[0] = out.astype(o_ref.dtype)


def adaptive_residual_forward(x_nchw, conv_w, bn_gamma, bn_beta, bn_mean, bn_var):
    """x_nchw: (N, CIN, H, W); conv_w: (NUM_BLOCKS, COUT, CIN, 3, 3) (OIHW);
    BN params: (NUM_BLOCKS, COUT). Returns (N, COUT, HO, WO) in NCHW."""
    N = x_nchw.shape[0]
    assert CIN == COUT, "residual = Identity branch requires cin == cout"

    # Pad batch to a multiple of B_LANE and pack (batch, channel) onto lanes.
    G = pl.cdiv(N, B_LANE)
    N_pad = G * B_LANE
    x_p = jnp.pad(x_nchw, ((0, N_pad - N), (0, 0), (0, 0), (0, 0)))
    x_packed = (x_p.transpose(0, 2, 3, 1)                 # (N_pad, H, W, C)
                   .reshape(G, B_LANE, HW, CIN)           # (G, B, HW, C)
                   .transpose(0, 2, 1, 3)                 # (G, HW, B, C)
                   .reshape(G, HW, BC))                   # lane = b*C + c

    # OIHW conv weights -> tap-major (L, 9, Cin, Cout) -> block-diag over batch
    # lanes -> stacked into one im2col matrix (L, 9*B*Cin, B*Cout).
    w_taps = jnp.transpose(conv_w, (0, 3, 4, 2, 1)).reshape(NUM_BLOCKS, 9, CIN, COUT)
    eye_b = jnp.eye(B_LANE, dtype=jnp.float32)
    w_bd = jnp.einsum("ab,lkio->lkaibo", eye_b, w_taps).reshape(
        NUM_BLOCKS, 9, B_LANE * CIN, B_LANE * COUT)
    w_im2col = w_bd.reshape(NUM_BLOCKS, 9 * B_LANE * CIN, B_LANE * COUT)

    # Fold eval-mode BatchNorm into scale/shift, tiled across the batch lanes.
    inv_std = 1.0 / jnp.sqrt(bn_var + BN_EPS)
    scale = bn_gamma * inv_std                            # (L, C)
    shift = bn_beta - bn_mean * scale                     # (L, C)
    bn_scale = jnp.tile(scale, (1, B_LANE)).reshape(NUM_BLOCKS, 1, BC)
    bn_shift = jnp.tile(shift, (1, B_LANE)).reshape(NUM_BLOCKS, 1, BC)

    out_packed = pl.pallas_call(
        adaptive_residual_kernel,
        out_shape=jax.ShapeDtypeStruct((G, OHW, BC), jnp.float32),
        grid_spec=pltpu.PrefetchScalarGridSpec(
            num_scalar_prefetch=0,
            grid=(G,),
            in_specs=[
                pl.BlockSpec((1, HW, BC), lambda n: (n, 0, 0)),
                pl.BlockSpec((NUM_BLOCKS, 9 * B_LANE * CIN, B_LANE * COUT),
                             lambda n: (0, 0, 0)),
                pl.BlockSpec((NUM_BLOCKS, 1, BC), lambda n: (0, 0, 0)),
                pl.BlockSpec((NUM_BLOCKS, 1, BC), lambda n: (0, 0, 0)),
                pl.BlockSpec((9, HW, 1), lambda n: (0, 0, 0)),
                pl.BlockSpec((4, OHW, HW), lambda n: (0, 0, 0)),
            ],
            out_specs=pl.BlockSpec((1, OHW, BC), lambda n: (n, 0, 0)),
        ),
        compiler_params=pltpu.CompilerParams(
            dimension_semantics=("parallel",),
            vmem_limit_bytes=32 * 1024 * 1024,
        ),
    )(x_packed, w_im2col, bn_scale, bn_shift, TAP_MASKS, POOL_SEL)

    # (G, OHW, B*C) -> NCHW, drop batch padding.
    out = (out_packed.reshape(G, OHW, B_LANE, COUT)
                     .transpose(0, 2, 1, 3)               # (G, B, OHW, C)
                     .reshape(N_pad, HO, WO, COUT)
                     .transpose(0, 3, 1, 2))              # (N_pad, C, HO, WO)
    return out[:N]


def reference_forward(x, conv_w, gamma, beta, mean, var):
    """Pure-JAX reference (eval semantics), NCHW."""
    h = x
    for l in range(NUM_BLOCKS):
        h = lax.conv_general_dilated(
            h, conv_w[l], window_strides=(1, 1), padding=((1, 1), (1, 1)),
            dimension_numbers=("NCHW", "OIHW", "NCHW"))
        inv = 1.0 / jnp.sqrt(var[l] + BN_EPS)
        h = ((h - mean[l][None, :, None, None]) * inv[None, :, None, None]
             * gamma[l][None, :, None, None] + beta[l][None, :, None, None])
        h = jnp.maximum(h, 0.0)
    s = h + x
    return lax.reduce_window(s, -jnp.inf, lax.max,
                             (1, 1, 2, 2), (1, 1, 2, 2),
                             ((0, 0), (0, 0), (1, 1), (1, 1)))


if __name__ == "__main__":
    key = jax.random.PRNGKey(0)
    k_x, k_w, k_g, k_b, k_m, k_v = jax.random.split(key, 6)
    N = 2
    x = jax.random.normal(k_x, (N, CIN, H, W), jnp.float32)
    conv_w = jax.random.normal(k_w, (NUM_BLOCKS, COUT, CIN, 3, 3), jnp.float32) * 0.2
    bn_gamma = jax.random.uniform(k_g, (NUM_BLOCKS, COUT), jnp.float32, 0.5, 1.5)
    bn_beta = jax.random.normal(k_b, (NUM_BLOCKS, COUT), jnp.float32) * 0.1
    bn_mean = jax.random.normal(k_m, (NUM_BLOCKS, COUT), jnp.float32) * 0.1
    bn_var = jax.random.uniform(k_v, (NUM_BLOCKS, COUT), jnp.float32, 0.5, 1.5)

    y = adaptive_residual_forward(x, conv_w, bn_gamma, bn_beta, bn_mean, bn_var)
    y = jax.block_until_ready(y)

    y_ref = reference_forward(x, conv_w, bn_gamma, bn_beta, bn_mean, bn_var)
    np.testing.assert_allclose(np.asarray(y), np.asarray(y_ref), rtol=5e-3, atol=5e-3)
    print("KERNEL_OK")
</pallas_src>

<mosaic_0001>
module attributes {stable_mosaic.version = 11 : i64} {
  func.func @adaptive_residual_kernel(%arg0: i32, %arg1: memref<1x256x128xf32, #tpu.memory_space<vmem>>, %arg2: memref<3x1152x128xf32, #tpu.memory_space<vmem>>, %arg3: memref<3x1x128xf32, #tpu.memory_space<vmem>>, %arg4: memref<3x1x128xf32, #tpu.memory_space<vmem>>, %arg5: memref<9x256x1xf32, #tpu.memory_space<vmem>>, %arg6: memref<4x81x256xf32, #tpu.memory_space<vmem>>, %arg7: memref<1x81x128xf32, #tpu.memory_space<vmem>>) attributes {dimension_semantics = [#tpu.dimension_semantics<parallel>], iteration_bounds = array<i64: 1>, scalar_prefetch = 0 : i64, scratch_operands = 0 : i64, tpu.core_type = #tpu.core_type<tc>, window_params = [{transform_indices = @transform_0, window_bounds = array<i64: 1, 256, 128>}, {pipeline_mode = #tpu.pipeline_mode<synchronous>, transform_indices = @transform_1, window_bounds = array<i64: 3, 1152, 128>}, {pipeline_mode = #tpu.pipeline_mode<synchronous>, transform_indices = @transform_2, window_bounds = array<i64: 3, 1, 128>}, {pipeline_mode = #tpu.pipeline_mode<synchronous>, transform_indices = @transform_3, window_bounds = array<i64: 3, 1, 128>}, {pipeline_mode = #tpu.pipeline_mode<synchronous>, transform_indices = @transform_4, window_bounds = array<i64: 9, 256, 1>}, {pipeline_mode = #tpu.pipeline_mode<synchronous>, transform_indices = @transform_5, window_bounds = array<i64: 4, 81, 256>}, {transform_indices = @transform_6, window_bounds = array<i64: 1, 81, 128>}]} {
    %c0 = arith.constant 0 : index
    %c0_0 = arith.constant 0 : index
    %c0_1 = arith.constant 0 : index
    %0 = vector.load %arg1[%c0, %c0_0, %c0_1] : memref<1x256x128xf32, #tpu.memory_space<vmem>>, vector<1x256x128xf32>
    %1 = vector.shape_cast %0 : vector<1x256x128xf32> to vector<256x128xf32>
    %c17_i32 = arith.constant 17 : i32
    %2 = tpu.dynamic_rotate %1 by %c17_i32 dim 0 : vector<256x128xf32>, i32 -> vector<256x128xf32>
    %c0_2 = arith.constant 0 : index
    %c0_3 = arith.constant 0 : index
    %c0_4 = arith.constant 0 : index
    %3 = vector.load %arg5[%c0_2, %c0_3, %c0_4] : memref<9x256x1xf32, #tpu.memory_space<vmem>>, vector<1x256x1xf32>
    %4 = vector.shape_cast %3 : vector<1x256x1xf32> to vector<256x1xf32>
    %5 = vector.broadcast %4 : vector<256x1xf32> to vector<256x128xf32>
    %6 = arith.mulf %2, %5 : vector<256x128xf32>
    %c16_i32 = arith.constant 16 : i32
    %7 = tpu.dynamic_rotate %1 by %c16_i32 dim 0 : vector<256x128xf32>, i32 -> vector<256x128xf32>
    %c1 = arith.constant 1 : index
    %c0_5 = arith.constant 0 : index
    %c0_6 = arith.constant 0 : index
    %8 = vector.load %arg5[%c1, %c0_5, %c0_6] : memref<9x256x1xf32, #tpu.memory_space<vmem>>, vector<1x256x1xf32>
    %9 = vector.shape_cast %8 : vector<1x256x1xf32> to vector<256x1xf32>
    %10 = vector.broadcast %9 : vector<256x1xf32> to vector<256x128xf32>
    %11 = arith.mulf %7, %10 : vector<256x128xf32>
    %c15_i32 = arith.constant 15 : i32
    %12 = tpu.dynamic_rotate %1 by %c15_i32 dim 0 : vector<256x128xf32>, i32 -> vector<256x128xf32>
    %c2 = arith.constant 2 : index
    %c0_7 = arith.constant 0 : index
    %c0_8 = arith.constant 0 : index
    %13 = vector.load %arg5[%c2, %c0_7, %c0_8] : memref<9x256x1xf32, #tpu.memory_space<vmem>>, vector<1x256x1xf32>
    %14 = vector.shape_cast %13 : vector<1x256x1xf32> to vector<256x1xf32>
    %15 = vector.broadcast %14 : vector<256x1xf32> to vector<256x128xf32>
    %16 = arith.mulf %12, %15 : vector<256x128xf32>
    %c1_i32 = arith.constant 1 : i32
    %17 = tpu.dynamic_rotate %1 by %c1_i32 dim 0 : vector<256x128xf32>, i32 -> vector<256x128xf32>
    %c3 = arith.constant 3 : index
    %c0_9 = arith.constant 0 : index
    %c0_10 = arith.constant 0 : index
    %18 = vector.load %arg5[%c3, %c0_9, %c0_10] : memref<9x256x1xf32, #tpu.memory_space<vmem>>, vector<1x256x1xf32>
    %19 = vector.shape_cast %18 : vector<1x256x1xf32> to vector<256x1xf32>
    %20 = vector.broadcast %19 : vector<256x1xf32> to vector<256x128xf32>
    %21 = arith.mulf %17, %20 : vector<256x128xf32>
    %c255_i32 = arith.constant 255 : i32
    %22 = tpu.dynamic_rotate %1 by %c255_i32 dim 0 : vector<256x128xf32>, i32 -> vector<256x128xf32>
    %c5 = arith.constant 5 : index
    %c0_11 = arith.constant 0 : index
    %c0_12 = arith.constant 0 : index
    %23 = vector.load %arg5[%c5, %c0_11, %c0_12] : memref<9x256x1xf32, #tpu.memory_space<vmem>>, vector<1x256x1xf32>
    %24 = vector.shape_cast %23 : vector<1x256x1xf32> to vector<256x1xf32>
    %25 = vector.broadcast %24 : vector<256x1xf32> to vector<256x128xf32>
    %26 = arith.mulf %22, %25 : vector<256x128xf32>
    %c241_i32 = arith.constant 241 : i32
    %27 = tpu.dynamic_rotate %1 by %c241_i32 dim 0 : vector<256x128xf32>, i32 -> vector<256x128xf32>
    %c6 = arith.constant 6 : index
    %c0_13 = arith.constant 0 : index
    %c0_14 = arith.constant 0 : index
    %28 = vector.load %arg5[%c6, %c0_13, %c0_14] : memref<9x256x1xf32, #tpu.memory_space<vmem>>, vector<1x256x1xf32>
    %29 = vector.shape_cast %28 : vector<1x256x1xf32> to vector<256x1xf32>
    %30 = vector.broadcast %29 : vector<256x1xf32> to vector<256x128xf32>
    %31 = arith.mulf %27, %30 : vector<256x128xf32>
    %c240_i32 = arith.constant 240 : i32
    %32 = tpu.dynamic_rotate %1 by %c240_i32 dim 0 : vector<256x128xf32>, i32 -> vector<256x128xf32>
    %c7 = arith.constant 7 : index
    %c0_15 = arith.constant 0 : index
    %c0_16 = arith.constant 0 : index
    %33 = vector.load %arg5[%c7, %c0_15, %c0_16] : memref<9x256x1xf32, #tpu.memory_space<vmem>>, vector<1x256x1xf32>
    %34 = vector.shape_cast %33 : vector<1x256x1xf32> to vector<256x1xf32>
    %35 = vector.broadcast %34 : vector<256x1xf32> to vector<256x128xf32>
    %36 = arith.mulf %32, %35 : vector<256x128xf32>
    %c239_i32 = arith.constant 239 : i32
    %37 = tpu.dynamic_rotate %1 by %c239_i32 dim 0 : vector<256x128xf32>, i32 -> vector<256x128xf32>
    %c8 = arith.constant 8 : index
    %c0_17 = arith.constant 0 : index
    %c0_18 = arith.constant 0 : index
    %38 = vector.load %arg5[%c8, %c0_17, %c0_18] : memref<9x256x1xf32, #tpu.memory_space<vmem>>, vector<1x256x1xf32>
    %39 = vector.shape_cast %38 : vector<1x256x1xf32> to vector<256x1xf32>
    %40 = vector.broadcast %39 : vector<256x1xf32> to vector<256x128xf32>
    %41 = arith.mulf %37, %40 : vector<256x128xf32>
    %42 = tpu.concatenate %6, %11, %16, %21, %1, %26, %31, %36, %41 in 1 : vector<256x128xf32>, vector<256x128xf32>, vector<256x128xf32>, vector<256x128xf32>, vector<256x128xf32>, vector<256x128xf32>, vector<256x128xf32>, vector<256x128xf32>, vector<256x128xf32> -> vector<256x1152xf32>
    %c0_19 = arith.constant 0 : index
    %c0_20 = arith.constant 0 : index
    %c0_21 = arith.constant 0 : index
    %43 = vector.load %arg2[%c0_19, %c0_20, %c0_21] : memref<3x1152x128xf32, #tpu.memory_space<vmem>>, vector<1x1152x128xf32>
    %44 = vector.shape_cast %43 : vector<1x1152x128xf32> to vector<1152x128xf32>
    %cst = arith.constant dense<0.000000e+00> : vector<256x128xf32>
    %45 = tpu.matmul %42, %44, %cst {dimension_numbers = #tpu.dot_dimension_numbers<[1], [0], [0], [1], [0, 0, 1, 1], [], []>} : vector<256x1152xf32>, vector<1152x128xf32>, vector<256x128xf32> -> vector<256x128xf32>
    %c0_22 = arith.constant 0 : index
    %c0_23 = arith.constant 0 : index
    %c0_24 = arith.constant 0 : index
    %46 = vector.load %arg3[%c0_22, %c0_23, %c0_24] : memref<3x1x128xf32, #tpu.memory_space<vmem>>, vector<1x1x128xf32>
    %47 = vector.shape_cast %46 : vector<1x1x128xf32> to vector<1x128xf32>
    %48 = vector.broadcast %47 : vector<1x128xf32> to vector<256x128xf32>
    %49 = arith.mulf %45, %48 : vector<256x128xf32>
    %c0_25 = arith.constant 0 : index
    %c0_26 = arith.constant 0 : index
    %c0_27 = arith.constant 0 : index
    %50 = vector.load %arg4[%c0_25, %c0_26, %c0_27] : memref<3x1x128xf32, #tpu.memory_space<vmem>>, vector<1x1x128xf32>
    %51 = vector.shape_cast %50 : vector<1x1x128xf32> to vector<1x128xf32>
    %52 = vector.broadcast %51 : vector<1x128xf32> to vector<256x128xf32>
    %53 = arith.addf %49, %52 : vector<256x128xf32>
    %cst_28 = arith.constant 0.000000e+00 : f32
    %54 = vector.broadcast %cst_28 : f32 to vector<256x128xf32>
    %55 = arith.maximumf %53, %54 : vector<256x128xf32>
    %c17_i32_29 = arith.constant 17 : i32
    %56 = tpu.dynamic_rotate %55 by %c17_i32_29 dim 0 : vector<256x128xf32>, i32 -> vector<256x128xf32>
    %c0_30 = arith.constant 0 : index
    %c0_31 = arith.constant 0 : index
    %c0_32 = arith.constant 0 : index
    %57 = vector.load %arg5[%c0_30, %c0_31, %c0_32] : memref<9x256x1xf32, #tpu.memory_space<vmem>>, vector<1x256x1xf32>
    %58 = vector.shape_cast %57 : vector<1x256x1xf32> to vector<256x1xf32>
    %59 = vector.broadcast %58 : vector<256x1xf32> to vector<256x128xf32>
    %60 = arith.mulf %56, %59 : vector<256x128xf32>
    %c16_i32_33 = arith.constant 16 : i32
    %61 = tpu.dynamic_rotate %55 by %c16_i32_33 dim 0 : vector<256x128xf32>, i32 -> vector<256x128xf32>
    %c1_34 = arith.constant 1 : index
    %c0_35 = arith.constant 0 : index
    %c0_36 = arith.constant 0 : index
    %62 = vector.load %arg5[%c1_34, %c0_35, %c0_36] : memref<9x256x1xf32, #tpu.memory_space<vmem>>, vector<1x256x1xf32>
    %63 = vector.shape_cast %62 : vector<1x256x1xf32> to vector<256x1xf32>
    %64 = vector.broadcast %63 : vector<256x1xf32> to vector<256x128xf32>
    %65 = arith.mulf %61, %64 : vector<256x128xf32>
    %c15_i32_37 = arith.constant 15 : i32
    %66 = tpu.dynamic_rotate %55 by %c15_i32_37 dim 0 : vector<256x128xf32>, i32 -> vector<256x128xf32>
    %c2_38 = arith.constant 2 : index
    %c0_39 = arith.constant 0 : index
    %c0_40 = arith.constant 0 : index
    %67 = vector.load %arg5[%c2_38, %c0_39, %c0_40] : memref<9x256x1xf32, #tpu.memory_space<vmem>>, vector<1x256x1xf32>
    %68 = vector.shape_cast %67 : vector<1x256x1xf32> to vector<256x1xf32>
    %69 = vector.broadcast %68 : vector<256x1xf32> to vector<256x128xf32>
    %70 = arith.mulf %66, %69 : vector<256x128xf32>
    %c1_i32_41 = arith.constant 1 : i32
    %71 = tpu.dynamic_rotate %55 by %c1_i32_41 dim 0 : vector<256x128xf32>, i32 -> vector<256x128xf32>
    %c3_42 = arith.constant 3 : index
    %c0_43 = arith.constant 0 : index
    %c0_44 = arith.constant 0 : index
    %72 = vector.load %arg5[%c3_42, %c0_43, %c0_44] : memref<9x256x1xf32, #tpu.memory_space<vmem>>, vector<1x256x1xf32>
    %73 = vector.shape_cast %72 : vector<1x256x1xf32> to vector<256x1xf32>
    %74 = vector.broadcast %73 : vector<256x1xf32> to vector<256x128xf32>
    %75 = arith.mulf %71, %74 : vector<256x128xf32>
    %c255_i32_45 = arith.constant 255 : i32
    %76 = tpu.dynamic_rotate %55 by %c255_i32_45 dim 0 : vector<256x128xf32>, i32 -> vector<256x128xf32>
    %c5_46 = arith.constant 5 : index
    %c0_47 = arith.constant 0 : index
    %c0_48 = arith.constant 0 : index
    %77 = vector.load %arg5[%c5_46, %c0_47, %c0_48] : memref<9x256x1xf32, #tpu.memory_space<vmem>>, vector<1x256x1xf32>
    %78 = vector.shape_cast %77 : vector<1x256x1xf32> to vector<256x1xf32>
    %79 = vector.broadcast %78 : vector<256x1xf32> to vector<256x128xf32>
    %80 = arith.mulf %76, %79 : vector<256x128xf32>
    %c241_i32_49 = arith.constant 241 : i32
    %81 = tpu.dynamic_rotate %55 by %c241_i32_49 dim 0 : vector<256x128xf32>, i32 -> vector<256x128xf32>
    %c6_50 = arith.constant 6 : index
    %c0_51 = arith.constant 0 : index
    %c0_52 = arith.constant 0 : index
    %82 = vector.load %arg5[%c6_50, %c0_51, %c0_52] : memref<9x256x1xf32, #tpu.memory_space<vmem>>, vector<1x256x1xf32>
    %83 = vector.shape_cast %82 : vector<1x256x1xf32> to vector<256x1xf32>
    %84 = vector.broadcast %83 : vector<256x1xf32> to vector<256x128xf32>
    %85 = arith.mulf %81, %84 : vector<256x128xf32>
    %c240_i32_53 = arith.constant 240 : i32
    %86 = tpu.dynamic_rotate %55 by %c240_i32_53 dim 0 : vector<256x128xf32>, i32 -> vector<256x128xf32>
    %c7_54 = arith.constant 7 : index
    %c0_55 = arith.constant 0 : index
    %c0_56 = arith.constant 0 : index
    %87 = vector.load %arg5[%c7_54, %c0_55, %c0_56] : memref<9x256x1xf32, #tpu.memory_space<vmem>>, vector<1x256x1xf32>
    %88 = vector.shape_cast %87 : vector<1x256x1xf32> to vector<256x1xf32>
    %89 = vector.broadcast %88 : vector<256x1xf32> to vector<256x128xf32>
    %90 = arith.mulf %86, %89 : vector<256x128xf32>
    %c239_i32_57 = arith.constant 239 : i32
    %91 = tpu.dynamic_rotate %55 by %c239_i32_57 dim 0 : vector<256x128xf32>, i32 -> vector<256x128xf32>
    %c8_58 = arith.constant 8 : index
    %c0_59 = arith.constant 0 : index
    %c0_60 = arith.constant 0 : index
    %92 = vector.load %arg5[%c8_58, %c0_59, %c0_60] : memref<9x256x1xf32, #tpu.memory_space<vmem>>, vector<1x256x1xf32>
    %93 = vector.shape_cast %92 : vector<1x256x1xf32> to vector<256x1xf32>
    %94 = vector.broadcast %93 : vector<256x1xf32> to vector<256x128xf32>
    %95 = arith.mulf %91, %94 : vector<256x128xf32>
    %96 = tpu.concatenate %60, %65, %70, %75, %55, %80, %85, %90, %95 in 1 : vector<256x128xf32>, vector<256x128xf32>, vector<256x128xf32>, vector<256x128xf32>, vector<256x128xf32>, vector<256x128xf32>, vector<256x128xf32>, vector<256x128xf32>, vector<256x128xf32> -> vector<256x1152xf32>
    %c1_61 = arith.constant 1 : index
    %c0_62 = arith.constant 0 : index
    %c0_63 = arith.constant 0 : index
    %97 = vector.load %arg2[%c1_61, %c0_62, %c0_63] : memref<3x1152x128xf32, #tpu.memory_space<vmem>>, vector<1x1152x128xf32>
    %98 = vector.shape_cast %97 : vector<1x1152x128xf32> to vector<1152x128xf32>
    %cst_64 = arith.constant dense<0.000000e+00> : vector<256x128xf32>
    %99 = tpu.matmul %96, %98, %cst_64 {dimension_numbers = #tpu.dot_dimension_numbers<[1], [0], [0], [1], [0, 0, 1, 1], [], []>} : vector<256x1152xf32>, vector<1152x128xf32>, vector<256x128xf32> -> vector<256x128xf32>
    %c1_65 = arith.constant 1 : index
    %c0_66 = arith.constant 0 : index
    %c0_67 = arith.constant 0 : index
    %100 = vector.load %arg3[%c1_65, %c0_66, %c0_67] : memref<3x1x128xf32, #tpu.memory_space<vmem>>, vector<1x1x128xf32>
    %101 = vector.shape_cast %100 : vector<1x1x128xf32> to vector<1x128xf32>
    %102 = vector.broadcast %101 : vector<1x128xf32> to vector<256x128xf32>
    %103 = arith.mulf %99, %102 : vector<256x128xf32>
    %c1_68 = arith.constant 1 : index
    %c0_69 = arith.constant 0 : index
    %c0_70 = arith.constant 0 : index
    %104 = vector.load %arg4[%c1_68, %c0_69, %c0_70] : memref<3x1x128xf32, #tpu.memory_space<vmem>>, vector<1x1x128xf32>
    %105 = vector.shape_cast %104 : vector<1x1x128xf32> to vector<1x128xf32>
    %106 = vector.broadcast %105 : vector<1x128xf32> to vector<256x128xf32>
    %107 = arith.addf %103, %106 : vector<256x128xf32>
    %cst_71 = arith.constant 0.000000e+00 : f32
    %108 = vector.broadcast %cst_71 : f32 to vector<256x128xf32>
    %109 = arith.maximumf %107, %108 : vector<256x128xf32>
    %c17_i32_72 = arith.constant 17 : i32
    %110 = tpu.dynamic_rotate %109 by %c17_i32_72 dim 0 : vector<256x128xf32>, i32 -> vector<256x128xf32>
    %c0_73 = arith.constant 0 : index
    %c0_74 = arith.constant 0 : index
    %c0_75 = arith.constant 0 : index
    %111 = vector.load %arg5[%c0_73, %c0_74, %c0_75] : memref<9x256x1xf32, #tpu.memory_space<vmem>>, vector<1x256x1xf32>
    %112 = vector.shape_cast %111 : vector<1x256x1xf32> to vector<256x1xf32>
    %113 = vector.broadcast %112 : vector<256x1xf32> to vector<256x128xf32>
    %114 = arith.mulf %110, %113 : vector<256x128xf32>
    %c16_i32_76 = arith.constant 16 : i32
    %115 = tpu.dynamic_rotate %109 by %c16_i32_76 dim 0 : vector<256x128xf32>, i32 -> vector<256x128xf32>
    %c1_77 = arith.constant 1 : index
    %c0_78 = arith.constant 0 : index
    %c0_79 = arith.constant 0 : index
    %116 = vector.load %arg5[%c1_77, %c0_78, %c0_79] : memref<9x256x1xf32, #tpu.memory_space<vmem>>, vector<1x256x1xf32>
    %117 = vector.shape_cast %116 : vector<1x256x1xf32> to vector<256x1xf32>
    %118 = vector.broadcast %117 : vector<256x1xf32> to vector<256x128xf32>
    %119 = arith.mulf %115, %118 : vector<256x128xf32>
    %c15_i32_80 = arith.constant 15 : i32
    %120 = tpu.dynamic_rotate %109 by %c15_i32_80 dim 0 : vector<256x128xf32>, i32 -> vector<256x128xf32>
    %c2_81 = arith.constant 2 : index
    %c0_82 = arith.constant 0 : index
    %c0_83 = arith.constant 0 : index
    %121 = vector.load %arg5[%c2_81, %c0_82, %c0_83] : memref<9x256x1xf32, #tpu.memory_space<vmem>>, vector<1x256x1xf32>
    %122 = vector.shape_cast %121 : vector<1x256x1xf32> to vector<256x1xf32>
    %123 = vector.broadcast %122 : vector<256x1xf32> to vector<256x128xf32>
    %124 = arith.mulf %120, %123 : vector<256x128xf32>
    %c1_i32_84 = arith.constant 1 : i32
    %125 = tpu.dynamic_rotate %109 by %c1_i32_84 dim 0 : vector<256x128xf32>, i32 -> vector<256x128xf32>
    %c3_85 = arith.constant 3 : index
    %c0_86 = arith.constant 0 : index
    %c0_87 = arith.constant 0 : index
    %126 = vector.load %arg5[%c3_85, %c0_86, %c0_87] : memref<9x256x1xf32, #tpu.memory_space<vmem>>, vector<1x256x1xf32>
    %127 = vector.shape_cast %126 : vector<1x256x1xf32> to vector<256x1xf32>
    %128 = vector.broadcast %127 : vector<256x1xf32> to vector<256x128xf32>
    %129 = arith.mulf %125, %128 : vector<256x128xf32>
    %c255_i32_88 = arith.constant 255 : i32
    %130 = tpu.dynamic_rotate %109 by %c255_i32_88 dim 0 : vector<256x128xf32>, i32 -> vector<256x128xf32>
    %c5_89 = arith.constant 5 : index
    %c0_90 = arith.constant 0 : index
    %c0_91 = arith.constant 0 : index
    %131 = vector.load %arg5[%c5_89, %c0_90, %c0_91] : memref<9x256x1xf32, #tpu.memory_space<vmem>>, vector<1x256x1xf32>
    %132 = vector.shape_cast %131 : vector<1x256x1xf32> to vector<256x1xf32>
    %133 = vector.broadcast %132 : vector<256x1xf32> to vector<256x128xf32>
    %134 = arith.mulf %130, %133 : vector<256x128xf32>
    %c241_i32_92 = arith.constant 241 : i32
    %135 = tpu.dynamic_rotate %109 by %c241_i32_92 dim 0 : vector<256x128xf32>, i32 -> vector<256x128xf32>
    %c6_93 = arith.constant 6 : index
    %c0_94 = arith.constant 0 : index
    %c0_95 = arith.constant 0 : index
    %136 = vector.load %arg5[%c6_93, %c0_94, %c0_95] : memref<9x256x1xf32, #tpu.memory_space<vmem>>, vector<1x256x1xf32>
    %137 = vector.shape_cast %136 : vector<1x256x1xf32> to vector<256x1xf32>
    %138 = vector.broadcast %137 : vector<256x1xf32> to vector<256x128xf32>
    %139 = arith.mulf %135, %138 : vector<256x128xf32>
    %c240_i32_96 = arith.constant 240 : i32
    %140 = tpu.dynamic_rotate %109 by %c240_i32_96 dim 0 : vector<256x128xf32>, i32 -> vector<256x128xf32>
    %c7_97 = arith.constant 7 : index
    %c0_98 = arith.constant 0 : index
    %c0_99 = arith.constant 0 : index
    %141 = vector.load %arg5[%c7_97, %c0_98, %c0_99] : memref<9x256x1xf32, #tpu.memory_space<vmem>>, vector<1x256x1xf32>
    %142 = vector.shape_cast %141 : vector<1x256x1xf32> to vector<256x1xf32>
    %143 = vector.broadcast %142 : vector<256x1xf32> to vector<256x128xf32>
    %144 = arith.mulf %140, %143 : vector<256x128xf32>
    %c239_i32_100 = arith.constant 239 : i32
    %145 = tpu.dynamic_rotate %109 by %c239_i32_100 dim 0 : vector<256x128xf32>, i32 -> vector<256x128xf32>
    %c8_101 = arith.constant 8 : index
    %c0_102 = arith.constant 0 : index
    %c0_103 = arith.constant 0 : index
    %146 = vector.load %arg5[%c8_101, %c0_102, %c0_103] : memref<9x256x1xf32, #tpu.memory_space<vmem>>, vector<1x256x1xf32>
    %147 = vector.shape_cast %146 : vector<1x256x1xf32> to vector<256x1xf32>
    %148 = vector.broadcast %147 : vector<256x1xf32> to vector<256x128xf32>
    %149 = arith.mulf %145, %148 : vector<256x128xf32>
    %150 = tpu.concatenate %114, %119, %124, %129, %109, %134, %139, %144, %149 in 1 : vector<256x128xf32>, vector<256x128xf32>, vector<256x128xf32>, vector<256x128xf32>, vector<256x128xf32>, vector<256x128xf32>, vector<256x128xf32>, vector<256x128xf32>, vector<256x128xf32> -> vector<256x1152xf32>
    %c2_104 = arith.constant 2 : index
    %c0_105 = arith.constant 0 : index
    %c0_106 = arith.constant 0 : index
    %151 = vector.load %arg2[%c2_104, %c0_105, %c0_106] : memref<3x1152x128xf32, #tpu.memory_space<vmem>>, vector<1x1152x128xf32>
    %152 = vector.shape_cast %151 : vector<1x1152x128xf32> to vector<1152x128xf32>
    %cst_107 = arith.constant dense<0.000000e+00> : vector<256x128xf32>
    %153 = tpu.matmul %150, %152, %cst_107 {dimension_numbers = #tpu.dot_dimension_numbers<[1], [0], [0], [1], [0, 0, 1, 1], [], []>} : vector<256x1152xf32>, vector<1152x128xf32>, vector<256x128xf32> -> vector<256x128xf32>
    %c2_108 = arith.constant 2 : index
    %c0_109 = arith.constant 0 : index
    %c0_110 = arith.constant 0 : index
    %154 = vector.load %arg3[%c2_108, %c0_109, %c0_110] : memref<3x1x128xf32, #tpu.memory_space<vmem>>, vector<1x1x128xf32>
    %155 = vector.shape_cast %154 : vector<1x1x128xf32> to vector<1x128xf32>
    %156 = vector.broadcast %155 : vector<1x128xf32> to vector<256x128xf32>
    %157 = arith.mulf %153, %156 : vector<256x128xf32>
    %c2_111 = arith.constant 2 : index
    %c0_112 = arith.constant 0 : index
    %c0_113 = arith.constant 0 : index
    %158 = vector.load %arg4[%c2_111, %c0_112, %c0_113] : memref<3x1x128xf32, #tpu.memory_space<vmem>>, vector<1x1x128xf32>
    %159 = vector.shape_cast %158 : vector<1x1x128xf32> to vector<1x128xf32>
    %160 = vector.broadcast %159 : vector<1x128xf32> to vector<256x128xf32>
    %161 = arith.addf %157, %160 : vector<256x128xf32>
    %cst_114 = arith.constant 0.000000e+00 : f32
    %162 = vector.broadcast %cst_114 : f32 to vector<256x128xf32>
    %163 = arith.maximumf %161, %162 : vector<256x128xf32>
    %164 = arith.addf %163, %1 : vector<256x128xf32>
    %c0_115 = arith.constant 0 : index
    %c0_116 = arith.constant 0 : index
    %c0_117 = arith.constant 0 : index
    %165 = vector.load %arg6[%c0_115, %c0_116, %c0_117] : memref<4x81x256xf32, #tpu.memory_space<vmem>>, vector<1x81x256xf32>
    %166 = vector.shape_cast %165 : vector<1x81x256xf32> to vector<81x256xf32>
    %cst_118 = arith.constant dense<0.000000e+00> : vector<81x128xf32>
    %167 = tpu.matmul %166, %164, %cst_118 {dimension_numbers = #tpu.dot_dimension_numbers<[1], [0], [0], [1], [0, 0, 1, 1], [], []>} : vector<81x256xf32>, vector<256x128xf32>, vector<81x128xf32> -> vector<81x128xf32>
    %c1_119 = arith.constant 1 : index
    %c0_120 = arith.constant 0 : index
    %c0_121 = arith.constant 0 : index
    %168 = vector.load %arg6[%c1_119, %c0_120, %c0_121] : memref<4x81x256xf32, #tpu.memory_space<vmem>>, vector<1x81x256xf32>
    %169 = vector.shape_cast %168 : vector<1x81x256xf32> to vector<81x256xf32>
    %cst_122 = arith.constant dense<0.000000e+00> : vector<81x128xf32>
    %170 = tpu.matmul %169, %164, %cst_122 {dimension_numbers = #tpu.dot_dimension_numbers<[1], [0], [0], [1], [0, 0, 1, 1], [], []>} : vector<81x256xf32>, vector<256x128xf32>, vector<81x128xf32> -> vector<81x128xf32>
    %171 = arith.maximumf %167, %170 : vector<81x128xf32>
    %c2_123 = arith.constant 2 : index
    %c0_124 = arith.constant 0 : index
    %c0_125 = arith.constant 0 : index
    %172 = vector.load %arg6[%c2_123, %c0_124, %c0_125] : memref<4x81x256xf32, #tpu.memory_space<vmem>>, vector<1x81x256xf32>
    %173 = vector.shape_cast %172 : vector<1x81x256xf32> to vector<81x256xf32>
    %cst_126 = arith.constant dense<0.000000e+00> : vector<81x128xf32>
    %174 = tpu.matmul %173, %164, %cst_126 {dimension_numbers = #tpu.dot_dimension_numbers<[1], [0], [0], [1], [0, 0, 1, 1], [], []>} : vector<81x256xf32>, vector<256x128xf32>, vector<81x128xf32> -> vector<81x128xf32>
    %175 = arith.maximumf %171, %174 : vector<81x128xf32>
    %c3_127 = arith.constant 3 : index
    %c0_128 = arith.constant 0 : index
    %c0_129 = arith.constant 0 : index
    %176 = vector.load %arg6[%c3_127, %c0_128, %c0_129] : memref<4x81x256xf32, #tpu.memory_space<vmem>>, vector<1x81x256xf32>
    %177 = vector.shape_cast %176 : vector<1x81x256xf32> to vector<81x256xf32>
    %cst_130 = arith.constant dense<0.000000e+00> : vector<81x128xf32>
    %178 = tpu.matmul %177, %164, %cst_130 {dimension_numbers = #tpu.dot_dimension_numbers<[1], [0], [0], [1], [0, 0, 1, 1], [], []>} : vector<81x256xf32>, vector<256x128xf32>, vector<81x128xf32> -> vector<81x128xf32>
    %179 = arith.maximumf %175, %178 : vector<81x128xf32>
    %c0_131 = arith.constant 0 : index
    %c0_132 = arith.constant 0 : index
    %c0_133 = arith.constant 0 : index
    %180 = vector.load %arg7[%c0_131, %c0_132, %c0_133] : memref<1x81x128xf32, #tpu.memory_space<vmem>>, vector<1x81x128xf32>
    %181 = vector.shape_cast %180 : vector<1x81x128xf32> to vector<81x128xf32>
    %182 = vector.shape_cast %179 : vector<81x128xf32> to vector<1x81x128xf32>
    tpu.vector_store %arg7[%c0_131, %c0_132, %c0_133], %182 {strides = array<i32>} : memref<1x81x128xf32, #tpu.memory_space<vmem>>, vector<1x81x128xf32>,
    return
  }
  func.func @transform_0(%arg0: i32) -> (i32, i32, i32) {
    %c0_i32 = arith.constant 0 : i32
    %c0_i32_0 = arith.constant 0 : i32
    %c0_i32_1 = arith.constant 0 : i32
    return %arg0, %c0_i32, %c0_i32_0 : i32, i32, i32
  }
  func.func @transform_1(%arg0: i32) -> (i32, i32, i32) {
    %c0_i32 = arith.constant 0 : i32
    %c0_i32_0 = arith.constant 0 : i32
    %c0_i32_1 = arith.constant 0 : i32
    %c0_i32_2 = arith.constant 0 : i32
    return %c0_i32, %c0_i32_0, %c0_i32_1 : i32, i32, i32
  }
  func.func @transform_2(%arg0: i32) -> (i32, i32, i32) {
    %c0_i32 = arith.constant 0 : i32
    %c0_i32_0 = arith.constant 0 : i32
    %c0_i32_1 = arith.constant 0 : i32
    %c0_i32_2 = arith.constant 0 : i32
    return %c0_i32, %c0_i32_0, %c0_i32_1 : i32, i32, i32
  }
  func.func @transform_3(%arg0: i32) -> (i32, i32, i32) {
    %c0_i32 = arith.constant 0 : i32
    %c0_i32_0 = arith.constant 0 : i32
    %c0_i32_1 = arith.constant 0 : i32
    %c0_i32_2 = arith.constant 0 : i32
    return %c0_i32, %c0_i32_0, %c0_i32_1 : i32, i32, i32
  }
  func.func @transform_4(%arg0: i32) -> (i32, i32, i32) {
    %c0_i32 = arith.constant 0 : i32
    %c0_i32_0 = arith.constant 0 : i32
    %c0_i32_1 = arith.constant 0 : i32
    %c0_i32_2 = arith.constant 0 : i32
    return %c0_i32, %c0_i32_0, %c0_i32_1 : i32, i32, i32
  }
  func.func @transform_5(%arg0: i32) -> (i32, i32, i32) {
    %c0_i32 = arith.constant 0 : i32
    %c0_i32_0 = arith.constant 0 : i32
    %c0_i32_1 = arith.constant 0 : i32
    %c0_i32_2 = arith.constant 0 : i32
    return %c0_i32, %c0_i32_0, %c0_i32_1 : i32, i32, i32
  }
  func.func @transform_6(%arg0: i32) -> (i32, i32, i32) {
    %c0_i32 = arith.constant 0 : i32
    %c0_i32_0 = arith.constant 0 : i32
    %c0_i32_1 = arith.constant 0 : i32
    return %arg0, %c0_i32, %c0_i32_0 : i32, i32, i32
  }
}

</mosaic_0001>

<llo_original>
// kernel: tpu_custom_call.1
$region0: #{tpu_custom_call.1}
  #allocation0 [shape = 'u32[]', space=smem, size = 0x4, offset = 0x4, fixed_abs, tag = 'smem constant byte address 0x4 - core index']
  #allocation1 [shape = 'u32[72,128]{1,0:T(1,128)}', space=vmem, size = 0x9000, scoped, tag = 'internal scratch']
  %s0 = inlined_call_operand.hbm [shape: f32[1,256,128], index: 0, kind: input, shape index: {}]
  %s1 = inlined_call_operand.vmem [shape: f32[3,1152,128], index: 1, kind: input, shape index: {}]
  %s2 = inlined_call_operand.vmem [shape: f32[3,1,128], index: 2, kind: input, shape index: {}]
  %s3 = inlined_call_operand.vmem [shape: f32[3,1,128], index: 3, kind: input, shape index: {}]
  %s4 = inlined_call_operand.vmem [shape: f32[9,256,1], index: 4, kind: input, shape index: {}]
  %s5 = inlined_call_operand.vmem [shape: f32[4,81,256], index: 5, kind: input, shape index: {}]
  %s6 = inlined_call_operand.vmem [shape: f32[1,81,128], index: 6, kind: output, shape index: {}]
  %s7 = sld [smem:[#allocation0]]
  $region38: #{tpu_custom_call.1} parent=0
    _
  %s9 = ssub.s32 1, %s7
  %s10 = scalar_select 0, %s9, %s7
  $region1: #{tpu_custom_call.1} parent=0
    #allocation2 [shape = 'u8[131072]{0}', space=vmem, size = 0x20000, scoped, tag = 'input window, operand 0, single buffered']
    #allocation3 [shape = 's32[1]{0}', space=sflag, size = 0x4, scoped, tag = 'scoped memory for tpu_custom_call.1']
    %11 = vsyncpa [#allocation3], 0
    // Predicated region
    $region2: #{tpu_custom_call.1} parent=1 // pred_check
      _
    $region3: #{tpu_custom_call.1} parent=1 // pred_check_branch
      %13 = sbr.rel (0) target = $region5
    $region4: #{tpu_custom_call.1} parent=1 // pred_region
      %15 = vsyncadd [#allocation3], 0
      %s16 = sshll.u32 %s0, 4
      %s17 = int_to_ptr.hbm [resolvable:$true] %s16
      %s18 = sshll.u32 [#allocation2], 4
      %s19 = int_to_ptr.vmem [resolvable:$true] %s18
      %24 = dma.hbm_to_vmem [thread:$0]  %s17, 4096, %s19, [#allocation3], 128, 128, 8
    $region5: #{tpu_custom_call.1} parent=1 // pred_fallthru
      _
    // Predicated region
    $region6: #{tpu_custom_call.1} parent=1 // pred_check
      _
    $region7: #{tpu_custom_call.1} parent=1 // pred_check_branch
      %26 = sbr.rel (0) target = $region9
    $region8: #{tpu_custom_call.1} parent=1 // pred_region
      _
    $region9: #{tpu_custom_call.1} parent=1 // pred_fallthru
      _
    // Predicated region
    $region10: #{tpu_custom_call.1} parent=1 // pred_check
      _
    $region11: #{tpu_custom_call.1} parent=1 // pred_check_branch
      %28 = sbr.rel (0) target = $region13
    $region12: #{tpu_custom_call.1} parent=1 // pred_region
      _
    $region13: #{tpu_custom_call.1} parent=1 // pred_fallthru
      _
    // Predicated region
    $region14: #{tpu_custom_call.1} parent=1 // pred_check
      _
    $region15: #{tpu_custom_call.1} parent=1 // pred_check_branch
      %30 = sbr.rel (0) target = $region17
    $region16: #{tpu_custom_call.1} parent=1 // pred_region
      _
    $region17: #{tpu_custom_call.1} parent=1 // pred_fallthru
      _
    // Predicated region
    $region18: #{tpu_custom_call.1} parent=1 // pred_check
      _
    $region19: #{tpu_custom_call.1} parent=1 // pred_check_branch
      %32 = sbr.rel (0) target = $region21
    $region20: #{tpu_custom_call.1} parent=1 // pred_region
      _
    $region21: #{tpu_custom_call.1} parent=1 // pred_fallthru
      _
    // Predicated region
    $region22: #{tpu_custom_call.1} parent=1 // pred_check
      _
    $region23: #{tpu_custom_call.1} parent=1 // pred_check_branch
      %34 = sbr.rel (0) target = $region25
    $region24: #{tpu_custom_call.1} parent=1 // pred_region
      _
    $region25: #{tpu_custom_call.1} parent=1 // pred_fallthru
      _
    // Predicated region
    $region26: #{tpu_custom_call.1} parent=1 // pred_check
      _
    $region27: #{tpu_custom_call.1} parent=1 // pred_check_branch
      %36 = sbr.rel (0) target = $region29
    $region28: #{tpu_custom_call.1} parent=1 // pred_region
      %38 = dma.done [#allocation3], 4096
    $region29: #{tpu_custom_call.1} parent=1 // pred_fallthru
      _
    %v39 = vld [vmem:[#allocation2] sm:$0xff]
    %v40 = vld [vmem:[#allocation2 + $0x8] sm:$0xff]
    %v41 = vld [vmem:[#allocation2 + $0x10] sm:$0xff]
    %v42 = vld [vmem:[#allocation2 + $0x18] sm:$0xff]
    %v43 = vld [vmem:[#allocation2 + $0x20] sm:$0xff]
    %v44 = vld [vmem:[#allocation2 + $0x28] sm:$0xff]
    %v45 = vld [vmem:[#allocation2 + $0x30] sm:$0xff]
    %v46 = vld [vmem:[#allocation2 + $0x38] sm:$0xff]
    %v47 = vld [vmem:[#allocation2 + $0x40] sm:$0xff]
    %v48 = vld [vmem:[#allocation2 + $0x48] sm:$0xff]
    %v49 = vld [vmem:[#allocation2 + $0x50] sm:$0xff]
    %v50 = vld [vmem:[#allocation2 + $0x58] sm:$0xff]
    %v51 = vld [vmem:[#allocation2 + $0x60] sm:$0xff]
    %v52 = vld [vmem:[#allocation2 + $0x68] sm:$0xff]
    %v53 = vld [vmem:[#allocation2 + $0x70] sm:$0xff]
    %v54 = vld [vmem:[#allocation2 + $0x78] sm:$0xff]
    %v55 = vld [vmem:[#allocation2 + $0x80] sm:$0xff]
    %v56 = vld [vmem:[#allocation2 + $0x88] sm:$0xff]
    %v57 = vld [vmem:[#allocation2 + $0x90] sm:$0xff]
    %v58 = vld [vmem:[#allocation2 + $0x98] sm:$0xff]
    %v59 = vld [vmem:[#allocation2 + $0xa0] sm:$0xff]
    %v60 = vld [vmem:[#allocation2 + $0xa8] sm:$0xff]
    %v61 = vld [vmem:[#allocation2 + $0xb0] sm:$0xff]
    %v62 = vld [vmem:[#allocation2 + $0xb8] sm:$0xff]
    %v63 = vld [vmem:[#allocation2 + $0xc0] sm:$0xff]
    %v64 = vld [vmem:[#allocation2 + $0xc8] sm:$0xff]
    %v65 = vld [vmem:[#allocation2 + $0xd0] sm:$0xff]
    %v66 = vld [vmem:[#allocation2 + $0xd8] sm:$0xff]
    %v67 = vld [vmem:[#allocation2 + $0xe0] sm:$0xff]
    %v68 = vld [vmem:[#allocation2 + $0xe8] sm:$0xff]
    %v69 = vld [vmem:[#allocation2 + $0xf0] sm:$0xff]
    %v70 = vld [vmem:[#allocation2 + $0xf8] sm:$0xff]
    %v71 = vrot.slane %v39, 7
    %v72 = vrot.slane %v40, 7
    %v73 = vrot.slane %v41, 7
    %v74 = vrot.slane %v42, 7
    %v75 = vrot.slane %v43, 7
    %v76 = vrot.slane %v44, 7
    %v77 = vrot.slane %v45, 7
    %v78 = vrot.slane %v46, 7
    %v79 = vrot.slane %v47, 7
    %v80 = vrot.slane %v48, 7
    %v81 = vrot.slane %v49, 7
    %v82 = vrot.slane %v50, 7
    %v83 = vrot.slane %v51, 7
    %v84 = vrot.slane %v52, 7
    %v85 = vrot.slane %v53, 7
    %v86 = vrot.slane %v54, 7
    %v87 = vrot.slane %v55, 7
    %v88 = vrot.slane %v56, 7
    %v89 = vrot.slane %v57, 7
    %v90 = vrot.slane %v58, 7
    %v91 = vrot.slane %v59, 7
    %v92 = vrot.slane %v60, 7
    %v93 = vrot.slane %v61, 7
    %v94 = vrot.slane %v62, 7
    %v95 = vrot.slane %v63, 7
    %v96 = vrot.slane %v64, 7
    %v97 = vrot.slane %v65, 7
    %v98 = vrot.slane %v66, 7
    %v99 = vrot.slane %v67, 7
    %v100 = vrot.slane %v68, 7
    %v101 = vrot.slane %v69, 7
    %v102 = vrot.slane %v70, 7
    %v103 = vlaneseq
    %v104 = vshrl.u32 %v103, 7
    %vm105 = vcmp.lt.s32.totalorder %v104, 1
    %v106 = vsel %vm105, %v101, %v102
    %v107 = vsel %vm105, %v100, %v101
    %v108 = vsel %vm105, %v99, %v100
    %v109 = vsel %vm105, %v98, %v99
    %v110 = vsel %vm105, %v97, %v98
    %v111 = vsel %vm105, %v96, %v97
    %v112 = vsel %vm105, %v95, %v96
    %v113 = vsel %vm105, %v94, %v95
    %v114 = vsel %vm105, %v93, %v94
    %v115 = vsel %vm105, %v92, %v93
    %v116 = vsel %vm105, %v91, %v92
    %v117 = vsel %vm105, %v90, %v91
    %v118 = vsel %vm105, %v89, %v90
    %v119 = vsel %vm105, %v88, %v89
    %v120 = vsel %vm105, %v87, %v88
    %v121 = vsel %vm105, %v86, %v87
    %v122 = vsel %vm105, %v85, %v86
    %v123 = vsel %vm105, %v84, %v85
    %v124 = vsel %vm105, %v83, %v84
    %v125 = vsel %vm105, %v82, %v83
    %v126 = vsel %vm105, %v81, %v82
    %v127 = vsel %vm105, %v80, %v81
    %v128 = vsel %vm105, %v79, %v80
    %v129 = vsel %vm105, %v78, %v79
    %v130 = vsel %vm105, %v77, %v78
    %v131 = vsel %vm105, %v76, %v77
    %v132 = vsel %vm105, %v75, %v76
    %v133 = vsel %vm105, %v74, %v75
    %v134 = vsel %vm105, %v73, %v74
    %v135 = vsel %vm105, %v72, %v73
    %v136 = vsel %vm105, %v71, %v72
    %v137 = vsel %vm105, %v102, %v71
    %v138 = vld [vmem:[%s4] sm:$0xff]
    %v139 = vld [vmem:[%s4 + $0x8] sm:$0xff]
    %v140 = vld [vmem:[%s4 + $0x10] sm:$0xff]
    %v141 = vld [vmem:[%s4 + $0x18] sm:$0xff]
    %v142 = vld [vmem:[%s4 + $0x20] sm:$0xff]
    %v143 = vld [vmem:[%s4 + $0x28] sm:$0xff]
    %v144 = vld [vmem:[%s4 + $0x30] sm:$0xff]
    %v145 = vld [vmem:[%s4 + $0x38] sm:$0xff]
    %v146 = vld [vmem:[%s4 + $0x40] sm:$0xff]
    %v147 = vld [vmem:[%s4 + $0x48] sm:$0xff]
    %v148 = vld [vmem:[%s4 + $0x50] sm:$0xff]
    %v149 = vld [vmem:[%s4 + $0x58] sm:$0xff]
    %v150 = vld [vmem:[%s4 + $0x60] sm:$0xff]
    %v151 = vld [vmem:[%s4 + $0x68] sm:$0xff]
    %v152 = vld [vmem:[%s4 + $0x70] sm:$0xff]
    %v153 = vld [vmem:[%s4 + $0x78] sm:$0xff]
    %v154 = vld [vmem:[%s4 + $0x80] sm:$0xff]
    %v155 = vld [vmem:[%s4 + $0x88] sm:$0xff]
    %v156 = vld [vmem:[%s4 + $0x90] sm:$0xff]
    %v157 = vld [vmem:[%s4 + $0x98] sm:$0xff]
    %v158 = vld [vmem:[%s4 + $0xa0] sm:$0xff]
    %v159 = vld [vmem:[%s4 + $0xa8] sm:$0xff]
    %v160 = vld [vmem:[%s4 + $0xb0] sm:$0xff]
    %v161 = vld [vmem:[%s4 + $0xb8] sm:$0xff]
    %v162 = vld [vmem:[%s4 + $0xc0] sm:$0xff]
    %v163 = vld [vmem:[%s4 + $0xc8] sm:$0xff]
    %v164 = vld [vmem:[%s4 + $0xd0] sm:$0xff]
    %v165 = vld [vmem:[%s4 + $0xd8] sm:$0xff]
    %v166 = vld [vmem:[%s4 + $0xe0] sm:$0xff]
    %v167 = vld [vmem:[%s4 + $0xe8] sm:$0xff]
    %v168 = vld [vmem:[%s4 + $0xf0] sm:$0xff]
    %v169 = vld [vmem:[%s4 + $0xf8] sm:$0xff]
    %171 = vset.pattern.permute.xlu0 0
    %172 = vperm.xlu0 %171, %v138
    %v173 = vpop.permute.xlu0 %172
    %176 = vset.pattern.permute.xlu0 0
    %177 = vperm.xlu0 %176, %v139
    %v178 = vpop.permute.xlu0 %177
    %181 = vset.pattern.permute.xlu0 0
    %182 = vperm.xlu0 %181, %v140
    %v183 = vpop.permute.xlu0 %182
    %186 = vset.pattern.permute.xlu0 0
    %187 = vperm.xlu0 %186, %v141
    %v188 = vpop.permute.xlu0 %187
    %191 = vset.pattern.permute.xlu0 0
    %192 = vperm.xlu0 %191, %v142
    %v193 = vpop.permute.xlu0 %192
    %196 = vset.pattern.permute.xlu0 0
    %197 = vperm.xlu0 %196, %v143
    %v198 = vpop.permute.xlu0 %197
    %201 = vset.pattern.permute.xlu0 0
    %202 = vperm.xlu0 %201, %v144
    %v203 = vpop.permute.xlu0 %202
    %206 = vset.pattern.permute.xlu0 0
    %207 = vperm.xlu0 %206, %v145
    %v208 = vpop.permute.xlu0 %207
    %211 = vset.pattern.permute.xlu0 0
    %212 = vperm.xlu0 %211, %v146
    %v213 = vpop.permute.xlu0 %212
    %216 = vset.pattern.permute.xlu0 0
    %217 = vperm.xlu0 %216, %v147
    %v218 = vpop.permute.xlu0 %217
    %221 = vset.pattern.permute.xlu0 0
    %222 = vperm.xlu0 %221, %v148
    %v223 = vpop.permute.xlu0 %222
    %226 = vset.pattern.permute.xlu0 0
    %227 = vperm.xlu0 %226, %v149
    %v228 = vpop.permute.xlu0 %227
    %231 = vset.pattern.permute.xlu0 0
    %232 = vperm.xlu0 %231, %v150
    %v233 = vpop.permute.xlu0 %232
    %236 = vset.pattern.permute.xlu0 0
    %237 = vperm.xlu0 %236, %v151
    %v238 = vpop.permute.xlu0 %237
    %241 = vset.pattern.permute.xlu0 0
    %242 = vperm.xlu0 %241, %v152
    %v243 = vpop.permute.xlu0 %242
    %246 = vset.pattern.permute.xlu0 0
    %247 = vperm.xlu0 %246, %v153
    %v248 = vpop.permute.xlu0 %247
    %251 = vset.pattern.permute.xlu0 0
    %252 = vperm.xlu0 %251, %v154
    %v253 = vpop.permute.xlu0 %252
    %256 = vset.pattern.permute.xlu0 0
    %257 = vperm.xlu0 %256, %v155
    %v258 = vpop.permute.xlu0 %257
    %261 = vset.pattern.permute.xlu0 0
    %262 = vperm.xlu0 %261, %v156
    %v263 = vpop.permute.xlu0 %262
    %266 = vset.pattern.permute.xlu0 0
    %267 = vperm.xlu0 %266, %v157
    %v268 = vpop.permute.xlu0 %267
    %271 = vset.pattern.permute.xlu0 0
    %272 = vperm.xlu0 %271, %v158
    %v273 = vpop.permute.xlu0 %272
    %276 = vset.pattern.permute.xlu0 0
    %277 = vperm.xlu0 %276, %v159
    %v278 = vpop.permute.xlu0 %277
    %281 = vset.pattern.permute.xlu0 0
    %282 = vperm.xlu0 %281, %v160
    %v283 = vpop.permute.xlu0 %282
    %286 = vset.pattern.permute.xlu0 0
    %287 = vperm.xlu0 %286, %v161
    %v288 = vpop.permute.xlu0 %287
    %291 = vset.pattern.permute.xlu0 0
    %292 = vperm.xlu0 %291, %v162
    %v293 = vpop.permute.xlu0 %292
    %296 = vset.pattern.permute.xlu0 0
    %297 = vperm.xlu0 %296, %v163
    %v298 = vpop.permute.xlu0 %297
    %301 = vset.pattern.permute.xlu0 0
    %302 = vperm.xlu0 %301, %v164
    %v303 = vpop.permute.xlu0 %302
    %306 = vset.pattern.permute.xlu0 0
    %307 = vperm.xlu0 %306, %v165
    %v308 = vpop.permute.xlu0 %307
    %311 = vset.pattern.permute.xlu0 0
    %312 = vperm.xlu0 %311, %v166
    %v313 = vpop.permute.xlu0 %312
    %316 = vset.pattern.permute.xlu0 0
    %317 = vperm.xlu0 %316, %v167
    %v318 = vpop.permute.xlu0 %317
    %321 = vset.pattern.permute.xlu0 0
    %322 = vperm.xlu0 %321, %v168
    %v323 = vpop.permute.xlu0 %322
    %326 = vset.pattern.permute.xlu0 0
    %327 = vperm.xlu0 %326, %v169
    %v328 = vpop.permute.xlu0 %327
    %v330 = vmul.f32 %v107, %v173
    %v331 = vmul.f32 %v106, %v178
    %v332 = vmul.f32 %v137, %v183
    %v333 = vmul.f32 %v136, %v188
    %v334 = vmul.f32 %v135, %v193
    %v335 = vmul.f32 %v134, %v198
    %v336 = vmul.f32 %v133, %v203
    %v337 = vmul.f32 %v132, %v208
    %v338 = vmul.f32 %v131, %v213
    %v339 = vmul.f32 %v130, %v218
    %v340 = vmul.f32 %v129, %v223
    %v341 = vmul.f32 %v128, %v228
    %v342 = vmul.f32 %v127, %v233
    %v343 = vmul.f32 %v126, %v238
    %v344 = vmul.f32 %v125, %v243
    %v345 = vmul.f32 %v124, %v248
    %v346 = vmul.f32 %v123, %v253
    %v347 = vmul.f32 %v122, %v258
    %v348 = vmul.f32 %v121, %v263
    %v349 = vmul.f32 %v120, %v268
    %v350 = vmul.f32 %v119, %v273
    %v351 = vmul.f32 %v118, %v278
    %v352 = vmul.f32 %v117, %v283
    %v353 = vmul.f32 %v116, %v288
    %v354 = vmul.f32 %v115, %v293
    %v355 = vmul.f32 %v114, %v298
    %v356 = vmul.f32 %v113, %v303
    %v357 = vmul.f32 %v112, %v308
    %v358 = vmul.f32 %v111, %v313
    %v359 = vmul.f32 %v110, %v318
    %v360 = vmul.f32 %v109, %v323
    %v361 = vmul.f32 %v108, %v328
    %s362 = scalar_lea.vmem %s4, 256
    %v363 = vld [vmem:[%s362] sm:$0xff]
    %v364 = vld [vmem:[%s362 + $0x8] sm:$0xff]
    %v365 = vld [vmem:[%s362 + $0x10] sm:$0xff]
    %v366 = vld [vmem:[%s362 + $0x18] sm:$0xff]
    %v367 = vld [vmem:[%s362 + $0x20] sm:$0xff]
    %v368 = vld [vmem:[%s362 + $0x28] sm:$0xff]
    %v369 = vld [vmem:[%s362 + $0x30] sm:$0xff]
    %v370 = vld [vmem:[%s362 + $0x38] sm:$0xff]
    %v371 = vld [vmem:[%s362 + $0x40] sm:$0xff]
    %v372 = vld [vmem:[%s362 + $0x48] sm:$0xff]
    %v373 = vld [vmem:[%s362 + $0x50] sm:$0xff]
    %v374 = vld [vmem:[%s362 + $0x58] sm:$0xff]
    %v375 = vld [vmem:[%s362 + $0x60] sm:$0xff]
    %v376 = vld [vmem:[%s362 + $0x68] sm:$0xff]
    %v377 = vld [vmem:[%s362 + $0x70] sm:$0xff]
    %v378 = vld [vmem:[%s362 + $0x78] sm:$0xff]
    %v379 = vld [vmem:[%s362 + $0x80] sm:$0xff]
    %v380 = vld [vmem:[%s362 + $0x88] sm:$0xff]
    %v381 = vld [vmem:[%s362 + $0x90] sm:$0xff]
    %v382 = vld [vmem:[%s362 + $0x98] sm:$0xff]
    %v383 = vld [vmem:[%s362 + $0xa0] sm:$0xff]
    %v384 = vld [vmem:[%s362 + $0xa8] sm:$0xff]
    %v385 = vld [vmem:[%s362 + $0xb0] sm:$0xff]
    %v386 = vld [vmem:[%s362 + $0xb8] sm:$0xff]
    %v387 = vld [vmem:[%s362 + $0xc0] sm:$0xff]
    %v388 = vld [vmem:[%s362 + $0xc8] sm:$0xff]
    %v389 = vld [vmem:[%s362 + $0xd0] sm:$0xff]
    %v390 = vld [vmem:[%s362 + $0xd8] sm:$0xff]
    %v391 = vld [vmem:[%s362 + $0xe0] sm:$0xff]
    %v392 = vld [vmem:[%s362 + $0xe8] sm:$0xff]
    %v393 = vld [vmem:[%s362 + $0xf0] sm:$0xff]
    %v394 = vld [vmem:[%s362 + $0xf8] sm:$0xff]
    %396 = vset.pattern.permute.xlu0 0
    %397 = vperm.xlu0 %396, %v363
    %v398 = vpop.permute.xlu0 %397
    %401 = vset.pattern.permute.xlu0 0
    %402 = vperm.xlu0 %401, %v364
    %v403 = vpop.permute.xlu0 %402
    %406 = vset.pattern.permute.xlu0 0
    %407 = vperm.xlu0 %406, %v365
    %v408 = vpop.permute.xlu0 %407
    %411 = vset.pattern.permute.xlu0 0
    %412 = vperm.xlu0 %411, %v366
    %v413 = vpop.permute.xlu0 %412
    %416 = vset.pattern.permute.xlu0 0
    %417 = vperm.xlu0 %416, %v367
    %v418 = vpop.permute.xlu0 %417
    %421 = vset.pattern.permute.xlu0 0
    %422 = vperm.xlu0 %421, %v368
    %v423 = vpop.permute.xlu0 %422
    %426 = vset.pattern.permute.xlu0 0
    %427 = vperm.xlu0 %426, %v369
    %v428 = vpop.permute.xlu0 %427
    %431 = vset.pattern.permute.xlu0 0
    %432 = vperm.xlu0 %431, %v370
    %v433 = vpop.permute.xlu0 %432
    %436 = vset.pattern.permute.xlu0 0
    %437 = vperm.xlu0 %436, %v371
    %v438 = vpop.permute.xlu0 %437
    %441 = vset.pattern.permute.xlu0 0
    %442 = vperm.xlu0 %441, %v372
    %v443 = vpop.permute.xlu0 %442
    %446 = vset.pattern.permute.xlu0 0
    %447 = vperm.xlu0 %446, %v373
    %v448 = vpop.permute.xlu0 %447
    %451 = vset.pattern.permute.xlu0 0
    %452 = vperm.xlu0 %451, %v374
    %v453 = vpop.permute.xlu0 %452
    %456 = vset.pattern.permute.xlu0 0
    %457 = vperm.xlu0 %456, %v375
    %v458 = vpop.permute.xlu0 %457
    %461 = vset.pattern.permute.xlu0 0
    %462 = vperm.xlu0 %461, %v376
    %v463 = vpop.permute.xlu0 %462
    %466 = vset.pattern.permute.xlu0 0
    %467 = vperm.xlu0 %466, %v377
    %v468 = vpop.permute.xlu0 %467
    %471 = vset.pattern.permute.xlu0 0
    %472 = vperm.xlu0 %471, %v378
    %v473 = vpop.permute.xlu0 %472
    %476 = vset.pattern.permute.xlu0 0
    %477 = vperm.xlu0 %476, %v379
    %v478 = vpop.permute.xlu0 %477
    %481 = vset.pattern.permute.xlu0 0
    %482 = vperm.xlu0 %481, %v380
    %v483 = vpop.permute.xlu0 %482
    %486 = vset.pattern.permute.xlu0 0
    %487 = vperm.xlu0 %486, %v381
    %v488 = vpop.permute.xlu0 %487
    %491 = vset.pattern.permute.xlu0 0
    %492 = vperm.xlu0 %491, %v382
    %v493 = vpop.permute.xlu0 %492
    %496 = vset.pattern.permute.xlu0 0
    %497 = vperm.xlu0 %496, %v383
    %v498 = vpop.permute.xlu0 %497
    %501 = vset.pattern.permute.xlu0 0
    %502 = vperm.xlu0 %501, %v384
    %v503 = vpop.permute.xlu0 %502
    %506 = vset.pattern.permute.xlu0 0
    %507 = vperm.xlu0 %506, %v385
    %v508 = vpop.permute.xlu0 %507
    %511 = vset.pattern.permute.xlu0 0
    %512 = vperm.xlu0 %511, %v386
    %v513 = vpop.permute.xlu0 %512
    %516 = vset.pattern.permute.xlu0 0
    %517 = vperm.xlu0 %516, %v387
    %v518 = vpop.permute.xlu0 %517
    %521 = vset.pattern.permute.xlu0 0
    %522 = vperm.xlu0 %521, %v388
    %v523 = vpop.permute.xlu0 %522
    %526 = vset.pattern.permute.xlu0 0
    %527 = vperm.xlu0 %526, %v389
    %v528 = vpop.permute.xlu0 %527
    %531 = vset.pattern.permute.xlu0 0
    %532 = vperm.xlu0 %531, %v390
    %v533 = vpop.permute.xlu0 %532
    %536 = vset.pattern.permute.xlu0 0
    %537 = vperm.xlu0 %536, %v391
    %v538 = vpop.permute.xlu0 %537
    %541 = vset.pattern.permute.xlu0 0
    %542 = vperm.xlu0 %541, %v392
    %v543 = vpop.permute.xlu0 %542
    %546 = vset.pattern.permute.xlu0 0
    %547 = vperm.xlu0 %546, %v393
    %v548 = vpop.permute.xlu0 %547
    %551 = vset.pattern.permute.xlu0 0
    %552 = vperm.xlu0 %551, %v394
    %v553 = vpop.permute.xlu0 %552
    %v555 = vmul.f32 %v69, %v398
    %v556 = vmul.f32 %v70, %v403
    %v557 = vmul.f32 %v39, %v408
    %v558 = vmul.f32 %v40, %v413
    %v559 = vmul.f32 %v41, %v418
    %v560 = vmul.f32 %v42, %v423
    %v561 = vmul.f32 %v43, %v428
    %v562 = vmul.f32 %v44, %v433
    %v563 = vmul.f32 %v45, %v438
    %v564 = vmul.f32 %v46, %v443
    %v565 = vmul.f32 %v47, %v448
    %v566 = vmul.f32 %v48, %v453
    %v567 = vmul.f32 %v49, %v458
    %v568 = vmul.f32 %v50, %v463
    %v569 = vmul.f32 %v51, %v468
    %v570 = vmul.f32 %v52, %v473
    %v571 = vmul.f32 %v53, %v478
    %v572 = vmul.f32 %v54, %v483
    %v573 = vmul.f32 %v55, %v488
    %v574 = vmul.f32 %v56, %v493
    %v575 = vmul.f32 %v57, %v498
    %v576 = vmul.f32 %v58, %v503
    %v577 = vmul.f32 %v59, %v508
    %v578 = vmul.f32 %v60, %v513
    %v579 = vmul.f32 %v61, %v518
    %v580 = vmul.f32 %v62, %v523
    %v581 = vmul.f32 %v63, %v528
    %v582 = vmul.f32 %v64, %v533
    %v583 = vmul.f32 %v65, %v538
    %v584 = vmul.f32 %v66, %v543
    %v585 = vmul.f32 %v67, %v548
    %v586 = vmul.f32 %v68, %v553
    %v587 = vrot.slane %v39, 1
    %v588 = vrot.slane %v40, 1
    %v589 = vrot.slane %v41, 1
    %v590 = vrot.slane %v42, 1
    %v591 = vrot.slane %v43, 1
    %v592 = vrot.slane %v44, 1
    %v593 = vrot.slane %v45, 1
    %v594 = vrot.slane %v46, 1
    %v595 = vrot.slane %v47, 1
    %v596 = vrot.slane %v48, 1
    %v597 = vrot.slane %v49, 1
    %v598 = vrot.slane %v50, 1
    %v599 = vrot.slane %v51, 1
    %v600 = vrot.slane %v52, 1
    %v601 = vrot.slane %v53, 1
    %v602 = vrot.slane %v54, 1
    %v603 = vrot.slane %v55, 1
    %v604 = vrot.slane %v56, 1
    %v605 = vrot.slane %v57, 1
    %v606 = vrot.slane %v58, 1
    %v607 = vrot.slane %v59, 1
    %v608 = vrot.slane %v60, 1
    %v609 = vrot.slane %v61, 1
    %v610 = vrot.slane %v62, 1
    %v611 = vrot.slane %v63, 1
    %v612 = vrot.slane %v64, 1
    %v613 = vrot.slane %v65, 1
    %v614 = vrot.slane %v66, 1
    %v615 = vrot.slane %v67, 1
    %v616 = vrot.slane %v68, 1
    %v617 = vrot.slane %v69, 1
    %v618 = vrot.slane %v70, 1
    %vm619 = vcmp.lt.s32.totalorder %v104, 7
    %v620 = vsel %vm619, %v617, %v618
    %v621 = vsel %vm619, %v616, %v617
    %v622 = vsel %vm619, %v615, %v616
    %v623 = vsel %vm619, %v614, %v615
    %v624 = vsel %vm619, %v613, %v614
    %v625 = vsel %vm619, %v612, %v613
    %v626 = vsel %vm619, %v611, %v612
    %v627 = vsel %vm619, %v610, %v611
    %v628 = vsel %vm619, %v609, %v610
    %v629 = vsel %vm619, %v608, %v609
    %v630 = vsel %vm619, %v607, %v608
    %v631 = vsel %vm619, %v606, %v607
    %v632 = vsel %vm619, %v605, %v606
    %v633 = vsel %vm619, %v604, %v605
    %v634 = vsel %vm619, %v603, %v604
    %v635 = vsel %vm619, %v602, %v603
    %v636 = vsel %vm619, %v601, %v602
    %v637 = vsel %vm619, %v600, %v601
    %v638 = vsel %vm619, %v599, %v600
    %v639 = vsel %vm619, %v598, %v599
    %v640 = vsel %vm619, %v597, %v598
    %v641 = vsel %vm619, %v596, %v597
    %v642 = vsel %vm619, %v595, %v596
    %v643 = vsel %vm619, %v594, %v595
    %v644 = vsel %vm619, %v593, %v594
    %v645 = vsel %vm619, %v592, %v593
    %v646 = vsel %vm619, %v591, %v592
    %v647 = vsel %vm619, %v590, %v591
    %v648 = vsel %vm619, %v589, %v590
    %v649 = vsel %vm619, %v588, %v589
    %v650 = vsel %vm619, %v587, %v588
    %v651 = vsel %vm619, %v618, %v587
    %s652 = scalar_lea.vmem %s4, 512
    %v653 = vld [vmem:[%s652] sm:$0xff]
    %v654 = vld [vmem:[%s652 + $0x8] sm:$0xff]
    %v655 = vld [vmem:[%s652 + $0x10] sm:$0xff]
    %v656 = vld [vmem:[%s652 + $0x18] sm:$0xff]
    %v657 = vld [vmem:[%s652 + $0x20] sm:$0xff]
    %v658 = vld [vmem:[%s652 + $0x28] sm:$0xff]
    %v659 = vld [vmem:[%s652 + $0x30] sm:$0xff]
    %v660 = vld [vmem:[%s652 + $0x38] sm:$0xff]
    %v661 = vld [vmem:[%s652 + $0x40] sm:$0xff]
    %v662 = vld [vmem:[%s652 + $0x48] sm:$0xff]
    %v663 = vld [vmem:[%s652 + $0x50] sm:$0xff]
    %v664 = vld [vmem:[%s652 + $0x58] sm:$0xff]
    %v665 = vld [vmem:[%s652 + $0x60] sm:$0xff]
    %v666 = vld [vmem:[%s652 + $0x68] sm:$0xff]
    %v667 = vld [vmem:[%s652 + $0x70] sm:$0xff]
    %v668 = vld [vmem:[%s652 + $0x78] sm:$0xff]
    %v669 = vld [vmem:[%s652 + $0x80] sm:$0xff]
    %v670 = vld [vmem:[%s652 + $0x88] sm:$0xff]
    %v671 = vld [vmem:[%s652 + $0x90] sm:$0xff]
    %v672 = vld [vmem:[%s652 + $0x98] sm:$0xff]
    %v673 = vld [vmem:[%s652 + $0xa0] sm:$0xff]
    %v674 = vld [vmem:[%s652 + $0xa8] sm:$0xff]
    %v675 = vld [vmem:[%s652 + $0xb0] sm:$0xff]
    %v676 = vld [vmem:[%s652 + $0xb8] sm:$0xff]
    %v677 = vld [vmem:[%s652 + $0xc0] sm:$0xff]
    %v678 = vld [vmem:[%s652 + $0xc8] sm:$0xff]
    %v679 = vld [vmem:[%s652 + $0xd0] sm:$0xff]
    %v680 = vld [vmem:[%s652 + $0xd8] sm:$0xff]
    %v681 = vld [vmem:[%s652 + $0xe0] sm:$0xff]
    %v682 = vld [vmem:[%s652 + $0xe8] sm:$0xff]
    %v683 = vld [vmem:[%s652 + $0xf0] sm:$0xff]
    %v684 = vld [vmem:[%s652 + $0xf8] sm:$0xff]
    %686 = vset.pattern.permute.xlu0 0
    %687 = vperm.xlu0 %686, %v653
    %v688 = vpop.permute.xlu0 %687
    %691 = vset.pattern.permute.xlu0 0
    %692 = vperm.xlu0 %691, %v654
    %v693 = vpop.permute.xlu0 %692
    %696 = vset.pattern.permute.xlu0 0
    %697 = vperm.xlu0 %696, %v655
    %v698 = vpop.permute.xlu0 %697
    %701 = vset.pattern.permute.xlu0 0
    %702 = vperm.xlu0 %701, %v656
    %v703 = vpop.permute.xlu0 %702
    %706 = vset.pattern.permute.xlu0 0
    %707 = vperm.xlu0 %706, %v657
    %v708 = vpop.permute.xlu0 %707
    %711 = vset.pattern.permute.xlu0 0
    %712 = vperm.xlu0 %711, %v658
    %v713 = vpop.permute.xlu0 %712
    %716 = vset.pattern.permute.xlu0 0
    %717 = vperm.xlu0 %716, %v659
    %v718 = vpop.permute.xlu0 %717
    %721 = vset.pattern.permute.xlu0 0
    %722 = vperm.xlu0 %721, %v660
    %v723 = vpop.permute.xlu0 %722
    %726 = vset.pattern.permute.xlu0 0
    %727 = vperm.xlu0 %726, %v661
    %v728 = vpop.permute.xlu0 %727
    %731 = vset.pattern.permute.xlu0 0
    %732 = vperm.xlu0 %731, %v662
    %v733 = vpop.permute.xlu0 %732
    %736 = vset.pattern.permute.xlu0 0
    %737 = vperm.xlu0 %736, %v663
    %v738 = vpop.permute.xlu0 %737
    %741 = vset.pattern.permute.xlu0 0
    %742 = vperm.xlu0 %741, %v664
    %v743 = vpop.permute.xlu0 %742
    %746 = vset.pattern.permute.xlu0 0
    %747 = vperm.xlu0 %746, %v665
    %v748 = vpop.permute.xlu0 %747
    %751 = vset.pattern.permute.xlu0 0
    %752 = vperm.xlu0 %751, %v666
    %v753 = vpop.permute.xlu0 %752
    %756 = vset.pattern.permute.xlu0 0
    %757 = vperm.xlu0 %756, %v667
    %v758 = vpop.permute.xlu0 %757
    %761 = vset.pattern.permute.xlu0 0
    %762 = vperm.xlu0 %761, %v668
    %v763 = vpop.permute.xlu0 %762
    %766 = vset.pattern.permute.xlu0 0
    %767 = vperm.xlu0 %766, %v669
    %v768 = vpop.permute.xlu0 %767
    %771 = vset.pattern.permute.xlu0 0
    %772 = vperm.xlu0 %771, %v670
    %v773 = vpop.permute.xlu0 %772
    %776 = vset.pattern.permute.xlu0 0
    %777 = vperm.xlu0 %776, %v671
    %v778 = vpop.permute.xlu0 %777
    %781 = vset.pattern.permute.xlu0 0
    %782 = vperm.xlu0 %781, %v672
    %v783 = vpop.permute.xlu0 %782
    %786 = vset.pattern.permute.xlu0 0
    %787 = vperm.xlu0 %786, %v673
    %v788 = vpop.permute.xlu0 %787
    %791 = vset.pattern.permute.xlu0 0
    %792 = vperm.xlu0 %791, %v674
    %v793 = vpop.permute.xlu0 %792
    %796 = vset.pattern.permute.xlu0 0
    %797 = vperm.xlu0 %796, %v675
    %v798 = vpop.permute.xlu0 %797
    %801 = vset.pattern.permute.xlu0 0
    %802 = vperm.xlu0 %801, %v676
    %v803 = vpop.permute.xlu0 %802
    %806 = vset.pattern.permute.xlu0 0
    %807 = vperm.xlu0 %806, %v677
    %v808 = vpop.permute.xlu0 %807
    %811 = vset.pattern.permute.xlu0 0
    %812 = vperm.xlu0 %811, %v678
    %v813 = vpop.permute.xlu0 %812
    %816 = vset.pattern.permute.xlu0 0
    %817 = vperm.xlu0 %816, %v679
    %v818 = vpop.permute.xlu0 %817
    %821 = vset.pattern.permute.xlu0 0
    %822 = vperm.xlu0 %821, %v680
    %v823 = vpop.permute.xlu0 %822
    %826 = vset.pattern.permute.xlu0 0
    %827 = vperm.xlu0 %826, %v681
    %v828 = vpop.permute.xlu0 %827
    %831 = vset.pattern.permute.xlu0 0
    %832 = vperm.xlu0 %831, %v682
    %v833 = vpop.permute.xlu0 %832
    %836 = vset.pattern.permute.xlu0 0
    %837 = vperm.xlu0 %836, %v683
    %v838 = vpop.permute.xlu0 %837
    %841 = vset.pattern.permute.xlu0 0
    %842 = vperm.xlu0 %841, %v684
    %v843 = vpop.permute.xlu0 %842
    %v845 = vmul.f32 %v620, %v688
    %v846 = vmul.f32 %v651, %v693
    %v847 = vmul.f32 %v650, %v698
    %v848 = vmul.f32 %v649, %v703
    %v849 = vmul.f32 %v648, %v708
    %v850 = vmul.f32 %v647, %v713
    %v851 = vmul.f32 %v646, %v718
    %v852 = vmul.f32 %v645, %v723
    %v853 = vmul.f32 %v644, %v728
    %v854 = vmul.f32 %v643, %v733
    %v855 = vmul.f32 %v642, %v738
    %v856 = vmul.f32 %v641, %v743
    %v857 = vmul.f32 %v640, %v748
    %v858 = vmul.f32 %v639, %v753
    %v859 = vmul.f32 %v638, %v758
    %v860 = vmul.f32 %v637, %v763
    %v861 = vmul.f32 %v636, %v768
    %v862 = vmul.f32 %v635, %v773
    %v863 = vmul.f32 %v634, %v778
    %v864 = vmul.f32 %v633, %v783
    %v865 = vmul.f32 %v632, %v788
    %v866 = vmul.f32 %v631, %v793
    %v867 = vmul.f32 %v630, %v798
    %v868 = vmul.f32 %v629, %v803
    %v869 = vmul.f32 %v628, %v808
    %v870 = vmul.f32 %v627, %v813
    %v871 = vmul.f32 %v626, %v818
    %v872 = vmul.f32 %v625, %v823
    %v873 = vmul.f32 %v624, %v828
    %v874 = vmul.f32 %v623, %v833
    %v875 = vmul.f32 %v622, %v838
    %v876 = vmul.f32 %v621, %v843
    %s877 = scalar_lea.vmem %s4, 768
    %v878 = vld [vmem:[%s877] sm:$0xff]
    %v879 = vld [vmem:[%s877 + $0x8] sm:$0xff]
    %v880 = vld [vmem:[%s877 + $0x10] sm:$0xff]
    %v881 = vld [vmem:[%s877 + $0x18] sm:$0xff]
    %v882 = vld [vmem:[%s877 + $0x20] sm:$0xff]
    %v883 = vld [vmem:[%s877 + $0x28] sm:$0xff]
    %v884 = vld [vmem:[%s877 + $0x30] sm:$0xff]
    %v885 = vld [vmem:[%s877 + $0x38] sm:$0xff]
    %v886 = vld [vmem:[%s877 + $0x40] sm:$0xff]
    %v887 = vld [vmem:[%s877 + $0x48] sm:$0xff]
    %v888 = vld [vmem:[%s877 + $0x50] sm:$0xff]
    %v889 = vld [vmem:[%s877 + $0x58] sm:$0xff]
    %v890 = vld [vmem:[%s877 + $0x60] sm:$0xff]
    %v891 = vld [vmem:[%s877 + $0x68] sm:$0xff]
    %v892 = vld [vmem:[%s877 + $0x70] sm:$0xff]
    %v893 = vld [vmem:[%s877 + $0x78] sm:$0xff]
    %v894 = vld [vmem:[%s877 + $0x80] sm:$0xff]
    %v895 = vld [vmem:[%s877 + $0x88] sm:$0xff]
    %v896 = vld [vmem:[%s877 + $0x90] sm:$0xff]
    %v897 = vld [vmem:[%s877 + $0x98] sm:$0xff]
    %v898 = vld [vmem:[%s877 + $0xa0] sm:$0xff]
    %v899 = vld [vmem:[%s877 + $0xa8] sm:$0xff]
    %v900 = vld [vmem:[%s877 + $0xb0] sm:$0xff]
    %v901 = vld [vmem:[%s877 + $0xb8] sm:$0xff]
    %v902 = vld [vmem:[%s877 + $0xc0] sm:$0xff]
    %v903 = vld [vmem:[%s877 + $0xc8] sm:$0xff]
    %v904 = vld [vmem:[%s877 + $0xd0] sm:$0xff]
    %v905 = vld [vmem:[%s877 + $0xd8] sm:$0xff]
    %v906 = vld [vmem:[%s877 + $0xe0] sm:$0xff]
    %v907 = vld [vmem:[%s877 + $0xe8] sm:$0xff]
    %v908 = vld [vmem:[%s877 + $0xf0] sm:$0xff]
    %v909 = vld [vmem:[%s877 + $0xf8] sm:$0xff]
    %911 = vset.pattern.permute.xlu0 0
    %912 = vperm.xlu0 %911, %v878
    %v913 = vpop.permute.xlu0 %912
    %916 = vset.pattern.permute.xlu0 0
    %917 = vperm.xlu0 %916, %v879
    %v918 = vpop.permute.xlu0 %917
    %921 = vset.pattern.permute.xlu0 0
    %922 = vperm.xlu0 %921, %v880
    %v923 = vpop.permute.xlu0 %922
    %926 = vset.pattern.permute.xlu0 0
    %927 = vperm.xlu0 %926, %v881
    %v928 = vpop.permute.xlu0 %927
    %931 = vset.pattern.permute.xlu0 0
    %932 = vperm.xlu0 %931, %v882
    %v933 = vpop.permute.xlu0 %932
    %936 = vset.pattern.permute.xlu0 0
    %937 = vperm.xlu0 %936, %v883
    %v938 = vpop.permute.xlu0 %937
    %941 = vset.pattern.permute.xlu0 0
    %942 = vperm.xlu0 %941, %v884
    %v943 = vpop.permute.xlu0 %942
    %946 = vset.pattern.permute.xlu0 0
    %947 = vperm.xlu0 %946, %v885
    %v948 = vpop.permute.xlu0 %947
    %951 = vset.pattern.permute.xlu0 0
    %952 = vperm.xlu0 %951, %v886
    %v953 = vpop.permute.xlu0 %952
    %956 = vset.pattern.permute.xlu0 0
    %957 = vperm.xlu0 %956, %v887
    %v958 = vpop.permute.xlu0 %957
    %961 = vset.pattern.permute.xlu0 0
    %962 = vperm.xlu0 %961, %v888
    %v963 = vpop.permute.xlu0 %962
    %966 = vset.pattern.permute.xlu0 0
    %967 = vperm.xlu0 %966, %v889
    %v968 = vpop.permute.xlu0 %967
    %971 = vset.pattern.permute.xlu0 0
    %972 = vperm.xlu0 %971, %v890
    %v973 = vpop.permute.xlu0 %972
    %976 = vset.pattern.permute.xlu0 0
    %977 = vperm.xlu0 %976, %v891
    %v978 = vpop.permute.xlu0 %977
    %981 = vset.pattern.permute.xlu0 0
    %982 = vperm.xlu0 %981, %v892
    %v983 = vpop.permute.xlu0 %982
    %986 = vset.pattern.permute.xlu0 0
    %987 = vperm.xlu0 %986, %v893
    %v988 = vpop.permute.xlu0 %987
    %991 = vset.pattern.permute.xlu0 0
    %992 = vperm.xlu0 %991, %v894
    %v993 = vpop.permute.xlu0 %992
    %996 = vset.pattern.permute.xlu0 0
    %997 = vperm.xlu0 %996, %v895
    %v998 = vpop.permute.xlu0 %997
    %1001 = vset.pattern.permute.xlu0 0
    %1002 = vperm.xlu0 %1001, %v896
    %v1003 = vpop.permute.xlu0 %1002
    %1006 = vset.pattern.permute.xlu0 0
    %1007 = vperm.xlu0 %1006, %v897
    %v1008 = vpop.permute.xlu0 %1007
    %1011 = vset.pattern.permute.xlu0 0
    %1012 = vperm.xlu0 %1011, %v898
    %v1013 = vpop.permute.xlu0 %1012
    %1016 = vset.pattern.permute.xlu0 0
    %1017 = vperm.xlu0 %1016, %v899
    %v1018 = vpop.permute.xlu0 %1017
    %1021 = vset.pattern.permute.xlu0 0
    %1022 = vperm.xlu0 %1021, %v900
    %v1023 = vpop.permute.xlu0 %1022
    %1026 = vset.pattern.permute.xlu0 0
    %1027 = vperm.xlu0 %1026, %v901
    %v1028 = vpop.permute.xlu0 %1027
    %1031 = vset.pattern.permute.xlu0 0
    %1032 = vperm.xlu0 %1031, %v902
    %v1033 = vpop.permute.xlu0 %1032
    %1036 = vset.pattern.permute.xlu0 0
    %1037 = vperm.xlu0 %1036, %v903
    %v1038 = vpop.permute.xlu0 %1037
    %1041 = vset.pattern.permute.xlu0 0
    %1042 = vperm.xlu0 %1041, %v904
    %v1043 = vpop.permute.xlu0 %1042
    %1046 = vset.pattern.permute.xlu0 0
    %1047 = vperm.xlu0 %1046, %v905
    %v1048 = vpop.permute.xlu0 %1047
    %1051 = vset.pattern.permute.xlu0 0
    %1052 = vperm.xlu0 %1051, %v906
    %v1053 = vpop.permute.xlu0 %1052
    %1056 = vset.pattern.permute.xlu0 0
    %1057 = vperm.xlu0 %1056, %v907
    %v1058 = vpop.permute.xlu0 %1057
    %1061 = vset.pattern.permute.xlu0 0
    %1062 = vperm.xlu0 %1061, %v908
    %v1063 = vpop.permute.xlu0 %1062
    %1066 = vset.pattern.permute.xlu0 0
    %1067 = vperm.xlu0 %1066, %v909
    %v1068 = vpop.permute.xlu0 %1067
    %v1070 = vmul.f32 %v137, %v913
    %v1071 = vmul.f32 %v136, %v918
    %v1072 = vmul.f32 %v135, %v923
    %v1073 = vmul.f32 %v134, %v928
    %v1074 = vmul.f32 %v133, %v933
    %v1075 = vmul.f32 %v132, %v938
    %v1076 = vmul.f32 %v131, %v943
    %v1077 = vmul.f32 %v130, %v948
    %v1078 = vmul.f32 %v129, %v953
    %v1079 = vmul.f32 %v128, %v958
    %v1080 = vmul.f32 %v127, %v963
    %v1081 = vmul.f32 %v126, %v968
    %v1082 = vmul.f32 %v125, %v973
    %v1083 = vmul.f32 %v124, %v978
    %v1084 = vmul.f32 %v123, %v983
    %v1085 = vmul.f32 %v122, %v988
    %v1086 = vmul.f32 %v121, %v993
    %v1087 = vmul.f32 %v120, %v998
    %v1088 = vmul.f32 %v119, %v1003
    %v1089 = vmul.f32 %v118, %v1008
    %v1090 = vmul.f32 %v117, %v1013
    %v1091 = vmul.f32 %v116, %v1018
    %v1092 = vmul.f32 %v115, %v1023
    %v1093 = vmul.f32 %v114, %v1028
    %v1094 = vmul.f32 %v113, %v1033
    %v1095 = vmul.f32 %v112, %v1038
    %v1096 = vmul.f32 %v111, %v1043
    %v1097 = vmul.f32 %v110, %v1048
    %v1098 = vmul.f32 %v109, %v1053
    %v1099 = vmul.f32 %v108, %v1058
    %v1100 = vmul.f32 %v107, %v1063
    %v1101 = vmul.f32 %v106, %v1068
    %s1102 = scalar_lea.vmem %s4, 1280
    %v1103 = vld [vmem:[%s1102] sm:$0xff]
    %v1104 = vld [vmem:[%s1102 + $0x8] sm:$0xff]
    %v1105 = vld [vmem:[%s1102 + $0x10] sm:$0xff]
    %v1106 = vld [vmem:[%s1102 + $0x18] sm:$0xff]
    %v1107 = vld [vmem:[%s1102 + $0x20] sm:$0xff]
    %v1108 = vld [vmem:[%s1102 + $0x28] sm:$0xff]
    %v1109 = vld [vmem:[%s1102 + $0x30] sm:$0xff]
    %v1110 = vld [vmem:[%s1102 + $0x38] sm:$0xff]
    %v1111 = vld [vmem:[%s1102 + $0x40] sm:$0xff]
    %v1112 = vld [vmem:[%s1102 + $0x48] sm:$0xff]
    %v1113 = vld [vmem:[%s1102 + $0x50] sm:$0xff]
    %v1114 = vld [vmem:[%s1102 + $0x58] sm:$0xff]
    %v1115 = vld [vmem:[%s1102 + $0x60] sm:$0xff]
    %v1116 = vld [vmem:[%s1102 + $0x68] sm:$0xff]
    %v1117 = vld [vmem:[%s1102 + $0x70] sm:$0xff]
    %v1118 = vld [vmem:[%s1102 + $0x78] sm:$0xff]
    %v1119 = vld [vmem:[%s1102 + $0x80] sm:$0xff]
    %v1120 = vld [vmem:[%s1102 + $0x88] sm:$0xff]
    %v1121 = vld [vmem:[%s1102 + $0x90] sm:$0xff]
    %v1122 = vld [vmem:[%s1102 + $0x98] sm:$0xff]
    %v1123 = vld [vmem:[%s1102 + $0xa0] sm:$0xff]
    %v1124 = vld [vmem:[%s1102 + $0xa8] sm:$0xff]
    %v1125 = vld [vmem:[%s1102 + $0xb0] sm:$0xff]
    %v1126 = vld [vmem:[%s1102 + $0xb8] sm:$0xff]
    %v1127 = vld [vmem:[%s1102 + $0xc0] sm:$0xff]
    %v1128 = vld [vmem:[%s1102 + $0xc8] sm:$0xff]
    %v1129 = vld [vmem:[%s1102 + $0xd0] sm:$0xff]
    %v1130 = vld [vmem:[%s1102 + $0xd8] sm:$0xff]
    %v1131 = vld [vmem:[%s1102 + $0xe0] sm:$0xff]
    %v1132 = vld [vmem:[%s1102 + $0xe8] sm:$0xff]
    %v1133 = vld [vmem:[%s1102 + $0xf0] sm:$0xff]
    %v1134 = vld [vmem:[%s1102 + $0xf8] sm:$0xff]
    %1136 = vset.pattern.permute.xlu0 0
    %1137 = vperm.xlu0 %1136, %v1103
    %v1138 = vpop.permute.xlu0 %1137
    %1141 = vset.pattern.permute.xlu0 0
    %1142 = vperm.xlu0 %1141, %v1104
    %v1143 = vpop.permute.xlu0 %1142
    %1146 = vset.pattern.permute.xlu0 0
    %1147 = vperm.xlu0 %1146, %v1105
    %v1148 = vpop.permute.xlu0 %1147
    %1151 = vset.pattern.permute.xlu0 0
    %1152 = vperm.xlu0 %1151, %v1106
    %v1153 = vpop.permute.xlu0 %1152
    %1156 = vset.pattern.permute.xlu0 0
    %1157 = vperm.xlu0 %1156, %v1107
    %v1158 = vpop.permute.xlu0 %1157
    %1161 = vset.pattern.permute.xlu0 0
    %1162 = vperm.xlu0 %1161, %v1108
    %v1163 = vpop.permute.xlu0 %1162
    %1166 = vset.pattern.permute.xlu0 0
    %1167 = vperm.xlu0 %1166, %v1109
    %v1168 = vpop.permute.xlu0 %1167
    %1171 = vset.pattern.permute.xlu0 0
    %1172 = vperm.xlu0 %1171, %v1110
    %v1173 = vpop.permute.xlu0 %1172
    %1176 = vset.pattern.permute.xlu0 0
    %1177 = vperm.xlu0 %1176, %v1111
    %v1178 = vpop.permute.xlu0 %1177
    %1181 = vset.pattern.permute.xlu0 0
    %1182 = vperm.xlu0 %1181, %v1112
    %v1183 = vpop.permute.xlu0 %1182
    %1186 = vset.pattern.permute.xlu0 0
    %1187 = vperm.xlu0 %1186, %v1113
    %v1188 = vpop.permute.xlu0 %1187
    %1191 = vset.pattern.permute.xlu0 0
    %1192 = vperm.xlu0 %1191, %v1114
    %v1193 = vpop.permute.xlu0 %1192
    %1196 = vset.pattern.permute.xlu0 0
    %1197 = vperm.xlu0 %1196, %v1115
    %v1198 = vpop.permute.xlu0 %1197
    %1201 = vset.pattern.permute.xlu0 0
    %1202 = vperm.xlu0 %1201, %v1116
    %v1203 = vpop.permute.xlu0 %1202
    %1206 = vset.pattern.permute.xlu0 0
    %1207 = vperm.xlu0 %1206, %v1117
    %v1208 = vpop.permute.xlu0 %1207
    %1211 = vset.pattern.permute.xlu0 0
    %1212 = vperm.xlu0 %1211, %v1118
    %v1213 = vpop.permute.xlu0 %1212
    %1216 = vset.pattern.permute.xlu0 0
    %1217 = vperm.xlu0 %1216, %v1119
    %v1218 = vpop.permute.xlu0 %1217
    %1221 = vset.pattern.permute.xlu0 0
    %1222 = vperm.xlu0 %1221, %v1120
    %v1223 = vpop.permute.xlu0 %1222
    %1226 = vset.pattern.permute.xlu0 0
    %1227 = vperm.xlu0 %1226, %v1121
    %v1228 = vpop.permute.xlu0 %1227
    %1231 = vset.pattern.permute.xlu0 0
    %1232 = vperm.xlu0 %1231, %v1122
    %v1233 = vpop.permute.xlu0 %1232
    %1236 = vset.pattern.permute.xlu0 0
    %1237 = vperm.xlu0 %1236, %v1123
    %v1238 = vpop.permute.xlu0 %1237
    %1241 = vset.pattern.permute.xlu0 0
    %1242 = vperm.xlu0 %1241, %v1124
    %v1243 = vpop.permute.xlu0 %1242
    %1246 = vset.pattern.permute.xlu0 0
    %1247 = vperm.xlu0 %1246, %v1125
    %v1248 = vpop.permute.xlu0 %1247
    %1251 = vset.pattern.permute.xlu0 0
    %1252 = vperm.xlu0 %1251, %v1126
    %v1253 = vpop.permute.xlu0 %1252
    %1256 = vset.pattern.permute.xlu0 0
    %1257 = vperm.xlu0 %1256, %v1127
    %v1258 = vpop.permute.xlu0 %1257
    %1261 = vset.pattern.permute.xlu0 0
    %1262 = vperm.xlu0 %1261, %v1128
    %v1263 = vpop.permute.xlu0 %1262
    %1266 = vset.pattern.permute.xlu0 0
    %1267 = vperm.xlu0 %1266, %v1129
    %v1268 = vpop.permute.xlu0 %1267
    %1271 = vset.pattern.permute.xlu0 0
    %1272 = vperm.xlu0 %1271, %v1130
    %v1273 = vpop.permute.xlu0 %1272
    %1276 = vset.pattern.permute.xlu0 0
    %1277 = vperm.xlu0 %1276, %v1131
    %v1278 = vpop.permute.xlu0 %1277
    %1281 = vset.pattern.permute.xlu0 0
    %1282 = vperm.xlu0 %1281, %v1132
    %v1283 = vpop.permute.xlu0 %1282
    %1286 = vset.pattern.permute.xlu0 0
    %1287 = vperm.xlu0 %1286, %v1133
    %v1288 = vpop.permute.xlu0 %1287
    %1291 = vset.pattern.permute.xlu0 0
    %1292 = vperm.xlu0 %1291, %v1134
    %v1293 = vpop.permute.xlu0 %1292
    %v1295 = vmul.f32 %v650, %v1138
    %v1296 = vmul.f32 %v649, %v1143
    %v1297 = vmul.f32 %v648, %v1148
    %v1298 = vmul.f32 %v647, %v1153
    %v1299 = vmul.f32 %v646, %v1158
    %v1300 = vmul.f32 %v645, %v1163
    %v1301 = vmul.f32 %v644, %v1168
    %v1302 = vmul.f32 %v643, %v1173
    %v1303 = vmul.f32 %v642, %v1178
    %v1304 = vmul.f32 %v641, %v1183
    %v1305 = vmul.f32 %v640, %v1188
    %v1306 = vmul.f32 %v639, %v1193
    %v1307 = vmul.f32 %v638, %v1198
    %v1308 = vmul.f32 %v637, %v1203
    %v1309 = vmul.f32 %v636, %v1208
    %v1310 = vmul.f32 %v635, %v1213
    %v1311 = vmul.f32 %v634, %v1218
    %v1312 = vmul.f32 %v633, %v1223
    %v1313 = vmul.f32 %v632, %v1228
    %v1314 = vmul.f32 %v631, %v1233
    %v1315 = vmul.f32 %v630, %v1238
    %v1316 = vmul.f32 %v629, %v1243
    %v1317 = vmul.f32 %v628, %v1248
    %v1318 = vmul.f32 %v627, %v1253
    %v1319 = vmul.f32 %v626, %v1258
    %v1320 = vmul.f32 %v625, %v1263
    %v1321 = vmul.f32 %v624, %v1268
    %v1322 = vmul.f32 %v623, %v1273
    %v1323 = vmul.f32 %v622, %v1278
    %v1324 = vmul.f32 %v621, %v1283
    %v1325 = vmul.f32 %v620, %v1288
    %v1326 = vmul.f32 %v651, %v1293
    %s1327 = scalar_lea.vmem %s4, 1536
    %v1328 = vld [vmem:[%s1327] sm:$0xff]
    %v1329 = vld [vmem:[%s1327 + $0x8] sm:$0xff]
    %v1330 = vld [vmem:[%s1327 + $0x10] sm:$0xff]
    %v1331 = vld [vmem:[%s1327 + $0x18] sm:$0xff]
    %v1332 = vld [vmem:[%s1327 + $0x20] sm:$0xff]
    %v1333 = vld [vmem:[%s1327 + $0x28] sm:$0xff]
    %v1334 = vld [vmem:[%s1327 + $0x30] sm:$0xff]
    %v1335 = vld [vmem:[%s1327 + $0x38] sm:$0xff]
    %v1336 = vld [vmem:[%s1327 + $0x40] sm:$0xff]
    %v1337 = vld [vmem:[%s1327 + $0x48] sm:$0xff]
    %v1338 = vld [vmem:[%s1327 + $0x50] sm:$0xff]
    %v1339 = vld [vmem:[%s1327 + $0x58] sm:$0xff]
    %v1340 = vld [vmem:[%s1327 + $0x60] sm:$0xff]
    %v1341 = vld [vmem:[%s1327 + $0x68] sm:$0xff]
    %v1342 = vld [vmem:[%s1327 + $0x70] sm:$0xff]
    %v1343 = vld [vmem:[%s1327 + $0x78] sm:$0xff]
    %v1344 = vld [vmem:[%s1327 + $0x80] sm:$0xff]
    %v1345 = vld [vmem:[%s1327 + $0x88] sm:$0xff]
    %v1346 = vld [vmem:[%s1327 + $0x90] sm:$0xff]
    %v1347 = vld [vmem:[%s1327 + $0x98] sm:$0xff]
    %v1348 = vld [vmem:[%s1327 + $0xa0] sm:$0xff]
    %v1349 = vld [vmem:[%s1327 + $0xa8] sm:$0xff]
    %v1350 = vld [vmem:[%s1327 + $0xb0] sm:$0xff]
    %v1351 = vld [vmem:[%s1327 + $0xb8] sm:$0xff]
    %v1352 = vld [vmem:[%s1327 + $0xc0] sm:$0xff]
    %v1353 = vld [vmem:[%s1327 + $0xc8] sm:$0xff]
    %v1354 = vld [vmem:[%s1327 + $0xd0] sm:$0xff]
    %v1355 = vld [vmem:[%s1327 + $0xd8] sm:$0xff]
    %v1356 = vld [vmem:[%s1327 + $0xe0] sm:$0xff]
    %v1357 = vld [vmem:[%s1327 + $0xe8] sm:$0xff]
    %v1358 = vld [vmem:[%s1327 + $0xf0] sm:$0xff]
    %v1359 = vld [vmem:[%s1327 + $0xf8] sm:$0xff]
    %1361 = vset.pattern.permute.xlu0 0
    %1362 = vperm.xlu0 %1361, %v1328
    %v1363 = vpop.permute.xlu0 %1362
    %1366 = vset.pattern.permute.xlu0 0
    %1367 = vperm.xlu0 %1366, %v1329
    %v1368 = vpop.permute.xlu0 %1367
    %1371 = vset.pattern.permute.xlu0 0
    %1372 = vperm.xlu0 %1371, %v1330
    %v1373 = vpop.permute.xlu0 %1372
    %1376 = vset.pattern.permute.xlu0 0
    %1377 = vperm.xlu0 %1376, %v1331
    %v1378 = vpop.permute.xlu0 %1377
    %1381 = vset.pattern.permute.xlu0 0
    %1382 = vperm.xlu0 %1381, %v1332
    %v1383 = vpop.permute.xlu0 %1382
    %1386 = vset.pattern.permute.xlu0 0
    %1387 = vperm.xlu0 %1386, %v1333
    %v1388 = vpop.permute.xlu0 %1387
    %1391 = vset.pattern.permute.xlu0 0
    %1392 = vperm.xlu0 %1391, %v1334
    %v1393 = vpop.permute.xlu0 %1392
    %1396 = vset.pattern.permute.xlu0 0
    %1397 = vperm.xlu0 %1396, %v1335
    %v1398 = vpop.permute.xlu0 %1397
    %1401 = vset.pattern.permute.xlu0 0
    %1402 = vperm.xlu0 %1401, %v1336
    %v1403 = vpop.permute.xlu0 %1402
    %1406 = vset.pattern.permute.xlu0 0
    %1407 = vperm.xlu0 %1406, %v1337
    %v1408 = vpop.permute.xlu0 %1407
    %1411 = vset.pattern.permute.xlu0 0
    %1412 = vperm.xlu0 %1411, %v1338
    %v1413 = vpop.permute.xlu0 %1412
    %1416 = vset.pattern.permute.xlu0 0
    %1417 = vperm.xlu0 %1416, %v1339
    %v1418 = vpop.permute.xlu0 %1417
    %1421 = vset.pattern.permute.xlu0 0
    %1422 = vperm.xlu0 %1421, %v1340
    %v1423 = vpop.permute.xlu0 %1422
    %1426 = vset.pattern.permute.xlu0 0
    %1427 = vperm.xlu0 %1426, %v1341
    %v1428 = vpop.permute.xlu0 %1427
    %1431 = vset.pattern.permute.xlu0 0
    %1432 = vperm.xlu0 %1431, %v1342
    %v1433 = vpop.permute.xlu0 %1432
    %1436 = vset.pattern.permute.xlu0 0
    %1437 = vperm.xlu0 %1436, %v1343
    %v1438 = vpop.permute.xlu0 %1437
    %1441 = vset.pattern.permute.xlu0 0
    %1442 = vperm.xlu0 %1441, %v1344
    %v1443 = vpop.permute.xlu0 %1442
    %1446 = vset.pattern.permute.xlu0 0
    %1447 = vperm.xlu0 %1446, %v1345
    %v1448 = vpop.permute.xlu0 %1447
    %1451 = vset.pattern.permute.xlu0 0
    %1452 = vperm.xlu0 %1451, %v1346
    %v1453 = vpop.permute.xlu0 %1452
    %1456 = vset.pattern.permute.xlu0 0
    %1457 = vperm.xlu0 %1456, %v1347
    %v1458 = vpop.permute.xlu0 %1457
    %1461 = vset.pattern.permute.xlu0 0
    %1462 = vperm.xlu0 %1461, %v1348
    %v1463 = vpop.permute.xlu0 %1462
    %1466 = vset.pattern.permute.xlu0 0
    %1467 = vperm.xlu0 %1466, %v1349
    %v1468 = vpop.permute.xlu0 %1467
    %1471 = vset.pattern.permute.xlu0 0
    %1472 = vperm.xlu0 %1471, %v1350
    %v1473 = vpop.permute.xlu0 %1472
    %1476 = vset.pattern.permute.xlu0 0
    %1477 = vperm.xlu0 %1476, %v1351
    %v1478 = vpop.permute.xlu0 %1477
    %1481 = vset.pattern.permute.xlu0 0
    %1482 = vperm.xlu0 %1481, %v1352
    %v1483 = vpop.permute.xlu0 %1482
    %1486 = vset.pattern.permute.xlu0 0
    %1487 = vperm.xlu0 %1486, %v1353
    %v1488 = vpop.permute.xlu0 %1487
    %1491 = vset.pattern.permute.xlu0 0
    %1492 = vperm.xlu0 %1491, %v1354
    %v1493 = vpop.permute.xlu0 %1492
    %1496 = vset.pattern.permute.xlu0 0
    %1497 = vperm.xlu0 %1496, %v1355
    %v1498 = vpop.permute.xlu0 %1497
    %1501 = vset.pattern.permute.xlu0 0
    %1502 = vperm.xlu0 %1501, %v1356
    %v1503 = vpop.permute.xlu0 %1502
    %1506 = vset.pattern.permute.xlu0 0
    %1507 = vperm.xlu0 %1506, %v1357
    %v1508 = vpop.permute.xlu0 %1507
    %1511 = vset.pattern.permute.xlu0 0
    %1512 = vperm.xlu0 %1511, %v1358
    %v1513 = vpop.permute.xlu0 %1512
    %1516 = vset.pattern.permute.xlu0 0
    %1517 = vperm.xlu0 %1516, %v1359
    %v1518 = vpop.permute.xlu0 %1517
    %v1520 = vmul.f32 %v135, %v1363
    %v1521 = vmul.f32 %v134, %v1368
    %v1522 = vmul.f32 %v133, %v1373
    %v1523 = vmul.f32 %v132, %v1378
    %v1524 = vmul.f32 %v131, %v1383
    %v1525 = vmul.f32 %v130, %v1388
    %v1526 = vmul.f32 %v129, %v1393
    %v1527 = vmul.f32 %v128, %v1398
    %v1528 = vmul.f32 %v127, %v1403
    %v1529 = vmul.f32 %v126, %v1408
    %v1530 = vmul.f32 %v125, %v1413
    %v1531 = vmul.f32 %v124, %v1418
    %v1532 = vmul.f32 %v123, %v1423
    %v1533 = vmul.f32 %v122, %v1428
    %v1534 = vmul.f32 %v121, %v1433
    %v1535 = vmul.f32 %v120, %v1438
    %v1536 = vmul.f32 %v119, %v1443
    %v1537 = vmul.f32 %v118, %v1448
    %v1538 = vmul.f32 %v117, %v1453
    %v1539 = vmul.f32 %v116, %v1458
    %v1540 = vmul.f32 %v115, %v1463
    %v1541 = vmul.f32 %v114, %v1468
    %v1542 = vmul.f32 %v113, %v1473
    %v1543 = vmul.f32 %v112, %v1478
    %v1544 = vmul.f32 %v111, %v1483
    %v1545 = vmul.f32 %v110, %v1488
    %v1546 = vmul.f32 %v109, %v1493
    %v1547 = vmul.f32 %v108, %v1498
    %v1548 = vmul.f32 %v107, %v1503
    %v1549 = vmul.f32 %v106, %v1508
    %v1550 = vmul.f32 %v137, %v1513
    %v1551 = vmul.f32 %v136, %v1518
    %s1552 = scalar_lea.vmem %s4, 1792
    %v1553 = vld [vmem:[%s1552] sm:$0xff]
    %v1554 = vld [vmem:[%s1552 + $0x8] sm:$0xff]
    %v1555 = vld [vmem:[%s1552 + $0x10] sm:$0xff]
    %v1556 = vld [vmem:[%s1552 + $0x18] sm:$0xff]
    %v1557 = vld [vmem:[%s1552 + $0x20] sm:$0xff]
    %v1558 = vld [vmem:[%s1552 + $0x28] sm:$0xff]
    %v1559 = vld [vmem:[%s1552 + $0x30] sm:$0xff]
    %v1560 = vld [vmem:[%s1552 + $0x38] sm:$0xff]
    %v1561 = vld [vmem:[%s1552 + $0x40] sm:$0xff]
    %v1562 = vld [vmem:[%s1552 + $0x48] sm:$0xff]
    %v1563 = vld [vmem:[%s1552 + $0x50] sm:$0xff]
    %v1564 = vld [vmem:[%s1552 + $0x58] sm:$0xff]
    %v1565 = vld [vmem:[%s1552 + $0x60] sm:$0xff]
    %v1566 = vld [vmem:[%s1552 + $0x68] sm:$0xff]
    %v1567 = vld [vmem:[%s1552 + $0x70] sm:$0xff]
    %v1568 = vld [vmem:[%s1552 + $0x78] sm:$0xff]
    %v1569 = vld [vmem:[%s1552 + $0x80] sm:$0xff]
    %v1570 = vld [vmem:[%s1552 + $0x88] sm:$0xff]
    %v1571 = vld [vmem:[%s1552 + $0x90] sm:$0xff]
    %v1572 = vld [vmem:[%s1552 + $0x98] sm:$0xff]
    %v1573 = vld [vmem:[%s1552 + $0xa0] sm:$0xff]
    %v1574 = vld [vmem:[%s1552 + $0xa8] sm:$0xff]
    %v1575 = vld [vmem:[%s1552 + $0xb0] sm:$0xff]
    %v1576 = vld [vmem:[%s1552 + $0xb8] sm:$0xff]
    %v1577 = vld [vmem:[%s1552 + $0xc0] sm:$0xff]
    %v1578 = vld [vmem:[%s1552 + $0xc8] sm:$0xff]
    %v1579 = vld [vmem:[%s1552 + $0xd0] sm:$0xff]
    %v1580 = vld [vmem:[%s1552 + $0xd8] sm:$0xff]
    %v1581 = vld [vmem:[%s1552 + $0xe0] sm:$0xff]
    %v1582 = vld [vmem:[%s1552 + $0xe8] sm:$0xff]
    %v1583 = vld [vmem:[%s1552 + $0xf0] sm:$0xff]
    %v1584 = vld [vmem:[%s1552 + $0xf8] sm:$0xff]
    %1586 = vset.pattern.permute.xlu0 0
    %1587 = vperm.xlu0 %1586, %v1553
    %v1588 = vpop.permute.xlu0 %1587
    %1591 = vset.pattern.permute.xlu0 0
    %1592 = vperm.xlu0 %1591, %v1554
    %v1593 = vpop.permute.xlu0 %1592
    %1596 = vset.pattern.permute.xlu0 0
    %1597 = vperm.xlu0 %1596, %v1555
    %v1598 = vpop.permute.xlu0 %1597
    %1601 = vset.pattern.permute.xlu0 0
    %1602 = vperm.xlu0 %1601, %v1556
    %v1603 = vpop.permute.xlu0 %1602
    %1606 = vset.pattern.permute.xlu0 0
    %1607 = vperm.xlu0 %1606, %v1557
    %v1608 = vpop.permute.xlu0 %1607
    %1611 = vset.pattern.permute.xlu0 0
    %1612 = vperm.xlu0 %1611, %v1558
    %v1613 = vpop.permute.xlu0 %1612
    %1616 = vset.pattern.permute.xlu0 0
    %1617 = vperm.xlu0 %1616, %v1559
    %v1618 = vpop.permute.xlu0 %1617
    %1621 = vset.pattern.permute.xlu0 0
    %1622 = vperm.xlu0 %1621, %v1560
    %v1623 = vpop.permute.xlu0 %1622
    %1626 = vset.pattern.permute.xlu0 0
    %1627 = vperm.xlu0 %1626, %v1561
    %v1628 = vpop.permute.xlu0 %1627
    %1631 = vset.pattern.permute.xlu0 0
    %1632 = vperm.xlu0 %1631, %v1562
    %v1633 = vpop.permute.xlu0 %1632
    %1636 = vset.pattern.permute.xlu0 0
    %1637 = vperm.xlu0 %1636, %v1563
    %v1638 = vpop.permute.xlu0 %1637
    %1641 = vset.pattern.permute.xlu0 0
    %1642 = vperm.xlu0 %1641, %v1564
    %v1643 = vpop.permute.xlu0 %1642
    %1646 = vset.pattern.permute.xlu0 0
    %1647 = vperm.xlu0 %1646, %v1565
    %v1648 = vpop.permute.xlu0 %1647
    %1651 = vset.pattern.permute.xlu0 0
    %1652 = vperm.xlu0 %1651, %v1566
    %v1653 = vpop.permute.xlu0 %1652
    %1656 = vset.pattern.permute.xlu0 0
    %1657 = vperm.xlu0 %1656, %v1567
    %v1658 = vpop.permute.xlu0 %1657
    %1661 = vset.pattern.permute.xlu0 0
    %1662 = vperm.xlu0 %1661, %v1568
    %v1663 = vpop.permute.xlu0 %1662
    %1666 = vset.pattern.permute.xlu0 0
    %1667 = vperm.xlu0 %1666, %v1569
    %v1668 = vpop.permute.xlu0 %1667
    %1671 = vset.pattern.permute.xlu0 0
    %1672 = vperm.xlu0 %1671, %v1570
    %v1673 = vpop.permute.xlu0 %1672
    %1676 = vset.pattern.permute.xlu0 0
    %1677 = vperm.xlu0 %1676, %v1571
    %v1678 = vpop.permute.xlu0 %1677
    %1681 = vset.pattern.permute.xlu0 0
    %1682 = vperm.xlu0 %1681, %v1572
    %v1683 = vpop.permute.xlu0 %1682
    %1686 = vset.pattern.permute.xlu0 0
    %1687 = vperm.xlu0 %1686, %v1573
    %v1688 = vpop.permute.xlu0 %1687
    %1691 = vset.pattern.permute.xlu0 0
    %1692 = vperm.xlu0 %1691, %v1574
    %v1693 = vpop.permute.xlu0 %1692
    %1696 = vset.pattern.permute.xlu0 0
    %1697 = vperm.xlu0 %1696, %v1575
    %v1698 = vpop.permute.xlu0 %1697
    %1701 = vset.pattern.permute.xlu0 0
    %1702 = vperm.xlu0 %1701, %v1576
    %v1703 = vpop.permute.xlu0 %1702
    %1706 = vset.pattern.permute.xlu0 0
    %1707 = vperm.xlu0 %1706, %v1577
    %v1708 = vpop.permute.xlu0 %1707
    %1711 = vset.pattern.permute.xlu0 0
    %1712 = vperm.xlu0 %1711, %v1578
    %v1713 = vpop.permute.xlu0 %1712
    %1716 = vset.pattern.permute.xlu0 0
    %1717 = vperm.xlu0 %1716, %v1579
    %v1718 = vpop.permute.xlu0 %1717
    %1721 = vset.pattern.permute.xlu0 0
    %1722 = vperm.xlu0 %1721, %v1580
    %v1723 = vpop.permute.xlu0 %1722
    %1726 = vset.pattern.permute.xlu0 0
    %1727 = vperm.xlu0 %1726, %v1581
    %v1728 = vpop.permute.xlu0 %1727
    %1731 = vset.pattern.permute.xlu0 0
    %1732 = vperm.xlu0 %1731, %v1582
    %v1733 = vpop.permute.xlu0 %1732
    %1736 = vset.pattern.permute.xlu0 0
    %1737 = vperm.xlu0 %1736, %v1583
    %v1738 = vpop.permute.xlu0 %1737
    %1741 = vset.pattern.permute.xlu0 0
    %1742 = vperm.xlu0 %1741, %v1584
    %v1743 = vpop.permute.xlu0 %1742
    %v1745 = vmul.f32 %v41, %v1588
    %v1746 = vmul.f32 %v42, %v1593
    %v1747 = vmul.f32 %v43, %v1598
    %v1748 = vmul.f32 %v44, %v1603
    %v1749 = vmul.f32 %v45, %v1608
    %v1750 = vmul.f32 %v46, %v1613
    %v1751 = vmul.f32 %v47, %v1618
    %v1752 = vmul.f32 %v48, %v1623
    %v1753 = vmul.f32 %v49, %v1628
    %v1754 = vmul.f32 %v50, %v1633
    %v1755 = vmul.f32 %v51, %v1638
    %v1756 = vmul.f32 %v52, %v1643
    %v1757 = vmul.f32 %v53, %v1648
    %v1758 = vmul.f32 %v54, %v1653
    %v1759 = vmul.f32 %v55, %v1658
    %v1760 = vmul.f32 %v56, %v1663
    %v1761 = vmul.f32 %v57, %v1668
    %v1762 = vmul.f32 %v58, %v1673
    %v1763 = vmul.f32 %v59, %v1678
    %v1764 = vmul.f32 %v60, %v1683
    %v1765 = vmul.f32 %v61, %v1688
    %v1766 = vmul.f32 %v62, %v1693
    %v1767 = vmul.f32 %v63, %v1698
    %v1768 = vmul.f32 %v64, %v1703
    %v1769 = vmul.f32 %v65, %v1708
    %v1770 = vmul.f32 %v66, %v1713
    %v1771 = vmul.f32 %v67, %v1718
    %v1772 = vmul.f32 %v68, %v1723
    %v1773 = vmul.f32 %v69, %v1728
    %v1774 = vmul.f32 %v70, %v1733
    %v1775 = vmul.f32 %v39, %v1738
    %v1776 = vmul.f32 %v40, %v1743
    %s1777 = scalar_lea.vmem %s4, 2048
    %v1778 = vld [vmem:[%s1777] sm:$0xff]
    %v1779 = vld [vmem:[%s1777 + $0x8] sm:$0xff]
    %v1780 = vld [vmem:[%s1777 + $0x10] sm:$0xff]
    %v1781 = vld [vmem:[%s1777 + $0x18] sm:$0xff]
    %v1782 = vld [vmem:[%s1777 + $0x20] sm:$0xff]
    %v1783 = vld [vmem:[%s1777 + $0x28] sm:$0xff]
    %v1784 = vld [vmem:[%s1777 + $0x30] sm:$0xff]
    %v1785 = vld [vmem:[%s1777 + $0x38] sm:$0xff]
    %v1786 = vld [vmem:[%s1777 + $0x40] sm:$0xff]
    %v1787 = vld [vmem:[%s1777 + $0x48] sm:$0xff]
    %v1788 = vld [vmem:[%s1777 + $0x50] sm:$0xff]
    %v1789 = vld [vmem:[%s1777 + $0x58] sm:$0xff]
    %v1790 = vld [vmem:[%s1777 + $0x60] sm:$0xff]
    %v1791 = vld [vmem:[%s1777 + $0x68] sm:$0xff]
    %v1792 = vld [vmem:[%s1777 + $0x70] sm:$0xff]
    %v1793 = vld [vmem:[%s1777 + $0x78] sm:$0xff]
    %v1794 = vld [vmem:[%s1777 + $0x80] sm:$0xff]
    %v1795 = vld [vmem:[%s1777 + $0x88] sm:$0xff]
    %v1796 = vld [vmem:[%s1777 + $0x90] sm:$0xff]
    %v1797 = vld [vmem:[%s1777 + $0x98] sm:$0xff]
    %v1798 = vld [vmem:[%s1777 + $0xa0] sm:$0xff]
    %v1799 = vld [vmem:[%s1777 + $0xa8] sm:$0xff]
    %v1800 = vld [vmem:[%s1777 + $0xb0] sm:$0xff]
    %v1801 = vld [vmem:[%s1777 + $0xb8] sm:$0xff]
    %v1802 = vld [vmem:[%s1777 + $0xc0] sm:$0xff]
    %v1803 = vld [vmem:[%s1777 + $0xc8] sm:$0xff]
    %v1804 = vld [vmem:[%s1777 + $0xd0] sm:$0xff]
    %v1805 = vld [vmem:[%s1777 + $0xd8] sm:$0xff]
    %v1806 = vld [vmem:[%s1777 + $0xe0] sm:$0xff]
    %v1807 = vld [vmem:[%s1777 + $0xe8] sm:$0xff]
    %v1808 = vld [vmem:[%s1777 + $0xf0] sm:$0xff]
    %v1809 = vld [vmem:[%s1777 + $0xf8] sm:$0xff]
    %1811 = vset.pattern.permute.xlu0 0
    %1812 = vperm.xlu0 %1811, %v1778
    %v1813 = vpop.permute.xlu0 %1812
    %1816 = vset.pattern.permute.xlu0 0
    %1817 = vperm.xlu0 %1816, %v1779
    %v1818 = vpop.permute.xlu0 %1817
    %1821 = vset.pattern.permute.xlu0 0
    %1822 = vperm.xlu0 %1821, %v1780
    %v1823 = vpop.permute.xlu0 %1822
    %1826 = vset.pattern.permute.xlu0 0
    %1827 = vperm.xlu0 %1826, %v1781
    %v1828 = vpop.permute.xlu0 %1827
    %1831 = vset.pattern.permute.xlu0 0
    %1832 = vperm.xlu0 %1831, %v1782
    %v1833 = vpop.permute.xlu0 %1832
    %1836 = vset.pattern.permute.xlu0 0
    %1837 = vperm.xlu0 %1836, %v1783
    %v1838 = vpop.permute.xlu0 %1837
    %1841 = vset.pattern.permute.xlu0 0
    %1842 = vperm.xlu0 %1841, %v1784
    %v1843 = vpop.permute.xlu0 %1842
    %1846 = vset.pattern.permute.xlu0 0
    %1847 = vperm.xlu0 %1846, %v1785
    %v1848 = vpop.permute.xlu0 %1847
    %1851 = vset.pattern.permute.xlu0 0
    %1852 = vperm.xlu0 %1851, %v1786
    %v1853 = vpop.permute.xlu0 %1852
    %1856 = vset.pattern.permute.xlu0 0
    %1857 = vperm.xlu0 %1856, %v1787
    %v1858 = vpop.permute.xlu0 %1857
    %1861 = vset.pattern.permute.xlu0 0
    %1862 = vperm.xlu0 %1861, %v1788
    %v1863 = vpop.permute.xlu0 %1862
    %1866 = vset.pattern.permute.xlu0 0
    %1867 = vperm.xlu0 %1866, %v1789
    %v1868 = vpop.permute.xlu0 %1867
    %1871 = vset.pattern.permute.xlu0 0
    %1872 = vperm.xlu0 %1871, %v1790
    %v1873 = vpop.permute.xlu0 %1872
    %1876 = vset.pattern.permute.xlu0 0
    %1877 = vperm.xlu0 %1876, %v1791
    %v1878 = vpop.permute.xlu0 %1877
    %1881 = vset.pattern.permute.xlu0 0
    %1882 = vperm.xlu0 %1881, %v1792
    %v1883 = vpop.permute.xlu0 %1882
    %1886 = vset.pattern.permute.xlu0 0
    %1887 = vperm.xlu0 %1886, %v1793
    %v1888 = vpop.permute.xlu0 %1887
    %1891 = vset.pattern.permute.xlu0 0
    %1892 = vperm.xlu0 %1891, %v1794
    %v1893 = vpop.permute.xlu0 %1892
    %1896 = vset.pattern.permute.xlu0 0
    %1897 = vperm.xlu0 %1896, %v1795
    %v1898 = vpop.permute.xlu0 %1897
    %1901 = vset.pattern.permute.xlu0 0
    %1902 = vperm.xlu0 %1901, %v1796
    %v1903 = vpop.permute.xlu0 %1902
    %1906 = vset.pattern.permute.xlu0 0
    %1907 = vperm.xlu0 %1906, %v1797
    %v1908 = vpop.permute.xlu0 %1907
    %1911 = vset.pattern.permute.xlu0 0
    %1912 = vperm.xlu0 %1911, %v1798
    %v1913 = vpop.permute.xlu0 %1912
    %1916 = vset.pattern.permute.xlu0 0
    %1917 = vperm.xlu0 %1916, %v1799
    %v1918 = vpop.permute.xlu0 %1917
    %1921 = vset.pattern.permute.xlu0 0
    %1922 = vperm.xlu0 %1921, %v1800
    %v1923 = vpop.permute.xlu0 %1922
    %1926 = vset.pattern.permute.xlu0 0
    %1927 = vperm.xlu0 %1926, %v1801
    %v1928 = vpop.permute.xlu0 %1927
    %1931 = vset.pattern.permute.xlu0 0
    %1932 = vperm.xlu0 %1931, %v1802
    %v1933 = vpop.permute.xlu0 %1932
    %1936 = vset.pattern.permute.xlu0 0
    %1937 = vperm.xlu0 %1936, %v1803
    %v1938 = vpop.permute.xlu0 %1937
    %1941 = vset.pattern.permute.xlu0 0
    %1942 = vperm.xlu0 %1941, %v1804
    %v1943 = vpop.permute.xlu0 %1942
    %1946 = vset.pattern.permute.xlu0 0
    %1947 = vperm.xlu0 %1946, %v1805
    %v1948 = vpop.permute.xlu0 %1947
    %1951 = vset.pattern.permute.xlu0 0
    %1952 = vperm.xlu0 %1951, %v1806
    %v1953 = vpop.permute.xlu0 %1952
    %1956 = vset.pattern.permute.xlu0 0
    %1957 = vperm.xlu0 %1956, %v1807
    %v1958 = vpop.permute.xlu0 %1957
    %1961 = vset.pattern.permute.xlu0 0
    %1962 = vperm.xlu0 %1961, %v1808
    %v1963 = vpop.permute.xlu0 %1962
    %1966 = vset.pattern.permute.xlu0 0
    %1967 = vperm.xlu0 %1966, %v1809
    %v1968 = vpop.permute.xlu0 %1967
    %v1970 = vmul.f32 %v648, %v1813
    %v1971 = vmul.f32 %v647, %v1818
    %v1972 = vmul.f32 %v646, %v1823
    %v1973 = vmul.f32 %v645, %v1828
    %v1974 = vmul.f32 %v644, %v1833
    %v1975 = vmul.f32 %v643, %v1838
    %v1976 = vmul.f32 %v642, %v1843
    %v1977 = vmul.f32 %v641, %v1848
    %v1978 = vmul.f32 %v640, %v1853
    %v1979 = vmul.f32 %v639, %v1858
    %v1980 = vmul.f32 %v638, %v1863
    %v1981 = vmul.f32 %v637, %v1868
    %v1982 = vmul.f32 %v636, %v1873
    %v1983 = vmul.f32 %v635, %v1878
    %v1984 = vmul.f32 %v634, %v1883
    %v1985 = vmul.f32 %v633, %v1888
    %v1986 = vmul.f32 %v632, %v1893
    %v1987 = vmul.f32 %v631, %v1898
    %v1988 = vmul.f32 %v630, %v1903
    %v1989 = vmul.f32 %v629, %v1908
    %v1990 = vmul.f32 %v628, %v1913
    %v1991 = vmul.f32 %v627, %v1918
    %v1992 = vmul.f32 %v626, %v1923
    %v1993 = vmul.f32 %v625, %v1928
    %v1994 = vmul.f32 %v624, %v1933
    %v1995 = vmul.f32 %v623, %v1938
    %v1996 = vmul.f32 %v622, %v1943
    %v1997 = vmul.f32 %v621, %v1948
    %v1998 = vmul.f32 %v620, %v1953
    %v1999 = vmul.f32 %v651, %v1958
    %v2000 = vmul.f32 %v650, %v1963
    %v2001 = vmul.f32 %v649, %v1968
    %v2002 = vld [vmem:[%s1] sm:$0xff]
    %v2003 = vld [vmem:[%s1 + $0x8] sm:$0xff]
    %v2004 = vld [vmem:[%s1 + $0x10] sm:$0xff]
    %v2005 = vld [vmem:[%s1 + $0x18] sm:$0xff]
    %v2006 = vld [vmem:[%s1 + $0x20] sm:$0xff]
    %v2007 = vld [vmem:[%s1 + $0x28] sm:$0xff]
    %v2008 = vld [vmem:[%s1 + $0x30] sm:$0xff]
    %v2009 = vld [vmem:[%s1 + $0x38] sm:$0xff]
    %v2010 = vld [vmem:[%s1 + $0x40] sm:$0xff]
    %v2011 = vld [vmem:[%s1 + $0x48] sm:$0xff]
    %v2012 = vld [vmem:[%s1 + $0x50] sm:$0xff]
    %v2013 = vld [vmem:[%s1 + $0x58] sm:$0xff]
    %v2014 = vld [vmem:[%s1 + $0x60] sm:$0xff]
    %v2015 = vld [vmem:[%s1 + $0x68] sm:$0xff]
    %v2016 = vld [vmem:[%s1 + $0x70] sm:$0xff]
    %v2017 = vld [vmem:[%s1 + $0x78] sm:$0xff]
    %v2018 = vld [vmem:[%s1 + $0x80] sm:$0xff]
    %v2019 = vld [vmem:[%s1 + $0x88] sm:$0xff]
    %v2020 = vld [vmem:[%s1 + $0x90] sm:$0xff]
    %v2021 = vld [vmem:[%s1 + $0x98] sm:$0xff]
    %v2022 = vld [vmem:[%s1 + $0xa0] sm:$0xff]
    %v2023 = vld [vmem:[%s1 + $0xa8] sm:$0xff]
    %v2024 = vld [vmem:[%s1 + $0xb0] sm:$0xff]
    %v2025 = vld [vmem:[%s1 + $0xb8] sm:$0xff]
    %v2026 = vld [vmem:[%s1 + $0xc0] sm:$0xff]
    %v2027 = vld [vmem:[%s1 + $0xc8] sm:$0xff]
    %v2028 = vld [vmem:[%s1 + $0xd0] sm:$0xff]
    %v2029 = vld [vmem:[%s1 + $0xd8] sm:$0xff]
    %v2030 = vld [vmem:[%s1 + $0xe0] sm:$0xff]
    %v2031 = vld [vmem:[%s1 + $0xe8] sm:$0xff]
    %v2032 = vld [vmem:[%s1 + $0xf0] sm:$0xff]
    %v2033 = vld [vmem:[%s1 + $0xf8] sm:$0xff]
    %v2034 = vld [vmem:[%s1 + $0x100] sm:$0xff]
    %v2035 = vld [vmem:[%s1 + $0x108] sm:$0xff]
    %v2036 = vld [vmem:[%s1 + $0x110] sm:$0xff]
    %v2037 = vld [vmem:[%s1 + $0x118] sm:$0xff]
    %v2038 = vld [vmem:[%s1 + $0x120] sm:$0xff]
    %v2039 = vld [vmem:[%s1 + $0x128] sm:$0xff]
    %v2040 = vld [vmem:[%s1 + $0x130] sm:$0xff]
    %v2041 = vld [vmem:[%s1 + $0x138] sm:$0xff]
    %v2042 = vld [vmem:[%s1 + $0x140] sm:$0xff]
    %v2043 = vld [vmem:[%s1 + $0x148] sm:$0xff]
    %v2044 = vld [vmem:[%s1 + $0x150] sm:$0xff]
    %v2045 = vld [vmem:[%s1 + $0x158] sm:$0xff]
    %v2046 = vld [vmem:[%s1 + $0x160] sm:$0xff]
    %v2047 = vld [vmem:[%s1 + $0x168] sm:$0xff]
    %v2048 = vld [vmem:[%s1 + $0x170] sm:$0xff]
    %v2049 = vld [vmem:[%s1 + $0x178] sm:$0xff]
    %v2050 = vld [vmem:[%s1 + $0x180] sm:$0xff]
    %v2051 = vld [vmem:[%s1 + $0x188] sm:$0xff]
    %v2052 = vld [vmem:[%s1 + $0x190] sm:$0xff]
    %v2053 = vld [vmem:[%s1 + $0x198] sm:$0xff]
    %v2054 = vld [vmem:[%s1 + $0x1a0] sm:$0xff]
    %v2055 = vld [vmem:[%s1 + $0x1a8] sm:$0xff]
    %v2056 = vld [vmem:[%s1 + $0x1b0] sm:$0xff]
    %v2057 = vld [vmem:[%s1 + $0x1b8] sm:$0xff]
    %v2058 = vld [vmem:[%s1 + $0x1c0] sm:$0xff]
    %v2059 = vld [vmem:[%s1 + $0x1c8] sm:$0xff]
    %v2060 = vld [vmem:[%s1 + $0x1d0] sm:$0xff]
    %v2061 = vld [vmem:[%s1 + $0x1d8] sm:$0xff]
    %v2062 = vld [vmem:[%s1 + $0x1e0] sm:$0xff]
    %v2063 = vld [vmem:[%s1 + $0x1e8] sm:$0xff]
    %v2064 = vld [vmem:[%s1 + $0x1f0] sm:$0xff]
    %v2065 = vld [vmem:[%s1 + $0x1f8] sm:$0xff]
    %v2066 = vld [vmem:[%s1 + $0x200] sm:$0xff]
    %v2067 = vld [vmem:[%s1 + $0x208] sm:$0xff]
    %v2068 = vld [vmem:[%s1 + $0x210] sm:$0xff]
    %v2069 = vld [vmem:[%s1 + $0x218] sm:$0xff]
    %v2070 = vld [vmem:[%s1 + $0x220] sm:$0xff]
    %v2071 = vld [vmem:[%s1 + $0x228] sm:$0xff]
    %v2072 = vld [vmem:[%s1 + $0x230] sm:$0xff]
    %v2073 = vld [vmem:[%s1 + $0x238] sm:$0xff]
    %v2074 = vld [vmem:[%s1 + $0x240] sm:$0xff]
    %v2075 = vld [vmem:[%s1 + $0x248] sm:$0xff]
    %v2076 = vld [vmem:[%s1 + $0x250] sm:$0xff]
    %v2077 = vld [vmem:[%s1 + $0x258] sm:$0xff]
    %v2078 = vld [vmem:[%s1 + $0x260] sm:$0xff]
    %v2079 = vld [vmem:[%s1 + $0x268] sm:$0xff]
    %v2080 = vld [vmem:[%s1 + $0x270] sm:$0xff]
    %v2081 = vld [vmem:[%s1 + $0x278] sm:$0xff]
    %v2082 = vld [vmem:[%s1 + $0x280] sm:$0xff]
    %v2083 = vld [vmem:[%s1 + $0x288] sm:$0xff]
    %v2084 = vld [vmem:[%s1 + $0x290] sm:$0xff]
    %v2085 = vld [vmem:[%s1 + $0x298] sm:$0xff]
    %v2086 = vld [vmem:[%s1 + $0x2a0] sm:$0xff]
    %v2087 = vld [vmem:[%s1 + $0x2a8] sm:$0xff]
    %v2088 = vld [vmem:[%s1 + $0x2b0] sm:$0xff]
    %v2089 = vld [vmem:[%s1 + $0x2b8] sm:$0xff]
    %v2090 = vld [vmem:[%s1 + $0x2c0] sm:$0xff]
    %v2091 = vld [vmem:[%s1 + $0x2c8] sm:$0xff]
    %v2092 = vld [vmem:[%s1 + $0x2d0] sm:$0xff]
    %v2093 = vld [vmem:[%s1 + $0x2d8] sm:$0xff]
    %v2094 = vld [vmem:[%s1 + $0x2e0] sm:$0xff]
    %v2095 = vld [vmem:[%s1 + $0x2e8] sm:$0xff]
    %v2096 = vld [vmem:[%s1 + $0x2f0] sm:$0xff]
    %v2097 = vld [vmem:[%s1 + $0x2f8] sm:$0xff]
    %v2098 = vld [vmem:[%s1 + $0x300] sm:$0xff]
    %v2099 = vld [vmem:[%s1 + $0x308] sm:$0xff]
    %v2100 = vld [vmem:[%s1 + $0x310] sm:$0xff]
    %v2101 = vld [vmem:[%s1 + $0x318] sm:$0xff]
    %v2102 = vld [vmem:[%s1 + $0x320] sm:$0xff]
    %v2103 = vld [vmem:[%s1 + $0x328] sm:$0xff]
    %v2104 = vld [vmem:[%s1 + $0x330] sm:$0xff]
    %v2105 = vld [vmem:[%s1 + $0x338] sm:$0xff]
    %v2106 = vld [vmem:[%s1 + $0x340] sm:$0xff]
    %v2107 = vld [vmem:[%s1 + $0x348] sm:$0xff]
    %v2108 = vld [vmem:[%s1 + $0x350] sm:$0xff]
    %v2109 = vld [vmem:[%s1 + $0x358] sm:$0xff]
    %v2110 = vld [vmem:[%s1 + $0x360] sm:$0xff]
    %v2111 = vld [vmem:[%s1 + $0x368] sm:$0xff]
    %v2112 = vld [vmem:[%s1 + $0x370] sm:$0xff]
    %v2113 = vld [vmem:[%s1 + $0x378] sm:$0xff]
    %v2114 = vld [vmem:[%s1 + $0x380] sm:$0xff]
    %v2115 = vld [vmem:[%s1 + $0x388] sm:$0xff]
    %v2116 = vld [vmem:[%s1 + $0x390] sm:$0xff]
    %v2117 = vld [vmem:[%s1 + $0x398] sm:$0xff]
    %v2118 = vld [vmem:[%s1 + $0x3a0] sm:$0xff]
    %v2119 = vld [vmem:[%s1 + $0x3a8] sm:$0xff]
    %v2120 = vld [vmem:[%s1 + $0x3b0] sm:$0xff]
    %v2121 = vld [vmem:[%s1 + $0x3b8] sm:$0xff]
    %v2122 = vld [vmem:[%s1 + $0x3c0] sm:$0xff]
    %v2123 = vld [vmem:[%s1 + $0x3c8] sm:$0xff]
    %v2124 = vld [vmem:[%s1 + $0x3d0] sm:$0xff]
    %v2125 = vld [vmem:[%s1 + $0x3d8] sm:$0xff]
    %v2126 = vld [vmem:[%s1 + $0x3e0] sm:$0xff]
    %v2127 = vld [vmem:[%s1 + $0x3e8] sm:$0xff]
    %v2128 = vld [vmem:[%s1 + $0x3f0] sm:$0xff]
    %v2129 = vld [vmem:[%s1 + $0x3f8] sm:$0xff]
    %v2130 = vld [vmem:[%s1 + $0x400] sm:$0xff]
    %v2131 = vld [vmem:[%s1 + $0x408] sm:$0xff]
    %v2132 = vld [vmem:[%s1 + $0x410] sm:$0xff]
    %v2133 = vld [vmem:[%s1 + $0x418] sm:$0xff]
    %v2134 = vld [vmem:[%s1 + $0x420] sm:$0xff]
    %v2135 = vld [vmem:[%s1 + $0x428] sm:$0xff]
    %v2136 = vld [vmem:[%s1 + $0x430] sm:$0xff]
    %v2137 = vld [vmem:[%s1 + $0x438] sm:$0xff]
    %v2138 = vld [vmem:[%s1 + $0x440] sm:$0xff]
    %v2139 = vld [vmem:[%s1 + $0x448] sm:$0xff]
    %v2140 = vld [vmem:[%s1 + $0x450] sm:$0xff]
    %v2141 = vld [vmem:[%s1 + $0x458] sm:$0xff]
    %v2142 = vld [vmem:[%s1 + $0x460] sm:$0xff]
    %v2143 = vld [vmem:[%s1 + $0x468] sm:$0xff]
    %v2144 = vld [vmem:[%s1 + $0x470] sm:$0xff]
    %v2145 = vld [vmem:[%s1 + $0x478] sm:$0xff]
    %2146 = vmatpush.msra.mxu0 %v2017
    %2147 = vmatpush.msra.mxu0 %v2016
    %2148 = vmatpush.msra.mxu0 %v2015
    %2149 = vmatpush.msra.mxu0 %v2014
    %2150 = vmatpush.msra.mxu0 %v2013
    %2151 = vmatpush.msra.mxu0 %v2012
    %2152 = vmatpush.msra.mxu0 %v2011
    %2153 = vmatpush.msra.mxu0 %v2010
    %2154 = vmatpush.msra.mxu0 %v2009
    %2155 = vmatpush.msra.mxu0 %v2008
    %2156 = vmatpush.msra.mxu0 %v2007
    %2157 = vmatpush.msra.mxu0 %v2006
    %2158 = vmatpush.msra.mxu0 %v2005
    %2159 = vmatpush.msra.mxu0 %v2004
    %2160 = vmatpush.msra.mxu0 %v2003
    %2161 = vmatpush.msra.mxu0 %v2002
    %2162 = vmatmul.f32.gmra.mxu0 %v330
    %v2163 = vpop.f32.mrf.mxu0
    %v2164 = vadd.f32 0.0, %v2163
    %2165 = vmatmul.f32.gmra.mxu0 %v331
    %v2166 = vpop.f32.mrf.mxu0
    %v2167 = vadd.f32 0.0, %v2166
    %2168 = vmatmul.f32.gmra.mxu0 %v332
    %v2169 = vpop.f32.mrf.mxu0
    %v2170 = vadd.f32 0.0, %v2169
    %2171 = vmatmul.f32.gmra.mxu0 %v333
    %v2172 = vpop.f32.mrf.mxu0
    %v2173 = vadd.f32 0.0, %v2172
    %2174 = vmatmul.f32.gmra.mxu0 %v334
    %v2175 = vpop.f32.mrf.mxu0
    %v2176 = vadd.f32 0.0, %v2175
    %2177 = vmatmul.f32.gmra.mxu0 %v335
    %v2178 = vpop.f32.mrf.mxu0
    %v2179 = vadd.f32 0.0, %v2178
    %2180 = vmatmul.f32.gmra.mxu0 %v336
    %v2181 = vpop.f32.mrf.mxu0
    %v2182 = vadd.f32 0.0, %v2181
    %2183 = vmatmul.f32.gmra.mxu0 %v337
    %v2184 = vpop.f32.mrf.mxu0
    %v2185 = vadd.f32 0.0, %v2184
    %2186 = vmatmul.f32.gmra.mxu0 %v338
    %v2187 = vpop.f32.mrf.mxu0
    %v2188 = vadd.f32 0.0, %v2187
    %2189 = vmatmul.f32.gmra.mxu0 %v339
    %v2190 = vpop.f32.mrf.mxu0
    %v2191 = vadd.f32 0.0, %v2190
    %2192 = vmatmul.f32.gmra.mxu0 %v340
    %v2193 = vpop.f32.mrf.mxu0
    %v2194 = vadd.f32 0.0, %v2193
    %2195 = vmatmul.f32.gmra.mxu0 %v341
    %v2196 = vpop.f32.mrf.mxu0
    %v2197 = vadd.f32 0.0, %v2196
    %2198 = vmatmul.f32.gmra.mxu0 %v342
    %v2199 = vpop.f32.mrf.mxu0
    %v2200 = vadd.f32 0.0, %v2199
    %2201 = vmatmul.f32.gmra.mxu0 %v343
    %v2202 = vpop.f32.mrf.mxu0
    %v2203 = vadd.f32 0.0, %v2202
    %2204 = vmatmul.f32.gmra.mxu0 %v344
    %v2205 = vpop.f32.mrf.mxu0
    %v2206 = vadd.f32 0.0, %v2205
    %2207 = vmatmul.f32.gmra.mxu0 %v345
    %v2208 = vpop.f32.mrf.mxu0
    %v2209 = vadd.f32 0.0, %v2208
    %2210 = vmatmul.f32.gmra.mxu0 %v346
    %v2211 = vpop.f32.mrf.mxu0
    %v2212 = vadd.f32 0.0, %v2211
    %2213 = vmatmul.f32.gmra.mxu0 %v347
    %v2214 = vpop.f32.mrf.mxu0
    %v2215 = vadd.f32 0.0, %v2214
    %2216 = vmatmul.f32.gmra.mxu0 %v348
    %v2217 = vpop.f32.mrf.mxu0
    %v2218 = vadd.f32 0.0, %v2217
    %2219 = vmatmul.f32.gmra.mxu0 %v349
    %v2220 = vpop.f32.mrf.mxu0
    %v2221 = vadd.f32 0.0, %v2220
    %2222 = vmatmul.f32.gmra.mxu0 %v350
    %v2223 = vpop.f32.mrf.mxu0
    %v2224 = vadd.f32 0.0, %v2223
    %2225 = vmatmul.f32.gmra.mxu0 %v351
    %v2226 = vpop.f32.mrf.mxu0
    %v2227 = vadd.f32 0.0, %v2226
    %2228 = vmatmul.f32.gmra.mxu0 %v352
    %v2229 = vpop.f32.mrf.mxu0
    %v2230 = vadd.f32 0.0, %v2229
    %2231 = vmatmul.f32.gmra.mxu0 %v353
    %v2232 = vpop.f32.mrf.mxu0
    %v2233 = vadd.f32 0.0, %v2232
    %2234 = vmatmul.f32.gmra.mxu0 %v354
    %v2235 = vpop.f32.mrf.mxu0
    %v2236 = vadd.f32 0.0, %v2235
    %2237 = vmatmul.f32.gmra.mxu0 %v355
    %v2238 = vpop.f32.mrf.mxu0
    %v2239 = vadd.f32 0.0, %v2238
    %2240 = vmatmul.f32.gmra.mxu0 %v356
    %v2241 = vpop.f32.mrf.mxu0
    %v2242 = vadd.f32 0.0, %v2241
    %2243 = vmatmul.f32.gmra.mxu0 %v357
    %v2244 = vpop.f32.mrf.mxu0
    %v2245 = vadd.f32 0.0, %v2244
    %2246 = vmatmul.f32.gmra.mxu0 %v358
    %v2247 = vpop.f32.mrf.mxu0
    %v2248 = vadd.f32 0.0, %v2247
    %2249 = vmatmul.f32.gmra.mxu0 %v359
    %v2250 = vpop.f32.mrf.mxu0
    %v2251 = vadd.f32 0.0, %v2250
    %2252 = vmatmul.f32.gmra.mxu0 %v360
    %v2253 = vpop.f32.mrf.mxu0
    %v2254 = vadd.f32 0.0, %v2253
    %2255 = vmatmul.f32.gmra.mxu0 %v361
    %v2256 = vpop.f32.mrf.mxu0
    %v2257 = vadd.f32 0.0, %v2256
    %2258 = vdwg.mxu0
    %2259 = vmatpush.msra.mxu0 %v2033
    %2260 = vmatpush.msra.mxu0 %v2032
    %2261 = vmatpush.msra.mxu0 %v2031
    %2262 = vmatpush.msra.mxu0 %v2030
    %2263 = vmatpush.msra.mxu0 %v2029
    %2264 = vmatpush.msra.mxu0 %v2028
    %2265 = vmatpush.msra.mxu0 %v2027
    %2266 = vmatpush.msra.mxu0 %v2026
    %2267 = vmatpush.msra.mxu0 %v2025
    %2268 = vmatpush.msra.mxu0 %v2024
    %2269 = vmatpush.msra.mxu0 %v2023
    %2270 = vmatpush.msra.mxu0 %v2022
    %2271 = vmatpush.msra.mxu0 %v2021
    %2272 = vmatpush.msra.mxu0 %v2020
    %2273 = vmatpush.msra.mxu0 %v2019
    %2274 = vmatpush.msra.mxu0 %v2018
    %2275 = vmatmul.f32.gmra.mxu0 %v555
    %v2276 = vpop.f32.mrf.mxu0
    %v2277 = vadd.f32 %v2164, %v2276
    %2278 = vmatmul.f32.gmra.mxu0 %v556
    %v2279 = vpop.f32.mrf.mxu0
    %v2280 = vadd.f32 %v2167, %v2279
    %2281 = vmatmul.f32.gmra.mxu0 %v557
    %v2282 = vpop.f32.mrf.mxu0
    %v2283 = vadd.f32 %v2170, %v2282
    %2284 = vmatmul.f32.gmra.mxu0 %v558
    %v2285 = vpop.f32.mrf.mxu0
    %v2286 = vadd.f32 %v2173, %v2285
    %2287 = vmatmul.f32.gmra.mxu0 %v559
    %v2288 = vpop.f32.mrf.mxu0
    %v2289 = vadd.f32 %v2176, %v2288
    %2290 = vmatmul.f32.gmra.mxu0 %v560
    %v2291 = vpop.f32.mrf.mxu0
    %v2292 = vadd.f32 %v2179, %v2291
    %2293 = vmatmul.f32.gmra.mxu0 %v561
    %v2294 = vpop.f32.mrf.mxu0
    %v2295 = vadd.f32 %v2182, %v2294
    %2296 = vmatmul.f32.gmra.mxu0 %v562
    %v2297 = vpop.f32.mrf.mxu0
    %v2298 = vadd.f32 %v2185, %v2297
    %2299 = vmatmul.f32.gmra.mxu0 %v563
    %v2300 = vpop.f32.mrf.mxu0
    %v2301 = vadd.f32 %v2188, %v2300
    %2302 = vmatmul.f32.gmra.mxu0 %v564
    %v2303 = vpop.f32.mrf.mxu0
    %v2304 = vadd.f32 %v2191, %v2303
    %2305 = vmatmul.f32.gmra.mxu0 %v565
    %v2306 = vpop.f32.mrf.mxu0
    %v2307 = vadd.f32 %v2194, %v2306
    %2308 = vmatmul.f32.gmra.mxu0 %v566
    %v2309 = vpop.f32.mrf.mxu0
    %v2310 = vadd.f32 %v2197, %v2309
    %2311 = vmatmul.f32.gmra.mxu0 %v567
    %v2312 = vpop.f32.mrf.mxu0
    %v2313 = vadd.f32 %v2200, %v2312
    %2314 = vmatmul.f32.gmra.mxu0 %v568
    %v2315 = vpop.f32.mrf.mxu0
    %v2316 = vadd.f32 %v2203, %v2315
    %2317 = vmatmul.f32.gmra.mxu0 %v569
    %v2318 = vpop.f32.mrf.mxu0
    %v2319 = vadd.f32 %v2206, %v2318
    %2320 = vmatmul.f32.gmra.mxu0 %v570
    %v2321 = vpop.f32.mrf.mxu0
    %v2322 = vadd.f32 %v2209, %v2321
    %2323 = vmatmul.f32.gmra.mxu0 %v571
    %v2324 = vpop.f32.mrf.mxu0
    %v2325 = vadd.f32 %v2212, %v2324
    %2326 = vmatmul.f32.gmra.mxu0 %v572
    %v2327 = vpop.f32.mrf.mxu0
    %v2328 = vadd.f32 %v2215, %v2327
    %2329 = vmatmul.f32.gmra.mxu0 %v573
    %v2330 = vpop.f32.mrf.mxu0
    %v2331 = vadd.f32 %v2218, %v2330
    %2332 = vmatmul.f32.gmra.mxu0 %v574
    %v2333 = vpop.f32.mrf.mxu0
    %v2334 = vadd.f32 %v2221, %v2333
    %2335 = vmatmul.f32.gmra.mxu0 %v575
    %v2336 = vpop.f32.mrf.mxu0
    %v2337 = vadd.f32 %v2224, %v2336
    %2338 = vmatmul.f32.gmra.mxu0 %v576
    %v2339 = vpop.f32.mrf.mxu0
    %v2340 = vadd.f32 %v2227, %v2339
    %2341 = vmatmul.f32.gmra.mxu0 %v577
    %v2342 = vpop.f32.mrf.mxu0
    %v2343 = vadd.f32 %v2230, %v2342
    %2344 = vmatmul.f32.gmra.mxu0 %v578
    %v2345 = vpop.f32.mrf.mxu0
    %v2346 = vadd.f32 %v2233, %v2345
    %2347 = vmatmul.f32.gmra.mxu0 %v579
    %v2348 = vpop.f32.mrf.mxu0
    %v2349 = vadd.f32 %v2236, %v2348
    %2350 = vmatmul.f32.gmra.mxu0 %v580
    %v2351 = vpop.f32.mrf.mxu0
    %v2352 = vadd.f32 %v2239, %v2351
    %2353 = vmatmul.f32.gmra.mxu0 %v581
    %v2354 = vpop.f32.mrf.mxu0
    %v2355 = vadd.f32 %v2242, %v2354
    %2356 = vmatmul.f32.gmra.mxu0 %v582
    %v2357 = vpop.f32.mrf.mxu0
    %v2358 = vadd.f32 %v2245, %v2357
    %2359 = vmatmul.f32.gmra.mxu0 %v583
    %v2360 = vpop.f32.mrf.mxu0
    %v2361 = vadd.f32 %v2248, %v2360
    %2362 = vmatmul.f32.gmra.mxu0 %v584
    %v2363 = vpop.f32.mrf.mxu0
    %v2364 = vadd.f32 %v2251, %v2363
    %2365 = vmatmul.f32.gmra.mxu0 %v585
    %v2366 = vpop.f32.mrf.mxu0
    %v2367 = vadd.f32 %v2254, %v2366
    %2368 = vmatmul.f32.gmra.mxu0 %v586
    %v2369 = vpop.f32.mrf.mxu0
    %v2370 = vadd.f32 %v2257, %v2369
    %2371 = vdwg.mxu0
    %2372 = vmatpush.msra.mxu0 %v2049
    %2373 = vmatpush.msra.mxu0 %v2048
    %2374 = vmatpush.msra.mxu0 %v2047
    %2375 = vmatpush.msra.mxu0 %v2046
    %2376 = vmatpush.msra.mxu0 %v2045
    %2377 = vmatpush.msra.mxu0 %v2044
    %2378 = vmatpush.msra.mxu0 %v2043
    %2379 = vmatpush.msra.mxu0 %v2042
    %2380 = vmatpush.msra.mxu0 %v2041
    %2381 = vmatpush.msra.mxu0 %v2040
    %2382 = vmatpush.msra.mxu0 %v2039
    %2383 = vmatpush.msra.mxu0 %v2038
    %2384 = vmatpush.msra.mxu0 %v2037
    %2385 = vmatpush.msra.mxu0 %v2036
    %2386 = vmatpush.msra.mxu0 %v2035
    %2387 = vmatpush.msra.mxu0 %v2034
    %2388 = vmatmul.f32.gmra.mxu0 %v845
    %v2389 = vpop.f32.mrf.mxu0
    %v2390 = vadd.f32 %v2277, %v2389
    %2391 = vmatmul.f32.gmra.mxu0 %v846
    %v2392 = vpop.f32.mrf.mxu0
    %v2393 = vadd.f32 %v2280, %v2392
    %2394 = vmatmul.f32.gmra.mxu0 %v847
    %v2395 = vpop.f32.mrf.mxu0
    %v2396 = vadd.f32 %v2283, %v2395
    %2397 = vmatmul.f32.gmra.mxu0 %v848
    %v2398 = vpop.f32.mrf.mxu0
    %v2399 = vadd.f32 %v2286, %v2398
    %2400 = vmatmul.f32.gmra.mxu0 %v849
    %v2401 = vpop.f32.mrf.mxu0
    %v2402 = vadd.f32 %v2289, %v2401
    %2403 = vmatmul.f32.gmra.mxu0 %v850
    %v2404 = vpop.f32.mrf.mxu0
    %v2405 = vadd.f32 %v2292, %v2404
    %2406 = vmatmul.f32.gmra.mxu0 %v851
    %v2407 = vpop.f32.mrf.mxu0
    %v2408 = vadd.f32 %v2295, %v2407
    %2409 = vmatmul.f32.gmra.mxu0 %v852
    %v2410 = vpop.f32.mrf.mxu0
    %v2411 = vadd.f32 %v2298, %v2410
    %2412 = vmatmul.f32.gmra.mxu0 %v853
    %v2413 = vpop.f32.mrf.mxu0
    %v2414 = vadd.f32 %v2301, %v2413
    %2415 = vmatmul.f32.gmra.mxu0 %v854
    %v2416 = vpop.f32.mrf.mxu0
    %v2417 = vadd.f32 %v2304, %v2416
    %2418 = vmatmul.f32.gmra.mxu0 %v855
    %v2419 = vpop.f32.mrf.mxu0
    %v2420 = vadd.f32 %v2307, %v2419
    %2421 = vmatmul.f32.gmra.mxu0 %v856
    %v2422 = vpop.f32.mrf.mxu0
    %v2423 = vadd.f32 %v2310, %v2422
    %2424 = vmatmul.f32.gmra.mxu0 %v857
    %v2425 = vpop.f32.mrf.mxu0
    %v2426 = vadd.f32 %v2313, %v2425
    %2427 = vmatmul.f32.gmra.mxu0 %v858
    %v2428 = vpop.f32.mrf.mxu0
    %v2429 = vadd.f32 %v2316, %v2428
    %2430 = vmatmul.f32.gmra.mxu0 %v859
    %v2431 = vpop.f32.mrf.mxu0
    %v2432 = vadd.f32 %v2319, %v2431
    %2433 = vmatmul.f32.gmra.mxu0 %v860
    %v2434 = vpop.f32.mrf.mxu0
    %v2435 = vadd.f32 %v2322, %v2434
    %2436 = vmatmul.f32.gmra.mxu0 %v861
    %v2437 = vpop.f32.mrf.mxu0
    %v2438 = vadd.f32 %v2325, %v2437
    %2439 = vmatmul.f32.gmra.mxu0 %v862
    %v2440 = vpop.f32.mrf.mxu0
    %v2441 = vadd.f32 %v2328, %v2440
    %2442 = vmatmul.f32.gmra.mxu0 %v863
    %v2443 = vpop.f32.mrf.mxu0
    %v2444 = vadd.f32 %v2331, %v2443
    %2445 = vmatmul.f32.gmra.mxu0 %v864
    %v2446 = vpop.f32.mrf.mxu0
    %v2447 = vadd.f32 %v2334, %v2446
    %2448 = vmatmul.f32.gmra.mxu0 %v865
    %v2449 = vpop.f32.mrf.mxu0
    %v2450 = vadd.f32 %v2337, %v2449
    %2451 = vmatmul.f32.gmra.mxu0 %v866
    %v2452 = vpop.f32.mrf.mxu0
    %v2453 = vadd.f32 %v2340, %v2452
    %2454 = vmatmul.f32.gmra.mxu0 %v867
    %v2455 = vpop.f32.mrf.mxu0
    %v2456 = vadd.f32 %v2343, %v2455
    %2457 = vmatmul.f32.gmra.mxu0 %v868
    %v2458 = vpop.f32.mrf.mxu0
    %v2459 = vadd.f32 %v2346, %v2458
    %2460 = vmatmul.f32.gmra.mxu0 %v869
    %v2461 = vpop.f32.mrf.mxu0
    %v2462 = vadd.f32 %v2349, %v2461
    %2463 = vmatmul.f32.gmra.mxu0 %v870
    %v2464 = vpop.f32.mrf.mxu0
    %v2465 = vadd.f32 %v2352, %v2464
    %2466 = vmatmul.f32.gmra.mxu0 %v871
    %v2467 = vpop.f32.mrf.mxu0
    %v2468 = vadd.f32 %v2355, %v2467
    %2469 = vmatmul.f32.gmra.mxu0 %v872
    %v2470 = vpop.f32.mrf.mxu0
    %v2471 = vadd.f32 %v2358, %v2470
    %2472 = vmatmul.f32.gmra.mxu0 %v873
    %v2473 = vpop.f32.mrf.mxu0
    %v2474 = vadd.f32 %v2361, %v2473
    %2475 = vmatmul.f32.gmra.mxu0 %v874
    %v2476 = vpop.f32.mrf.mxu0
    %v2477 = vadd.f32 %v2364, %v2476
    %2478 = vmatmul.f32.gmra.mxu0 %v875
    %v2479 = vpop.f32.mrf.mxu0
    %v2480 = vadd.f32 %v2367, %v2479
    %2481 = vmatmul.f32.gmra.mxu0 %v876
    %v2482 = vpop.f32.mrf.mxu0
    %v2483 = vadd.f32 %v2370, %v2482
    %2484 = vdwg.mxu0
    %2485 = vmatpush.msra.mxu0 %v2065
    %2486 = vmatpush.msra.mxu0 %v2064
    %2487 = vmatpush.msra.mxu0 %v2063
    %2488 = vmatpush.msra.mxu0 %v2062
    %2489 = vmatpush.msra.mxu0 %v2061
    %2490 = vmatpush.msra.mxu0 %v2060
    %2491 = vmatpush.msra.mxu0 %v2059
    %2492 = vmatpush.msra.mxu0 %v2058
    %2493 = vmatpush.msra.mxu0 %v2057
    %2494 = vmatpush.msra.mxu0 %v2056
    %2495 = vmatpush.msra.mxu0 %v2055
    %2496 = vmatpush.msra.mxu0 %v2054
    %2497 = vmatpush.msra.mxu0 %v2053
    %2498 = vmatpush.msra.mxu0 %v2052
    %2499 = vmatpush.msra.mxu0 %v2051
    %2500 = vmatpush.msra.mxu0 %v2050
    %2501 = vmatmul.f32.gmra.mxu0 %v1070
    %v2502 = vpop.f32.mrf.mxu0
    %v2503 = vadd.f32 %v2390, %v2502
    %2504 = vmatmul.f32.gmra.mxu0 %v1071
    %v2505 = vpop.f32.mrf.mxu0
    %v2506 = vadd.f32 %v2393, %v2505
    %2507 = vmatmul.f32.gmra.mxu0 %v1072
    %v2508 = vpop.f32.mrf.mxu0
    %v2509 = vadd.f32 %v2396, %v2508
    %2510 = vmatmul.f32.gmra.mxu0 %v1073
    %v2511 = vpop.f32.mrf.mxu0
    %v2512 = vadd.f32 %v2399, %v2511
    %2513 = vmatmul.f32.gmra.mxu0 %v1074
    %v2514 = vpop.f32.mrf.mxu0
    %v2515 = vadd.f32 %v2402, %v2514
    %2516 = vmatmul.f32.gmra.mxu0 %v1075
    %v2517 = vpop.f32.mrf.mxu0
    %v2518 = vadd.f32 %v2405, %v2517
    %2519 = vmatmul.f32.gmra.mxu0 %v1076
    %v2520 = vpop.f32.mrf.mxu0
    %v2521 = vadd.f32 %v2408, %v2520
    %2522 = vmatmul.f32.gmra.mxu0 %v1077
    %v2523 = vpop.f32.mrf.mxu0
    %v2524 = vadd.f32 %v2411, %v2523
    %2525 = vmatmul.f32.gmra.mxu0 %v1078
    %v2526 = vpop.f32.mrf.mxu0
    %v2527 = vadd.f32 %v2414, %v2526
    %2528 = vmatmul.f32.gmra.mxu0 %v1079
    %v2529 = vpop.f32.mrf.mxu0
    %v2530 = vadd.f32 %v2417, %v2529
    %2531 = vmatmul.f32.gmra.mxu0 %v1080
    %v2532 = vpop.f32.mrf.mxu0
    %v2533 = vadd.f32 %v2420, %v2532
    %2534 = vmatmul.f32.gmra.mxu0 %v1081
    %v2535 = vpop.f32.mrf.mxu0
    %v2536 = vadd.f32 %v2423, %v2535
    %2537 = vmatmul.f32.gmra.mxu0 %v1082
    %v2538 = vpop.f32.mrf.mxu0
    %v2539 = vadd.f32 %v2426, %v2538
    %2540 = vmatmul.f32.gmra.mxu0 %v1083
    %v2541 = vpop.f32.mrf.mxu0
    %v2542 = vadd.f32 %v2429, %v2541
    %2543 = vmatmul.f32.gmra.mxu0 %v1084
    %v2544 = vpop.f32.mrf.mxu0
    %v2545 = vadd.f32 %v2432, %v2544
    %2546 = vmatmul.f32.gmra.mxu0 %v1085
    %v2547 = vpop.f32.mrf.mxu0
    %v2548 = vadd.f32 %v2435, %v2547
    %2549 = vmatmul.f32.gmra.mxu0 %v1086
    %v2550 = vpop.f32.mrf.mxu0
    %v2551 = vadd.f32 %v2438, %v2550
    %2552 = vmatmul.f32.gmra.mxu0 %v1087
    %v2553 = vpop.f32.mrf.mxu0
    %v2554 = vadd.f32 %v2441, %v2553
    %2555 = vmatmul.f32.gmra.mxu0 %v1088
    %v2556 = vpop.f32.mrf.mxu0
    %v2557 = vadd.f32 %v2444, %v2556
    %2558 = vmatmul.f32.gmra.mxu0 %v1089
    %v2559 = vpop.f32.mrf.mxu0
    %v2560 = vadd.f32 %v2447, %v2559
    %2561 = vmatmul.f32.gmra.mxu0 %v1090
    %v2562 = vpop.f32.mrf.mxu0
    %v2563 = vadd.f32 %v2450, %v2562
    %2564 = vmatmul.f32.gmra.mxu0 %v1091
    %v2565 = vpop.f32.mrf.mxu0
    %v2566 = vadd.f32 %v2453, %v2565
    %2567 = vmatmul.f32.gmra.mxu0 %v1092
    %v2568 = vpop.f32.mrf.mxu0
    %v2569 = vadd.f32 %v2456, %v2568
    %2570 = vmatmul.f32.gmra.mxu0 %v1093
    %v2571 = vpop.f32.mrf.mxu0
    %v2572 = vadd.f32 %v2459, %v2571
    %2573 = vmatmul.f32.gmra.mxu0 %v1094
    %v2574 = vpop.f32.mrf.mxu0
    %v2575 = vadd.f32 %v2462, %v2574
    %2576 = vmatmul.f32.gmra.mxu0 %v1095
    %v2577 = vpop.f32.mrf.mxu0
    %v2578 = vadd.f32 %v2465, %v2577
    %2579 = vmatmul.f32.gmra.mxu0 %v1096
    %v2580 = vpop.f32.mrf.mxu0
    %v2581 = vadd.f32 %v2468, %v2580
    %2582 = vmatmul.f32.gmra.mxu0 %v1097
    %v2583 = vpop.f32.mrf.mxu0
    %v2584 = vadd.f32 %v2471, %v2583
    %2585 = vmatmul.f32.gmra.mxu0 %v1098
    %v2586 = vpop.f32.mrf.mxu0
    %v2587 = vadd.f32 %v2474, %v2586
    %2588 = vmatmul.f32.gmra.mxu0 %v1099
    %v2589 = vpop.f32.mrf.mxu0
    %v2590 = vadd.f32 %v2477, %v2589
    %2591 = vmatmul.f32.gmra.mxu0 %v1100
    %v2592 = vpop.f32.mrf.mxu0
    %v2593 = vadd.f32 %v2480, %v2592
    %2594 = vmatmul.f32.gmra.mxu0 %v1101
    %v2595 = vpop.f32.mrf.mxu0
    %v2596 = vadd.f32 %v2483, %v2595
    %2597 = vdwg.mxu0
    %2598 = vmatpush.msra.mxu0 %v2081
    %2599 = vmatpush.msra.mxu0 %v2080
    %2600 = vmatpush.msra.mxu0 %v2079
    %2601 = vmatpush.msra.mxu0 %v2078
    %2602 = vmatpush.msra.mxu0 %v2077
    %2603 = vmatpush.msra.mxu0 %v2076
    %2604 = vmatpush.msra.mxu0 %v2075
    %2605 = vmatpush.msra.mxu0 %v2074
    %2606 = vmatpush.msra.mxu0 %v2073
    %2607 = vmatpush.msra.mxu0 %v2072
    %2608 = vmatpush.msra.mxu0 %v2071
    %2609 = vmatpush.msra.mxu0 %v2070
    %2610 = vmatpush.msra.mxu0 %v2069
    %2611 = vmatpush.msra.mxu0 %v2068
    %2612 = vmatpush.msra.mxu0 %v2067
    %2613 = vmatpush.msra.mxu0 %v2066
    %2614 = vmatmul.f32.gmra.mxu0 %v39
    %v2615 = vpop.f32.mrf.mxu0
    %v2616 = vadd.f32 %v2503, %v2615
    %2617 = vmatmul.f32.gmra.mxu0 %v40
    %v2618 = vpop.f32.mrf.mxu0
    %v2619 = vadd.f32 %v2506, %v2618
    %2620 = vmatmul.f32.gmra.mxu0 %v41
    %v2621 = vpop.f32.mrf.mxu0
    %v2622 = vadd.f32 %v2509, %v2621
    %2623 = vmatmul.f32.gmra.mxu0 %v42
    %v2624 = vpop.f32.mrf.mxu0
    %v2625 = vadd.f32 %v2512, %v2624
    %2626 = vmatmul.f32.gmra.mxu0 %v43
    %v2627 = vpop.f32.mrf.mxu0
    %v2628 = vadd.f32 %v2515, %v2627
    %2629 = vmatmul.f32.gmra.mxu0 %v44
    %v2630 = vpop.f32.mrf.mxu0
    %v2631 = vadd.f32 %v2518, %v2630
    %2632 = vmatmul.f32.gmra.mxu0 %v45
    %v2633 = vpop.f32.mrf.mxu0
    %v2634 = vadd.f32 %v2521, %v2633
    %2635 = vmatmul.f32.gmra.mxu0 %v46
    %v2636 = vpop.f32.mrf.mxu0
    %v2637 = vadd.f32 %v2524, %v2636
    %2638 = vmatmul.f32.gmra.mxu0 %v47
    %v2639 = vpop.f32.mrf.mxu0
    %v2640 = vadd.f32 %v2527, %v2639
    %2641 = vmatmul.f32.gmra.mxu0 %v48
    %v2642 = vpop.f32.mrf.mxu0
    %v2643 = vadd.f32 %v2530, %v2642
    %2644 = vmatmul.f32.gmra.mxu0 %v49
    %v2645 = vpop.f32.mrf.mxu0
    %v2646 = vadd.f32 %v2533, %v2645
    %2647 = vmatmul.f32.gmra.mxu0 %v50
    %v2648 = vpop.f32.mrf.mxu0
    %v2649 = vadd.f32 %v2536, %v2648
    %2650 = vmatmul.f32.gmra.mxu0 %v51
    %v2651 = vpop.f32.mrf.mxu0
    %v2652 = vadd.f32 %v2539, %v2651
    %2653 = vmatmul.f32.gmra.mxu0 %v52
    %v2654 = vpop.f32.mrf.mxu0
    %v2655 = vadd.f32 %v2542, %v2654
    %2656 = vmatmul.f32.gmra.mxu0 %v53
    %v2657 = vpop.f32.mrf.mxu0
    %v2658 = vadd.f32 %v2545, %v2657
    %2659 = vmatmul.f32.gmra.mxu0 %v54
    %v2660 = vpop.f32.mrf.mxu0
    %v2661 = vadd.f32 %v2548, %v2660
    %2662 = vmatmul.f32.gmra.mxu0 %v55
    %v2663 = vpop.f32.mrf.mxu0
    %v2664 = vadd.f32 %v2551, %v2663
    %2665 = vmatmul.f32.gmra.mxu0 %v56
    %v2666 = vpop.f32.mrf.mxu0
    %v2667 = vadd.f32 %v2554, %v2666
    %2668 = vmatmul.f32.gmra.mxu0 %v57
    %v2669 = vpop.f32.mrf.mxu0
    %v2670 = vadd.f32 %v2557, %v2669
    %2671 = vmatmul.f32.gmra.mxu0 %v58
    %v2672 = vpop.f32.mrf.mxu0
    %v2673 = vadd.f32 %v2560, %v2672
    %2674 = vmatmul.f32.gmra.mxu0 %v59
    %v2675 = vpop.f32.mrf.mxu0
    %v2676 = vadd.f32 %v2563, %v2675
    %2677 = vmatmul.f32.gmra.mxu0 %v60
    %v2678 = vpop.f32.mrf.mxu0
    %v2679 = vadd.f32 %v2566, %v2678
    %2680 = vmatmul.f32.gmra.mxu0 %v61
    %v2681 = vpop.f32.mrf.mxu0
    %v2682 = vadd.f32 %v2569, %v2681
    %2683 = vmatmul.f32.gmra.mxu0 %v62
    %v2684 = vpop.f32.mrf.mxu0
    %v2685 = vadd.f32 %v2572, %v2684
    %2686 = vmatmul.f32.gmra.mxu0 %v63
    %v2687 = vpop.f32.mrf.mxu0
    %v2688 = vadd.f32 %v2575, %v2687
    %2689 = vmatmul.f32.gmra.mxu0 %v64
    %v2690 = vpop.f32.mrf.mxu0
    %v2691 = vadd.f32 %v2578, %v2690
    %2692 = vmatmul.f32.gmra.mxu0 %v65
    %v2693 = vpop.f32.mrf.mxu0
    %v2694 = vadd.f32 %v2581, %v2693
    %2695 = vmatmul.f32.gmra.mxu0 %v66
    %v2696 = vpop.f32.mrf.mxu0
    %v2697 = vadd.f32 %v2584, %v2696
    %2698 = vmatmul.f32.gmra.mxu0 %v67
    %v2699 = vpop.f32.mrf.mxu0
    %v2700 = vadd.f32 %v2587, %v2699
    %2701 = vmatmul.f32.gmra.mxu0 %v68
    %v2702 = vpop.f32.mrf.mxu0
    %v2703 = vadd.f32 %v2590, %v2702
    %2704 = vmatmul.f32.gmra.mxu0 %v69
    %v2705 = vpop.f32.mrf.mxu0
    %v2706 = vadd.f32 %v2593, %v2705
    %2707 = vmatmul.f32.gmra.mxu0 %v70
    %v2708 = vpop.f32.mrf.mxu0
    %v2709 = vadd.f32 %v2596, %v2708
    %2710 = vdwg.mxu0
    %2711 = vmatpush.msra.mxu0 %v2097
    %2712 = vmatpush.msra.mxu0 %v2096
    %2713 = vmatpush.msra.mxu0 %v2095
    %2714 = vmatpush.msra.mxu0 %v2094
    %2715 = vmatpush.msra.mxu0 %v2093
    %2716 = vmatpush.msra.mxu0 %v2092
    %2717 = vmatpush.msra.mxu0 %v2091
    %2718 = vmatpush.msra.mxu0 %v2090
    %2719 = vmatpush.msra.mxu0 %v2089
    %2720 = vmatpush.msra.mxu0 %v2088
    %2721 = vmatpush.msra.mxu0 %v2087
    %2722 = vmatpush.msra.mxu0 %v2086
    %2723 = vmatpush.msra.mxu0 %v2085
    %2724 = vmatpush.msra.mxu0 %v2084
    %2725 = vmatpush.msra.mxu0 %v2083
    %2726 = vmatpush.msra.mxu0 %v2082
    %2727 = vmatmul.f32.gmra.mxu0 %v1295
    %v2728 = vpop.f32.mrf.mxu0
    %v2729 = vadd.f32 %v2616, %v2728
    %2730 = vmatmul.f32.gmra.mxu0 %v1296
    %v2731 = vpop.f32.mrf.mxu0
    %v2732 = vadd.f32 %v2619, %v2731
    %2733 = vmatmul.f32.gmra.mxu0 %v1297
    %v2734 = vpop.f32.mrf.mxu0
    %v2735 = vadd.f32 %v2622, %v2734
    %2736 = vmatmul.f32.gmra.mxu0 %v1298
    %v2737 = vpop.f32.mrf.mxu0
    %v2738 = vadd.f32 %v2625, %v2737
    %2739 = vmatmul.f32.gmra.mxu0 %v1299
    %v2740 = vpop.f32.mrf.mxu0
    %v2741 = vadd.f32 %v2628, %v2740
    %2742 = vmatmul.f32.gmra.mxu0 %v1300
    %v2743 = vpop.f32.mrf.mxu0
    %v2744 = vadd.f32 %v2631, %v2743
    %2745 = vmatmul.f32.gmra.mxu0 %v1301
    %v2746 = vpop.f32.mrf.mxu0
    %v2747 = vadd.f32 %v2634, %v2746
    %2748 = vmatmul.f32.gmra.mxu0 %v1302
    %v2749 = vpop.f32.mrf.mxu0
    %v2750 = vadd.f32 %v2637, %v2749
    %2751 = vmatmul.f32.gmra.mxu0 %v1303
    %v2752 = vpop.f32.mrf.mxu0
    %v2753 = vadd.f32 %v2640, %v2752
    %2754 = vmatmul.f32.gmra.mxu0 %v1304
    %v2755 = vpop.f32.mrf.mxu0
    %v2756 = vadd.f32 %v2643, %v2755
    %2757 = vmatmul.f32.gmra.mxu0 %v1305
    %v2758 = vpop.f32.mrf.mxu0
    %v2759 = vadd.f32 %v2646, %v2758
    %2760 = vmatmul.f32.gmra.mxu0 %v1306
    %v2761 = vpop.f32.mrf.mxu0
    %v2762 = vadd.f32 %v2649, %v2761
    %2763 = vmatmul.f32.gmra.mxu0 %v1307
    %v2764 = vpop.f32.mrf.mxu0
    %v2765 = vadd.f32 %v2652, %v2764
    %2766 = vmatmul.f32.gmra.mxu0 %v1308
    %v2767 = vpop.f32.mrf.mxu0
    %v2768 = vadd.f32 %v2655, %v2767
    %2769 = vmatmul.f32.gmra.mxu0 %v1309
    %v2770 = vpop.f32.mrf.mxu0
    %v2771 = vadd.f32 %v2658, %v2770
    %2772 = vmatmul.f32.gmra.mxu0 %v1310
    %v2773 = vpop.f32.mrf.mxu0
    %v2774 = vadd.f32 %v2661, %v2773
    %2775 = vmatmul.f32.gmra.mxu0 %v1311
    %v2776 = vpop.f32.mrf.mxu0
    %v2777 = vadd.f32 %v2664, %v2776
    %2778 = vmatmul.f32.gmra.mxu0 %v1312
    %v2779 = vpop.f32.mrf.mxu0
    %v2780 = vadd.f32 %v2667, %v2779
    %2781 = vmatmul.f32.gmra.mxu0 %v1313
    %v2782 = vpop.f32.mrf.mxu0
    %v2783 = vadd.f32 %v2670, %v2782
    %2784 = vmatmul.f32.gmra.mxu0 %v1314
    %v2785 = vpop.f32.mrf.mxu0
    %v2786 = vadd.f32 %v2673, %v2785
    %2787 = vmatmul.f32.gmra.mxu0 %v1315
    %v2788 = vpop.f32.mrf.mxu0
    %v2789 = vadd.f32 %v2676, %v2788
    %2790 = vmatmul.f32.gmra.mxu0 %v1316
    %v2791 = vpop.f32.mrf.mxu0
    %v2792 = vadd.f32 %v2679, %v2791
    %2793 = vmatmul.f32.gmra.mxu0 %v1317
    %v2794 = vpop.f32.mrf.mxu0
    %v2795 = vadd.f32 %v2682, %v2794
    %2796 = vmatmul.f32.gmra.mxu0 %v1318
    %v2797 = vpop.f32.mrf.mxu0
    %v2798 = vadd.f32 %v2685, %v2797
    %2799 = vmatmul.f32.gmra.mxu0 %v1319
    %v2800 = vpop.f32.mrf.mxu0
    %v2801 = vadd.f32 %v2688, %v2800
    %2802 = vmatmul.f32.gmra.mxu0 %v1320
    %v2803 = vpop.f32.mrf.mxu0
    %v2804 = vadd.f32 %v2691, %v2803
    %2805 = vmatmul.f32.gmra.mxu0 %v1321
    %v2806 = vpop.f32.mrf.mxu0
    %v2807 = vadd.f32 %v2694, %v2806
    %2808 = vmatmul.f32.gmra.mxu0 %v1322
    %v2809 = vpop.f32.mrf.mxu0
    %v2810 = vadd.f32 %v2697, %v2809
    %2811 = vmatmul.f32.gmra.mxu0 %v1323
    %v2812 = vpop.f32.mrf.mxu0
    %v2813 = vadd.f32 %v2700, %v2812
    %2814 = vmatmul.f32.gmra.mxu0 %v1324
    %v2815 = vpop.f32.mrf.mxu0
    %v2816 = vadd.f32 %v2703, %v2815
    %2817 = vmatmul.f32.gmra.mxu0 %v1325
    %v2818 = vpop.f32.mrf.mxu0
    %v2819 = vadd.f32 %v2706, %v2818
    %2820 = vmatmul.f32.gmra.mxu0 %v1326
    %v2821 = vpop.f32.mrf.mxu0
    %v2822 = vadd.f32 %v2709, %v2821
    %2823 = vdwg.mxu0
    %2824 = vmatpush.msra.mxu0 %v2113
    %2825 = vmatpush.msra.mxu0 %v2112
    %2826 = vmatpush.msra.mxu0 %v2111
    %2827 = vmatpush.msra.mxu0 %v2110
    %2828 = vmatpush.msra.mxu0 %v2109
    %2829 = vmatpush.msra.mxu0 %v2108
    %2830 = vmatpush.msra.mxu0 %v2107
    %2831 = vmatpush.msra.mxu0 %v2106
    %2832 = vmatpush.msra.mxu0 %v2105
    %2833 = vmatpush.msra.mxu0 %v2104
    %2834 = vmatpush.msra.mxu0 %v2103
    %2835 = vmatpush.msra.mxu0 %v2102
    %2836 = vmatpush.msra.mxu0 %v2101
    %2837 = vmatpush.msra.mxu0 %v2100
    %2838 = vmatpush.msra.mxu0 %v2099
    %2839 = vmatpush.msra.mxu0 %v2098
    %2840 = vmatmul.f32.gmra.mxu0 %v1520
    %v2841 = vpop.f32.mrf.mxu0
    %v2842 = vadd.f32 %v2729, %v2841
    %2843 = vmatmul.f32.gmra.mxu0 %v1521
    %v2844 = vpop.f32.mrf.mxu0
    %v2845 = vadd.f32 %v2732, %v2844
    %2846 = vmatmul.f32.gmra.mxu0 %v1522
    %v2847 = vpop.f32.mrf.mxu0
    %v2848 = vadd.f32 %v2735, %v2847
    %2849 = vmatmul.f32.gmra.mxu0 %v1523
    %v2850 = vpop.f32.mrf.mxu0
    %v2851 = vadd.f32 %v2738, %v2850
    %2852 = vmatmul.f32.gmra.mxu0 %v1524
    %v2853 = vpop.f32.mrf.mxu0
    %v2854 = vadd.f32 %v2741, %v2853
    %2855 = vmatmul.f32.gmra.mxu0 %v1525
    %v2856 = vpop.f32.mrf.mxu0
    %v2857 = vadd.f32 %v2744, %v2856
    %2858 = vmatmul.f32.gmra.mxu0 %v1526
    %v2859 = vpop.f32.mrf.mxu0
    %v2860 = vadd.f32 %v2747, %v2859
    %2861 = vmatmul.f32.gmra.mxu0 %v1527
    %v2862 = vpop.f32.mrf.mxu0
    %v2863 = vadd.f32 %v2750, %v2862
    %2864 = vmatmul.f32.gmra.mxu0 %v1528
    %v2865 = vpop.f32.mrf.mxu0
    %v2866 = vadd.f32 %v2753, %v2865
    %2867 = vmatmul.f32.gmra.mxu0 %v1529
    %v2868 = vpop.f32.mrf.mxu0
    %v2869 = vadd.f32 %v2756, %v2868
    %2870 = vmatmul.f32.gmra.mxu0 %v1530
    %v2871 = vpop.f32.mrf.mxu0
    %v2872 = vadd.f32 %v2759, %v2871
    %2873 = vmatmul.f32.gmra.mxu0 %v1531
    %v2874 = vpop.f32.mrf.mxu0
    %v2875 = vadd.f32 %v2762, %v2874
    %2876 = vmatmul.f32.gmra.mxu0 %v1532
    %v2877 = vpop.f32.mrf.mxu0
    %v2878 = vadd.f32 %v2765, %v2877
    %2879 = vmatmul.f32.gmra.mxu0 %v1533
    %v2880 = vpop.f32.mrf.mxu0
    %v2881 = vadd.f32 %v2768, %v2880
    %2882 = vmatmul.f32.gmra.mxu0 %v1534
    %v2883 = vpop.f32.mrf.mxu0
    %v2884 = vadd.f32 %v2771, %v2883
    %2885 = vmatmul.f32.gmra.mxu0 %v1535
    %v2886 = vpop.f32.mrf.mxu0
    %v2887 = vadd.f32 %v2774, %v2886
    %2888 = vmatmul.f32.gmra.mxu0 %v1536
    %v2889 = vpop.f32.mrf.mxu0
    %v2890 = vadd.f32 %v2777, %v2889
    %2891 = vmatmul.f32.gmra.mxu0 %v1537
    %v2892 = vpop.f32.mrf.mxu0
    %v2893 = vadd.f32 %v2780, %v2892
    %2894 = vmatmul.f32.gmra.mxu0 %v1538
    %v2895 = vpop.f32.mrf.mxu0
    %v2896 = vadd.f32 %v2783, %v2895
    %2897 = vmatmul.f32.gmra.mxu0 %v1539
    %v2898 = vpop.f32.mrf.mxu0
    %v2899 = vadd.f32 %v2786, %v2898
    %2900 = vmatmul.f32.gmra.mxu0 %v1540
    %v2901 = vpop.f32.mrf.mxu0
    %v2902 = vadd.f32 %v2789, %v2901
    %2903 = vmatmul.f32.gmra.mxu0 %v1541
    %v2904 = vpop.f32.mrf.mxu0
    %v2905 = vadd.f32 %v2792, %v2904
    %2906 = vmatmul.f32.gmra.mxu0 %v1542
    %v2907 = vpop.f32.mrf.mxu0
    %v2908 = vadd.f32 %v2795, %v2907
    %2909 = vmatmul.f32.gmra.mxu0 %v1543
    %v2910 = vpop.f32.mrf.mxu0
    %v2911 = vadd.f32 %v2798, %v2910
    %2912 = vmatmul.f32.gmra.mxu0 %v1544
    %v2913 = vpop.f32.mrf.mxu0
    %v2914 = vadd.f32 %v2801, %v2913
    %2915 = vmatmul.f32.gmra.mxu0 %v1545
    %v2916 = vpop.f32.mrf.mxu0
    %v2917 = vadd.f32 %v2804, %v2916
    %2918 = vmatmul.f32.gmra.mxu0 %v1546
    %v2919 = vpop.f32.mrf.mxu0
    %v2920 = vadd.f32 %v2807, %v2919
    %2921 = vmatmul.f32.gmra.mxu0 %v1547
    %v2922 = vpop.f32.mrf.mxu0
    %v2923 = vadd.f32 %v2810, %v2922
    %2924 = vmatmul.f32.gmra.mxu0 %v1548
    %v2925 = vpop.f32.mrf.mxu0
    %v2926 = vadd.f32 %v2813, %v2925
    %2927 = vmatmul.f32.gmra.mxu0 %v1549
    %v2928 = vpop.f32.mrf.mxu0
    %v2929 = vadd.f32 %v2816, %v2928
    %2930 = vmatmul.f32.gmra.mxu0 %v1550
    %v2931 = vpop.f32.mrf.mxu0
    %v2932 = vadd.f32 %v2819, %v2931
    %2933 = vmatmul.f32.gmra.mxu0 %v1551
    %v2934 = vpop.f32.mrf.mxu0
    %v2935 = vadd.f32 %v2822, %v2934
    %2936 = vdwg.mxu0
    %2937 = vmatpush.msra.mxu0 %v2129
    %2938 = vmatpush.msra.mxu0 %v2128
    %2939 = vmatpush.msra.mxu0 %v2127
    %2940 = vmatpush.msra.mxu0 %v2126
    %2941 = vmatpush.msra.mxu0 %v2125
    %2942 = vmatpush.msra.mxu0 %v2124
    %2943 = vmatpush.msra.mxu0 %v2123
    %2944 = vmatpush.msra.mxu0 %v2122
    %2945 = vmatpush.msra.mxu0 %v2121
    %2946 = vmatpush.msra.mxu0 %v2120
    %2947 = vmatpush.msra.mxu0 %v2119
    %2948 = vmatpush.msra.mxu0 %v2118
    %2949 = vmatpush.msra.mxu0 %v2117
    %2950 = vmatpush.msra.mxu0 %v2116
    %2951 = vmatpush.msra.mxu0 %v2115
    %2952 = vmatpush.msra.mxu0 %v2114
    %2953 = vmatmul.f32.gmra.mxu0 %v1745
    %v2954 = vpop.f32.mrf.mxu0
    %v2955 = vadd.f32 %v2842, %v2954
    %2956 = vmatmul.f32.gmra.mxu0 %v1746
    %v2957 = vpop.f32.mrf.mxu0
    %v2958 = vadd.f32 %v2845, %v2957
    %2959 = vmatmul.f32.gmra.mxu0 %v1747
    %v2960 = vpop.f32.mrf.mxu0
    %v2961 = vadd.f32 %v2848, %v2960
    %2962 = vmatmul.f32.gmra.mxu0 %v1748
    %v2963 = vpop.f32.mrf.mxu0
    %v2964 = vadd.f32 %v2851, %v2963
    %2965 = vmatmul.f32.gmra.mxu0 %v1749
    %v2966 = vpop.f32.mrf.mxu0
    %v2967 = vadd.f32 %v2854, %v2966
    %2968 = vmatmul.f32.gmra.mxu0 %v1750
    %v2969 = vpop.f32.mrf.mxu0
    %v2970 = vadd.f32 %v2857, %v2969
    %2971 = vmatmul.f32.gmra.mxu0 %v1751
    %v2972 = vpop.f32.mrf.mxu0
    %v2973 = vadd.f32 %v2860, %v2972
    %2974 = vmatmul.f32.gmra.mxu0 %v1752
    %v2975 = vpop.f32.mrf.mxu0
    %v2976 = vadd.f32 %v2863, %v2975
    %2977 = vmatmul.f32.gmra.mxu0 %v1753
    %v2978 = vpop.f32.mrf.mxu0
    %v2979 = vadd.f32 %v2866, %v2978
    %2980 = vmatmul.f32.gmra.mxu0 %v1754
    %v2981 = vpop.f32.mrf.mxu0
    %v2982 = vadd.f32 %v2869, %v2981
    %2983 = vmatmul.f32.gmra.mxu0 %v1755
    %v2984 = vpop.f32.mrf.mxu0
    %v2985 = vadd.f32 %v2872, %v2984
    %2986 = vmatmul.f32.gmra.mxu0 %v1756
    %v2987 = vpop.f32.mrf.mxu0
    %v2988 = vadd.f32 %v2875, %v2987
    %2989 = vmatmul.f32.gmra.mxu0 %v1757
    %v2990 = vpop.f32.mrf.mxu0
    %v2991 = vadd.f32 %v2878, %v2990
    %2992 = vmatmul.f32.gmra.mxu0 %v1758
    %v2993 = vpop.f32.mrf.mxu0
    %v2994 = vadd.f32 %v2881, %v2993
    %2995 = vmatmul.f32.gmra.mxu0 %v1759
    %v2996 = vpop.f32.mrf.mxu0
    %v2997 = vadd.f32 %v2884, %v2996
    %2998 = vmatmul.f32.gmra.mxu0 %v1760
    %v2999 = vpop.f32.mrf.mxu0
    %v3000 = vadd.f32 %v2887, %v2999
    %3001 = vmatmul.f32.gmra.mxu0 %v1761
    %v3002 = vpop.f32.mrf.mxu0
    %v3003 = vadd.f32 %v2890, %v3002
    %3004 = vmatmul.f32.gmra.mxu0 %v1762
    %v3005 = vpop.f32.mrf.mxu0
    %v3006 = vadd.f32 %v2893, %v3005
    %3007 = vmatmul.f32.gmra.mxu0 %v1763
    %v3008 = vpop.f32.mrf.mxu0
    %v3009 = vadd.f32 %v2896, %v3008
    %3010 = vmatmul.f32.gmra.mxu0 %v1764
    %v3011 = vpop.f32.mrf.mxu0
    %v3012 = vadd.f32 %v2899, %v3011
    %3013 = vmatmul.f32.gmra.mxu0 %v1765
    %v3014 = vpop.f32.mrf.mxu0
    %v3015 = vadd.f32 %v2902, %v3014
    %3016 = vmatmul.f32.gmra.mxu0 %v1766
    %v3017 = vpop.f32.mrf.mxu0
    %v3018 = vadd.f32 %v2905, %v3017
    %3019 = vmatmul.f32.gmra.mxu0 %v1767
    %v3020 = vpop.f32.mrf.mxu0
    %v3021 = vadd.f32 %v2908, %v3020
    %3022 = vmatmul.f32.gmra.mxu0 %v1768
    %v3023 = vpop.f32.mrf.mxu0
    %v3024 = vadd.f32 %v2911, %v3023
    %3025 = vmatmul.f32.gmra.mxu0 %v1769
    %v3026 = vpop.f32.mrf.mxu0
    %v3027 = vadd.f32 %v2914, %v3026
    %3028 = vmatmul.f32.gmra.mxu0 %v1770
    %v3029 = vpop.f32.mrf.mxu0
    %v3030 = vadd.f32 %v2917, %v3029
    %3031 = vmatmul.f32.gmra.mxu0 %v1771
    %v3032 = vpop.f32.mrf.mxu0
    %v3033 = vadd.f32 %v2920, %v3032
    %3034 = vmatmul.f32.gmra.mxu0 %v1772
    %v3035 = vpop.f32.mrf.mxu0
    %v3036 = vadd.f32 %v2923, %v3035
    %3037 = vmatmul.f32.gmra.mxu0 %v1773
    %v3038 = vpop.f32.mrf.mxu0
    %v3039 = vadd.f32 %v2926, %v3038
    %3040 = vmatmul.f32.gmra.mxu0 %v1774
    %v3041 = vpop.f32.mrf.mxu0
    %v3042 = vadd.f32 %v2929, %v3041
    %3043 = vmatmul.f32.gmra.mxu0 %v1775
    %v3044 = vpop.f32.mrf.mxu0
    %v3045 = vadd.f32 %v2932, %v3044
    %3046 = vmatmul.f32.gmra.mxu0 %v1776
    %v3047 = vpop.f32.mrf.mxu0
    %v3048 = vadd.f32 %v2935, %v3047
    %3049 = vdwg.mxu0
    %3050 = vmatpush.msra.mxu0 %v2145
    %3051 = vmatpush.msra.mxu0 %v2144
    %3052 = vmatpush.msra.mxu0 %v2143
    %3053 = vmatpush.msra.mxu0 %v2142
    %3054 = vmatpush.msra.mxu0 %v2141
    %3055 = vmatpush.msra.mxu0 %v2140
    %3056 = vmatpush.msra.mxu0 %v2139
    %3057 = vmatpush.msra.mxu0 %v2138
    %3058 = vmatpush.msra.mxu0 %v2137
    %3059 = vmatpush.msra.mxu0 %v2136
    %3060 = vmatpush.msra.mxu0 %v2135
    %3061 = vmatpush.msra.mxu0 %v2134
    %3062 = vmatpush.msra.mxu0 %v2133
    %3063 = vmatpush.msra.mxu0 %v2132
    %3064 = vmatpush.msra.mxu0 %v2131
    %3065 = vmatpush.msra.mxu0 %v2130
    %3066 = vmatmul.f32.gmra.mxu0 %v1970
    %v3067 = vpop.f32.mrf.mxu0
    %v3068 = vadd.f32 %v2955, %v3067
    %3069 = vmatmul.f32.gmra.mxu0 %v1971
    %v3070 = vpop.f32.mrf.mxu0
    %v3071 = vadd.f32 %v2958, %v3070
    %3072 = vmatmul.f32.gmra.mxu0 %v1972
    %v3073 = vpop.f32.mrf.mxu0
    %v3074 = vadd.f32 %v2961, %v3073
    %3075 = vmatmul.f32.gmra.mxu0 %v1973
    %v3076 = vpop.f32.mrf.mxu0
    %v3077 = vadd.f32 %v2964, %v3076
    %3078 = vmatmul.f32.gmra.mxu0 %v1974
    %v3079 = vpop.f32.mrf.mxu0
    %v3080 = vadd.f32 %v2967, %v3079
    %3081 = vmatmul.f32.gmra.mxu0 %v1975
    %v3082 = vpop.f32.mrf.mxu0
    %v3083 = vadd.f32 %v2970, %v3082
    %3084 = vmatmul.f32.gmra.mxu0 %v1976
    %v3085 = vpop.f32.mrf.mxu0
    %v3086 = vadd.f32 %v2973, %v3085
    %3087 = vmatmul.f32.gmra.mxu0 %v1977
    %v3088 = vpop.f32.mrf.mxu0
    %v3089 = vadd.f32 %v2976, %v3088
    %3090 = vmatmul.f32.gmra.mxu0 %v1978
    %v3091 = vpop.f32.mrf.mxu0
    %v3092 = vadd.f32 %v2979, %v3091
    %3093 = vmatmul.f32.gmra.mxu0 %v1979
    %v3094 = vpop.f32.mrf.mxu0
    %v3095 = vadd.f32 %v2982, %v3094
    %3096 = vmatmul.f32.gmra.mxu0 %v1980
    %v3097 = vpop.f32.mrf.mxu0
    %v3098 = vadd.f32 %v2985, %v3097
    %3099 = vmatmul.f32.gmra.mxu0 %v1981
    %v3100 = vpop.f32.mrf.mxu0
    %v3101 = vadd.f32 %v2988, %v3100
    %3102 = vmatmul.f32.gmra.mxu0 %v1982
    %v3103 = vpop.f32.mrf.mxu0
    %v3104 = vadd.f32 %v2991, %v3103
    %3105 = vmatmul.f32.gmra.mxu0 %v1983
    %v3106 = vpop.f32.mrf.mxu0
    %v3107 = vadd.f32 %v2994, %v3106
    %3108 = vmatmul.f32.gmra.mxu0 %v1984
    %v3109 = vpop.f32.mrf.mxu0
    %v3110 = vadd.f32 %v2997, %v3109
    %3111 = vmatmul.f32.gmra.mxu0 %v1985
    %v3112 = vpop.f32.mrf.mxu0
    %v3113 = vadd.f32 %v3000, %v3112
    %3114 = vmatmul.f32.gmra.mxu0 %v1986
    %v3115 = vpop.f32.mrf.mxu0
    %v3116 = vadd.f32 %v3003, %v3115
    %3117 = vmatmul.f32.gmra.mxu0 %v1987
    %v3118 = vpop.f32.mrf.mxu0
    %v3119 = vadd.f32 %v3006, %v3118
    %3120 = vmatmul.f32.gmra.mxu0 %v1988
    %v3121 = vpop.f32.mrf.mxu0
    %v3122 = vadd.f32 %v3009, %v3121
    %3123 = vmatmul.f32.gmra.mxu0 %v1989
    %v3124 = vpop.f32.mrf.mxu0
    %v3125 = vadd.f32 %v3012, %v3124
    %3126 = vmatmul.f32.gmra.mxu0 %v1990
    %v3127 = vpop.f32.mrf.mxu0
    %v3128 = vadd.f32 %v3015, %v3127
    %3129 = vmatmul.f32.gmra.mxu0 %v1991
    %v3130 = vpop.f32.mrf.mxu0
    %v3131 = vadd.f32 %v3018, %v3130
    %3132 = vmatmul.f32.gmra.mxu0 %v1992
    %v3133 = vpop.f32.mrf.mxu0
    %v3134 = vadd.f32 %v3021, %v3133
    %3135 = vmatmul.f32.gmra.mxu0 %v1993
    %v3136 = vpop.f32.mrf.mxu0
    %v3137 = vadd.f32 %v3024, %v3136
    %3138 = vmatmul.f32.gmra.mxu0 %v1994
    %v3139 = vpop.f32.mrf.mxu0
    %v3140 = vadd.f32 %v3027, %v3139
    %3141 = vmatmul.f32.gmra.mxu0 %v1995
    %v3142 = vpop.f32.mrf.mxu0
    %v3143 = vadd.f32 %v3030, %v3142
    %3144 = vmatmul.f32.gmra.mxu0 %v1996
    %v3145 = vpop.f32.mrf.mxu0
    %v3146 = vadd.f32 %v3033, %v3145
    %3147 = vmatmul.f32.gmra.mxu0 %v1997
    %v3148 = vpop.f32.mrf.mxu0
    %v3149 = vadd.f32 %v3036, %v3148
    %3150 = vmatmul.f32.gmra.mxu0 %v1998
    %v3151 = vpop.f32.mrf.mxu0
    %v3152 = vadd.f32 %v3039, %v3151
    %3153 = vmatmul.f32.gmra.mxu0 %v1999
    %v3154 = vpop.f32.mrf.mxu0
    %v3155 = vadd.f32 %v3042, %v3154
    %3156 = vmatmul.f32.gmra.mxu0 %v2000
    %v3157 = vpop.f32.mrf.mxu0
    %v3158 = vadd.f32 %v3045, %v3157
    %3159 = vmatmul.f32.gmra.mxu0 %v2001
    %v3160 = vpop.f32.mrf.mxu0
    %v3161 = vadd.f32 %v3048, %v3160
    %3162 = vdwg.mxu0
    %v3163 = vld [vmem:[%s2] sm:$0x1]
    %v3165 = vperm.slane %v3163, 0
    %v3167 = vmul.f32 %v3068, %v3165
    %v3168 = vmul.f32 %v3071, %v3165
    %v3169 = vmul.f32 %v3074, %v3165
    %v3170 = vmul.f32 %v3077, %v3165
    %v3171 = vmul.f32 %v3080, %v3165
    %v3172 = vmul.f32 %v3083, %v3165
    %v3173 = vmul.f32 %v3086, %v3165
    %v3174 = vmul.f32 %v3089, %v3165
    %v3175 = vmul.f32 %v3092, %v3165
    %v3176 = vmul.f32 %v3095, %v3165
    %v3177 = vmul.f32 %v3098, %v3165
    %v3178 = vmul.f32 %v3101, %v3165
    %v3179 = vmul.f32 %v3104, %v3165
    %v3180 = vmul.f32 %v3107, %v3165
    %v3181 = vmul.f32 %v3110, %v3165
    %v3182 = vmul.f32 %v3113, %v3165
    %v3183 = vmul.f32 %v3116, %v3165
    %v3184 = vmul.f32 %v3119, %v3165
    %v3185 = vmul.f32 %v3122, %v3165
    %v3186 = vmul.f32 %v3125, %v3165
    %v3187 = vmul.f32 %v3128, %v3165
    %v3188 = vmul.f32 %v3131, %v3165
    %v3189 = vmul.f32 %v3134, %v3165
    %v3190 = vmul.f32 %v3137, %v3165
    %v3191 = vmul.f32 %v3140, %v3165
    %v3192 = vmul.f32 %v3143, %v3165
    %v3193 = vmul.f32 %v3146, %v3165
    %v3194 = vmul.f32 %v3149, %v3165
    %v3195 = vmul.f32 %v3152, %v3165
    %v3196 = vmul.f32 %v3155, %v3165
    %v3197 = vmul.f32 %v3158, %v3165
    %v3198 = vmul.f32 %v3161, %v3165
    %v3199 = vld [vmem:[%s3] sm:$0x1]
    %v3201 = vperm.slane %v3199, 0
    %v3203 = vadd.f32 %v3167, %v3201
    %v3204 = vadd.f32 %v3168, %v3201
    %v3205 = vadd.f32 %v3169, %v3201
    %v3206 = vadd.f32 %v3170, %v3201
    %v3207 = vadd.f32 %v3171, %v3201
    %v3208 = vadd.f32 %v3172, %v3201
    %v3209 = vadd.f32 %v3173, %v3201
    %v3210 = vadd.f32 %v3174, %v3201
    %v3211 = vadd.f32 %v3175, %v3201
    %v3212 = vadd.f32 %v3176, %v3201
    %v3213 = vadd.f32 %v3177, %v3201
    %v3214 = vadd.f32 %v3178, %v3201
    %v3215 = vadd.f32 %v3179, %v3201
    %v3216 = vadd.f32 %v3180, %v3201
    %v3217 = vadd.f32 %v3181, %v3201
    %v3218 = vadd.f32 %v3182, %v3201
    %v3219 = vadd.f32 %v3183, %v3201
    %v3220 = vadd.f32 %v3184, %v3201
    %v3221 = vadd.f32 %v3185, %v3201
    %v3222 = vadd.f32 %v3186, %v3201
    %v3223 = vadd.f32 %v3187, %v3201
    %v3224 = vadd.f32 %v3188, %v3201
    %v3225 = vadd.f32 %v3189, %v3201
    %v3226 = vadd.f32 %v3190, %v3201
    %v3227 = vadd.f32 %v3191, %v3201
    %v3228 = vadd.f32 %v3192, %v3201
    %v3229 = vadd.f32 %v3193, %v3201
    %v3230 = vadd.f32 %v3194, %v3201
    %v3231 = vadd.f32 %v3195, %v3201
    %v3232 = vadd.f32 %v3196, %v3201
    %v3233 = vadd.f32 %v3197, %v3201
    %v3234 = vadd.f32 %v3198, %v3201
    %v3235 = vmax.f32 %v3203, 0.0
    %v3236 = vmax.f32 %v3204, 0.0
    %v3237 = vmax.f32 %v3205, 0.0
    %v3238 = vmax.f32 %v3206, 0.0
    %v3239 = vmax.f32 %v3207, 0.0
    %v3240 = vmax.f32 %v3208, 0.0
    %v3241 = vmax.f32 %v3209, 0.0
    %v3242 = vmax.f32 %v3210, 0.0
    %v3243 = vmax.f32 %v3211, 0.0
    %v3244 = vmax.f32 %v3212, 0.0
    %v3245 = vmax.f32 %v3213, 0.0
    %v3246 = vmax.f32 %v3214, 0.0
    %v3247 = vmax.f32 %v3215, 0.0
    %v3248 = vmax.f32 %v3216, 0.0
    %v3249 = vmax.f32 %v3217, 0.0
    %v3250 = vmax.f32 %v3218, 0.0
    %v3251 = vmax.f32 %v3219, 0.0
    %v3252 = vmax.f32 %v3220, 0.0
    %v3253 = vmax.f32 %v3221, 0.0
    %v3254 = vmax.f32 %v3222, 0.0
    %v3255 = vmax.f32 %v3223, 0.0
    %v3256 = vmax.f32 %v3224, 0.0
    %v3257 = vmax.f32 %v3225, 0.0
    %v3258 = vmax.f32 %v3226, 0.0
    %v3259 = vmax.f32 %v3227, 0.0
    %v3260 = vmax.f32 %v3228, 0.0
    %v3261 = vmax.f32 %v3229, 0.0
    %v3262 = vmax.f32 %v3230, 0.0
    %v3263 = vmax.f32 %v3231, 0.0
    %v3264 = vmax.f32 %v3232, 0.0
    %v3265 = vmax.f32 %v3233, 0.0
    %v3266 = vmax.f32 %v3234, 0.0
    %v3267 = vrot.slane %v3235, 7
    %v3268 = vrot.slane %v3236, 7
    %v3269 = vrot.slane %v3237, 7
    %v3270 = vrot.slane %v3238, 7
    %v3271 = vrot.slane %v3239, 7
    %v3272 = vrot.slane %v3240, 7
    %v3273 = vrot.slane %v3241, 7
    %v3274 = vrot.slane %v3242, 7
    %v3275 = vrot.slane %v3243, 7
    %v3276 = vrot.slane %v3244, 7
    %v3277 = vrot.slane %v3245, 7
    %v3278 = vrot.slane %v3246, 7
    %v3279 = vrot.slane %v3247, 7
    %v3280 = vrot.slane %v3248, 7
    %v3281 = vrot.slane %v3249, 7
    %v3282 = vrot.slane %v3250, 7
    %v3283 = vrot.slane %v3251, 7
    %v3284 = vrot.slane %v3252, 7
    %v3285 = vrot.slane %v3253, 7
    %v3286 = vrot.slane %v3254, 7
    %v3287 = vrot.slane %v3255, 7
    %v3288 = vrot.slane %v3256, 7
    %v3289 = vrot.slane %v3257, 7
    %v3290 = vrot.slane %v3258, 7
    %v3291 = vrot.slane %v3259, 7
    %v3292 = vrot.slane %v3260, 7
    %v3293 = vrot.slane %v3261, 7
    %v3294 = vrot.slane %v3262, 7
    %v3295 = vrot.slane %v3263, 7
    %v3296 = vrot.slane %v3264, 7
    %v3297 = vrot.slane %v3265, 7
    %v3298 = vrot.slane %v3266, 7
    %v3299 = vsel %vm105, %v3297, %v3298
    %v3300 = vsel %vm105, %v3296, %v3297
    %v3301 = vsel %vm105, %v3295, %v3296
    %v3302 = vsel %vm105, %v3294, %v3295
    %v3303 = vsel %vm105, %v3293, %v3294
    %v3304 = vsel %vm105, %v3292, %v3293
    %v3305 = vsel %vm105, %v3291, %v3292
    %v3306 = vsel %vm105, %v3290, %v3291
    %v3307 = vsel %vm105, %v3289, %v3290
    %v3308 = vsel %vm105, %v3288, %v3289
    %v3309 = vsel %vm105, %v3287, %v3288
    %v3310 = vsel %vm105, %v3286, %v3287
    %v3311 = vsel %vm105, %v3285, %v3286
    %v3312 = vsel %vm105, %v3284, %v3285
    %v3313 = vsel %vm105, %v3283, %v3284
    %v3314 = vsel %vm105, %v3282, %v3283
    %v3315 = vsel %vm105, %v3281, %v3282
    %v3316 = vsel %vm105, %v3280, %v3281
    %v3317 = vsel %vm105, %v3279, %v3280
    %v3318 = vsel %vm105, %v3278, %v3279
    %v3319 = vsel %vm105, %v3277, %v3278
    %v3320 = vsel %vm105, %v3276, %v3277
    %v3321 = vsel %vm105, %v3275, %v3276
    %v3322 = vsel %vm105, %v3274, %v3275
    %v3323 = vsel %vm105, %v3273, %v3274
    %v3324 = vsel %vm105, %v3272, %v3273
    %v3325 = vsel %vm105, %v3271, %v3272
    %v3326 = vsel %vm105, %v3270, %v3271
    %v3327 = vsel %vm105, %v3269, %v3270
    %v3328 = vsel %vm105, %v3268, %v3269
    %v3329 = vsel %vm105, %v3267, %v3268
    %v3330 = vsel %vm105, %v3298, %v3267
    %v3331 = vmul.f32 %v3300, %v173
    %v3332 = vmul.f32 %v3299, %v178
    %v3333 = vmul.f32 %v3330, %v183
    %v3334 = vmul.f32 %v3329, %v188
    %v3335 = vmul.f32 %v3328, %v193
    %v3336 = vmul.f32 %v3327, %v198
    %v3337 = vmul.f32 %v3326, %v203
    %v3338 = vmul.f32 %v3325, %v208
    %v3339 = vmul.f32 %v3324, %v213
    %v3340 = vmul.f32 %v3323, %v218
    %v3341 = vmul.f32 %v3322, %v223
    %v3342 = vmul.f32 %v3321, %v228
    %v3343 = vmul.f32 %v3320, %v233
    %v3344 = vmul.f32 %v3319, %v238
    %v3345 = vmul.f32 %v3318, %v243
    %v3346 = vmul.f32 %v3317, %v248
    %v3347 = vmul.f32 %v3316, %v253
    %v3348 = vmul.f32 %v3315, %v258
    %v3349 = vmul.f32 %v3314, %v263
    %v3350 = vmul.f32 %v3313, %v268
    %v3351 = vmul.f32 %v3312, %v273
    %v3352 = vmul.f32 %v3311, %v278
    %v3353 = vmul.f32 %v3310, %v283
    %v3354 = vmul.f32 %v3309, %v288
    %v3355 = vmul.f32 %v3308, %v293
    %v3356 = vmul.f32 %v3307, %v298
    %v3357 = vmul.f32 %v3306, %v303
    %v3358 = vmul.f32 %v3305, %v308
    %v3359 = vmul.f32 %v3304, %v313
    %v3360 = vmul.f32 %v3303, %v318
    %v3361 = vmul.f32 %v3302, %v323
    %v3362 = vmul.f32 %v3301, %v328
    %v3363 = vmul.f32 %v3265, %v398
    %v3364 = vmul.f32 %v3266, %v403
    %v3365 = vmul.f32 %v3235, %v408
    %v3366 = vmul.f32 %v3236, %v413
    %v3367 = vmul.f32 %v3237, %v418
    %v3368 = vmul.f32 %v3238, %v423
    %v3369 = vmul.f32 %v3239, %v428
    %v3370 = vmul.f32 %v3240, %v433
    %v3371 = vmul.f32 %v3241, %v438
    %v3372 = vmul.f32 %v3242, %v443
    %v3373 = vmul.f32 %v3243, %v448
    %v3374 = vmul.f32 %v3244, %v453
    %v3375 = vmul.f32 %v3245, %v458
    %v3376 = vmul.f32 %v3246, %v463
    %v3377 = vmul.f32 %v3247, %v468
    %v3378 = vmul.f32 %v3248, %v473
    %v3379 = vmul.f32 %v3249, %v478
    %v3380 = vmul.f32 %v3250, %v483
    %v3381 = vmul.f32 %v3251, %v488
    %v3382 = vmul.f32 %v3252, %v493
    %v3383 = vmul.f32 %v3253, %v498
    %v3384 = vmul.f32 %v3254, %v503
    %v3385 = vmul.f32 %v3255, %v508
    %v3386 = vmul.f32 %v3256, %v513
    %v3387 = vmul.f32 %v3257, %v518
    %v3388 = vmul.f32 %v3258, %v523
    %v3389 = vmul.f32 %v3259, %v528
    %v3390 = vmul.f32 %v3260, %v533
    %v3391 = vmul.f32 %v3261, %v538
    %v3392 = vmul.f32 %v3262, %v543
    %v3393 = vmul.f32 %v3263, %v548
    %v3394 = vmul.f32 %v3264, %v553
    %v3395 = vrot.slane %v3235, 1
    %v3396 = vrot.slane %v3236, 1
    %v3397 = vrot.slane %v3237, 1
    %v3398 = vrot.slane %v3238, 1
    %v3399 = vrot.slane %v3239, 1
    %v3400 = vrot.slane %v3240, 1
    %v3401 = vrot.slane %v3241, 1
    %v3402 = vrot.slane %v3242, 1
    %v3403 = vrot.slane %v3243, 1
    %v3404 = vrot.slane %v3244, 1
    %v3405 = vrot.slane %v3245, 1
    %v3406 = vrot.slane %v3246, 1
    %v3407 = vrot.slane %v3247, 1
    %v3408 = vrot.slane %v3248, 1
    %v3409 = vrot.slane %v3249, 1
    %v3410 = vrot.slane %v3250, 1
    %v3411 = vrot.slane %v3251, 1
    %v3412 = vrot.slane %v3252, 1
    %v3413 = vrot.slane %v3253, 1
    %v3414 = vrot.slane %v3254, 1
    %v3415 = vrot.slane %v3255, 1
    %v3416 = vrot.slane %v3256, 1
    %v3417 = vrot.slane %v3257, 1
    %v3418 = vrot.slane %v3258, 1
    %v3419 = vrot.slane %v3259, 1
    %v3420 = vrot.slane %v3260, 1
    %v3421 = vrot.slane %v3261, 1
    %v3422 = vrot.slane %v3262, 1
    %v3423 = vrot.slane %v3263, 1
    %v3424 = vrot.slane %v3264, 1
    %v3425 = vrot.slane %v3265, 1
    %v3426 = vrot.slane %v3266, 1
    %v3427 = vsel %vm619, %v3425, %v3426
    %v3428 = vsel %vm619, %v3424, %v3425
    %v3429 = vsel %vm619, %v3423, %v3424
    %v3430 = vsel %vm619, %v3422, %v3423
    %v3431 = vsel %vm619, %v3421, %v3422
    %v3432 = vsel %vm619, %v3420, %v3421
    %v3433 = vsel %vm619, %v3419, %v3420
    %v3434 = vsel %vm619, %v3418, %v3419
    %v3435 = vsel %vm619, %v3417, %v3418
    %v3436 = vsel %vm619, %v3416, %v3417
    %v3437 = vsel %vm619, %v3415, %v3416
    %v3438 = vsel %vm619, %v3414, %v3415
    %v3439 = vsel %vm619, %v3413, %v3414
    %v3440 = vsel %vm619, %v3412, %v3413
    %v3441 = vsel %vm619, %v3411, %v3412
    %v3442 = vsel %vm619, %v3410, %v3411
    %v3443 = vsel %vm619, %v3409, %v3410
    %v3444 = vsel %vm619, %v3408, %v3409
    %v3445 = vsel %vm619, %v3407, %v3408
    %v3446 = vsel %vm619, %v3406, %v3407
    %v3447 = vsel %vm619, %v3405, %v3406
    %v3448 = vsel %vm619, %v3404, %v3405
    %v3449 = vsel %vm619, %v3403, %v3404
    %v3450 = vsel %vm619, %v3402, %v3403
    %v3451 = vsel %vm619, %v3401, %v3402
    %v3452 = vsel %vm619, %v3400, %v3401
    %v3453 = vsel %vm619, %v3399, %v3400
    %v3454 = vsel %vm619, %v3398, %v3399
    %v3455 = vsel %vm619, %v3397, %v3398
    %v3456 = vsel %vm619, %v3396, %v3397
    %v3457 = vsel %vm619, %v3395, %v3396
    %v3458 = vsel %vm619, %v3426, %v3395
    %v3459 = vmul.f32 %v3427, %v688
    %v3460 = vmul.f32 %v3458, %v693
    %v3461 = vmul.f32 %v3457, %v698
    %v3462 = vmul.f32 %v3456, %v703
    %v3463 = vmul.f32 %v3455, %v708
    %v3464 = vmul.f32 %v3454, %v713
    %v3465 = vmul.f32 %v3453, %v718
    %v3466 = vmul.f32 %v3452, %v723
    %v3467 = vmul.f32 %v3451, %v728
    %v3468 = vmul.f32 %v3450, %v733
    %v3469 = vmul.f32 %v3449, %v738
    %v3470 = vmul.f32 %v3448, %v743
    %v3471 = vmul.f32 %v3447, %v748
    %v3472 = vmul.f32 %v3446, %v753
    %v3473 = vmul.f32 %v3445, %v758
    %v3474 = vmul.f32 %v3444, %v763
    %v3475 = vmul.f32 %v3443, %v768
    %v3476 = vmul.f32 %v3442, %v773
    %v3477 = vmul.f32 %v3441, %v778
    %v3478 = vmul.f32 %v3440, %v783
    %v3479 = vmul.f32 %v3439, %v788
    %v3480 = vmul.f32 %v3438, %v793
    %v3481 = vmul.f32 %v3437, %v798
    %v3482 = vmul.f32 %v3436, %v803
    %v3483 = vmul.f32 %v3435, %v808
    %v3484 = vmul.f32 %v3434, %v813
    %v3485 = vmul.f32 %v3433, %v818
    %v3486 = vmul.f32 %v3432, %v823
    %v3487 = vmul.f32 %v3431, %v828
    %v3488 = vmul.f32 %v3430, %v833
    %v3489 = vmul.f32 %v3429, %v838
    %v3490 = vmul.f32 %v3428, %v843
    %v3491 = vmul.f32 %v3330, %v913
    %v3492 = vmul.f32 %v3329, %v918
    %v3493 = vmul.f32 %v3328, %v923
    %v3494 = vmul.f32 %v3327, %v928
    %v3495 = vmul.f32 %v3326, %v933
    %v3496 = vmul.f32 %v3325, %v938
    %v3497 = vmul.f32 %v3324, %v943
    %v3498 = vmul.f32 %v3323, %v948
    %v3499 = vmul.f32 %v3322, %v953
    %v3500 = vmul.f32 %v3321, %v958
    %v3501 = vmul.f32 %v3320, %v963
    %v3502 = vmul.f32 %v3319, %v968
    %v3503 = vmul.f32 %v3318, %v973
    %v3504 = vmul.f32 %v3317, %v978
    %v3505 = vmul.f32 %v3316, %v983
    %v3506 = vmul.f32 %v3315, %v988
    %v3507 = vmul.f32 %v3314, %v993
    %v3508 = vmul.f32 %v3313, %v998
    %v3509 = vmul.f32 %v3312, %v1003
    %v3510 = vmul.f32 %v3311, %v1008
    %v3511 = vmul.f32 %v3310, %v1013
    %v3512 = vmul.f32 %v3309, %v1018
    %v3513 = vmul.f32 %v3308, %v1023
    %v3514 = vmul.f32 %v3307, %v1028
    %v3515 = vmul.f32 %v3306, %v1033
    %v3516 = vmul.f32 %v3305, %v1038
    %v3517 = vmul.f32 %v3304, %v1043
    %v3518 = vmul.f32 %v3303, %v1048
    %v3519 = vmul.f32 %v3302, %v1053
    %v3520 = vmul.f32 %v3301, %v1058
    %v3521 = vmul.f32 %v3300, %v1063
    %v3522 = vmul.f32 %v3299, %v1068
    %v3523 = vmul.f32 %v3457, %v1138
    %v3524 = vmul.f32 %v3456, %v1143
    %v3525 = vmul.f32 %v3455, %v1148
    %v3526 = vmul.f32 %v3454, %v1153
    %v3527 = vmul.f32 %v3453, %v1158
    %v3528 = vmul.f32 %v3452, %v1163
    %v3529 = vmul.f32 %v3451, %v1168
    %v3530 = vmul.f32 %v3450, %v1173
    %v3531 = vmul.f32 %v3449, %v1178
    %v3532 = vmul.f32 %v3448, %v1183
    %v3533 = vmul.f32 %v3447, %v1188
    %v3534 = vmul.f32 %v3446, %v1193
    %v3535 = vmul.f32 %v3445, %v1198
    %v3536 = vmul.f32 %v3444, %v1203
    %v3537 = vmul.f32 %v3443, %v1208
    %v3538 = vmul.f32 %v3442, %v1213
    %v3539 = vmul.f32 %v3441, %v1218
    %v3540 = vmul.f32 %v3440, %v1223
    %v3541 = vmul.f32 %v3439, %v1228
    %v3542 = vmul.f32 %v3438, %v1233
    %v3543 = vmul.f32 %v3437, %v1238
    %v3544 = vmul.f32 %v3436, %v1243
    %v3545 = vmul.f32 %v3435, %v1248
    %v3546 = vmul.f32 %v3434, %v1253
    %v3547 = vmul.f32 %v3433, %v1258
    %v3548 = vmul.f32 %v3432, %v1263
    %v3549 = vmul.f32 %v3431, %v1268
    %v3550 = vmul.f32 %v3430, %v1273
    %v3551 = vmul.f32 %v3429, %v1278
    %v3552 = vmul.f32 %v3428, %v1283
    %v3553 = vmul.f32 %v3427, %v1288
    %v3554 = vmul.f32 %v3458, %v1293
    %v3555 = vmul.f32 %v3328, %v1363
    %v3556 = vmul.f32 %v3327, %v1368
    %v3557 = vmul.f32 %v3326, %v1373
    %v3558 = vmul.f32 %v3325, %v1378
    %v3559 = vmul.f32 %v3324, %v1383
    %v3560 = vmul.f32 %v3323, %v1388
    %v3561 = vmul.f32 %v3322, %v1393
    %v3562 = vmul.f32 %v3321, %v1398
    %v3563 = vmul.f32 %v3320, %v1403
    %v3564 = vmul.f32 %v3319, %v1408
    %v3565 = vmul.f32 %v3318, %v1413
    %v3566 = vmul.f32 %v3317, %v1418
    %v3567 = vmul.f32 %v3316, %v1423
    %v3568 = vmul.f32 %v3315, %v1428
    %v3569 = vmul.f32 %v3314, %v1433
    %v3570 = vmul.f32 %v3313, %v1438
    %v3571 = vmul.f32 %v3312, %v1443
    %v3572 = vmul.f32 %v3311, %v1448
    %v3573 = vmul.f32 %v3310, %v1453
    %v3574 = vmul.f32 %v3309, %v1458
    %v3575 = vmul.f32 %v3308, %v1463
    %v3576 = vmul.f32 %v3307, %v1468
    %v3577 = vmul.f32 %v3306, %v1473
    %v3578 = vmul.f32 %v3305, %v1478
    %v3579 = vmul.f32 %v3304, %v1483
    %v3580 = vmul.f32 %v3303, %v1488
    %v3581 = vmul.f32 %v3302, %v1493
    %v3582 = vmul.f32 %v3301, %v1498
    %v3583 = vmul.f32 %v3300, %v1503
    %v3584 = vmul.f32 %v3299, %v1508
    %v3585 = vmul.f32 %v3330, %v1513
    %v3586 = vmul.f32 %v3329, %v1518
    %v3587 = vmul.f32 %v3237, %v1588
    %v3588 = vmul.f32 %v3238, %v1593
    %v3589 = vmul.f32 %v3239, %v1598
    %v3590 = vmul.f32 %v3240, %v1603
    %v3591 = vmul.f32 %v3241, %v1608
    %v3592 = vmul.f32 %v3242, %v1613
    %v3593 = vmul.f32 %v3243, %v1618
    %v3594 = vmul.f32 %v3244, %v1623
    %v3595 = vmul.f32 %v3245, %v1628
    %v3596 = vmul.f32 %v3246, %v1633
    %v3597 = vmul.f32 %v3247, %v1638
    %v3598 = vmul.f32 %v3248, %v1643
    %v3599 = vmul.f32 %v3249, %v1648
    %v3600 = vmul.f32 %v3250, %v1653
    %v3601 = vmul.f32 %v3251, %v1658
    %v3602 = vmul.f32 %v3252, %v1663
    %v3603 = vmul.f32 %v3253, %v1668
    %v3604 = vmul.f32 %v3254, %v1673
    %v3605 = vmul.f32 %v3255, %v1678
    %v3606 = vmul.f32 %v3256, %v1683
    %v3607 = vmul.f32 %v3257, %v1688
    %v3608 = vmul.f32 %v3258, %v1693
    %v3609 = vmul.f32 %v3259, %v1698
    %v3610 = vmul.f32 %v3260, %v1703
    %v3611 = vmul.f32 %v3261, %v1708
    %v3612 = vmul.f32 %v3262, %v1713
    %v3613 = vmul.f32 %v3263, %v1718
    %v3614 = vmul.f32 %v3264, %v1723
    %v3615 = vmul.f32 %v3265, %v1728
    %v3616 = vmul.f32 %v3266, %v1733
    %v3617 = vmul.f32 %v3235, %v1738
    %v3618 = vmul.f32 %v3236, %v1743
    %v3619 = vmul.f32 %v3455, %v1813
    %v3620 = vmul.f32 %v3454, %v1818
    %v3621 = vmul.f32 %v3453, %v1823
    %v3622 = vmul.f32 %v3452, %v1828
    %v3623 = vmul.f32 %v3451, %v1833
    %v3624 = vmul.f32 %v3450, %v1838
    %v3625 = vmul.f32 %v3449, %v1843
    %v3626 = vmul.f32 %v3448, %v1848
    %v3627 = vmul.f32 %v3447, %v1853
    %v3628 = vmul.f32 %v3446, %v1858
    %v3629 = vmul.f32 %v3445, %v1863
    %v3630 = vmul.f32 %v3444, %v1868
    %v3631 = vmul.f32 %v3443, %v1873
    %v3632 = vmul.f32 %v3442, %v1878
    %v3633 = vmul.f32 %v3441, %v1883
    %v3634 = vmul.f32 %v3440, %v1888
    %v3635 = vmul.f32 %v3439, %v1893
    %v3636 = vmul.f32 %v3438, %v1898
    %v3637 = vmul.f32 %v3437, %v1903
    %v3638 = vmul.f32 %v3436, %v1908
    %v3639 = vmul.f32 %v3435, %v1913
    %v3640 = vmul.f32 %v3434, %v1918
    %v3641 = vmul.f32 %v3433, %v1923
    %v3642 = vmul.f32 %v3432, %v1928
    %v3643 = vmul.f32 %v3431, %v1933
    %v3644 = vmul.f32 %v3430, %v1938
    %v3645 = vmul.f32 %v3429, %v1943
    %v3646 = vmul.f32 %v3428, %v1948
    %v3647 = vmul.f32 %v3427, %v1953
    %v3648 = vmul.f32 %v3458, %v1958
    %v3649 = vmul.f32 %v3457, %v1963
    %v3650 = vmul.f32 %v3456, %v1968
    %s3651 = scalar_lea.vmem %s1, 1152
    %v3652 = vld [vmem:[%s3651] sm:$0xff]
    %v3653 = vld [vmem:[%s3651 + $0x8] sm:$0xff]
    %v3654 = vld [vmem:[%s3651 + $0x10] sm:$0xff]
    %v3655 = vld [vmem:[%s3651 + $0x18] sm:$0xff]
    %v3656 = vld [vmem:[%s3651 + $0x20] sm:$0xff]
    %v3657 = vld [vmem:[%s3651 + $0x28] sm:$0xff]
    %v3658 = vld [vmem:[%s3651 + $0x30] sm:$0xff]
    %v3659 = vld [vmem:[%s3651 + $0x38] sm:$0xff]
    %v3660 = vld [vmem:[%s3651 + $0x40] sm:$0xff]
    %v3661 = vld [vmem:[%s3651 + $0x48] sm:$0xff]
    %v3662 = vld [vmem:[%s3651 + $0x50] sm:$0xff]
    %v3663 = vld [vmem:[%s3651 + $0x58] sm:$0xff]
    %v3664 = vld [vmem:[%s3651 + $0x60] sm:$0xff]
    %v3665 = vld [vmem:[%s3651 + $0x68] sm:$0xff]
    %v3666 = vld [vmem:[%s3651 + $0x70] sm:$0xff]
    %v3667 = vld [vmem:[%s3651 + $0x78] sm:$0xff]
    %v3668 = vld [vmem:[%s3651 + $0x80] sm:$0xff]
    %v3669 = vld [vmem:[%s3651 + $0x88] sm:$0xff]
    %v3670 = vld [vmem:[%s3651 + $0x90] sm:$0xff]
    %v3671 = vld [vmem:[%s3651 + $0x98] sm:$0xff]
    %v3672 = vld [vmem:[%s3651 + $0xa0] sm:$0xff]
    %v3673 = vld [vmem:[%s3651 + $0xa8] sm:$0xff]
    %v3674 = vld [vmem:[%s3651 + $0xb0] sm:$0xff]
    %v3675 = vld [vmem:[%s3651 + $0xb8] sm:$0xff]
    %v3676 = vld [vmem:[%s3651 + $0xc0] sm:$0xff]
    %v3677 = vld [vmem:[%s3651 + $0xc8] sm:$0xff]
    %v3678 = vld [vmem:[%s3651 + $0xd0] sm:$0xff]
    %v3679 = vld [vmem:[%s3651 + $0xd8] sm:$0xff]
    %v3680 = vld [vmem:[%s3651 + $0xe0] sm:$0xff]
    %v3681 = vld [vmem:[%s3651 + $0xe8] sm:$0xff]
    %v3682 = vld [vmem:[%s3651 + $0xf0] sm:$0xff]
    %v3683 = vld [vmem:[%s3651 + $0xf8] sm:$0xff]
    %v3684 = vld [vmem:[%s3651 + $0x100] sm:$0xff]
    %v3685 = vld [vmem:[%s3651 + $0x108] sm:$0xff]
    %v3686 = vld [vmem:[%s3651 + $0x110] sm:$0xff]
    %v3687 = vld [vmem:[%s3651 + $0x118] sm:$0xff]
    %v3688 = vld [vmem:[%s3651 + $0x120] sm:$0xff]
    %v3689 = vld [vmem:[%s3651 + $0x128] sm:$0xff]
    %v3690 = vld [vmem:[%s3651 + $0x130] sm:$0xff]
    %v3691 = vld [vmem:[%s3651 + $0x138] sm:$0xff]
    %v3692 = vld [vmem:[%s3651 + $0x140] sm:$0xff]
    %v3693 = vld [vmem:[%s3651 + $0x148] sm:$0xff]
    %v3694 = vld [vmem:[%s3651 + $0x150] sm:$0xff]
    %v3695 = vld [vmem:[%s3651 + $0x158] sm:$0xff]
    %v3696 = vld [vmem:[%s3651 + $0x160] sm:$0xff]
    %v3697 = vld [vmem:[%s3651 + $0x168] sm:$0xff]
    %v3698 = vld [vmem:[%s3651 + $0x170] sm:$0xff]
    %v3699 = vld [vmem:[%s3651 + $0x178] sm:$0xff]
    %v3700 = vld [vmem:[%s3651 + $0x180] sm:$0xff]
    %v3701 = vld [vmem:[%s3651 + $0x188] sm:$0xff]
    %v3702 = vld [vmem:[%s3651 + $0x190] sm:$0xff]
    %v3703 = vld [vmem:[%s3651 + $0x198] sm:$0xff]
    %v3704 = vld [vmem:[%s3651 + $0x1a0] sm:$0xff]
    %v3705 = vld [vmem:[%s3651 + $0x1a8] sm:$0xff]
    %v3706 = vld [vmem:[%s3651 + $0x1b0] sm:$0xff]
    %v3707 = vld [vmem:[%s3651 + $0x1b8] sm:$0xff]
    %v3708 = vld [vmem:[%s3651 + $0x1c0] sm:$0xff]
    %v3709 = vld [vmem:[%s3651 + $0x1c8] sm:$0xff]
    %v3710 = vld [vmem:[%s3651 + $0x1d0] sm:$0xff]
    %v3711 = vld [vmem:[%s3651 + $0x1d8] sm:$0xff]
    %v3712 = vld [vmem:[%s3651 + $0x1e0] sm:$0xff]
    %v3713 = vld [vmem:[%s3651 + $0x1e8] sm:$0xff]
    %v3714 = vld [vmem:[%s3651 + $0x1f0] sm:$0xff]
    %v3715 = vld [vmem:[%s3651 + $0x1f8] sm:$0xff]
    %v3716 = vld [vmem:[%s3651 + $0x200] sm:$0xff]
    %v3717 = vld [vmem:[%s3651 + $0x208] sm:$0xff]
    %v3718 = vld [vmem:[%s3651 + $0x210] sm:$0xff]
    %v3719 = vld [vmem:[%s3651 + $0x218] sm:$0xff]
    %v3720 = vld [vmem:[%s3651 + $0x220] sm:$0xff]
    %v3721 = vld [vmem:[%s3651 + $0x228] sm:$0xff]
    %v3722 = vld [vmem:[%s3651 + $0x230] sm:$0xff]
    %v3723 = vld [vmem:[%s3651 + $0x238] sm:$0xff]
    %v3724 = vld [vmem:[%s3651 + $0x240] sm:$0xff]
    %v3725 = vld [vmem:[%s3651 + $0x248] sm:$0xff]
    %v3726 = vld [vmem:[%s3651 + $0x250] sm:$0xff]
    %v3727 = vld [vmem:[%s3651 + $0x258] sm:$0xff]
    %v3728 = vld [vmem:[%s3651 + $0x260] sm:$0xff]
    %v3729 = vld [vmem:[%s3651 + $0x268] sm:$0xff]
    %v3730 = vld [vmem:[%s3651 + $0x270] sm:$0xff]
    %v3731 = vld [vmem:[%s3651 + $0x278] sm:$0xff]
    %v3732 = vld [vmem:[%s3651 + $0x280] sm:$0xff]
    %v3733 = vld [vmem:[%s3651 + $0x288] sm:$0xff]
    %v3734 = vld [vmem:[%s3651 + $0x290] sm:$0xff]
    %v3735 = vld [vmem:[%s3651 + $0x298] sm:$0xff]
    %v3736 = vld [vmem:[%s3651 + $0x2a0] sm:$0xff]
    %v3737 = vld [vmem:[%s3651 + $0x2a8] sm:$0xff]
    %v3738 = vld [vmem:[%s3651 + $0x2b0] sm:$0xff]
    %v3739 = vld [vmem:[%s3651 + $0x2b8] sm:$0xff]
    %v3740 = vld [vmem:[%s3651 + $0x2c0] sm:$0xff]
    %v3741 = vld [vmem:[%s3651 + $0x2c8] sm:$0xff]
    %v3742 = vld [vmem:[%s3651 + $0x2d0] sm:$0xff]
    %v3743 = vld [vmem:[%s3651 + $0x2d8] sm:$0xff]
    %v3744 = vld [vmem:[%s3651 + $0x2e0] sm:$0xff]
    %v3745 = vld [vmem:[%s3651 + $0x2e8] sm:$0xff]
    %v3746 = vld [vmem:[%s3651 + $0x2f0] sm:$0xff]
    %v3747 = vld [vmem:[%s3651 + $0x2f8] sm:$0xff]
    %v3748 = vld [vmem:[%s3651 + $0x300] sm:$0xff]
    %v3749 = vld [vmem:[%s3651 + $0x308] sm:$0xff]
    %v3750 = vld [vmem:[%s3651 + $0x310] sm:$0xff]
    %v3751 = vld [vmem:[%s3651 + $0x318] sm:$0xff]
    %v3752 = vld [vmem:[%s3651 + $0x320] sm:$0xff]
    %v3753 = vld [vmem:[%s3651 + $0x328] sm:$0xff]
    %v3754 = vld [vmem:[%s3651 + $0x330] sm:$0xff]
    %v3755 = vld [vmem:[%s3651 + $0x338] sm:$0xff]
    %v3756 = vld [vmem:[%s3651 + $0x340] sm:$0xff]
    %v3757 = vld [vmem:[%s3651 + $0x348] sm:$0xff]
    %v3758 = vld [vmem:[%s3651 + $0x350] sm:$0xff]
    %v3759 = vld [vmem:[%s3651 + $0x358] sm:$0xff]
    %v3760 = vld [vmem:[%s3651 + $0x360] sm:$0xff]
    %v3761 = vld [vmem:[%s3651 + $0x368] sm:$0xff]
    %v3762 = vld [vmem:[%s3651 + $0x370] sm:$0xff]
    %v3763 = vld [vmem:[%s3651 + $0x378] sm:$0xff]
    %v3764 = vld [vmem:[%s3651 + $0x380] sm:$0xff]
    %v3765 = vld [vmem:[%s3651 + $0x388] sm:$0xff]
    %v3766 = vld [vmem:[%s3651 + $0x390] sm:$0xff]
    %v3767 = vld [vmem:[%s3651 + $0x398] sm:$0xff]
    %v3768 = vld [vmem:[%s3651 + $0x3a0] sm:$0xff]
    %v3769 = vld [vmem:[%s3651 + $0x3a8] sm:$0xff]
    %v3770 = vld [vmem:[%s3651 + $0x3b0] sm:$0xff]
    %v3771 = vld [vmem:[%s3651 + $0x3b8] sm:$0xff]
    %v3772 = vld [vmem:[%s3651 + $0x3c0] sm:$0xff]
    %v3773 = vld [vmem:[%s3651 + $0x3c8] sm:$0xff]
    %v3774 = vld [vmem:[%s3651 + $0x3d0] sm:$0xff]
    %v3775 = vld [vmem:[%s3651 + $0x3d8] sm:$0xff]
    %v3776 = vld [vmem:[%s3651 + $0x3e0] sm:$0xff]
    %v3777 = vld [vmem:[%s3651 + $0x3e8] sm:$0xff]
    %v3778 = vld [vmem:[%s3651 + $0x3f0] sm:$0xff]
    %v3779 = vld [vmem:[%s3651 + $0x3f8] sm:$0xff]
    %v3780 = vld [vmem:[%s3651 + $0x400] sm:$0xff]
    %v3781 = vld [vmem:[%s3651 + $0x408] sm:$0xff]
    %v3782 = vld [vmem:[%s3651 + $0x410] sm:$0xff]
    %v3783 = vld [vmem:[%s3651 + $0x418] sm:$0xff]
    %v3784 = vld [vmem:[%s3651 + $0x420] sm:$0xff]
    %v3785 = vld [vmem:[%s3651 + $0x428] sm:$0xff]
    %v3786 = vld [vmem:[%s3651 + $0x430] sm:$0xff]
    %v3787 = vld [vmem:[%s3651 + $0x438] sm:$0xff]
    %v3788 = vld [vmem:[%s3651 + $0x440] sm:$0xff]
    %v3789 = vld [vmem:[%s3651 + $0x448] sm:$0xff]
    %v3790 = vld [vmem:[%s3651 + $0x450] sm:$0xff]
    %v3791 = vld [vmem:[%s3651 + $0x458] sm:$0xff]
    %v3792 = vld [vmem:[%s3651 + $0x460] sm:$0xff]
    %v3793 = vld [vmem:[%s3651 + $0x468] sm:$0xff]
    %v3794 = vld [vmem:[%s3651 + $0x470] sm:$0xff]
    %v3795 = vld [vmem:[%s3651 + $0x478] sm:$0xff]
    %3796 = vmatpush.msra.mxu0 %v3667
    %3797 = vmatpush.msra.mxu0 %v3666
    %3798 = vmatpush.msra.mxu0 %v3665
    %3799 = vmatpush.msra.mxu0 %v3664
    %3800 = vmatpush.msra.mxu0 %v3663
    %3801 = vmatpush.msra.mxu0 %v3662
    %3802 = vmatpush.msra.mxu0 %v3661
    %3803 = vmatpush.msra.mxu0 %v3660
    %3804 = vmatpush.msra.mxu0 %v3659
    %3805 = vmatpush.msra.mxu0 %v3658
    %3806 = vmatpush.msra.mxu0 %v3657
    %3807 = vmatpush.msra.mxu0 %v3656
    %3808 = vmatpush.msra.mxu0 %v3655
    %3809 = vmatpush.msra.mxu0 %v3654
    %3810 = vmatpush.msra.mxu0 %v3653
    %3811 = vmatpush.msra.mxu0 %v3652
    %3812 = vmatmul.f32.gmra.mxu0 %v3331
    %v3813 = vpop.f32.mrf.mxu0
    %v3814 = vadd.f32 0.0, %v3813
    %3815 = vmatmul.f32.gmra.mxu0 %v3332
    %v3816 = vpop.f32.mrf.mxu0
    %v3817 = vadd.f32 0.0, %v3816
    %3818 = vmatmul.f32.gmra.mxu0 %v3333
    %v3819 = vpop.f32.mrf.mxu0
    %v3820 = vadd.f32 0.0, %v3819
    %3821 = vmatmul.f32.gmra.mxu0 %v3334
    %v3822 = vpop.f32.mrf.mxu0
    %v3823 = vadd.f32 0.0, %v3822
    %3824 = vmatmul.f32.gmra.mxu0 %v3335
    %v3825 = vpop.f32.mrf.mxu0
    %v3826 = vadd.f32 0.0, %v3825
    %3827 = vmatmul.f32.gmra.mxu0 %v3336
    %v3828 = vpop.f32.mrf.mxu0
    %v3829 = vadd.f32 0.0, %v3828
    %3830 = vmatmul.f32.gmra.mxu0 %v3337
    %v3831 = vpop.f32.mrf.mxu0
    %v3832 = vadd.f32 0.0, %v3831
    %3833 = vmatmul.f32.gmra.mxu0 %v3338
    %v3834 = vpop.f32.mrf.mxu0
    %v3835 = vadd.f32 0.0, %v3834
    %3836 = vmatmul.f32.gmra.mxu0 %v3339
    %v3837 = vpop.f32.mrf.mxu0
    %v3838 = vadd.f32 0.0, %v3837
    %3839 = vmatmul.f32.gmra.mxu0 %v3340
    %v3840 = vpop.f32.mrf.mxu0
    %v3841 = vadd.f32 0.0, %v3840
    %3842 = vmatmul.f32.gmra.mxu0 %v3341
    %v3843 = vpop.f32.mrf.mxu0
    %v3844 = vadd.f32 0.0, %v3843
    %3845 = vmatmul.f32.gmra.mxu0 %v3342
    %v3846 = vpop.f32.mrf.mxu0
    %v3847 = vadd.f32 0.0, %v3846
    %3848 = vmatmul.f32.gmra.mxu0 %v3343
    %v3849 = vpop.f32.mrf.mxu0
    %v3850 = vadd.f32 0.0, %v3849
    %3851 = vmatmul.f32.gmra.mxu0 %v3344
    %v3852 = vpop.f32.mrf.mxu0
    %v3853 = vadd.f32 0.0, %v3852
    %3854 = vmatmul.f32.gmra.mxu0 %v3345
    %v3855 = vpop.f32.mrf.mxu0
    %v3856 = vadd.f32 0.0, %v3855
    %3857 = vmatmul.f32.gmra.mxu0 %v3346
    %v3858 = vpop.f32.mrf.mxu0
    %v3859 = vadd.f32 0.0, %v3858
    %3860 = vmatmul.f32.gmra.mxu0 %v3347
    %v3861 = vpop.f32.mrf.mxu0
    %v3862 = vadd.f32 0.0, %v3861
    %3863 = vmatmul.f32.gmra.mxu0 %v3348
    %v3864 = vpop.f32.mrf.mxu0
    %v3865 = vadd.f32 0.0, %v3864
    %3866 = vmatmul.f32.gmra.mxu0 %v3349
    %v3867 = vpop.f32.mrf.mxu0
    %v3868 = vadd.f32 0.0, %v3867
    %3869 = vmatmul.f32.gmra.mxu0 %v3350
    %v3870 = vpop.f32.mrf.mxu0
    %v3871 = vadd.f32 0.0, %v3870
    %3872 = vmatmul.f32.gmra.mxu0 %v3351
    %v3873 = vpop.f32.mrf.mxu0
    %v3874 = vadd.f32 0.0, %v3873
    %3875 = vmatmul.f32.gmra.mxu0 %v3352
    %v3876 = vpop.f32.mrf.mxu0
    %v3877 = vadd.f32 0.0, %v3876
    %3878 = vmatmul.f32.gmra.mxu0 %v3353
    %v3879 = vpop.f32.mrf.mxu0
    %v3880 = vadd.f32 0.0, %v3879
    %3881 = vmatmul.f32.gmra.mxu0 %v3354
    %v3882 = vpop.f32.mrf.mxu0
    %v3883 = vadd.f32 0.0, %v3882
    %3884 = vmatmul.f32.gmra.mxu0 %v3355
    %v3885 = vpop.f32.mrf.mxu0
    %v3886 = vadd.f32 0.0, %v3885
    %3887 = vmatmul.f32.gmra.mxu0 %v3356
    %v3888 = vpop.f32.mrf.mxu0
    %v3889 = vadd.f32 0.0, %v3888
    %3890 = vmatmul.f32.gmra.mxu0 %v3357
    %v3891 = vpop.f32.mrf.mxu0
    %v3892 = vadd.f32 0.0, %v3891
    %3893 = vmatmul.f32.gmra.mxu0 %v3358
    %v3894 = vpop.f32.mrf.mxu0
    %v3895 = vadd.f32 0.0, %v3894
    %3896 = vmatmul.f32.gmra.mxu0 %v3359
    %v3897 = vpop.f32.mrf.mxu0
    %v3898 = vadd.f32 0.0, %v3897
    %3899 = vmatmul.f32.gmra.mxu0 %v3360
    %v3900 = vpop.f32.mrf.mxu0
    %v3901 = vadd.f32 0.0, %v3900
    %3902 = vmatmul.f32.gmra.mxu0 %v3361
    %v3903 = vpop.f32.mrf.mxu0
    %v3904 = vadd.f32 0.0, %v3903
    %3905 = vmatmul.f32.gmra.mxu0 %v3362
    %v3906 = vpop.f32.mrf.mxu0
    %v3907 = vadd.f32 0.0, %v3906
    %3908 = vdwg.mxu0
    %3909 = vmatpush.msra.mxu0 %v3683
    %3910 = vmatpush.msra.mxu0 %v3682
    %3911 = vmatpush.msra.mxu0 %v3681
    %3912 = vmatpush.msra.mxu0 %v3680
    %3913 = vmatpush.msra.mxu0 %v3679
    %3914 = vmatpush.msra.mxu0 %v3678
    %3915 = vmatpush.msra.mxu0 %v3677
    %3916 = vmatpush.msra.mxu0 %v3676
    %3917 = vmatpush.msra.mxu0 %v3675
    %3918 = vmatpush.msra.mxu0 %v3674
    %3919 = vmatpush.msra.mxu0 %v3673
    %3920 = vmatpush.msra.mxu0 %v3672
    %3921 = vmatpush.msra.mxu0 %v3671
    %3922 = vmatpush.msra.mxu0 %v3670
    %3923 = vmatpush.msra.mxu0 %v3669
    %3924 = vmatpush.msra.mxu0 %v3668
    %3925 = vmatmul.f32.gmra.mxu0 %v3363
    %v3926 = vpop.f32.mrf.mxu0
    %v3927 = vadd.f32 %v3814, %v3926
    %3928 = vmatmul.f32.gmra.mxu0 %v3364
    %v3929 = vpop.f32.mrf.mxu0
    %v3930 = vadd.f32 %v3817, %v3929
    %3931 = vmatmul.f32.gmra.mxu0 %v3365
    %v3932 = vpop.f32.mrf.mxu0
    %v3933 = vadd.f32 %v3820, %v3932
    %3934 = vmatmul.f32.gmra.mxu0 %v3366
    %v3935 = vpop.f32.mrf.mxu0
    %v3936 = vadd.f32 %v3823, %v3935
    %3937 = vmatmul.f32.gmra.mxu0 %v3367
    %v3938 = vpop.f32.mrf.mxu0
    %v3939 = vadd.f32 %v3826, %v3938
    %3940 = vmatmul.f32.gmra.mxu0 %v3368
    %v3941 = vpop.f32.mrf.mxu0
    %v3942 = vadd.f32 %v3829, %v3941
    %3943 = vmatmul.f32.gmra.mxu0 %v3369
    %v3944 = vpop.f32.mrf.mxu0
    %v3945 = vadd.f32 %v3832, %v3944
    %3946 = vmatmul.f32.gmra.mxu0 %v3370
    %v3947 = vpop.f32.mrf.mxu0
    %v3948 = vadd.f32 %v3835, %v3947
    %3949 = vmatmul.f32.gmra.mxu0 %v3371
    %v3950 = vpop.f32.mrf.mxu0
    %v3951 = vadd.f32 %v3838, %v3950
    %3952 = vmatmul.f32.gmra.mxu0 %v3372
    %v3953 = vpop.f32.mrf.mxu0
    %v3954 = vadd.f32 %v3841, %v3953
    %3955 = vmatmul.f32.gmra.mxu0 %v3373
    %v3956 = vpop.f32.mrf.mxu0
    %v3957 = vadd.f32 %v3844, %v3956
    %3958 = vmatmul.f32.gmra.mxu0 %v3374
    %v3959 = vpop.f32.mrf.mxu0
    %v3960 = vadd.f32 %v3847, %v3959
    %3961 = vmatmul.f32.gmra.mxu0 %v3375
    %v3962 = vpop.f32.mrf.mxu0
    %v3963 = vadd.f32 %v3850, %v3962
    %3964 = vmatmul.f32.gmra.mxu0 %v3376
    %v3965 = vpop.f32.mrf.mxu0
    %v3966 = vadd.f32 %v3853, %v3965
    %3967 = vmatmul.f32.gmra.mxu0 %v3377
    %v3968 = vpop.f32.mrf.mxu0
    %v3969 = vadd.f32 %v3856, %v3968
    %3970 = vmatmul.f32.gmra.mxu0 %v3378
    %v3971 = vpop.f32.mrf.mxu0
    %v3972 = vadd.f32 %v3859, %v3971
    %3973 = vmatmul.f32.gmra.mxu0 %v3379
    %v3974 = vpop.f32.mrf.mxu0
    %v3975 = vadd.f32 %v3862, %v3974
    %3976 = vmatmul.f32.gmra.mxu0 %v3380
    %v3977 = vpop.f32.mrf.mxu0
    %v3978 = vadd.f32 %v3865, %v3977
    %3979 = vmatmul.f32.gmra.mxu0 %v3381
    %v3980 = vpop.f32.mrf.mxu0
    %v3981 = vadd.f32 %v3868, %v3980
    %3982 = vmatmul.f32.gmra.mxu0 %v3382
    %v3983 = vpop.f32.mrf.mxu0
    %v3984 = vadd.f32 %v3871, %v3983
    %3985 = vmatmul.f32.gmra.mxu0 %v3383
    %v3986 = vpop.f32.mrf.mxu0
    %v3987 = vadd.f32 %v3874, %v3986
    %3988 = vmatmul.f32.gmra.mxu0 %v3384
    %v3989 = vpop.f32.mrf.mxu0
    %v3990 = vadd.f32 %v3877, %v3989
    %3991 = vmatmul.f32.gmra.mxu0 %v3385
    %v3992 = vpop.f32.mrf.mxu0
    %v3993 = vadd.f32 %v3880, %v3992
    %3994 = vmatmul.f32.gmra.mxu0 %v3386
    %v3995 = vpop.f32.mrf.mxu0
    %v3996 = vadd.f32 %v3883, %v3995
    %3997 = vmatmul.f32.gmra.mxu0 %v3387
    %v3998 = vpop.f32.mrf.mxu0
    %v3999 = vadd.f32 %v3886, %v3998
    %4000 = vmatmul.f32.gmra.mxu0 %v3388
    %v4001 = vpop.f32.mrf.mxu0
    %v4002 = vadd.f32 %v3889, %v4001
    %4003 = vmatmul.f32.gmra.mxu0 %v3389
    %v4004 = vpop.f32.mrf.mxu0
    %v4005 = vadd.f32 %v3892, %v4004
    %4006 = vmatmul.f32.gmra.mxu0 %v3390
    %v4007 = vpop.f32.mrf.mxu0
    %v4008 = vadd.f32 %v3895, %v4007
    %4009 = vmatmul.f32.gmra.mxu0 %v3391
    %v4010 = vpop.f32.mrf.mxu0
    %v4011 = vadd.f32 %v3898, %v4010
    %4012 = vmatmul.f32.gmra.mxu0 %v3392
    %v4013 = vpop.f32.mrf.mxu0
    %v4014 = vadd.f32 %v3901, %v4013
    %4015 = vmatmul.f32.gmra.mxu0 %v3393
    %v4016 = vpop.f32.mrf.mxu0
    %v4017 = vadd.f32 %v3904, %v4016
    %4018 = vmatmul.f32.gmra.mxu0 %v3394
    %v4019 = vpop.f32.mrf.mxu0
    %v4020 = vadd.f32 %v3907, %v4019
    %4021 = vdwg.mxu0
    %4022 = vmatpush.msra.mxu0 %v3699
    %4023 = vmatpush.msra.mxu0 %v3698
    %4024 = vmatpush.msra.mxu0 %v3697
    %4025 = vmatpush.msra.mxu0 %v3696
    %4026 = vmatpush.msra.mxu0 %v3695
    %4027 = vmatpush.msra.mxu0 %v3694
    %4028 = vmatpush.msra.mxu0 %v3693
    %4029 = vmatpush.msra.mxu0 %v3692
    %4030 = vmatpush.msra.mxu0 %v3691
    %4031 = vmatpush.msra.mxu0 %v3690
    %4032 = vmatpush.msra.mxu0 %v3689
    %4033 = vmatpush.msra.mxu0 %v3688
    %4034 = vmatpush.msra.mxu0 %v3687
    %4035 = vmatpush.msra.mxu0 %v3686
    %4036 = vmatpush.msra.mxu0 %v3685
    %4037 = vmatpush.msra.mxu0 %v3684
    %4038 = vmatmul.f32.gmra.mxu0 %v3459
    %v4039 = vpop.f32.mrf.mxu0
    %v4040 = vadd.f32 %v3927, %v4039
    %4041 = vmatmul.f32.gmra.mxu0 %v3460
    %v4042 = vpop.f32.mrf.mxu0
    %v4043 = vadd.f32 %v3930, %v4042
    %4044 = vmatmul.f32.gmra.mxu0 %v3461
    %v4045 = vpop.f32.mrf.mxu0
    %v4046 = vadd.f32 %v3933, %v4045
    %4047 = vmatmul.f32.gmra.mxu0 %v3462
    %v4048 = vpop.f32.mrf.mxu0
    %v4049 = vadd.f32 %v3936, %v4048
    %4050 = vmatmul.f32.gmra.mxu0 %v3463
    %v4051 = vpop.f32.mrf.mxu0
    %v4052 = vadd.f32 %v3939, %v4051
    %4053 = vmatmul.f32.gmra.mxu0 %v3464
    %v4054 = vpop.f32.mrf.mxu0
    %v4055 = vadd.f32 %v3942, %v4054
    %4056 = vmatmul.f32.gmra.mxu0 %v3465
    %v4057 = vpop.f32.mrf.mxu0
    %v4058 = vadd.f32 %v3945, %v4057
    %4059 = vmatmul.f32.gmra.mxu0 %v3466
    %v4060 = vpop.f32.mrf.mxu0
    %v4061 = vadd.f32 %v3948, %v4060
    %4062 = vmatmul.f32.gmra.mxu0 %v3467
    %v4063 = vpop.f32.mrf.mxu0
    %v4064 = vadd.f32 %v3951, %v4063
    %4065 = vmatmul.f32.gmra.mxu0 %v3468
    %v4066 = vpop.f32.mrf.mxu0
    %v4067 = vadd.f32 %v3954, %v4066
    %4068 = vmatmul.f32.gmra.mxu0 %v3469
    %v4069 = vpop.f32.mrf.mxu0
    %v4070 = vadd.f32 %v3957, %v4069
    %4071 = vmatmul.f32.gmra.mxu0 %v3470
    %v4072 = vpop.f32.mrf.mxu0
    %v4073 = vadd.f32 %v3960, %v4072
    %4074 = vmatmul.f32.gmra.mxu0 %v3471
    %v4075 = vpop.f32.mrf.mxu0
    %v4076 = vadd.f32 %v3963, %v4075
    %4077 = vmatmul.f32.gmra.mxu0 %v3472
    %v4078 = vpop.f32.mrf.mxu0
    %v4079 = vadd.f32 %v3966, %v4078
    %4080 = vmatmul.f32.gmra.mxu0 %v3473
    %v4081 = vpop.f32.mrf.mxu0
    %v4082 = vadd.f32 %v3969, %v4081
    %4083 = vmatmul.f32.gmra.mxu0 %v3474
    %v4084 = vpop.f32.mrf.mxu0
    %v4085 = vadd.f32 %v3972, %v4084
    %4086 = vmatmul.f32.gmra.mxu0 %v3475
    %v4087 = vpop.f32.mrf.mxu0
    %v4088 = vadd.f32 %v3975, %v4087
    %4089 = vmatmul.f32.gmra.mxu0 %v3476
    %v4090 = vpop.f32.mrf.mxu0
    %v4091 = vadd.f32 %v3978, %v4090
    %4092 = vmatmul.f32.gmra.mxu0 %v3477
    %v4093 = vpop.f32.mrf.mxu0
    %v4094 = vadd.f32 %v3981, %v4093
    %4095 = vmatmul.f32.gmra.mxu0 %v3478
    %v4096 = vpop.f32.mrf.mxu0
    %v4097 = vadd.f32 %v3984, %v4096
    %4098 = vmatmul.f32.gmra.mxu0 %v3479
    %v4099 = vpop.f32.mrf.mxu0
    %v4100 = vadd.f32 %v3987, %v4099
    %4101 = vmatmul.f32.gmra.mxu0 %v3480
    %v4102 = vpop.f32.mrf.mxu0
    %v4103 = vadd.f32 %v3990, %v4102
    %4104 = vmatmul.f32.gmra.mxu0 %v3481
    %v4105 = vpop.f32.mrf.mxu0
    %v4106 = vadd.f32 %v3993, %v4105
    %4107 = vmatmul.f32.gmra.mxu0 %v3482
    %v4108 = vpop.f32.mrf.mxu0
    %v4109 = vadd.f32 %v3996, %v4108
    %4110 = vmatmul.f32.gmra.mxu0 %v3483
    %v4111 = vpop.f32.mrf.mxu0
    %v4112 = vadd.f32 %v3999, %v4111
    %4113 = vmatmul.f32.gmra.mxu0 %v3484
    %v4114 = vpop.f32.mrf.mxu0
    %v4115 = vadd.f32 %v4002, %v4114
    %4116 = vmatmul.f32.gmra.mxu0 %v3485
    %v4117 = vpop.f32.mrf.mxu0
    %v4118 = vadd.f32 %v4005, %v4117
    %4119 = vmatmul.f32.gmra.mxu0 %v3486
    %v4120 = vpop.f32.mrf.mxu0
    %v4121 = vadd.f32 %v4008, %v4120
    %4122 = vmatmul.f32.gmra.mxu0 %v3487
    %v4123 = vpop.f32.mrf.mxu0
    %v4124 = vadd.f32 %v4011, %v4123
    %4125 = vmatmul.f32.gmra.mxu0 %v3488
    %v4126 = vpop.f32.mrf.mxu0
    %v4127 = vadd.f32 %v4014, %v4126
    %4128 = vmatmul.f32.gmra.mxu0 %v3489
    %v4129 = vpop.f32.mrf.mxu0
    %v4130 = vadd.f32 %v4017, %v4129
    %4131 = vmatmul.f32.gmra.mxu0 %v3490
    %v4132 = vpop.f32.mrf.mxu0
    %v4133 = vadd.f32 %v4020, %v4132
    %4134 = vdwg.mxu0
    %4135 = vmatpush.msra.mxu0 %v3715
    %4136 = vmatpush.msra.mxu0 %v3714
    %4137 = vmatpush.msra.mxu0 %v3713
    %4138 = vmatpush.msra.mxu0 %v3712
    %4139 = vmatpush.msra.mxu0 %v3711
    %4140 = vmatpush.msra.mxu0 %v3710
    %4141 = vmatpush.msra.mxu0 %v3709
    %4142 = vmatpush.msra.mxu0 %v3708
    %4143 = vmatpush.msra.mxu0 %v3707
    %4144 = vmatpush.msra.mxu0 %v3706
    %4145 = vmatpush.msra.mxu0 %v3705
    %4146 = vmatpush.msra.mxu0 %v3704
    %4147 = vmatpush.msra.mxu0 %v3703
    %4148 = vmatpush.msra.mxu0 %v3702
    %4149 = vmatpush.msra.mxu0 %v3701
    %4150 = vmatpush.msra.mxu0 %v3700
    %4151 = vmatmul.f32.gmra.mxu0 %v3491
    %v4152 = vpop.f32.mrf.mxu0
    %v4153 = vadd.f32 %v4040, %v4152
    %4154 = vmatmul.f32.gmra.mxu0 %v3492
    %v4155 = vpop.f32.mrf.mxu0
    %v4156 = vadd.f32 %v4043, %v4155
    %4157 = vmatmul.f32.gmra.mxu0 %v3493
    %v4158 = vpop.f32.mrf.mxu0
    %v4159 = vadd.f32 %v4046, %v4158
    %4160 = vmatmul.f32.gmra.mxu0 %v3494
    %v4161 = vpop.f32.mrf.mxu0
    %v4162 = vadd.f32 %v4049, %v4161
    %4163 = vmatmul.f32.gmra.mxu0 %v3495
    %v4164 = vpop.f32.mrf.mxu0
    %v4165 = vadd.f32 %v4052, %v4164
    %4166 = vmatmul.f32.gmra.mxu0 %v3496
    %v4167 = vpop.f32.mrf.mxu0
    %v4168 = vadd.f32 %v4055, %v4167
    %4169 = vmatmul.f32.gmra.mxu0 %v3497
    %v4170 = vpop.f32.mrf.mxu0
    %v4171 = vadd.f32 %v4058, %v4170
    %4172 = vmatmul.f32.gmra.mxu0 %v3498
    %v4173 = vpop.f32.mrf.mxu0
    %v4174 = vadd.f32 %v4061, %v4173
    %4175 = vmatmul.f32.gmra.mxu0 %v3499
    %v4176 = vpop.f32.mrf.mxu0
    %v4177 = vadd.f32 %v4064, %v4176
    %4178 = vmatmul.f32.gmra.mxu0 %v3500
    %v4179 = vpop.f32.mrf.mxu0
    %v4180 = vadd.f32 %v4067, %v4179
    %4181 = vmatmul.f32.gmra.mxu0 %v3501
    %v4182 = vpop.f32.mrf.mxu0
    %v4183 = vadd.f32 %v4070, %v4182
    %4184 = vmatmul.f32.gmra.mxu0 %v3502
    %v4185 = vpop.f32.mrf.mxu0
    %v4186 = vadd.f32 %v4073, %v4185
    %4187 = vmatmul.f32.gmra.mxu0 %v3503
    %v4188 = vpop.f32.mrf.mxu0
    %v4189 = vadd.f32 %v4076, %v4188
    %4190 = vmatmul.f32.gmra.mxu0 %v3504
    %v4191 = vpop.f32.mrf.mxu0
    %v4192 = vadd.f32 %v4079, %v4191
    %4193 = vmatmul.f32.gmra.mxu0 %v3505
    %v4194 = vpop.f32.mrf.mxu0
    %v4195 = vadd.f32 %v4082, %v4194
    %4196 = vmatmul.f32.gmra.mxu0 %v3506
    %v4197 = vpop.f32.mrf.mxu0
    %v4198 = vadd.f32 %v4085, %v4197
    %4199 = vmatmul.f32.gmra.mxu0 %v3507
    %v4200 = vpop.f32.mrf.mxu0
    %v4201 = vadd.f32 %v4088, %v4200
    %4202 = vmatmul.f32.gmra.mxu0 %v3508
    %v4203 = vpop.f32.mrf.mxu0
    %v4204 = vadd.f32 %v4091, %v4203
    %4205 = vmatmul.f32.gmra.mxu0 %v3509
    %v4206 = vpop.f32.mrf.mxu0
    %v4207 = vadd.f32 %v4094, %v4206
    %4208 = vmatmul.f32.gmra.mxu0 %v3510
    %v4209 = vpop.f32.mrf.mxu0
    %v4210 = vadd.f32 %v4097, %v4209
    %4211 = vmatmul.f32.gmra.mxu0 %v3511
    %v4212 = vpop.f32.mrf.mxu0
    %v4213 = vadd.f32 %v4100, %v4212
    %4214 = vmatmul.f32.gmra.mxu0 %v3512
    %v4215 = vpop.f32.mrf.mxu0
    %v4216 = vadd.f32 %v4103, %v4215
    %4217 = vmatmul.f32.gmra.mxu0 %v3513
    %v4218 = vpop.f32.mrf.mxu0
    %v4219 = vadd.f32 %v4106, %v4218
    %4220 = vmatmul.f32.gmra.mxu0 %v3514
    %v4221 = vpop.f32.mrf.mxu0
    %v4222 = vadd.f32 %v4109, %v4221
    %4223 = vmatmul.f32.gmra.mxu0 %v3515
    %v4224 = vpop.f32.mrf.mxu0
    %v4225 = vadd.f32 %v4112, %v4224
    %4226 = vmatmul.f32.gmra.mxu0 %v3516
    %v4227 = vpop.f32.mrf.mxu0
    %v4228 = vadd.f32 %v4115, %v4227
    %4229 = vmatmul.f32.gmra.mxu0 %v3517
    %v4230 = vpop.f32.mrf.mxu0
    %v4231 = vadd.f32 %v4118, %v4230
    %4232 = vmatmul.f32.gmra.mxu0 %v3518
    %v4233 = vpop.f32.mrf.mxu0
    %v4234 = vadd.f32 %v4121, %v4233
    %4235 = vmatmul.f32.gmra.mxu0 %v3519
    %v4236 = vpop.f32.mrf.mxu0
    %v4237 = vadd.f32 %v4124, %v4236
    %4238 = vmatmul.f32.gmra.mxu0 %v3520
    %v4239 = vpop.f32.mrf.mxu0
    %v4240 = vadd.f32 %v4127, %v4239
    %4241 = vmatmul.f32.gmra.mxu0 %v3521
    %v4242 = vpop.f32.mrf.mxu0
    %v4243 = vadd.f32 %v4130, %v4242
    %4244 = vmatmul.f32.gmra.mxu0 %v3522
    %v4245 = vpop.f32.mrf.mxu0
    %v4246 = vadd.f32 %v4133, %v4245
    %4247 = vdwg.mxu0
    %4248 = vmatpush.msra.mxu0 %v3731
    %4249 = vmatpush.msra.mxu0 %v3730
    %4250 = vmatpush.msra.mxu0 %v3729
    %4251 = vmatpush.msra.mxu0 %v3728
    %4252 = vmatpush.msra.mxu0 %v3727
    %4253 = vmatpush.msra.mxu0 %v3726
    %4254 = vmatpush.msra.mxu0 %v3725
    %4255 = vmatpush.msra.mxu0 %v3724
    %4256 = vmatpush.msra.mxu0 %v3723
    %4257 = vmatpush.msra.mxu0 %v3722
    %4258 = vmatpush.msra.mxu0 %v3721
    %4259 = vmatpush.msra.mxu0 %v3720
    %4260 = vmatpush.msra.mxu0 %v3719
    %4261 = vmatpush.msra.mxu0 %v3718
    %4262 = vmatpush.msra.mxu0 %v3717
    %4263 = vmatpush.msra.mxu0 %v3716
    %4264 = vmatmul.f32.gmra.mxu0 %v3235
    %v4265 = vpop.f32.mrf.mxu0
    %v4266 = vadd.f32 %v4153, %v4265
    %4267 = vmatmul.f32.gmra.mxu0 %v3236
    %v4268 = vpop.f32.mrf.mxu0
    %v4269 = vadd.f32 %v4156, %v4268
    %4270 = vmatmul.f32.gmra.mxu0 %v3237
    %v4271 = vpop.f32.mrf.mxu0
    %v4272 = vadd.f32 %v4159, %v4271
    %4273 = vmatmul.f32.gmra.mxu0 %v3238
    %v4274 = vpop.f32.mrf.mxu0
    %v4275 = vadd.f32 %v4162, %v4274
    %4276 = vmatmul.f32.gmra.mxu0 %v3239
    %v4277 = vpop.f32.mrf.mxu0
    %v4278 = vadd.f32 %v4165, %v4277
    %4279 = vmatmul.f32.gmra.mxu0 %v3240
    %v4280 = vpop.f32.mrf.mxu0
    %v4281 = vadd.f32 %v4168, %v4280
    %4282 = vmatmul.f32.gmra.mxu0 %v3241
    %v4283 = vpop.f32.mrf.mxu0
    %v4284 = vadd.f32 %v4171, %v4283
    %4285 = vmatmul.f32.gmra.mxu0 %v3242
    %v4286 = vpop.f32.mrf.mxu0
    %v4287 = vadd.f32 %v4174, %v4286
    %4288 = vmatmul.f32.gmra.mxu0 %v3243
    %v4289 = vpop.f32.mrf.mxu0
    %v4290 = vadd.f32 %v4177, %v4289
    %4291 = vmatmul.f32.gmra.mxu0 %v3244
    %v4292 = vpop.f32.mrf.mxu0
    %v4293 = vadd.f32 %v4180, %v4292
    %4294 = vmatmul.f32.gmra.mxu0 %v3245
    %v4295 = vpop.f32.mrf.mxu0
    %v4296 = vadd.f32 %v4183, %v4295
    %4297 = vmatmul.f32.gmra.mxu0 %v3246
    %v4298 = vpop.f32.mrf.mxu0
    %v4299 = vadd.f32 %v4186, %v4298
    %4300 = vmatmul.f32.gmra.mxu0 %v3247
    %v4301 = vpop.f32.mrf.mxu0
    %v4302 = vadd.f32 %v4189, %v4301
    %4303 = vmatmul.f32.gmra.mxu0 %v3248
    %v4304 = vpop.f32.mrf.mxu0
    %v4305 = vadd.f32 %v4192, %v4304
    %4306 = vmatmul.f32.gmra.mxu0 %v3249
    %v4307 = vpop.f32.mrf.mxu0
    %v4308 = vadd.f32 %v4195, %v4307
    %4309 = vmatmul.f32.gmra.mxu0 %v3250
    %v4310 = vpop.f32.mrf.mxu0
    %v4311 = vadd.f32 %v4198, %v4310
    %4312 = vmatmul.f32.gmra.mxu0 %v3251
    %v4313 = vpop.f32.mrf.mxu0
    %v4314 = vadd.f32 %v4201, %v4313
    %4315 = vmatmul.f32.gmra.mxu0 %v3252
    %v4316 = vpop.f32.mrf.mxu0
    %v4317 = vadd.f32 %v4204, %v4316
    %4318 = vmatmul.f32.gmra.mxu0 %v3253
    %v4319 = vpop.f32.mrf.mxu0
    %v4320 = vadd.f32 %v4207, %v4319
    %4321 = vmatmul.f32.gmra.mxu0 %v3254
    %v4322 = vpop.f32.mrf.mxu0
    %v4323 = vadd.f32 %v4210, %v4322
    %4324 = vmatmul.f32.gmra.mxu0 %v3255
    %v4325 = vpop.f32.mrf.mxu0
    %v4326 = vadd.f32 %v4213, %v4325
    %4327 = vmatmul.f32.gmra.mxu0 %v3256
    %v4328 = vpop.f32.mrf.mxu0
    %v4329 = vadd.f32 %v4216, %v4328
    %4330 = vmatmul.f32.gmra.mxu0 %v3257
    %v4331 = vpop.f32.mrf.mxu0
    %v4332 = vadd.f32 %v4219, %v4331
    %4333 = vmatmul.f32.gmra.mxu0 %v3258
    %v4334 = vpop.f32.mrf.mxu0
    %v4335 = vadd.f32 %v4222, %v4334
    %4336 = vmatmul.f32.gmra.mxu0 %v3259
    %v4337 = vpop.f32.mrf.mxu0
    %v4338 = vadd.f32 %v4225, %v4337
    %4339 = vmatmul.f32.gmra.mxu0 %v3260
    %v4340 = vpop.f32.mrf.mxu0
    %v4341 = vadd.f32 %v4228, %v4340
    %4342 = vmatmul.f32.gmra.mxu0 %v3261
    %v4343 = vpop.f32.mrf.mxu0
    %v4344 = vadd.f32 %v4231, %v4343
    %4345 = vmatmul.f32.gmra.mxu0 %v3262
    %v4346 = vpop.f32.mrf.mxu0
    %v4347 = vadd.f32 %v4234, %v4346
    %4348 = vmatmul.f32.gmra.mxu0 %v3263
    %v4349 = vpop.f32.mrf.mxu0
    %v4350 = vadd.f32 %v4237, %v4349
    %4351 = vmatmul.f32.gmra.mxu0 %v3264
    %v4352 = vpop.f32.mrf.mxu0
    %v4353 = vadd.f32 %v4240, %v4352
    %4354 = vmatmul.f32.gmra.mxu0 %v3265
    %v4355 = vpop.f32.mrf.mxu0
    %v4356 = vadd.f32 %v4243, %v4355
    %4357 = vmatmul.f32.gmra.mxu0 %v3266
    %v4358 = vpop.f32.mrf.mxu0
    %v4359 = vadd.f32 %v4246, %v4358
    %4360 = vdwg.mxu0
    %4361 = vmatpush.msra.mxu0 %v3747
    %4362 = vmatpush.msra.mxu0 %v3746
    %4363 = vmatpush.msra.mxu0 %v3745
    %4364 = vmatpush.msra.mxu0 %v3744
    %4365 = vmatpush.msra.mxu0 %v3743
    %4366 = vmatpush.msra.mxu0 %v3742
    %4367 = vmatpush.msra.mxu0 %v3741
    %4368 = vmatpush.msra.mxu0 %v3740
    %4369 = vmatpush.msra.mxu0 %v3739
    %4370 = vmatpush.msra.mxu0 %v3738
    %4371 = vmatpush.msra.mxu0 %v3737
    %4372 = vmatpush.msra.mxu0 %v3736
    %4373 = vmatpush.msra.mxu0 %v3735
    %4374 = vmatpush.msra.mxu0 %v3734
    %4375 = vmatpush.msra.mxu0 %v3733
    %4376 = vmatpush.msra.mxu0 %v3732
    %4377 = vmatmul.f32.gmra.mxu0 %v3523
    %v4378 = vpop.f32.mrf.mxu0
    %v4379 = vadd.f32 %v4266, %v4378
    %4380 = vmatmul.f32.gmra.mxu0 %v3524
    %v4381 = vpop.f32.mrf.mxu0
    %v4382 = vadd.f32 %v4269, %v4381
    %4383 = vmatmul.f32.gmra.mxu0 %v3525
    %v4384 = vpop.f32.mrf.mxu0
    %v4385 = vadd.f32 %v4272, %v4384
    %4386 = vmatmul.f32.gmra.mxu0 %v3526
    %v4387 = vpop.f32.mrf.mxu0
    %v4388 = vadd.f32 %v4275, %v4387
    %4389 = vmatmul.f32.gmra.mxu0 %v3527
    %v4390 = vpop.f32.mrf.mxu0
    %v4391 = vadd.f32 %v4278, %v4390
    %4392 = vmatmul.f32.gmra.mxu0 %v3528
    %v4393 = vpop.f32.mrf.mxu0
    %v4394 = vadd.f32 %v4281, %v4393
    %4395 = vmatmul.f32.gmra.mxu0 %v3529
    %v4396 = vpop.f32.mrf.mxu0
    %v4397 = vadd.f32 %v4284, %v4396
    %4398 = vmatmul.f32.gmra.mxu0 %v3530
    %v4399 = vpop.f32.mrf.mxu0
    %v4400 = vadd.f32 %v4287, %v4399
    %4401 = vmatmul.f32.gmra.mxu0 %v3531
    %v4402 = vpop.f32.mrf.mxu0
    %v4403 = vadd.f32 %v4290, %v4402
    %4404 = vmatmul.f32.gmra.mxu0 %v3532
    %v4405 = vpop.f32.mrf.mxu0
    %v4406 = vadd.f32 %v4293, %v4405
    %4407 = vmatmul.f32.gmra.mxu0 %v3533
    %v4408 = vpop.f32.mrf.mxu0
    %v4409 = vadd.f32 %v4296, %v4408
    %4410 = vmatmul.f32.gmra.mxu0 %v3534
    %v4411 = vpop.f32.mrf.mxu0
    %v4412 = vadd.f32 %v4299, %v4411
    %4413 = vmatmul.f32.gmra.mxu0 %v3535
    %v4414 = vpop.f32.mrf.mxu0
    %v4415 = vadd.f32 %v4302, %v4414
    %4416 = vmatmul.f32.gmra.mxu0 %v3536
    %v4417 = vpop.f32.mrf.mxu0
    %v4418 = vadd.f32 %v4305, %v4417
    %4419 = vmatmul.f32.gmra.mxu0 %v3537
    %v4420 = vpop.f32.mrf.mxu0
    %v4421 = vadd.f32 %v4308, %v4420
    %4422 = vmatmul.f32.gmra.mxu0 %v3538
    %v4423 = vpop.f32.mrf.mxu0
    %v4424 = vadd.f32 %v4311, %v4423
    %4425 = vmatmul.f32.gmra.mxu0 %v3539
    %v4426 = vpop.f32.mrf.mxu0
    %v4427 = vadd.f32 %v4314, %v4426
    %4428 = vmatmul.f32.gmra.mxu0 %v3540
    %v4429 = vpop.f32.mrf.mxu0
    %v4430 = vadd.f32 %v4317, %v4429
    %4431 = vmatmul.f32.gmra.mxu0 %v3541
    %v4432 = vpop.f32.mrf.mxu0
    %v4433 = vadd.f32 %v4320, %v4432
    %4434 = vmatmul.f32.gmra.mxu0 %v3542
    %v4435 = vpop.f32.mrf.mxu0
    %v4436 = vadd.f32 %v4323, %v4435
    %4437 = vmatmul.f32.gmra.mxu0 %v3543
    %v4438 = vpop.f32.mrf.mxu0
    %v4439 = vadd.f32 %v4326, %v4438
    %4440 = vmatmul.f32.gmra.mxu0 %v3544
    %v4441 = vpop.f32.mrf.mxu0
    %v4442 = vadd.f32 %v4329, %v4441
    %4443 = vmatmul.f32.gmra.mxu0 %v3545
    %v4444 = vpop.f32.mrf.mxu0
    %v4445 = vadd.f32 %v4332, %v4444
    %4446 = vmatmul.f32.gmra.mxu0 %v3546
    %v4447 = vpop.f32.mrf.mxu0
    %v4448 = vadd.f32 %v4335, %v4447
    %4449 = vmatmul.f32.gmra.mxu0 %v3547
    %v4450 = vpop.f32.mrf.mxu0
    %v4451 = vadd.f32 %v4338, %v4450
    %4452 = vmatmul.f32.gmra.mxu0 %v3548
    %v4453 = vpop.f32.mrf.mxu0
    %v4454 = vadd.f32 %v4341, %v4453
    %4455 = vmatmul.f32.gmra.mxu0 %v3549
    %v4456 = vpop.f32.mrf.mxu0
    %v4457 = vadd.f32 %v4344, %v4456
    %4458 = vmatmul.f32.gmra.mxu0 %v3550
    %v4459 = vpop.f32.mrf.mxu0
    %v4460 = vadd.f32 %v4347, %v4459
    %4461 = vmatmul.f32.gmra.mxu0 %v3551
    %v4462 = vpop.f32.mrf.mxu0
    %v4463 = vadd.f32 %v4350, %v4462
    %4464 = vmatmul.f32.gmra.mxu0 %v3552
    %v4465 = vpop.f32.mrf.mxu0
    %v4466 = vadd.f32 %v4353, %v4465
    %4467 = vmatmul.f32.gmra.mxu0 %v3553
    %v4468 = vpop.f32.mrf.mxu0
    %v4469 = vadd.f32 %v4356, %v4468
    %4470 = vmatmul.f32.gmra.mxu0 %v3554
    %v4471 = vpop.f32.mrf.mxu0
    %v4472 = vadd.f32 %v4359, %v4471
    %4473 = vdwg.mxu0
    %4474 = vmatpush.msra.mxu0 %v3763
    %4475 = vmatpush.msra.mxu0 %v3762
    %4476 = vmatpush.msra.mxu0 %v3761
    %4477 = vmatpush.msra.mxu0 %v3760
    %4478 = vmatpush.msra.mxu0 %v3759
    %4479 = vmatpush.msra.mxu0 %v3758
    %4480 = vmatpush.msra.mxu0 %v3757
    %4481 = vmatpush.msra.mxu0 %v3756
    %4482 = vmatpush.msra.mxu0 %v3755
    %4483 = vmatpush.msra.mxu0 %v3754
    %4484 = vmatpush.msra.mxu0 %v3753
    %4485 = vmatpush.msra.mxu0 %v3752
    %4486 = vmatpush.msra.mxu0 %v3751
    %4487 = vmatpush.msra.mxu0 %v3750
    %4488 = vmatpush.msra.mxu0 %v3749
    %4489 = vmatpush.msra.mxu0 %v3748
    %4490 = vmatmul.f32.gmra.mxu0 %v3555
    %v4491 = vpop.f32.mrf.mxu0
    %v4492 = vadd.f32 %v4379, %v4491
    %4493 = vmatmul.f32.gmra.mxu0 %v3556
    %v4494 = vpop.f32.mrf.mxu0
    %v4495 = vadd.f32 %v4382, %v4494
    %4496 = vmatmul.f32.gmra.mxu0 %v3557
    %v4497 = vpop.f32.mrf.mxu0
    %v4498 = vadd.f32 %v4385, %v4497
    %4499 = vmatmul.f32.gmra.mxu0 %v3558
    %v4500 = vpop.f32.mrf.mxu0
    %v4501 = vadd.f32 %v4388, %v4500
    %4502 = vmatmul.f32.gmra.mxu0 %v3559
    %v4503 = vpop.f32.mrf.mxu0
    %v4504 = vadd.f32 %v4391, %v4503
    %4505 = vmatmul.f32.gmra.mxu0 %v3560
    %v4506 = vpop.f32.mrf.mxu0
    %v4507 = vadd.f32 %v4394, %v4506
    %4508 = vmatmul.f32.gmra.mxu0 %v3561
    %v4509 = vpop.f32.mrf.mxu0
    %v4510 = vadd.f32 %v4397, %v4509
    %4511 = vmatmul.f32.gmra.mxu0 %v3562
    %v4512 = vpop.f32.mrf.mxu0
    %v4513 = vadd.f32 %v4400, %v4512
    %4514 = vmatmul.f32.gmra.mxu0 %v3563
    %v4515 = vpop.f32.mrf.mxu0
    %v4516 = vadd.f32 %v4403, %v4515
    %4517 = vmatmul.f32.gmra.mxu0 %v3564
    %v4518 = vpop.f32.mrf.mxu0
    %v4519 = vadd.f32 %v4406, %v4518
    %4520 = vmatmul.f32.gmra.mxu0 %v3565
    %v4521 = vpop.f32.mrf.mxu0
    %v4522 = vadd.f32 %v4409, %v4521
    %4523 = vmatmul.f32.gmra.mxu0 %v3566
    %v4524 = vpop.f32.mrf.mxu0
    %v4525 = vadd.f32 %v4412, %v4524
    %4526 = vmatmul.f32.gmra.mxu0 %v3567
    %v4527 = vpop.f32.mrf.mxu0
    %v4528 = vadd.f32 %v4415, %v4527
    %4529 = vmatmul.f32.gmra.mxu0 %v3568
    %v4530 = vpop.f32.mrf.mxu0
    %v4531 = vadd.f32 %v4418, %v4530
    %4532 = vmatmul.f32.gmra.mxu0 %v3569
    %v4533 = vpop.f32.mrf.mxu0
    %v4534 = vadd.f32 %v4421, %v4533
    %4535 = vmatmul.f32.gmra.mxu0 %v3570
    %v4536 = vpop.f32.mrf.mxu0
    %v4537 = vadd.f32 %v4424, %v4536
    %4538 = vmatmul.f32.gmra.mxu0 %v3571
    %v4539 = vpop.f32.mrf.mxu0
    %v4540 = vadd.f32 %v4427, %v4539
    %4541 = vmatmul.f32.gmra.mxu0 %v3572
    %v4542 = vpop.f32.mrf.mxu0
    %v4543 = vadd.f32 %v4430, %v4542
    %4544 = vmatmul.f32.gmra.mxu0 %v3573
    %v4545 = vpop.f32.mrf.mxu0
    %v4546 = vadd.f32 %v4433, %v4545
    %4547 = vmatmul.f32.gmra.mxu0 %v3574
    %v4548 = vpop.f32.mrf.mxu0
    %v4549 = vadd.f32 %v4436, %v4548
    %4550 = vmatmul.f32.gmra.mxu0 %v3575
    %v4551 = vpop.f32.mrf.mxu0
    %v4552 = vadd.f32 %v4439, %v4551
    %4553 = vmatmul.f32.gmra.mxu0 %v3576
    %v4554 = vpop.f32.mrf.mxu0
    %v4555 = vadd.f32 %v4442, %v4554
    %4556 = vmatmul.f32.gmra.mxu0 %v3577
    %v4557 = vpop.f32.mrf.mxu0
    %v4558 = vadd.f32 %v4445, %v4557
    %4559 = vmatmul.f32.gmra.mxu0 %v3578
    %v4560 = vpop.f32.mrf.mxu0
    %v4561 = vadd.f32 %v4448, %v4560
    %4562 = vmatmul.f32.gmra.mxu0 %v3579
    %v4563 = vpop.f32.mrf.mxu0
    %v4564 = vadd.f32 %v4451, %v4563
    %4565 = vmatmul.f32.gmra.mxu0 %v3580
    %v4566 = vpop.f32.mrf.mxu0
    %v4567 = vadd.f32 %v4454, %v4566
    %4568 = vmatmul.f32.gmra.mxu0 %v3581
    %v4569 = vpop.f32.mrf.mxu0
    %v4570 = vadd.f32 %v4457, %v4569
    %4571 = vmatmul.f32.gmra.mxu0 %v3582
    %v4572 = vpop.f32.mrf.mxu0
    %v4573 = vadd.f32 %v4460, %v4572
    %4574 = vmatmul.f32.gmra.mxu0 %v3583
    %v4575 = vpop.f32.mrf.mxu0
    %v4576 = vadd.f32 %v4463, %v4575
    %4577 = vmatmul.f32.gmra.mxu0 %v3584
    %v4578 = vpop.f32.mrf.mxu0
    %v4579 = vadd.f32 %v4466, %v4578
    %4580 = vmatmul.f32.gmra.mxu0 %v3585
    %v4581 = vpop.f32.mrf.mxu0
    %v4582 = vadd.f32 %v4469, %v4581
    %4583 = vmatmul.f32.gmra.mxu0 %v3586
    %v4584 = vpop.f32.mrf.mxu0
    %v4585 = vadd.f32 %v4472, %v4584
    %4586 = vdwg.mxu0
    %4587 = vmatpush.msra.mxu0 %v3779
    %4588 = vmatpush.msra.mxu0 %v3778
    %4589 = vmatpush.msra.mxu0 %v3777
    %4590 = vmatpush.msra.mxu0 %v3776
    %4591 = vmatpush.msra.mxu0 %v3775
    %4592 = vmatpush.msra.mxu0 %v3774
    %4593 = vmatpush.msra.mxu0 %v3773
    %4594 = vmatpush.msra.mxu0 %v3772
    %4595 = vmatpush.msra.mxu0 %v3771
    %4596 = vmatpush.msra.mxu0 %v3770
    %4597 = vmatpush.msra.mxu0 %v3769
    %4598 = vmatpush.msra.mxu0 %v3768
    %4599 = vmatpush.msra.mxu0 %v3767
    %4600 = vmatpush.msra.mxu0 %v3766
    %4601 = vmatpush.msra.mxu0 %v3765
    %4602 = vmatpush.msra.mxu0 %v3764
    %4603 = vmatmul.f32.gmra.mxu0 %v3587
    %v4604 = vpop.f32.mrf.mxu0
    %v4605 = vadd.f32 %v4492, %v4604
    %4606 = vmatmul.f32.gmra.mxu0 %v3588
    %v4607 = vpop.f32.mrf.mxu0
    %v4608 = vadd.f32 %v4495, %v4607
    %4609 = vmatmul.f32.gmra.mxu0 %v3589
    %v4610 = vpop.f32.mrf.mxu0
    %v4611 = vadd.f32 %v4498, %v4610
    %4612 = vmatmul.f32.gmra.mxu0 %v3590
    %v4613 = vpop.f32.mrf.mxu0
    %v4614 = vadd.f32 %v4501, %v4613
    %4615 = vmatmul.f32.gmra.mxu0 %v3591
    %v4616 = vpop.f32.mrf.mxu0
    %v4617 = vadd.f32 %v4504, %v4616
    %4618 = vmatmul.f32.gmra.mxu0 %v3592
    %v4619 = vpop.f32.mrf.mxu0
    %v4620 = vadd.f32 %v4507, %v4619
    %4621 = vmatmul.f32.gmra.mxu0 %v3593
    %v4622 = vpop.f32.mrf.mxu0
    %v4623 = vadd.f32 %v4510, %v4622
    %4624 = vmatmul.f32.gmra.mxu0 %v3594
    %v4625 = vpop.f32.mrf.mxu0
    %v4626 = vadd.f32 %v4513, %v4625
    %4627 = vmatmul.f32.gmra.mxu0 %v3595
    %v4628 = vpop.f32.mrf.mxu0
    %v4629 = vadd.f32 %v4516, %v4628
    %4630 = vmatmul.f32.gmra.mxu0 %v3596
    %v4631 = vpop.f32.mrf.mxu0
    %v4632 = vadd.f32 %v4519, %v4631
    %4633 = vmatmul.f32.gmra.mxu0 %v3597
    %v4634 = vpop.f32.mrf.mxu0
    %v4635 = vadd.f32 %v4522, %v4634
    %4636 = vmatmul.f32.gmra.mxu0 %v3598
    %v4637 = vpop.f32.mrf.mxu0
    %v4638 = vadd.f32 %v4525, %v4637
    %4639 = vmatmul.f32.gmra.mxu0 %v3599
    %v4640 = vpop.f32.mrf.mxu0
    %v4641 = vadd.f32 %v4528, %v4640
    %4642 = vmatmul.f32.gmra.mxu0 %v3600
    %v4643 = vpop.f32.mrf.mxu0
    %v4644 = vadd.f32 %v4531, %v4643
    %4645 = vmatmul.f32.gmra.mxu0 %v3601
    %v4646 = vpop.f32.mrf.mxu0
    %v4647 = vadd.f32 %v4534, %v4646
    %4648 = vmatmul.f32.gmra.mxu0 %v3602
    %v4649 = vpop.f32.mrf.mxu0
    %v4650 = vadd.f32 %v4537, %v4649
    %4651 = vmatmul.f32.gmra.mxu0 %v3603
    %v4652 = vpop.f32.mrf.mxu0
    %v4653 = vadd.f32 %v4540, %v4652
    %4654 = vmatmul.f32.gmra.mxu0 %v3604
    %v4655 = vpop.f32.mrf.mxu0
    %v4656 = vadd.f32 %v4543, %v4655
    %4657 = vmatmul.f32.gmra.mxu0 %v3605
    %v4658 = vpop.f32.mrf.mxu0
    %v4659 = vadd.f32 %v4546, %v4658
    %4660 = vmatmul.f32.gmra.mxu0 %v3606
    %v4661 = vpop.f32.mrf.mxu0
    %v4662 = vadd.f32 %v4549, %v4661
    %4663 = vmatmul.f32.gmra.mxu0 %v3607
    %v4664 = vpop.f32.mrf.mxu0
    %v4665 = vadd.f32 %v4552, %v4664
    %4666 = vmatmul.f32.gmra.mxu0 %v3608
    %v4667 = vpop.f32.mrf.mxu0
    %v4668 = vadd.f32 %v4555, %v4667
    %4669 = vmatmul.f32.gmra.mxu0 %v3609
    %v4670 = vpop.f32.mrf.mxu0
    %v4671 = vadd.f32 %v4558, %v4670
    %4672 = vmatmul.f32.gmra.mxu0 %v3610
    %v4673 = vpop.f32.mrf.mxu0
    %v4674 = vadd.f32 %v4561, %v4673
    %4675 = vmatmul.f32.gmra.mxu0 %v3611
    %v4676 = vpop.f32.mrf.mxu0
    %v4677 = vadd.f32 %v4564, %v4676
    %4678 = vmatmul.f32.gmra.mxu0 %v3612
    %v4679 = vpop.f32.mrf.mxu0
    %v4680 = vadd.f32 %v4567, %v4679
    %4681 = vmatmul.f32.gmra.mxu0 %v3613
    %v4682 = vpop.f32.mrf.mxu0
    %v4683 = vadd.f32 %v4570, %v4682
    %4684 = vmatmul.f32.gmra.mxu0 %v3614
    %v4685 = vpop.f32.mrf.mxu0
    %v4686 = vadd.f32 %v4573, %v4685
    %4687 = vmatmul.f32.gmra.mxu0 %v3615
    %v4688 = vpop.f32.mrf.mxu0
    %v4689 = vadd.f32 %v4576, %v4688
    %4690 = vmatmul.f32.gmra.mxu0 %v3616
    %v4691 = vpop.f32.mrf.mxu0
    %v4692 = vadd.f32 %v4579, %v4691
    %4693 = vmatmul.f32.gmra.mxu0 %v3617
    %v4694 = vpop.f32.mrf.mxu0
    %v4695 = vadd.f32 %v4582, %v4694
    %4696 = vmatmul.f32.gmra.mxu0 %v3618
    %v4697 = vpop.f32.mrf.mxu0
    %v4698 = vadd.f32 %v4585, %v4697
    %4699 = vdwg.mxu0
    %4700 = vmatpush.msra.mxu0 %v3795
    %4701 = vmatpush.msra.mxu0 %v3794
    %4702 = vmatpush.msra.mxu0 %v3793
    %4703 = vmatpush.msra.mxu0 %v3792
    %4704 = vmatpush.msra.mxu0 %v3791
    %4705 = vmatpush.msra.mxu0 %v3790
    %4706 = vmatpush.msra.mxu0 %v3789
    %4707 = vmatpush.msra.mxu0 %v3788
    %4708 = vmatpush.msra.mxu0 %v3787
    %4709 = vmatpush.msra.mxu0 %v3786
    %4710 = vmatpush.msra.mxu0 %v3785
    %4711 = vmatpush.msra.mxu0 %v3784
    %4712 = vmatpush.msra.mxu0 %v3783
    %4713 = vmatpush.msra.mxu0 %v3782
    %4714 = vmatpush.msra.mxu0 %v3781
    %4715 = vmatpush.msra.mxu0 %v3780
    %4716 = vmatmul.f32.gmra.mxu0 %v3619
    %v4717 = vpop.f32.mrf.mxu0
    %v4718 = vadd.f32 %v4605, %v4717
    %4719 = vmatmul.f32.gmra.mxu0 %v3620
    %v4720 = vpop.f32.mrf.mxu0
    %v4721 = vadd.f32 %v4608, %v4720
    %4722 = vmatmul.f32.gmra.mxu0 %v3621
    %v4723 = vpop.f32.mrf.mxu0
    %v4724 = vadd.f32 %v4611, %v4723
    %4725 = vmatmul.f32.gmra.mxu0 %v3622
    %v4726 = vpop.f32.mrf.mxu0
    %v4727 = vadd.f32 %v4614, %v4726
    %4728 = vmatmul.f32.gmra.mxu0 %v3623
    %v4729 = vpop.f32.mrf.mxu0
    %v4730 = vadd.f32 %v4617, %v4729
    %4731 = vmatmul.f32.gmra.mxu0 %v3624
    %v4732 = vpop.f32.mrf.mxu0
    %v4733 = vadd.f32 %v4620, %v4732
    %4734 = vmatmul.f32.gmra.mxu0 %v3625
    %v4735 = vpop.f32.mrf.mxu0
    %v4736 = vadd.f32 %v4623, %v4735
    %4737 = vmatmul.f32.gmra.mxu0 %v3626
    %v4738 = vpop.f32.mrf.mxu0
    %v4739 = vadd.f32 %v4626, %v4738
    %4740 = vmatmul.f32.gmra.mxu0 %v3627
    %v4741 = vpop.f32.mrf.mxu0
    %v4742 = vadd.f32 %v4629, %v4741
    %4743 = vmatmul.f32.gmra.mxu0 %v3628
    %v4744 = vpop.f32.mrf.mxu0
    %v4745 = vadd.f32 %v4632, %v4744
    %4746 = vmatmul.f32.gmra.mxu0 %v3629
    %v4747 = vpop.f32.mrf.mxu0
    %v4748 = vadd.f32 %v4635, %v4747
    %4749 = vmatmul.f32.gmra.mxu0 %v3630
    %v4750 = vpop.f32.mrf.mxu0
    %v4751 = vadd.f32 %v4638, %v4750
    %4752 = vmatmul.f32.gmra.mxu0 %v3631
    %v4753 = vpop.f32.mrf.mxu0
    %v4754 = vadd.f32 %v4641, %v4753
    %4755 = vmatmul.f32.gmra.mxu0 %v3632
    %v4756 = vpop.f32.mrf.mxu0
    %v4757 = vadd.f32 %v4644, %v4756
    %4758 = vmatmul.f32.gmra.mxu0 %v3633
    %v4759 = vpop.f32.mrf.mxu0
    %v4760 = vadd.f32 %v4647, %v4759
    %4761 = vmatmul.f32.gmra.mxu0 %v3634
    %v4762 = vpop.f32.mrf.mxu0
    %v4763 = vadd.f32 %v4650, %v4762
    %4764 = vmatmul.f32.gmra.mxu0 %v3635
    %v4765 = vpop.f32.mrf.mxu0
    %v4766 = vadd.f32 %v4653, %v4765
    %4767 = vmatmul.f32.gmra.mxu0 %v3636
    %v4768 = vpop.f32.mrf.mxu0
    %v4769 = vadd.f32 %v4656, %v4768
    %4770 = vmatmul.f32.gmra.mxu0 %v3637
    %v4771 = vpop.f32.mrf.mxu0
    %v4772 = vadd.f32 %v4659, %v4771
    %4773 = vmatmul.f32.gmra.mxu0 %v3638
    %v4774 = vpop.f32.mrf.mxu0
    %v4775 = vadd.f32 %v4662, %v4774
    %4776 = vmatmul.f32.gmra.mxu0 %v3639
    %v4777 = vpop.f32.mrf.mxu0
    %v4778 = vadd.f32 %v4665, %v4777
    %4779 = vmatmul.f32.gmra.mxu0 %v3640
    %v4780 = vpop.f32.mrf.mxu0
    %v4781 = vadd.f32 %v4668, %v4780
    %4782 = vmatmul.f32.gmra.mxu0 %v3641
    %v4783 = vpop.f32.mrf.mxu0
    %v4784 = vadd.f32 %v4671, %v4783
    %4785 = vmatmul.f32.gmra.mxu0 %v3642
    %v4786 = vpop.f32.mrf.mxu0
    %v4787 = vadd.f32 %v4674, %v4786
    %4788 = vmatmul.f32.gmra.mxu0 %v3643
    %v4789 = vpop.f32.mrf.mxu0
    %v4790 = vadd.f32 %v4677, %v4789
    %4791 = vmatmul.f32.gmra.mxu0 %v3644
    %v4792 = vpop.f32.mrf.mxu0
    %v4793 = vadd.f32 %v4680, %v4792
    %4794 = vmatmul.f32.gmra.mxu0 %v3645
    %v4795 = vpop.f32.mrf.mxu0
    %v4796 = vadd.f32 %v4683, %v4795
    %4797 = vmatmul.f32.gmra.mxu0 %v3646
    %v4798 = vpop.f32.mrf.mxu0
    %v4799 = vadd.f32 %v4686, %v4798
    %4800 = vmatmul.f32.gmra.mxu0 %v3647
    %v4801 = vpop.f32.mrf.mxu0
    %v4802 = vadd.f32 %v4689, %v4801
    %4803 = vmatmul.f32.gmra.mxu0 %v3648
    %v4804 = vpop.f32.mrf.mxu0
    %v4805 = vadd.f32 %v4692, %v4804
    %4806 = vmatmul.f32.gmra.mxu0 %v3649
    %v4807 = vpop.f32.mrf.mxu0
    %v4808 = vadd.f32 %v4695, %v4807
    %4809 = vmatmul.f32.gmra.mxu0 %v3650
    %v4810 = vpop.f32.mrf.mxu0
    %v4811 = vadd.f32 %v4698, %v4810
    %4812 = vdwg.mxu0
    %s4813 = scalar_lea.vmem %s2, 1
    %v4814 = vld [vmem:[%s4813] sm:$0x1]
    %v4816 = vperm.slane %v4814, 0
    %v4818 = vmul.f32 %v4718, %v4816
    %v4819 = vmul.f32 %v4721, %v4816
    %v4820 = vmul.f32 %v4724, %v4816
    %v4821 = vmul.f32 %v4727, %v4816
    %v4822 = vmul.f32 %v4730, %v4816
    %v4823 = vmul.f32 %v4733, %v4816
    %v4824 = vmul.f32 %v4736, %v4816
    %v4825 = vmul.f32 %v4739, %v4816
    %v4826 = vmul.f32 %v4742, %v4816
    %v4827 = vmul.f32 %v4745, %v4816
    %v4828 = vmul.f32 %v4748, %v4816
    %v4829 = vmul.f32 %v4751, %v4816
    %v4830 = vmul.f32 %v4754, %v4816
    %v4831 = vmul.f32 %v4757, %v4816
    %v4832 = vmul.f32 %v4760, %v4816
    %v4833 = vmul.f32 %v4763, %v4816
    %v4834 = vmul.f32 %v4766, %v4816
    %v4835 = vmul.f32 %v4769, %v4816
    %v4836 = vmul.f32 %v4772, %v4816
    %v4837 = vmul.f32 %v4775, %v4816
    %v4838 = vmul.f32 %v4778, %v4816
    %v4839 = vmul.f32 %v4781, %v4816
    %v4840 = vmul.f32 %v4784, %v4816
    %v4841 = vmul.f32 %v4787, %v4816
    %v4842 = vmul.f32 %v4790, %v4816
    %v4843 = vmul.f32 %v4793, %v4816
    %v4844 = vmul.f32 %v4796, %v4816
    %v4845 = vmul.f32 %v4799, %v4816
    %v4846 = vmul.f32 %v4802, %v4816
    %v4847 = vmul.f32 %v4805, %v4816
    %v4848 = vmul.f32 %v4808, %v4816
    %v4849 = vmul.f32 %v4811, %v4816
    %s4850 = scalar_lea.vmem %s3, 1
    %v4851 = vld [vmem:[%s4850] sm:$0x1]
    %v4853 = vperm.slane %v4851, 0
    %v4855 = vadd.f32 %v4818, %v4853
    %v4856 = vadd.f32 %v4819, %v4853
    %v4857 = vadd.f32 %v4820, %v4853
    %v4858 = vadd.f32 %v4821, %v4853
    %v4859 = vadd.f32 %v4822, %v4853
    %v4860 = vadd.f32 %v4823, %v4853
    %v4861 = vadd.f32 %v4824, %v4853
    %v4862 = vadd.f32 %v4825, %v4853
    %v4863 = vadd.f32 %v4826, %v4853
    %v4864 = vadd.f32 %v4827, %v4853
    %v4865 = vadd.f32 %v4828, %v4853
    %v4866 = vadd.f32 %v4829, %v4853
    %v4867 = vadd.f32 %v4830, %v4853
    %v4868 = vadd.f32 %v4831, %v4853
    %v4869 = vadd.f32 %v4832, %v4853
    %v4870 = vadd.f32 %v4833, %v4853
    %v4871 = vadd.f32 %v4834, %v4853
    %v4872 = vadd.f32 %v4835, %v4853
    %v4873 = vadd.f32 %v4836, %v4853
    %v4874 = vadd.f32 %v4837, %v4853
    %v4875 = vadd.f32 %v4838, %v4853
    %v4876 = vadd.f32 %v4839, %v4853
    %v4877 = vadd.f32 %v4840, %v4853
    %v4878 = vadd.f32 %v4841, %v4853
    %v4879 = vadd.f32 %v4842, %v4853
    %v4880 = vadd.f32 %v4843, %v4853
    %v4881 = vadd.f32 %v4844, %v4853
    %v4882 = vadd.f32 %v4845, %v4853
    %v4883 = vadd.f32 %v4846, %v4853
    %v4884 = vadd.f32 %v4847, %v4853
    %v4885 = vadd.f32 %v4848, %v4853
    %v4886 = vadd.f32 %v4849, %v4853
    %v4887 = vmax.f32 %v4855, 0.0
    %v4888 = vmax.f32 %v4856, 0.0
    %v4889 = vmax.f32 %v4857, 0.0
    %v4890 = vmax.f32 %v4858, 0.0
    %v4891 = vmax.f32 %v4859, 0.0
    %v4892 = vmax.f32 %v4860, 0.0
    %v4893 = vmax.f32 %v4861, 0.0
    %v4894 = vmax.f32 %v4862, 0.0
    %v4895 = vmax.f32 %v4863, 0.0
    %v4896 = vmax.f32 %v4864, 0.0
    %v4897 = vmax.f32 %v4865, 0.0
    %v4898 = vmax.f32 %v4866, 0.0
    %v4899 = vmax.f32 %v4867, 0.0
    %v4900 = vmax.f32 %v4868, 0.0
    %v4901 = vmax.f32 %v4869, 0.0
    %v4902 = vmax.f32 %v4870, 0.0
    %v4903 = vmax.f32 %v4871, 0.0
    %v4904 = vmax.f32 %v4872, 0.0
    %v4905 = vmax.f32 %v4873, 0.0
    %v4906 = vmax.f32 %v4874, 0.0
    %v4907 = vmax.f32 %v4875, 0.0
    %v4908 = vmax.f32 %v4876, 0.0
    %v4909 = vmax.f32 %v4877, 0.0
    %v4910 = vmax.f32 %v4878, 0.0
    %v4911 = vmax.f32 %v4879, 0.0
    %v4912 = vmax.f32 %v4880, 0.0
    %v4913 = vmax.f32 %v4881, 0.0
    %v4914 = vmax.f32 %v4882, 0.0
    %v4915 = vmax.f32 %v4883, 0.0
    %v4916 = vmax.f32 %v4884, 0.0
    %v4917 = vmax.f32 %v4885, 0.0
    %v4918 = vmax.f32 %v4886, 0.0
    %v4919 = vrot.slane %v4887, 7
    %v4920 = vrot.slane %v4888, 7
    %v4921 = vrot.slane %v4889, 7
    %v4922 = vrot.slane %v4890, 7
    %v4923 = vrot.slane %v4891, 7
    %v4924 = vrot.slane %v4892, 7
    %v4925 = vrot.slane %v4893, 7
    %v4926 = vrot.slane %v4894, 7
    %v4927 = vrot.slane %v4895, 7
    %v4928 = vrot.slane %v4896, 7
    %v4929 = vrot.slane %v4897, 7
    %v4930 = vrot.slane %v4898, 7
    %v4931 = vrot.slane %v4899, 7
    %v4932 = vrot.slane %v4900, 7
    %v4933 = vrot.slane %v4901, 7
    %v4934 = vrot.slane %v4902, 7
    %v4935 = vrot.slane %v4903, 7
    %v4936 = vrot.slane %v4904, 7
    %v4937 = vrot.slane %v4905, 7
    %v4938 = vrot.slane %v4906, 7
    %v4939 = vrot.slane %v4907, 7
    %v4940 = vrot.slane %v4908, 7
    %v4941 = vrot.slane %v4909, 7
    %v4942 = vrot.slane %v4910, 7
    %v4943 = vrot.slane %v4911, 7
    %v4944 = vrot.slane %v4912, 7
    %v4945 = vrot.slane %v4913, 7
    %v4946 = vrot.slane %v4914, 7
    %v4947 = vrot.slane %v4915, 7
    %v4948 = vrot.slane %v4916, 7
    %v4949 = vrot.slane %v4917, 7
    %v4950 = vrot.slane %v4918, 7
    %v4951 = vsel %vm105, %v4949, %v4950
    %v4952 = vsel %vm105, %v4948, %v4949
    %v4953 = vsel %vm105, %v4947, %v4948
    %v4954 = vsel %vm105, %v4946, %v4947
    %v4955 = vsel %vm105, %v4945, %v4946
    %v4956 = vsel %vm105, %v4944, %v4945
    %v4957 = vsel %vm105, %v4943, %v4944
    %v4958 = vsel %vm105, %v4942, %v4943
    %v4959 = vsel %vm105, %v4941, %v4942
    %v4960 = vsel %vm105, %v4940, %v4941
    %v4961 = vsel %vm105, %v4939, %v4940
    %v4962 = vsel %vm105, %v4938, %v4939
    %v4963 = vsel %vm105, %v4937, %v4938
    %v4964 = vsel %vm105, %v4936, %v4937
    %v4965 = vsel %vm105, %v4935, %v4936
    %v4966 = vsel %vm105, %v4934, %v4935
    %v4967 = vsel %vm105, %v4933, %v4934
    %v4968 = vsel %vm105, %v4932, %v4933
    %v4969 = vsel %vm105, %v4931, %v4932
    %v4970 = vsel %vm105, %v4930, %v4931
    %v4971 = vsel %vm105, %v4929, %v4930
    %v4972 = vsel %vm105, %v4928, %v4929
    %v4973 = vsel %vm105, %v4927, %v4928
    %v4974 = vsel %vm105, %v4926, %v4927
    %v4975 = vsel %vm105, %v4925, %v4926
    %v4976 = vsel %vm105, %v4924, %v4925
    %v4977 = vsel %vm105, %v4923, %v4924
    %v4978 = vsel %vm105, %v4922, %v4923
    %v4979 = vsel %vm105, %v4921, %v4922
    %v4980 = vsel %vm105, %v4920, %v4921
    %v4981 = vsel %vm105, %v4919, %v4920
    %v4982 = vsel %vm105, %v4950, %v4919
    %v4983 = vmul.f32 %v4952, %v173
    %v4984 = vmul.f32 %v4951, %v178
    %v4985 = vmul.f32 %v4982, %v183
    %v4986 = vmul.f32 %v4981, %v188
    %v4987 = vmul.f32 %v4980, %v193
    %v4988 = vmul.f32 %v4979, %v198
    %v4989 = vmul.f32 %v4978, %v203
    %v4990 = vmul.f32 %v4977, %v208
    %v4991 = vmul.f32 %v4976, %v213
    %v4992 = vmul.f32 %v4975, %v218
    %v4993 = vmul.f32 %v4974, %v223
    %v4994 = vmul.f32 %v4973, %v228
    %v4995 = vmul.f32 %v4972, %v233
    %v4996 = vmul.f32 %v4971, %v238
    %v4997 = vmul.f32 %v4970, %v243
    %v4998 = vmul.f32 %v4969, %v248
    %v4999 = vmul.f32 %v4968, %v253
    %v5000 = vmul.f32 %v4967, %v258
    %v5001 = vmul.f32 %v4966, %v263
    %v5002 = vmul.f32 %v4965, %v268
    %v5003 = vmul.f32 %v4964, %v273
    %v5004 = vmul.f32 %v4963, %v278
    %v5005 = vmul.f32 %v4962, %v283
    %v5006 = vmul.f32 %v4961, %v288
    %v5007 = vmul.f32 %v4960, %v293
    %v5008 = vmul.f32 %v4959, %v298
    %v5009 = vmul.f32 %v4958, %v303
    %v5010 = vmul.f32 %v4957, %v308
    %v5011 = vmul.f32 %v4956, %v313
    %v5012 = vmul.f32 %v4955, %v318
    %v5013 = vmul.f32 %v4954, %v323
    %v5014 = vmul.f32 %v4953, %v328
    %v5015 = vmul.f32 %v4917, %v398
    %v5016 = vmul.f32 %v4918, %v403
    %v5017 = vmul.f32 %v4887, %v408
    %v5018 = vmul.f32 %v4888, %v413
    %v5019 = vmul.f32 %v4889, %v418
    %v5020 = vmul.f32 %v4890, %v423
    %v5021 = vmul.f32 %v4891, %v428
    %v5022 = vmul.f32 %v4892, %v433
    %v5023 = vmul.f32 %v4893, %v438
    %v5024 = vmul.f32 %v4894, %v443
    %v5025 = vmul.f32 %v4895, %v448
    %v5026 = vmul.f32 %v4896, %v453
    %v5027 = vmul.f32 %v4897, %v458
    %v5028 = vmul.f32 %v4898, %v463
    %v5029 = vmul.f32 %v4899, %v468
    %v5030 = vmul.f32 %v4900, %v473
    %v5031 = vmul.f32 %v4901, %v478
    %v5032 = vmul.f32 %v4902, %v483
    %v5033 = vmul.f32 %v4903, %v488
    %v5034 = vmul.f32 %v4904, %v493
    %v5035 = vmul.f32 %v4905, %v498
    %v5036 = vmul.f32 %v4906, %v503
    %v5037 = vmul.f32 %v4907, %v508
    %v5038 = vmul.f32 %v4908, %v513
    %v5039 = vmul.f32 %v4909, %v518
    %v5040 = vmul.f32 %v4910, %v523
    %v5041 = vmul.f32 %v4911, %v528
    %v5042 = vmul.f32 %v4912, %v533
    %v5043 = vmul.f32 %v4913, %v538
    %v5044 = vmul.f32 %v4914, %v543
    %v5045 = vmul.f32 %v4915, %v548
    %v5046 = vmul.f32 %v4916, %v553
    %v5047 = vrot.slane %v4887, 1
    %v5048 = vrot.slane %v4888, 1
    %v5049 = vrot.slane %v4889, 1
    %v5050 = vrot.slane %v4890, 1
    %v5051 = vrot.slane %v4891, 1
    %v5052 = vrot.slane %v4892, 1
    %v5053 = vrot.slane %v4893, 1
    %v5054 = vrot.slane %v4894, 1
    %v5055 = vrot.slane %v4895, 1
    %v5056 = vrot.slane %v4896, 1
    %v5057 = vrot.slane %v4897, 1
    %v5058 = vrot.slane %v4898, 1
    %v5059 = vrot.slane %v4899, 1
    %v5060 = vrot.slane %v4900, 1
    %v5061 = vrot.slane %v4901, 1
    %v5062 = vrot.slane %v4902, 1
    %v5063 = vrot.slane %v4903, 1
    %v5064 = vrot.slane %v4904, 1
    %v5065 = vrot.slane %v4905, 1
    %v5066 = vrot.slane %v4906, 1
    %v5067 = vrot.slane %v4907, 1
    %v5068 = vrot.slane %v4908, 1
    %v5069 = vrot.slane %v4909, 1
    %v5070 = vrot.slane %v4910, 1
    %v5071 = vrot.slane %v4911, 1
    %v5072 = vrot.slane %v4912, 1
    %v5073 = vrot.slane %v4913, 1
    %v5074 = vrot.slane %v4914, 1
    %v5075 = vrot.slane %v4915, 1
    %v5076 = vrot.slane %v4916, 1
    %v5077 = vrot.slane %v4917, 1
    %v5078 = vrot.slane %v4918, 1
    %v5079 = vsel %vm619, %v5077, %v5078
    %v5080 = vsel %vm619, %v5076, %v5077
    %v5081 = vsel %vm619, %v5075, %v5076
    %v5082 = vsel %vm619, %v5074, %v5075
    %v5083 = vsel %vm619, %v5073, %v5074
    %v5084 = vsel %vm619, %v5072, %v5073
    %v5085 = vsel %vm619, %v5071, %v5072
    %v5086 = vsel %vm619, %v5070, %v5071
    %v5087 = vsel %vm619, %v5069, %v5070
    %v5088 = vsel %vm619, %v5068, %v5069
    %v5089 = vsel %vm619, %v5067, %v5068
    %v5090 = vsel %vm619, %v5066, %v5067
    %v5091 = vsel %vm619, %v5065, %v5066
    %v5092 = vsel %vm619, %v5064, %v5065
    %v5093 = vsel %vm619, %v5063, %v5064
    %v5094 = vsel %vm619, %v5062, %v5063
    %v5095 = vsel %vm619, %v5061, %v5062
    %v5096 = vsel %vm619, %v5060, %v5061
    %v5097 = vsel %vm619, %v5059, %v5060
    %v5098 = vsel %vm619, %v5058, %v5059
    %v5099 = vsel %vm619, %v5057, %v5058
    %v5100 = vsel %vm619, %v5056, %v5057
    %v5101 = vsel %vm619, %v5055, %v5056
    %v5102 = vsel %vm619, %v5054, %v5055
    %v5103 = vsel %vm619, %v5053, %v5054
    %v5104 = vsel %vm619, %v5052, %v5053
    %v5105 = vsel %vm619, %v5051, %v5052
    %v5106 = vsel %vm619, %v5050, %v5051
    %v5107 = vsel %vm619, %v5049, %v5050
    %v5108 = vsel %vm619, %v5048, %v5049
    %v5109 = vsel %vm619, %v5047, %v5048
    %v5110 = vsel %vm619, %v5078, %v5047
    %v5111 = vmul.f32 %v5079, %v688
    %v5112 = vmul.f32 %v5110, %v693
    %v5113 = vmul.f32 %v5109, %v698
    %v5114 = vmul.f32 %v5108, %v703
    %v5115 = vmul.f32 %v5107, %v708
    %v5116 = vmul.f32 %v5106, %v713
    %v5117 = vmul.f32 %v5105, %v718
    %v5118 = vmul.f32 %v5104, %v723
    %v5119 = vmul.f32 %v5103, %v728
    %v5120 = vmul.f32 %v5102, %v733
    %v5121 = vmul.f32 %v5101, %v738
    %v5122 = vmul.f32 %v5100, %v743
    %v5123 = vmul.f32 %v5099, %v748
    %v5124 = vmul.f32 %v5098, %v753
    %v5125 = vmul.f32 %v5097, %v758
    %v5126 = vmul.f32 %v5096, %v763
    %v5127 = vmul.f32 %v5095, %v768
    %v5128 = vmul.f32 %v5094, %v773
    %v5129 = vmul.f32 %v5093, %v778
    %v5130 = vmul.f32 %v5092, %v783
    %v5131 = vmul.f32 %v5091, %v788
    %v5132 = vmul.f32 %v5090, %v793
    %v5133 = vmul.f32 %v5089, %v798
    %v5134 = vmul.f32 %v5088, %v803
    %v5135 = vmul.f32 %v5087, %v808
    %v5136 = vmul.f32 %v5086, %v813
    %v5137 = vmul.f32 %v5085, %v818
    %v5138 = vmul.f32 %v5084, %v823
    %v5139 = vmul.f32 %v5083, %v828
    %v5140 = vmul.f32 %v5082, %v833
    %v5141 = vmul.f32 %v5081, %v838
    %v5142 = vmul.f32 %v5080, %v843
    %v5143 = vmul.f32 %v4982, %v913
    %v5144 = vmul.f32 %v4981, %v918
    %v5145 = vmul.f32 %v4980, %v923
    %v5146 = vmul.f32 %v4979, %v928
    %v5147 = vmul.f32 %v4978, %v933
    %v5148 = vmul.f32 %v4977, %v938
    %v5149 = vmul.f32 %v4976, %v943
    %v5150 = vmul.f32 %v4975, %v948
    %v5151 = vmul.f32 %v4974, %v953
    %v5152 = vmul.f32 %v4973, %v958
    %v5153 = vmul.f32 %v4972, %v963
    %v5154 = vmul.f32 %v4971, %v968
    %v5155 = vmul.f32 %v4970, %v973
    %v5156 = vmul.f32 %v4969, %v978
    %v5157 = vmul.f32 %v4968, %v983
    %v5158 = vmul.f32 %v4967, %v988
    %v5159 = vmul.f32 %v4966, %v993
    %v5160 = vmul.f32 %v4965, %v998
    %v5161 = vmul.f32 %v4964, %v1003
    %v5162 = vmul.f32 %v4963, %v1008
    %v5163 = vmul.f32 %v4962, %v1013
    %v5164 = vmul.f32 %v4961, %v1018
    %v5165 = vmul.f32 %v4960, %v1023
    %v5166 = vmul.f32 %v4959, %v1028
    %v5167 = vmul.f32 %v4958, %v1033
    %v5168 = vmul.f32 %v4957, %v1038
    %v5169 = vmul.f32 %v4956, %v1043
    %v5170 = vmul.f32 %v4955, %v1048
    %v5171 = vmul.f32 %v4954, %v1053
    %v5172 = vmul.f32 %v4953, %v1058
    %v5173 = vmul.f32 %v4952, %v1063
    %v5174 = vmul.f32 %v4951, %v1068
    %v5175 = vmul.f32 %v5109, %v1138
    %v5176 = vmul.f32 %v5108, %v1143
    %v5177 = vmul.f32 %v5107, %v1148
    %v5178 = vmul.f32 %v5106, %v1153
    %v5179 = vmul.f32 %v5105, %v1158
    %v5180 = vmul.f32 %v5104, %v1163
    %v5181 = vmul.f32 %v5103, %v1168
    %v5182 = vmul.f32 %v5102, %v1173
    %v5183 = vmul.f32 %v5101, %v1178
    %v5184 = vmul.f32 %v5100, %v1183
    %v5185 = vmul.f32 %v5099, %v1188
    %v5186 = vmul.f32 %v5098, %v1193
    %v5187 = vmul.f32 %v5097, %v1198
    %v5188 = vmul.f32 %v5096, %v1203
    %v5189 = vmul.f32 %v5095, %v1208
    %v5190 = vmul.f32 %v5094, %v1213
    %v5191 = vmul.f32 %v5093, %v1218
    %v5192 = vmul.f32 %v5092, %v1223
    %v5193 = vmul.f32 %v5091, %v1228
    %v5194 = vmul.f32 %v5090, %v1233
    %v5195 = vmul.f32 %v5089, %v1238
    %v5196 = vmul.f32 %v5088, %v1243
    %v5197 = vmul.f32 %v5087, %v1248
    %v5198 = vmul.f32 %v5086, %v1253
    %v5199 = vmul.f32 %v5085, %v1258
    %v5200 = vmul.f32 %v5084, %v1263
    %v5201 = vmul.f32 %v5083, %v1268
    %v5202 = vmul.f32 %v5082, %v1273
    %v5203 = vmul.f32 %v5081, %v1278
    %v5204 = vmul.f32 %v5080, %v1283
    %v5205 = vmul.f32 %v5079, %v1288
    %v5206 = vmul.f32 %v5110, %v1293
    %v5207 = vmul.f32 %v4980, %v1363
    %v5208 = vmul.f32 %v4979, %v1368
    %v5209 = vmul.f32 %v4978, %v1373
    %v5210 = vmul.f32 %v4977, %v1378
    %v5211 = vmul.f32 %v4976, %v1383
    %v5212 = vmul.f32 %v4975, %v1388
    %v5213 = vmul.f32 %v4974, %v1393
    %v5214 = vmul.f32 %v4973, %v1398
    %v5215 = vmul.f32 %v4972, %v1403
    %v5216 = vmul.f32 %v4971, %v1408
    %v5217 = vmul.f32 %v4970, %v1413
    %v5218 = vmul.f32 %v4969, %v1418
    %v5219 = vmul.f32 %v4968, %v1423
    %v5220 = vmul.f32 %v4967, %v1428
    %v5221 = vmul.f32 %v4966, %v1433
    %v5222 = vmul.f32 %v4965, %v1438
    %v5223 = vmul.f32 %v4964, %v1443
    %v5224 = vmul.f32 %v4963, %v1448
    %v5225 = vmul.f32 %v4962, %v1453
    %v5226 = vmul.f32 %v4961, %v1458
    %v5227 = vmul.f32 %v4960, %v1463
    %v5228 = vmul.f32 %v4959, %v1468
    %v5229 = vmul.f32 %v4958, %v1473
    %v5230 = vmul.f32 %v4957, %v1478
    %v5231 = vmul.f32 %v4956, %v1483
    %v5232 = vmul.f32 %v4955, %v1488
    %v5233 = vmul.f32 %v4954, %v1493
    %v5234 = vmul.f32 %v4953, %v1498
    %v5235 = vmul.f32 %v4952, %v1503
    %v5236 = vmul.f32 %v4951, %v1508
    %v5237 = vmul.f32 %v4982, %v1513
    %v5238 = vmul.f32 %v4981, %v1518
    %v5239 = vmul.f32 %v4889, %v1588
    %v5240 = vmul.f32 %v4890, %v1593
    %v5241 = vmul.f32 %v4891, %v1598
    %v5242 = vmul.f32 %v4892, %v1603
    %v5243 = vmul.f32 %v4893, %v1608
    %v5244 = vmul.f32 %v4894, %v1613
    %v5245 = vmul.f32 %v4895, %v1618
    %v5246 = vmul.f32 %v4896, %v1623
    %v5247 = vmul.f32 %v4897, %v1628
    %v5248 = vmul.f32 %v4898, %v1633
    %v5249 = vmul.f32 %v4899, %v1638
    %v5250 = vmul.f32 %v4900, %v1643
    %v5251 = vmul.f32 %v4901, %v1648
    %v5252 = vmul.f32 %v4902, %v1653
    %v5253 = vmul.f32 %v4903, %v1658
    %v5254 = vmul.f32 %v4904, %v1663
    %v5255 = vmul.f32 %v4905, %v1668
    %v5256 = vmul.f32 %v4906, %v1673
    %v5257 = vmul.f32 %v4907, %v1678
    %v5258 = vmul.f32 %v4908, %v1683
    %v5259 = vmul.f32 %v4909, %v1688
    %v5260 = vmul.f32 %v4910, %v1693
    %v5261 = vmul.f32 %v4911, %v1698
    %v5262 = vmul.f32 %v4912, %v1703
    %v5263 = vmul.f32 %v4913, %v1708
    %v5264 = vmul.f32 %v4914, %v1713
    %v5265 = vmul.f32 %v4915, %v1718
    %v5266 = vmul.f32 %v4916, %v1723
    %v5267 = vmul.f32 %v4917, %v1728
    %v5268 = vmul.f32 %v4918, %v1733
    %v5269 = vmul.f32 %v4887, %v1738
    %v5270 = vmul.f32 %v4888, %v1743
    %v5271 = vmul.f32 %v5107, %v1813
    %v5272 = vmul.f32 %v5106, %v1818
    %v5273 = vmul.f32 %v5105, %v1823
    %v5274 = vmul.f32 %v5104, %v1828
    %v5275 = vmul.f32 %v5103, %v1833
    %v5276 = vmul.f32 %v5102, %v1838
    %v5277 = vmul.f32 %v5101, %v1843
    %v5278 = vmul.f32 %v5100, %v1848
    %v5279 = vmul.f32 %v5099, %v1853
    %v5280 = vmul.f32 %v5098, %v1858
    %v5281 = vmul.f32 %v5097, %v1863
    %v5282 = vmul.f32 %v5096, %v1868
    %v5283 = vmul.f32 %v5095, %v1873
    %v5284 = vmul.f32 %v5094, %v1878
    %v5285 = vmul.f32 %v5093, %v1883
    %v5286 = vmul.f32 %v5092, %v1888
    %v5287 = vmul.f32 %v5091, %v1893
    %v5288 = vmul.f32 %v5090, %v1898
    %v5289 = vmul.f32 %v5089, %v1903
    %v5290 = vmul.f32 %v5088, %v1908
    %v5291 = vmul.f32 %v5087, %v1913
    %v5292 = vmul.f32 %v5086, %v1918
    %v5293 = vmul.f32 %v5085, %v1923
    %v5294 = vmul.f32 %v5084, %v1928
    %v5295 = vmul.f32 %v5083, %v1933
    %v5296 = vmul.f32 %v5082, %v1938
    %v5297 = vmul.f32 %v5081, %v1943
    %v5298 = vmul.f32 %v5080, %v1948
    %v5299 = vmul.f32 %v5079, %v1953
    %v5300 = vmul.f32 %v5110, %v1958
    %v5301 = vmul.f32 %v5109, %v1963
    %v5302 = vmul.f32 %v5108, %v1968
    %s5303 = scalar_lea.vmem %s1, 2304
    %v5304 = vld [vmem:[%s5303] sm:$0xff]
    %v5305 = vld [vmem:[%s5303 + $0x8] sm:$0xff]
    %v5306 = vld [vmem:[%s5303 + $0x10] sm:$0xff]
    %v5307 = vld [vmem:[%s5303 + $0x18] sm:$0xff]
    %v5308 = vld [vmem:[%s5303 + $0x20] sm:$0xff]
    %v5309 = vld [vmem:[%s5303 + $0x28] sm:$0xff]
    %v5310 = vld [vmem:[%s5303 + $0x30] sm:$0xff]
    %v5311 = vld [vmem:[%s5303 + $0x38] sm:$0xff]
    %v5312 = vld [vmem:[%s5303 + $0x40] sm:$0xff]
    %v5313 = vld [vmem:[%s5303 + $0x48] sm:$0xff]
    %v5314 = vld [vmem:[%s5303 + $0x50] sm:$0xff]
    %v5315 = vld [vmem:[%s5303 + $0x58] sm:$0xff]
    %v5316 = vld [vmem:[%s5303 + $0x60] sm:$0xff]
    %v5317 = vld [vmem:[%s5303 + $0x68] sm:$0xff]
    %v5318 = vld [vmem:[%s5303 + $0x70] sm:$0xff]
    %v5319 = vld [vmem:[%s5303 + $0x78] sm:$0xff]
    %v5320 = vld [vmem:[%s5303 + $0x80] sm:$0xff]
    %v5321 = vld [vmem:[%s5303 + $0x88] sm:$0xff]
    %v5322 = vld [vmem:[%s5303 + $0x90] sm:$0xff]
    %v5323 = vld [vmem:[%s5303 + $0x98] sm:$0xff]
    %v5324 = vld [vmem:[%s5303 + $0xa0] sm:$0xff]
    %v5325 = vld [vmem:[%s5303 + $0xa8] sm:$0xff]
    %v5326 = vld [vmem:[%s5303 + $0xb0] sm:$0xff]
    %v5327 = vld [vmem:[%s5303 + $0xb8] sm:$0xff]
    %v5328 = vld [vmem:[%s5303 + $0xc0] sm:$0xff]
    %v5329 = vld [vmem:[%s5303 + $0xc8] sm:$0xff]
    %v5330 = vld [vmem:[%s5303 + $0xd0] sm:$0xff]
    %v5331 = vld [vmem:[%s5303 + $0xd8] sm:$0xff]
    %v5332 = vld [vmem:[%s5303 + $0xe0] sm:$0xff]
    %v5333 = vld [vmem:[%s5303 + $0xe8] sm:$0xff]
    %v5334 = vld [vmem:[%s5303 + $0xf0] sm:$0xff]
    %v5335 = vld [vmem:[%s5303 + $0xf8] sm:$0xff]
    %v5336 = vld [vmem:[%s5303 + $0x100] sm:$0xff]
    %v5337 = vld [vmem:[%s5303 + $0x108] sm:$0xff]
    %v5338 = vld [vmem:[%s5303 + $0x110] sm:$0xff]
    %v5339 = vld [vmem:[%s5303 + $0x118] sm:$0xff]
    %v5340 = vld [vmem:[%s5303 + $0x120] sm:$0xff]
    %v5341 = vld [vmem:[%s5303 + $0x128] sm:$0xff]
    %v5342 = vld [vmem:[%s5303 + $0x130] sm:$0xff]
    %v5343 = vld [vmem:[%s5303 + $0x138] sm:$0xff]
    %v5344 = vld [vmem:[%s5303 + $0x140] sm:$0xff]
    %v5345 = vld [vmem:[%s5303 + $0x148] sm:$0xff]
    %v5346 = vld [vmem:[%s5303 + $0x150] sm:$0xff]
    %v5347 = vld [vmem:[%s5303 + $0x158] sm:$0xff]
    %v5348 = vld [vmem:[%s5303 + $0x160] sm:$0xff]
    %v5349 = vld [vmem:[%s5303 + $0x168] sm:$0xff]
    %v5350 = vld [vmem:[%s5303 + $0x170] sm:$0xff]
    %v5351 = vld [vmem:[%s5303 + $0x178] sm:$0xff]
    %v5352 = vld [vmem:[%s5303 + $0x180] sm:$0xff]
    %v5353 = vld [vmem:[%s5303 + $0x188] sm:$0xff]
    %v5354 = vld [vmem:[%s5303 + $0x190] sm:$0xff]
    %v5355 = vld [vmem:[%s5303 + $0x198] sm:$0xff]
    %v5356 = vld [vmem:[%s5303 + $0x1a0] sm:$0xff]
    %v5357 = vld [vmem:[%s5303 + $0x1a8] sm:$0xff]
    %v5358 = vld [vmem:[%s5303 + $0x1b0] sm:$0xff]
    %v5359 = vld [vmem:[%s5303 + $0x1b8] sm:$0xff]
    %v5360 = vld [vmem:[%s5303 + $0x1c0] sm:$0xff]
    %v5361 = vld [vmem:[%s5303 + $0x1c8] sm:$0xff]
    %v5362 = vld [vmem:[%s5303 + $0x1d0] sm:$0xff]
    %v5363 = vld [vmem:[%s5303 + $0x1d8] sm:$0xff]
    %v5364 = vld [vmem:[%s5303 + $0x1e0] sm:$0xff]
    %v5365 = vld [vmem:[%s5303 + $0x1e8] sm:$0xff]
    %v5366 = vld [vmem:[%s5303 + $0x1f0] sm:$0xff]
    %v5367 = vld [vmem:[%s5303 + $0x1f8] sm:$0xff]
    %v5368 = vld [vmem:[%s5303 + $0x200] sm:$0xff]
    %v5369 = vld [vmem:[%s5303 + $0x208] sm:$0xff]
    %v5370 = vld [vmem:[%s5303 + $0x210] sm:$0xff]
    %v5371 = vld [vmem:[%s5303 + $0x218] sm:$0xff]
    %v5372 = vld [vmem:[%s5303 + $0x220] sm:$0xff]
    %v5373 = vld [vmem:[%s5303 + $0x228] sm:$0xff]
    %v5374 = vld [vmem:[%s5303 + $0x230] sm:$0xff]
    %v5375 = vld [vmem:[%s5303 + $0x238] sm:$0xff]
    %v5376 = vld [vmem:[%s5303 + $0x240] sm:$0xff]
    %v5377 = vld [vmem:[%s5303 + $0x248] sm:$0xff]
    %v5378 = vld [vmem:[%s5303 + $0x250] sm:$0xff]
    %v5379 = vld [vmem:[%s5303 + $0x258] sm:$0xff]
    %v5380 = vld [vmem:[%s5303 + $0x260] sm:$0xff]
    %v5381 = vld [vmem:[%s5303 + $0x268] sm:$0xff]
    %v5382 = vld [vmem:[%s5303 + $0x270] sm:$0xff]
    %v5383 = vld [vmem:[%s5303 + $0x278] sm:$0xff]
    %v5384 = vld [vmem:[%s5303 + $0x280] sm:$0xff]
    %v5385 = vld [vmem:[%s5303 + $0x288] sm:$0xff]
    %v5386 = vld [vmem:[%s5303 + $0x290] sm:$0xff]
    %v5387 = vld [vmem:[%s5303 + $0x298] sm:$0xff]
    %v5388 = vld [vmem:[%s5303 + $0x2a0] sm:$0xff]
    %v5389 = vld [vmem:[%s5303 + $0x2a8] sm:$0xff]
    %v5390 = vld [vmem:[%s5303 + $0x2b0] sm:$0xff]
    %v5391 = vld [vmem:[%s5303 + $0x2b8] sm:$0xff]
    %v5392 = vld [vmem:[%s5303 + $0x2c0] sm:$0xff]
    %v5393 = vld [vmem:[%s5303 + $0x2c8] sm:$0xff]
    %v5394 = vld [vmem:[%s5303 + $0x2d0] sm:$0xff]
    %v5395 = vld [vmem:[%s5303 + $0x2d8] sm:$0xff]
    %v5396 = vld [vmem:[%s5303 + $0x2e0] sm:$0xff]
    %v5397 = vld [vmem:[%s5303 + $0x2e8] sm:$0xff]
    %v5398 = vld [vmem:[%s5303 + $0x2f0] sm:$0xff]
    %v5399 = vld [vmem:[%s5303 + $0x2f8] sm:$0xff]
    %v5400 = vld [vmem:[%s5303 + $0x300] sm:$0xff]
    %v5401 = vld [vmem:[%s5303 + $0x308] sm:$0xff]
    %v5402 = vld [vmem:[%s5303 + $0x310] sm:$0xff]
    %v5403 = vld [vmem:[%s5303 + $0x318] sm:$0xff]
    %v5404 = vld [vmem:[%s5303 + $0x320] sm:$0xff]
    %v5405 = vld [vmem:[%s5303 + $0x328] sm:$0xff]
    %v5406 = vld [vmem:[%s5303 + $0x330] sm:$0xff]
    %v5407 = vld [vmem:[%s5303 + $0x338] sm:$0xff]
    %v5408 = vld [vmem:[%s5303 + $0x340] sm:$0xff]
    %v5409 = vld [vmem:[%s5303 + $0x348] sm:$0xff]
    %v5410 = vld [vmem:[%s5303 + $0x350] sm:$0xff]
    %v5411 = vld [vmem:[%s5303 + $0x358] sm:$0xff]
    %v5412 = vld [vmem:[%s5303 + $0x360] sm:$0xff]
    %v5413 = vld [vmem:[%s5303 + $0x368] sm:$0xff]
    %v5414 = vld [vmem:[%s5303 + $0x370] sm:$0xff]
    %v5415 = vld [vmem:[%s5303 + $0x378] sm:$0xff]
    %v5416 = vld [vmem:[%s5303 + $0x380] sm:$0xff]
    %v5417 = vld [vmem:[%s5303 + $0x388] sm:$0xff]
    %v5418 = vld [vmem:[%s5303 + $0x390] sm:$0xff]
    %v5419 = vld [vmem:[%s5303 + $0x398] sm:$0xff]
    %v5420 = vld [vmem:[%s5303 + $0x3a0] sm:$0xff]
    %v5421 = vld [vmem:[%s5303 + $0x3a8] sm:$0xff]
    %v5422 = vld [vmem:[%s5303 + $0x3b0] sm:$0xff]
    %v5423 = vld [vmem:[%s5303 + $0x3b8] sm:$0xff]
    %v5424 = vld [vmem:[%s5303 + $0x3c0] sm:$0xff]
    %v5425 = vld [vmem:[%s5303 + $0x3c8] sm:$0xff]
    %v5426 = vld [vmem:[%s5303 + $0x3d0] sm:$0xff]
    %v5427 = vld [vmem:[%s5303 + $0x3d8] sm:$0xff]
    %v5428 = vld [vmem:[%s5303 + $0x3e0] sm:$0xff]
    %v5429 = vld [vmem:[%s5303 + $0x3e8] sm:$0xff]
    %v5430 = vld [vmem:[%s5303 + $0x3f0] sm:$0xff]
    %v5431 = vld [vmem:[%s5303 + $0x3f8] sm:$0xff]
    %v5432 = vld [vmem:[%s5303 + $0x400] sm:$0xff]
    %v5433 = vld [vmem:[%s5303 + $0x408] sm:$0xff]
    %v5434 = vld [vmem:[%s5303 + $0x410] sm:$0xff]
    %v5435 = vld [vmem:[%s5303 + $0x418] sm:$0xff]
    %v5436 = vld [vmem:[%s5303 + $0x420] sm:$0xff]
    %v5437 = vld [vmem:[%s5303 + $0x428] sm:$0xff]
    %v5438 = vld [vmem:[%s5303 + $0x430] sm:$0xff]
    %v5439 = vld [vmem:[%s5303 + $0x438] sm:$0xff]
    %v5440 = vld [vmem:[%s5303 + $0x440] sm:$0xff]
    %v5441 = vld [vmem:[%s5303 + $0x448] sm:$0xff]
    %v5442 = vld [vmem:[%s5303 + $0x450] sm:$0xff]
    %v5443 = vld [vmem:[%s5303 + $0x458] sm:$0xff]
    %v5444 = vld [vmem:[%s5303 + $0x460] sm:$0xff]
    %v5445 = vld [vmem:[%s5303 + $0x468] sm:$0xff]
    %v5446 = vld [vmem:[%s5303 + $0x470] sm:$0xff]
    %v5447 = vld [vmem:[%s5303 + $0x478] sm:$0xff]
    %5448 = vmatpush.msra.mxu0 %v5319
    %5449 = vmatpush.msra.mxu0 %v5318
    %5450 = vmatpush.msra.mxu0 %v5317
    %5451 = vmatpush.msra.mxu0 %v5316
    %5452 = vmatpush.msra.mxu0 %v5315
    %5453 = vmatpush.msra.mxu0 %v5314
    %5454 = vmatpush.msra.mxu0 %v5313
    %5455 = vmatpush.msra.mxu0 %v5312
    %5456 = vmatpush.msra.mxu0 %v5311
    %5457 = vmatpush.msra.mxu0 %v5310
    %5458 = vmatpush.msra.mxu0 %v5309
    %5459 = vmatpush.msra.mxu0 %v5308
    %5460 = vmatpush.msra.mxu0 %v5307
    %5461 = vmatpush.msra.mxu0 %v5306
    %5462 = vmatpush.msra.mxu0 %v5305
    %5463 = vmatpush.msra.mxu0 %v5304
    %5464 = vmatmul.f32.gmra.mxu0 %v4983
    %v5465 = vpop.f32.mrf.mxu0
    %v5466 = vadd.f32 0.0, %v5465
    %5467 = vmatmul.f32.gmra.mxu0 %v4984
    %v5468 = vpop.f32.mrf.mxu0
    %v5469 = vadd.f32 0.0, %v5468
    %5470 = vmatmul.f32.gmra.mxu0 %v4985
    %v5471 = vpop.f32.mrf.mxu0
    %v5472 = vadd.f32 0.0, %v5471
    %5473 = vmatmul.f32.gmra.mxu0 %v4986
    %v5474 = vpop.f32.mrf.mxu0
    %v5475 = vadd.f32 0.0, %v5474
    %5476 = vmatmul.f32.gmra.mxu0 %v4987
    %v5477 = vpop.f32.mrf.mxu0
    %v5478 = vadd.f32 0.0, %v5477
    %5479 = vmatmul.f32.gmra.mxu0 %v4988
    %v5480 = vpop.f32.mrf.mxu0
    %v5481 = vadd.f32 0.0, %v5480
    %5482 = vmatmul.f32.gmra.mxu0 %v4989
    %v5483 = vpop.f32.mrf.mxu0
    %v5484 = vadd.f32 0.0, %v5483
    %5485 = vmatmul.f32.gmra.mxu0 %v4990
    %v5486 = vpop.f32.mrf.mxu0
    %v5487 = vadd.f32 0.0, %v5486
    %5488 = vmatmul.f32.gmra.mxu0 %v4991
    %v5489 = vpop.f32.mrf.mxu0
    %v5490 = vadd.f32 0.0, %v5489
    %5491 = vmatmul.f32.gmra.mxu0 %v4992
    %v5492 = vpop.f32.mrf.mxu0
    %v5493 = vadd.f32 0.0, %v5492
    %5494 = vmatmul.f32.gmra.mxu0 %v4993
    %v5495 = vpop.f32.mrf.mxu0
    %v5496 = vadd.f32 0.0, %v5495
    %5497 = vmatmul.f32.gmra.mxu0 %v4994
    %v5498 = vpop.f32.mrf.mxu0
    %v5499 = vadd.f32 0.0, %v5498
    %5500 = vmatmul.f32.gmra.mxu0 %v4995
    %v5501 = vpop.f32.mrf.mxu0
    %v5502 = vadd.f32 0.0, %v5501
    %5503 = vmatmul.f32.gmra.mxu0 %v4996
    %v5504 = vpop.f32.mrf.mxu0
    %v5505 = vadd.f32 0.0, %v5504
    %5506 = vmatmul.f32.gmra.mxu0 %v4997
    %v5507 = vpop.f32.mrf.mxu0
    %v5508 = vadd.f32 0.0, %v5507
    %5509 = vmatmul.f32.gmra.mxu0 %v4998
    %v5510 = vpop.f32.mrf.mxu0
    %v5511 = vadd.f32 0.0, %v5510
    %5512 = vmatmul.f32.gmra.mxu0 %v4999
    %v5513 = vpop.f32.mrf.mxu0
    %v5514 = vadd.f32 0.0, %v5513
    %5515 = vmatmul.f32.gmra.mxu0 %v5000
    %v5516 = vpop.f32.mrf.mxu0
    %v5517 = vadd.f32 0.0, %v5516
    %5518 = vmatmul.f32.gmra.mxu0 %v5001
    %v5519 = vpop.f32.mrf.mxu0
    %v5520 = vadd.f32 0.0, %v5519
    %5521 = vmatmul.f32.gmra.mxu0 %v5002
    %v5522 = vpop.f32.mrf.mxu0
    %v5523 = vadd.f32 0.0, %v5522
    %5524 = vmatmul.f32.gmra.mxu0 %v5003
    %v5525 = vpop.f32.mrf.mxu0
    %v5526 = vadd.f32 0.0, %v5525
    %5527 = vmatmul.f32.gmra.mxu0 %v5004
    %v5528 = vpop.f32.mrf.mxu0
    %v5529 = vadd.f32 0.0, %v5528
    %5530 = vmatmul.f32.gmra.mxu0 %v5005
    %v5531 = vpop.f32.mrf.mxu0
    %v5532 = vadd.f32 0.0, %v5531
    %5533 = vmatmul.f32.gmra.mxu0 %v5006
    %v5534 = vpop.f32.mrf.mxu0
    %v5535 = vadd.f32 0.0, %v5534
    %5536 = vmatmul.f32.gmra.mxu0 %v5007
    %v5537 = vpop.f32.mrf.mxu0
    %v5538 = vadd.f32 0.0, %v5537
    %5539 = vmatmul.f32.gmra.mxu0 %v5008
    %v5540 = vpop.f32.mrf.mxu0
    %v5541 = vadd.f32 0.0, %v5540
    %5542 = vmatmul.f32.gmra.mxu0 %v5009
    %v5543 = vpop.f32.mrf.mxu0
    %v5544 = vadd.f32 0.0, %v5543
    %5545 = vmatmul.f32.gmra.mxu0 %v5010
    %v5546 = vpop.f32.mrf.mxu0
    %v5547 = vadd.f32 0.0, %v5546
    %5548 = vmatmul.f32.gmra.mxu0 %v5011
    %v5549 = vpop.f32.mrf.mxu0
    %v5550 = vadd.f32 0.0, %v5549
    %5551 = vmatmul.f32.gmra.mxu0 %v5012
    %v5552 = vpop.f32.mrf.mxu0
    %v5553 = vadd.f32 0.0, %v5552
    %5554 = vmatmul.f32.gmra.mxu0 %v5013
    %v5555 = vpop.f32.mrf.mxu0
    %v5556 = vadd.f32 0.0, %v5555
    %5557 = vmatmul.f32.gmra.mxu0 %v5014
    %v5558 = vpop.f32.mrf.mxu0
    %v5559 = vadd.f32 0.0, %v5558
    %5560 = vdwg.mxu0
    %5561 = vmatpush.msra.mxu0 %v5335
    %5562 = vmatpush.msra.mxu0 %v5334
    %5563 = vmatpush.msra.mxu0 %v5333
    %5564 = vmatpush.msra.mxu0 %v5332
    %5565 = vmatpush.msra.mxu0 %v5331
    %5566 = vmatpush.msra.mxu0 %v5330
    %5567 = vmatpush.msra.mxu0 %v5329
    %5568 = vmatpush.msra.mxu0 %v5328
    %5569 = vmatpush.msra.mxu0 %v5327
    %5570 = vmatpush.msra.mxu0 %v5326
    %5571 = vmatpush.msra.mxu0 %v5325
    %5572 = vmatpush.msra.mxu0 %v5324
    %5573 = vmatpush.msra.mxu0 %v5323
    %5574 = vmatpush.msra.mxu0 %v5322
    %5575 = vmatpush.msra.mxu0 %v5321
    %5576 = vmatpush.msra.mxu0 %v5320
    %5577 = vmatmul.f32.gmra.mxu0 %v5015
    %v5578 = vpop.f32.mrf.mxu0
    %v5579 = vadd.f32 %v5466, %v5578
    %5580 = vmatmul.f32.gmra.mxu0 %v5016
    %v5581 = vpop.f32.mrf.mxu0
    %v5582 = vadd.f32 %v5469, %v5581
    %5583 = vmatmul.f32.gmra.mxu0 %v5017
    %v5584 = vpop.f32.mrf.mxu0
    %v5585 = vadd.f32 %v5472, %v5584
    %5586 = vmatmul.f32.gmra.mxu0 %v5018
    %v5587 = vpop.f32.mrf.mxu0
    %v5588 = vadd.f32 %v5475, %v5587
    %5589 = vmatmul.f32.gmra.mxu0 %v5019
    %v5590 = vpop.f32.mrf.mxu0
    %v5591 = vadd.f32 %v5478, %v5590
    %5592 = vmatmul.f32.gmra.mxu0 %v5020
    %v5593 = vpop.f32.mrf.mxu0
    %v5594 = vadd.f32 %v5481, %v5593
    %5595 = vmatmul.f32.gmra.mxu0 %v5021
    %v5596 = vpop.f32.mrf.mxu0
    %v5597 = vadd.f32 %v5484, %v5596
    %5598 = vmatmul.f32.gmra.mxu0 %v5022
    %v5599 = vpop.f32.mrf.mxu0
    %v5600 = vadd.f32 %v5487, %v5599
    %5601 = vmatmul.f32.gmra.mxu0 %v5023
    %v5602 = vpop.f32.mrf.mxu0
    %v5603 = vadd.f32 %v5490, %v5602
    %5604 = vmatmul.f32.gmra.mxu0 %v5024
    %v5605 = vpop.f32.mrf.mxu0
    %v5606 = vadd.f32 %v5493, %v5605
    %5607 = vmatmul.f32.gmra.mxu0 %v5025
    %v5608 = vpop.f32.mrf.mxu0
    %v5609 = vadd.f32 %v5496, %v5608
    %5610 = vmatmul.f32.gmra.mxu0 %v5026
    %v5611 = vpop.f32.mrf.mxu0
    %v5612 = vadd.f32 %v5499, %v5611
    %5613 = vmatmul.f32.gmra.mxu0 %v5027
    %v5614 = vpop.f32.mrf.mxu0
    %v5615 = vadd.f32 %v5502, %v5614
    %5616 = vmatmul.f32.gmra.mxu0 %v5028
    %v5617 = vpop.f32.mrf.mxu0
    %v5618 = vadd.f32 %v5505, %v5617
    %5619 = vmatmul.f32.gmra.mxu0 %v5029
    %v5620 = vpop.f32.mrf.mxu0
    %v5621 = vadd.f32 %v5508, %v5620
    %5622 = vmatmul.f32.gmra.mxu0 %v5030
    %v5623 = vpop.f32.mrf.mxu0
    %v5624 = vadd.f32 %v5511, %v5623
    %5625 = vmatmul.f32.gmra.mxu0 %v5031
    %v5626 = vpop.f32.mrf.mxu0
    %v5627 = vadd.f32 %v5514, %v5626
    %5628 = vmatmul.f32.gmra.mxu0 %v5032
    %v5629 = vpop.f32.mrf.mxu0
    %v5630 = vadd.f32 %v5517, %v5629
    %5631 = vmatmul.f32.gmra.mxu0 %v5033
    %v5632 = vpop.f32.mrf.mxu0
    %v5633 = vadd.f32 %v5520, %v5632
    %5634 = vmatmul.f32.gmra.mxu0 %v5034
    %v5635 = vpop.f32.mrf.mxu0
    %v5636 = vadd.f32 %v5523, %v5635
    %5637 = vmatmul.f32.gmra.mxu0 %v5035
    %v5638 = vpop.f32.mrf.mxu0
    %v5639 = vadd.f32 %v5526, %v5638
    %5640 = vmatmul.f32.gmra.mxu0 %v5036
    %v5641 = vpop.f32.mrf.mxu0
    %v5642 = vadd.f32 %v5529, %v5641
    %5643 = vmatmul.f32.gmra.mxu0 %v5037
    %v5644 = vpop.f32.mrf.mxu0
    %v5645 = vadd.f32 %v5532, %v5644
    %5646 = vmatmul.f32.gmra.mxu0 %v5038
    %v5647 = vpop.f32.mrf.mxu0
    %v5648 = vadd.f32 %v5535, %v5647
    %5649 = vmatmul.f32.gmra.mxu0 %v5039
    %v5650 = vpop.f32.mrf.mxu0
    %v5651 = vadd.f32 %v5538, %v5650
    %5652 = vmatmul.f32.gmra.mxu0 %v5040
    %v5653 = vpop.f32.mrf.mxu0
    %v5654 = vadd.f32 %v5541, %v5653
    %5655 = vmatmul.f32.gmra.mxu0 %v5041
    %v5656 = vpop.f32.mrf.mxu0
    %v5657 = vadd.f32 %v5544, %v5656
    %5658 = vmatmul.f32.gmra.mxu0 %v5042
    %v5659 = vpop.f32.mrf.mxu0
    %v5660 = vadd.f32 %v5547, %v5659
    %5661 = vmatmul.f32.gmra.mxu0 %v5043
    %v5662 = vpop.f32.mrf.mxu0
    %v5663 = vadd.f32 %v5550, %v5662
    %5664 = vmatmul.f32.gmra.mxu0 %v5044
    %v5665 = vpop.f32.mrf.mxu0
    %v5666 = vadd.f32 %v5553, %v5665
    %5667 = vmatmul.f32.gmra.mxu0 %v5045
    %v5668 = vpop.f32.mrf.mxu0
    %v5669 = vadd.f32 %v5556, %v5668
    %5670 = vmatmul.f32.gmra.mxu0 %v5046
    %v5671 = vpop.f32.mrf.mxu0
    %v5672 = vadd.f32 %v5559, %v5671
    %5673 = vdwg.mxu0
    %5674 = vmatpush.msra.mxu0 %v5351
    %5675 = vmatpush.msra.mxu0 %v5350
    %5676 = vmatpush.msra.mxu0 %v5349
    %5677 = vmatpush.msra.mxu0 %v5348
    %5678 = vmatpush.msra.mxu0 %v5347
    %5679 = vmatpush.msra.mxu0 %v5346
    %5680 = vmatpush.msra.mxu0 %v5345
    %5681 = vmatpush.msra.mxu0 %v5344
    %5682 = vmatpush.msra.mxu0 %v5343
    %5683 = vmatpush.msra.mxu0 %v5342
    %5684 = vmatpush.msra.mxu0 %v5341
    %5685 = vmatpush.msra.mxu0 %v5340
    %5686 = vmatpush.msra.mxu0 %v5339
    %5687 = vmatpush.msra.mxu0 %v5338
    %5688 = vmatpush.msra.mxu0 %v5337
    %5689 = vmatpush.msra.mxu0 %v5336
    %5690 = vmatmul.f32.gmra.mxu0 %v5111
    %v5691 = vpop.f32.mrf.mxu0
    %v5692 = vadd.f32 %v5579, %v5691
    %5693 = vmatmul.f32.gmra.mxu0 %v5112
    %v5694 = vpop.f32.mrf.mxu0
    %v5695 = vadd.f32 %v5582, %v5694
    %5696 = vmatmul.f32.gmra.mxu0 %v5113
    %v5697 = vpop.f32.mrf.mxu0
    %v5698 = vadd.f32 %v5585, %v5697
    %5699 = vmatmul.f32.gmra.mxu0 %v5114
    %v5700 = vpop.f32.mrf.mxu0
    %v5701 = vadd.f32 %v5588, %v5700
    %5702 = vmatmul.f32.gmra.mxu0 %v5115
    %v5703 = vpop.f32.mrf.mxu0
    %v5704 = vadd.f32 %v5591, %v5703
    %5705 = vmatmul.f32.gmra.mxu0 %v5116
    %v5706 = vpop.f32.mrf.mxu0
    %v5707 = vadd.f32 %v5594, %v5706
    %5708 = vmatmul.f32.gmra.mxu0 %v5117
    %v5709 = vpop.f32.mrf.mxu0
    %v5710 = vadd.f32 %v5597, %v5709
    %5711 = vmatmul.f32.gmra.mxu0 %v5118
    %v5712 = vpop.f32.mrf.mxu0
    %v5713 = vadd.f32 %v5600, %v5712
    %5714 = vmatmul.f32.gmra.mxu0 %v5119
    %v5715 = vpop.f32.mrf.mxu0
    %v5716 = vadd.f32 %v5603, %v5715
    %5717 = vmatmul.f32.gmra.mxu0 %v5120
    %v5718 = vpop.f32.mrf.mxu0
    %v5719 = vadd.f32 %v5606, %v5718
    %5720 = vmatmul.f32.gmra.mxu0 %v5121
    %v5721 = vpop.f32.mrf.mxu0
    %v5722 = vadd.f32 %v5609, %v5721
    %5723 = vmatmul.f32.gmra.mxu0 %v5122
    %v5724 = vpop.f32.mrf.mxu0
    %v5725 = vadd.f32 %v5612, %v5724
    %5726 = vmatmul.f32.gmra.mxu0 %v5123
    %v5727 = vpop.f32.mrf.mxu0
    %v5728 = vadd.f32 %v5615, %v5727
    %5729 = vmatmul.f32.gmra.mxu0 %v5124
    %v5730 = vpop.f32.mrf.mxu0
    %v5731 = vadd.f32 %v5618, %v5730
    %5732 = vmatmul.f32.gmra.mxu0 %v5125
    %v5733 = vpop.f32.mrf.mxu0
    %v5734 = vadd.f32 %v5621, %v5733
    %5735 = vmatmul.f32.gmra.mxu0 %v5126
    %v5736 = vpop.f32.mrf.mxu0
    %v5737 = vadd.f32 %v5624, %v5736
    %5738 = vmatmul.f32.gmra.mxu0 %v5127
    %v5739 = vpop.f32.mrf.mxu0
    %v5740 = vadd.f32 %v5627, %v5739
    %5741 = vmatmul.f32.gmra.mxu0 %v5128
    %v5742 = vpop.f32.mrf.mxu0
    %v5743 = vadd.f32 %v5630, %v5742
    %5744 = vmatmul.f32.gmra.mxu0 %v5129
    %v5745 = vpop.f32.mrf.mxu0
    %v5746 = vadd.f32 %v5633, %v5745
    %5747 = vmatmul.f32.gmra.mxu0 %v5130
    %v5748 = vpop.f32.mrf.mxu0
    %v5749 = vadd.f32 %v5636, %v5748
    %5750 = vmatmul.f32.gmra.mxu0 %v5131
    %v5751 = vpop.f32.mrf.mxu0
    %v5752 = vadd.f32 %v5639, %v5751
    %5753 = vmatmul.f32.gmra.mxu0 %v5132
    %v5754 = vpop.f32.mrf.mxu0
    %v5755 = vadd.f32 %v5642, %v5754
    %5756 = vmatmul.f32.gmra.mxu0 %v5133
    %v5757 = vpop.f32.mrf.mxu0
    %v5758 = vadd.f32 %v5645, %v5757
    %5759 = vmatmul.f32.gmra.mxu0 %v5134
    %v5760 = vpop.f32.mrf.mxu0
    %v5761 = vadd.f32 %v5648, %v5760
    %5762 = vmatmul.f32.gmra.mxu0 %v5135
    %v5763 = vpop.f32.mrf.mxu0
    %v5764 = vadd.f32 %v5651, %v5763
    %5765 = vmatmul.f32.gmra.mxu0 %v5136
    %v5766 = vpop.f32.mrf.mxu0
    %v5767 = vadd.f32 %v5654, %v5766
    %5768 = vmatmul.f32.gmra.mxu0 %v5137
    %v5769 = vpop.f32.mrf.mxu0
    %v5770 = vadd.f32 %v5657, %v5769
    %5771 = vmatmul.f32.gmra.mxu0 %v5138
    %v5772 = vpop.f32.mrf.mxu0
    %v5773 = vadd.f32 %v5660, %v5772
    %5774 = vmatmul.f32.gmra.mxu0 %v5139
    %v5775 = vpop.f32.mrf.mxu0
    %v5776 = vadd.f32 %v5663, %v5775
    %5777 = vmatmul.f32.gmra.mxu0 %v5140
    %v5778 = vpop.f32.mrf.mxu0
    %v5779 = vadd.f32 %v5666, %v5778
    %5780 = vmatmul.f32.gmra.mxu0 %v5141
    %v5781 = vpop.f32.mrf.mxu0
    %v5782 = vadd.f32 %v5669, %v5781
    %5783 = vmatmul.f32.gmra.mxu0 %v5142
    %v5784 = vpop.f32.mrf.mxu0
    %v5785 = vadd.f32 %v5672, %v5784
    %5786 = vdwg.mxu0
    %5787 = vmatpush.msra.mxu0 %v5367
    %5788 = vmatpush.msra.mxu0 %v5366
    %5789 = vmatpush.msra.mxu0 %v5365
    %5790 = vmatpush.msra.mxu0 %v5364
    %5791 = vmatpush.msra.mxu0 %v5363
    %5792 = vmatpush.msra.mxu0 %v5362
    %5793 = vmatpush.msra.mxu0 %v5361
    %5794 = vmatpush.msra.mxu0 %v5360
    %5795 = vmatpush.msra.mxu0 %v5359
    %5796 = vmatpush.msra.mxu0 %v5358
    %5797 = vmatpush.msra.mxu0 %v5357
    %5798 = vmatpush.msra.mxu0 %v5356
    %5799 = vmatpush.msra.mxu0 %v5355
    %5800 = vmatpush.msra.mxu0 %v5354
    %5801 = vmatpush.msra.mxu0 %v5353
    %5802 = vmatpush.msra.mxu0 %v5352
    %5803 = vmatmul.f32.gmra.mxu0 %v5143
    %v5804 = vpop.f32.mrf.mxu0
    %v5805 = vadd.f32 %v5692, %v5804
    %5806 = vmatmul.f32.gmra.mxu0 %v5144
    %v5807 = vpop.f32.mrf.mxu0
    %v5808 = vadd.f32 %v5695, %v5807
    %5809 = vmatmul.f32.gmra.mxu0 %v5145
    %v5810 = vpop.f32.mrf.mxu0
    %v5811 = vadd.f32 %v5698, %v5810
    %5812 = vmatmul.f32.gmra.mxu0 %v5146
    %v5813 = vpop.f32.mrf.mxu0
    %v5814 = vadd.f32 %v5701, %v5813
    %5815 = vmatmul.f32.gmra.mxu0 %v5147
    %v5816 = vpop.f32.mrf.mxu0
    %v5817 = vadd.f32 %v5704, %v5816
    %5818 = vmatmul.f32.gmra.mxu0 %v5148
    %v5819 = vpop.f32.mrf.mxu0
    %v5820 = vadd.f32 %v5707, %v5819
    %5821 = vmatmul.f32.gmra.mxu0 %v5149
    %v5822 = vpop.f32.mrf.mxu0
    %v5823 = vadd.f32 %v5710, %v5822
    %5824 = vmatmul.f32.gmra.mxu0 %v5150
    %v5825 = vpop.f32.mrf.mxu0
    %v5826 = vadd.f32 %v5713, %v5825
    %5827 = vmatmul.f32.gmra.mxu0 %v5151
    %v5828 = vpop.f32.mrf.mxu0
    %v5829 = vadd.f32 %v5716, %v5828
    %5830 = vmatmul.f32.gmra.mxu0 %v5152
    %v5831 = vpop.f32.mrf.mxu0
    %v5832 = vadd.f32 %v5719, %v5831
    %5833 = vmatmul.f32.gmra.mxu0 %v5153
    %v5834 = vpop.f32.mrf.mxu0
    %v5835 = vadd.f32 %v5722, %v5834
    %5836 = vmatmul.f32.gmra.mxu0 %v5154
    %v5837 = vpop.f32.mrf.mxu0
    %v5838 = vadd.f32 %v5725, %v5837
    %5839 = vmatmul.f32.gmra.mxu0 %v5155
    %v5840 = vpop.f32.mrf.mxu0
    %v5841 = vadd.f32 %v5728, %v5840
    %5842 = vmatmul.f32.gmra.mxu0 %v5156
    %v5843 = vpop.f32.mrf.mxu0
    %v5844 = vadd.f32 %v5731, %v5843
    %5845 = vmatmul.f32.gmra.mxu0 %v5157
    %v5846 = vpop.f32.mrf.mxu0
    %v5847 = vadd.f32 %v5734, %v5846
    %5848 = vmatmul.f32.gmra.mxu0 %v5158
    %v5849 = vpop.f32.mrf.mxu0
    %v5850 = vadd.f32 %v5737, %v5849
    %5851 = vmatmul.f32.gmra.mxu0 %v5159
    %v5852 = vpop.f32.mrf.mxu0
    %v5853 = vadd.f32 %v5740, %v5852
    %5854 = vmatmul.f32.gmra.mxu0 %v5160
    %v5855 = vpop.f32.mrf.mxu0
    %v5856 = vadd.f32 %v5743, %v5855
    %5857 = vmatmul.f32.gmra.mxu0 %v5161
    %v5858 = vpop.f32.mrf.mxu0
    %v5859 = vadd.f32 %v5746, %v5858
    %5860 = vmatmul.f32.gmra.mxu0 %v5162
    %v5861 = vpop.f32.mrf.mxu0
    %v5862 = vadd.f32 %v5749, %v5861
    %5863 = vmatmul.f32.gmra.mxu0 %v5163
    %v5864 = vpop.f32.mrf.mxu0
    %v5865 = vadd.f32 %v5752, %v5864
    %5866 = vmatmul.f32.gmra.mxu0 %v5164
    %v5867 = vpop.f32.mrf.mxu0
    %v5868 = vadd.f32 %v5755, %v5867
    %5869 = vmatmul.f32.gmra.mxu0 %v5165
    %v5870 = vpop.f32.mrf.mxu0
    %v5871 = vadd.f32 %v5758, %v5870
    %5872 = vmatmul.f32.gmra.mxu0 %v5166
    %v5873 = vpop.f32.mrf.mxu0
    %v5874 = vadd.f32 %v5761, %v5873
    %5875 = vmatmul.f32.gmra.mxu0 %v5167
    %v5876 = vpop.f32.mrf.mxu0
    %v5877 = vadd.f32 %v5764, %v5876
    %5878 = vmatmul.f32.gmra.mxu0 %v5168
    %v5879 = vpop.f32.mrf.mxu0
    %v5880 = vadd.f32 %v5767, %v5879
    %5881 = vmatmul.f32.gmra.mxu0 %v5169
    %v5882 = vpop.f32.mrf.mxu0
    %v5883 = vadd.f32 %v5770, %v5882
    %5884 = vmatmul.f32.gmra.mxu0 %v5170
    %v5885 = vpop.f32.mrf.mxu0
    %v5886 = vadd.f32 %v5773, %v5885
    %5887 = vmatmul.f32.gmra.mxu0 %v5171
    %v5888 = vpop.f32.mrf.mxu0
    %v5889 = vadd.f32 %v5776, %v5888
    %5890 = vmatmul.f32.gmra.mxu0 %v5172
    %v5891 = vpop.f32.mrf.mxu0
    %v5892 = vadd.f32 %v5779, %v5891
    %5893 = vmatmul.f32.gmra.mxu0 %v5173
    %v5894 = vpop.f32.mrf.mxu0
    %v5895 = vadd.f32 %v5782, %v5894
    %5896 = vmatmul.f32.gmra.mxu0 %v5174
    %v5897 = vpop.f32.mrf.mxu0
    %v5898 = vadd.f32 %v5785, %v5897
    %5899 = vdwg.mxu0
    %5900 = vmatpush.msra.mxu0 %v5383
    %5901 = vmatpush.msra.mxu0 %v5382
    %5902 = vmatpush.msra.mxu0 %v5381
    %5903 = vmatpush.msra.mxu0 %v5380
    %5904 = vmatpush.msra.mxu0 %v5379
    %5905 = vmatpush.msra.mxu0 %v5378
    %5906 = vmatpush.msra.mxu0 %v5377
    %5907 = vmatpush.msra.mxu0 %v5376
    %5908 = vmatpush.msra.mxu0 %v5375
    %5909 = vmatpush.msra.mxu0 %v5374
    %5910 = vmatpush.msra.mxu0 %v5373
    %5911 = vmatpush.msra.mxu0 %v5372
    %5912 = vmatpush.msra.mxu0 %v5371
    %5913 = vmatpush.msra.mxu0 %v5370
    %5914 = vmatpush.msra.mxu0 %v5369
    %5915 = vmatpush.msra.mxu0 %v5368
    %5916 = vmatmul.f32.gmra.mxu0 %v4887
    %v5917 = vpop.f32.mrf.mxu0
    %v5918 = vadd.f32 %v5805, %v5917
    %5919 = vmatmul.f32.gmra.mxu0 %v4888
    %v5920 = vpop.f32.mrf.mxu0
    %v5921 = vadd.f32 %v5808, %v5920
    %5922 = vmatmul.f32.gmra.mxu0 %v4889
    %v5923 = vpop.f32.mrf.mxu0
    %v5924 = vadd.f32 %v5811, %v5923
    %5925 = vmatmul.f32.gmra.mxu0 %v4890
    %v5926 = vpop.f32.mrf.mxu0
    %v5927 = vadd.f32 %v5814, %v5926
    %5928 = vmatmul.f32.gmra.mxu0 %v4891
    %v5929 = vpop.f32.mrf.mxu0
    %v5930 = vadd.f32 %v5817, %v5929
    %5931 = vmatmul.f32.gmra.mxu0 %v4892
    %v5932 = vpop.f32.mrf.mxu0
    %v5933 = vadd.f32 %v5820, %v5932
    %5934 = vmatmul.f32.gmra.mxu0 %v4893
    %v5935 = vpop.f32.mrf.mxu0
    %v5936 = vadd.f32 %v5823, %v5935
    %5937 = vmatmul.f32.gmra.mxu0 %v4894
    %v5938 = vpop.f32.mrf.mxu0
    %v5939 = vadd.f32 %v5826, %v5938
    %5940 = vmatmul.f32.gmra.mxu0 %v4895
    %v5941 = vpop.f32.mrf.mxu0
    %v5942 = vadd.f32 %v5829, %v5941
    %5943 = vmatmul.f32.gmra.mxu0 %v4896
    %v5944 = vpop.f32.mrf.mxu0
    %v5945 = vadd.f32 %v5832, %v5944
    %5946 = vmatmul.f32.gmra.mxu0 %v4897
    %v5947 = vpop.f32.mrf.mxu0
    %v5948 = vadd.f32 %v5835, %v5947
    %5949 = vmatmul.f32.gmra.mxu0 %v4898
    %v5950 = vpop.f32.mrf.mxu0
    %v5951 = vadd.f32 %v5838, %v5950
    %5952 = vmatmul.f32.gmra.mxu0 %v4899
    %v5953 = vpop.f32.mrf.mxu0
    %v5954 = vadd.f32 %v5841, %v5953
    %5955 = vmatmul.f32.gmra.mxu0 %v4900
    %v5956 = vpop.f32.mrf.mxu0
    %v5957 = vadd.f32 %v5844, %v5956
    %5958 = vmatmul.f32.gmra.mxu0 %v4901
    %v5959 = vpop.f32.mrf.mxu0
    %v5960 = vadd.f32 %v5847, %v5959
    %5961 = vmatmul.f32.gmra.mxu0 %v4902
    %v5962 = vpop.f32.mrf.mxu0
    %v5963 = vadd.f32 %v5850, %v5962
    %5964 = vmatmul.f32.gmra.mxu0 %v4903
    %v5965 = vpop.f32.mrf.mxu0
    %v5966 = vadd.f32 %v5853, %v5965
    %5967 = vmatmul.f32.gmra.mxu0 %v4904
    %v5968 = vpop.f32.mrf.mxu0
    %v5969 = vadd.f32 %v5856, %v5968
    %5970 = vmatmul.f32.gmra.mxu0 %v4905
    %v5971 = vpop.f32.mrf.mxu0
    %v5972 = vadd.f32 %v5859, %v5971
    %5973 = vmatmul.f32.gmra.mxu0 %v4906
    %v5974 = vpop.f32.mrf.mxu0
    %v5975 = vadd.f32 %v5862, %v5974
    %5976 = vmatmul.f32.gmra.mxu0 %v4907
    %v5977 = vpop.f32.mrf.mxu0
    %v5978 = vadd.f32 %v5865, %v5977
    %5979 = vmatmul.f32.gmra.mxu0 %v4908
    %v5980 = vpop.f32.mrf.mxu0
    %v5981 = vadd.f32 %v5868, %v5980
    %5982 = vmatmul.f32.gmra.mxu0 %v4909
    %v5983 = vpop.f32.mrf.mxu0
    %v5984 = vadd.f32 %v5871, %v5983
    %5985 = vmatmul.f32.gmra.mxu0 %v4910
    %v5986 = vpop.f32.mrf.mxu0
    %v5987 = vadd.f32 %v5874, %v5986
    %5988 = vmatmul.f32.gmra.mxu0 %v4911
    %v5989 = vpop.f32.mrf.mxu0
    %v5990 = vadd.f32 %v5877, %v5989
    %5991 = vmatmul.f32.gmra.mxu0 %v4912
    %v5992 = vpop.f32.mrf.mxu0
    %v5993 = vadd.f32 %v5880, %v5992
    %5994 = vmatmul.f32.gmra.mxu0 %v4913
    %v5995 = vpop.f32.mrf.mxu0
    %v5996 = vadd.f32 %v5883, %v5995
    %5997 = vmatmul.f32.gmra.mxu0 %v4914
    %v5998 = vpop.f32.mrf.mxu0
    %v5999 = vadd.f32 %v5886, %v5998
    %6000 = vmatmul.f32.gmra.mxu0 %v4915
    %v6001 = vpop.f32.mrf.mxu0
    %v6002 = vadd.f32 %v5889, %v6001
    %6003 = vmatmul.f32.gmra.mxu0 %v4916
    %v6004 = vpop.f32.mrf.mxu0
    %v6005 = vadd.f32 %v5892, %v6004
    %6006 = vmatmul.f32.gmra.mxu0 %v4917
    %v6007 = vpop.f32.mrf.mxu0
    %v6008 = vadd.f32 %v5895, %v6007
    %6009 = vmatmul.f32.gmra.mxu0 %v4918
    %v6010 = vpop.f32.mrf.mxu0
    %v6011 = vadd.f32 %v5898, %v6010
    %6012 = vdwg.mxu0
    %6013 = vmatpush.msra.mxu0 %v5399
    %6014 = vmatpush.msra.mxu0 %v5398
    %6015 = vmatpush.msra.mxu0 %v5397
    %6016 = vmatpush.msra.mxu0 %v5396
    %6017 = vmatpush.msra.mxu0 %v5395
    %6018 = vmatpush.msra.mxu0 %v5394
    %6019 = vmatpush.msra.mxu0 %v5393
    %6020 = vmatpush.msra.mxu0 %v5392
    %6021 = vmatpush.msra.mxu0 %v5391
    %6022 = vmatpush.msra.mxu0 %v5390
    %6023 = vmatpush.msra.mxu0 %v5389
    %6024 = vmatpush.msra.mxu0 %v5388
    %6025 = vmatpush.msra.mxu0 %v5387
    %6026 = vmatpush.msra.mxu0 %v5386
    %6027 = vmatpush.msra.mxu0 %v5385
    %6028 = vmatpush.msra.mxu0 %v5384
    %6029 = vmatmul.f32.gmra.mxu0 %v5175
    %v6030 = vpop.f32.mrf.mxu0
    %v6031 = vadd.f32 %v5918, %v6030
    %6032 = vmatmul.f32.gmra.mxu0 %v5176
    %v6033 = vpop.f32.mrf.mxu0
    %v6034 = vadd.f32 %v5921, %v6033
    %6035 = vmatmul.f32.gmra.mxu0 %v5177
    %v6036 = vpop.f32.mrf.mxu0
    %v6037 = vadd.f32 %v5924, %v6036
    %6038 = vmatmul.f32.gmra.mxu0 %v5178
    %v6039 = vpop.f32.mrf.mxu0
    %v6040 = vadd.f32 %v5927, %v6039
    %6041 = vmatmul.f32.gmra.mxu0 %v5179
    %v6042 = vpop.f32.mrf.mxu0
    %v6043 = vadd.f32 %v5930, %v6042
    %6044 = vmatmul.f32.gmra.mxu0 %v5180
    %v6045 = vpop.f32.mrf.mxu0
    %v6046 = vadd.f32 %v5933, %v6045
    %6047 = vmatmul.f32.gmra.mxu0 %v5181
    %v6048 = vpop.f32.mrf.mxu0
    %v6049 = vadd.f32 %v5936, %v6048
    %6050 = vmatmul.f32.gmra.mxu0 %v5182
    %v6051 = vpop.f32.mrf.mxu0
    %v6052 = vadd.f32 %v5939, %v6051
    %6053 = vmatmul.f32.gmra.mxu0 %v5183
    %v6054 = vpop.f32.mrf.mxu0
    %v6055 = vadd.f32 %v5942, %v6054
    %6056 = vmatmul.f32.gmra.mxu0 %v5184
    %v6057 = vpop.f32.mrf.mxu0
    %v6058 = vadd.f32 %v5945, %v6057
    %6059 = vmatmul.f32.gmra.mxu0 %v5185
    %v6060 = vpop.f32.mrf.mxu0
    %v6061 = vadd.f32 %v5948, %v6060
    %6062 = vmatmul.f32.gmra.mxu0 %v5186
    %v6063 = vpop.f32.mrf.mxu0
    %v6064 = vadd.f32 %v5951, %v6063
    %6065 = vmatmul.f32.gmra.mxu0 %v5187
    %v6066 = vpop.f32.mrf.mxu0
    %v6067 = vadd.f32 %v5954, %v6066
    %6068 = vmatmul.f32.gmra.mxu0 %v5188
    %v6069 = vpop.f32.mrf.mxu0
    %v6070 = vadd.f32 %v5957, %v6069
    %6071 = vmatmul.f32.gmra.mxu0 %v5189
    %v6072 = vpop.f32.mrf.mxu0
    %v6073 = vadd.f32 %v5960, %v6072
    %6074 = vmatmul.f32.gmra.mxu0 %v5190
    %v6075 = vpop.f32.mrf.mxu0
    %v6076 = vadd.f32 %v5963, %v6075
    %6077 = vmatmul.f32.gmra.mxu0 %v5191
    %v6078 = vpop.f32.mrf.mxu0
    %v6079 = vadd.f32 %v5966, %v6078
    %6080 = vmatmul.f32.gmra.mxu0 %v5192
    %v6081 = vpop.f32.mrf.mxu0
    %v6082 = vadd.f32 %v5969, %v6081
    %6083 = vmatmul.f32.gmra.mxu0 %v5193
    %v6084 = vpop.f32.mrf.mxu0
    %v6085 = vadd.f32 %v5972, %v6084
    %6086 = vmatmul.f32.gmra.mxu0 %v5194
    %v6087 = vpop.f32.mrf.mxu0
    %v6088 = vadd.f32 %v5975, %v6087
    %6089 = vmatmul.f32.gmra.mxu0 %v5195
    %v6090 = vpop.f32.mrf.mxu0
    %v6091 = vadd.f32 %v5978, %v6090
    %6092 = vmatmul.f32.gmra.mxu0 %v5196
    %v6093 = vpop.f32.mrf.mxu0
    %v6094 = vadd.f32 %v5981, %v6093
    %6095 = vmatmul.f32.gmra.mxu0 %v5197
    %v6096 = vpop.f32.mrf.mxu0
    %v6097 = vadd.f32 %v5984, %v6096
    %6098 = vmatmul.f32.gmra.mxu0 %v5198
    %v6099 = vpop.f32.mrf.mxu0
    %v6100 = vadd.f32 %v5987, %v6099
    %6101 = vmatmul.f32.gmra.mxu0 %v5199
    %v6102 = vpop.f32.mrf.mxu0
    %v6103 = vadd.f32 %v5990, %v6102
    %6104 = vmatmul.f32.gmra.mxu0 %v5200
    %v6105 = vpop.f32.mrf.mxu0
    %v6106 = vadd.f32 %v5993, %v6105
    %6107 = vmatmul.f32.gmra.mxu0 %v5201
    %v6108 = vpop.f32.mrf.mxu0
    %v6109 = vadd.f32 %v5996, %v6108
    %6110 = vmatmul.f32.gmra.mxu0 %v5202
    %v6111 = vpop.f32.mrf.mxu0
    %v6112 = vadd.f32 %v5999, %v6111
    %6113 = vmatmul.f32.gmra.mxu0 %v5203
    %v6114 = vpop.f32.mrf.mxu0
    %v6115 = vadd.f32 %v6002, %v6114
    %6116 = vmatmul.f32.gmra.mxu0 %v5204
    %v6117 = vpop.f32.mrf.mxu0
    %v6118 = vadd.f32 %v6005, %v6117
    %6119 = vmatmul.f32.gmra.mxu0 %v5205
    %v6120 = vpop.f32.mrf.mxu0
    %v6121 = vadd.f32 %v6008, %v6120
    %6122 = vmatmul.f32.gmra.mxu0 %v5206
    %v6123 = vpop.f32.mrf.mxu0
    %v6124 = vadd.f32 %v6011, %v6123
    %6125 = vdwg.mxu0
    %6126 = vmatpush.msra.mxu0 %v5415
    %6127 = vmatpush.msra.mxu0 %v5414
    %6128 = vmatpush.msra.mxu0 %v5413
    %6129 = vmatpush.msra.mxu0 %v5412
    %6130 = vmatpush.msra.mxu0 %v5411
    %6131 = vmatpush.msra.mxu0 %v5410
    %6132 = vmatpush.msra.mxu0 %v5409
    %6133 = vmatpush.msra.mxu0 %v5408
    %6134 = vmatpush.msra.mxu0 %v5407
    %6135 = vmatpush.msra.mxu0 %v5406
    %6136 = vmatpush.msra.mxu0 %v5405
    %6137 = vmatpush.msra.mxu0 %v5404
    %6138 = vmatpush.msra.mxu0 %v5403
    %6139 = vmatpush.msra.mxu0 %v5402
    %6140 = vmatpush.msra.mxu0 %v5401
    %6141 = vmatpush.msra.mxu0 %v5400
    %6142 = vmatmul.f32.gmra.mxu0 %v5207
    %v6143 = vpop.f32.mrf.mxu0
    %v6144 = vadd.f32 %v6031, %v6143
    %6145 = vmatmul.f32.gmra.mxu0 %v5208
    %v6146 = vpop.f32.mrf.mxu0
    %v6147 = vadd.f32 %v6034, %v6146
    %6148 = vmatmul.f32.gmra.mxu0 %v5209
    %v6149 = vpop.f32.mrf.mxu0
    %v6150 = vadd.f32 %v6037, %v6149
    %6151 = vmatmul.f32.gmra.mxu0 %v5210
    %v6152 = vpop.f32.mrf.mxu0
    %v6153 = vadd.f32 %v6040, %v6152
    %6154 = vmatmul.f32.gmra.mxu0 %v5211
    %v6155 = vpop.f32.mrf.mxu0
    %v6156 = vadd.f32 %v6043, %v6155
    %6157 = vmatmul.f32.gmra.mxu0 %v5212
    %v6158 = vpop.f32.mrf.mxu0
    %v6159 = vadd.f32 %v6046, %v6158
    %6160 = vmatmul.f32.gmra.mxu0 %v5213
    %v6161 = vpop.f32.mrf.mxu0
    %v6162 = vadd.f32 %v6049, %v6161
    %6163 = vmatmul.f32.gmra.mxu0 %v5214
    %v6164 = vpop.f32.mrf.mxu0
    %v6165 = vadd.f32 %v6052, %v6164
    %6166 = vmatmul.f32.gmra.mxu0 %v5215
    %v6167 = vpop.f32.mrf.mxu0
    %v6168 = vadd.f32 %v6055, %v6167
    %6169 = vmatmul.f32.gmra.mxu0 %v5216
    %v6170 = vpop.f32.mrf.mxu0
    %v6171 = vadd.f32 %v6058, %v6170
    %6172 = vmatmul.f32.gmra.mxu0 %v5217
    %v6173 = vpop.f32.mrf.mxu0
    %v6174 = vadd.f32 %v6061, %v6173
    %6175 = vmatmul.f32.gmra.mxu0 %v5218
    %v6176 = vpop.f32.mrf.mxu0
    %v6177 = vadd.f32 %v6064, %v6176
    %6178 = vmatmul.f32.gmra.mxu0 %v5219
    %v6179 = vpop.f32.mrf.mxu0
    %v6180 = vadd.f32 %v6067, %v6179
    %6181 = vmatmul.f32.gmra.mxu0 %v5220
    %v6182 = vpop.f32.mrf.mxu0
    %v6183 = vadd.f32 %v6070, %v6182
    %6184 = vmatmul.f32.gmra.mxu0 %v5221
    %v6185 = vpop.f32.mrf.mxu0
    %v6186 = vadd.f32 %v6073, %v6185
    %6187 = vmatmul.f32.gmra.mxu0 %v5222
    %v6188 = vpop.f32.mrf.mxu0
    %v6189 = vadd.f32 %v6076, %v6188
    %6190 = vmatmul.f32.gmra.mxu0 %v5223
    %v6191 = vpop.f32.mrf.mxu0
    %v6192 = vadd.f32 %v6079, %v6191
    %6193 = vmatmul.f32.gmra.mxu0 %v5224
    %v6194 = vpop.f32.mrf.mxu0
    %v6195 = vadd.f32 %v6082, %v6194
    %6196 = vmatmul.f32.gmra.mxu0 %v5225
    %v6197 = vpop.f32.mrf.mxu0
    %v6198 = vadd.f32 %v6085, %v6197
    %6199 = vmatmul.f32.gmra.mxu0 %v5226
    %v6200 = vpop.f32.mrf.mxu0
    %v6201 = vadd.f32 %v6088, %v6200
    %6202 = vmatmul.f32.gmra.mxu0 %v5227
    %v6203 = vpop.f32.mrf.mxu0
    %v6204 = vadd.f32 %v6091, %v6203
    %6205 = vmatmul.f32.gmra.mxu0 %v5228
    %v6206 = vpop.f32.mrf.mxu0
    %v6207 = vadd.f32 %v6094, %v6206
    %6208 = vmatmul.f32.gmra.mxu0 %v5229
    %v6209 = vpop.f32.mrf.mxu0
    %v6210 = vadd.f32 %v6097, %v6209
    %6211 = vmatmul.f32.gmra.mxu0 %v5230
    %v6212 = vpop.f32.mrf.mxu0
    %v6213 = vadd.f32 %v6100, %v6212
    %6214 = vmatmul.f32.gmra.mxu0 %v5231
    %v6215 = vpop.f32.mrf.mxu0
    %v6216 = vadd.f32 %v6103, %v6215
    %6217 = vmatmul.f32.gmra.mxu0 %v5232
    %v6218 = vpop.f32.mrf.mxu0
    %v6219 = vadd.f32 %v6106, %v6218
    %6220 = vmatmul.f32.gmra.mxu0 %v5233
    %v6221 = vpop.f32.mrf.mxu0
    %v6222 = vadd.f32 %v6109, %v6221
    %6223 = vmatmul.f32.gmra.mxu0 %v5234
    %v6224 = vpop.f32.mrf.mxu0
    %v6225 = vadd.f32 %v6112, %v6224
    %6226 = vmatmul.f32.gmra.mxu0 %v5235
    %v6227 = vpop.f32.mrf.mxu0
    %v6228 = vadd.f32 %v6115, %v6227
    %6229 = vmatmul.f32.gmra.mxu0 %v5236
    %v6230 = vpop.f32.mrf.mxu0
    %v6231 = vadd.f32 %v6118, %v6230
    %6232 = vmatmul.f32.gmra.mxu0 %v5237
    %v6233 = vpop.f32.mrf.mxu0
    %v6234 = vadd.f32 %v6121, %v6233
    %6235 = vmatmul.f32.gmra.mxu0 %v5238
    %v6236 = vpop.f32.mrf.mxu0
    %v6237 = vadd.f32 %v6124, %v6236
    %6238 = vdwg.mxu0
    %6239 = vmatpush.msra.mxu0 %v5431
    %6240 = vmatpush.msra.mxu0 %v5430
    %6241 = vmatpush.msra.mxu0 %v5429
    %6242 = vmatpush.msra.mxu0 %v5428
    %6243 = vmatpush.msra.mxu0 %v5427
    %6244 = vmatpush.msra.mxu0 %v5426
    %6245 = vmatpush.msra.mxu0 %v5425
    %6246 = vmatpush.msra.mxu0 %v5424
    %6247 = vmatpush.msra.mxu0 %v5423
    %6248 = vmatpush.msra.mxu0 %v5422
    %6249 = vmatpush.msra.mxu0 %v5421
    %6250 = vmatpush.msra.mxu0 %v5420
    %6251 = vmatpush.msra.mxu0 %v5419
    %6252 = vmatpush.msra.mxu0 %v5418
    %6253 = vmatpush.msra.mxu0 %v5417
    %6254 = vmatpush.msra.mxu0 %v5416
    %6255 = vmatmul.f32.gmra.mxu0 %v5239
    %v6256 = vpop.f32.mrf.mxu0
    %v6257 = vadd.f32 %v6144, %v6256
    %6258 = vmatmul.f32.gmra.mxu0 %v5240
    %v6259 = vpop.f32.mrf.mxu0
    %v6260 = vadd.f32 %v6147, %v6259
    %6261 = vmatmul.f32.gmra.mxu0 %v5241
    %v6262 = vpop.f32.mrf.mxu0
    %v6263 = vadd.f32 %v6150, %v6262
    %6264 = vmatmul.f32.gmra.mxu0 %v5242
    %v6265 = vpop.f32.mrf.mxu0
    %v6266 = vadd.f32 %v6153, %v6265
    %6267 = vmatmul.f32.gmra.mxu0 %v5243
    %v6268 = vpop.f32.mrf.mxu0
    %v6269 = vadd.f32 %v6156, %v6268
    %6270 = vmatmul.f32.gmra.mxu0 %v5244
    %v6271 = vpop.f32.mrf.mxu0
    %v6272 = vadd.f32 %v6159, %v6271
    %6273 = vmatmul.f32.gmra.mxu0 %v5245
    %v6274 = vpop.f32.mrf.mxu0
    %v6275 = vadd.f32 %v6162, %v6274
    %6276 = vmatmul.f32.gmra.mxu0 %v5246
    %v6277 = vpop.f32.mrf.mxu0
    %v6278 = vadd.f32 %v6165, %v6277
    %6279 = vmatmul.f32.gmra.mxu0 %v5247
    %v6280 = vpop.f32.mrf.mxu0
    %v6281 = vadd.f32 %v6168, %v6280
    %6282 = vmatmul.f32.gmra.mxu0 %v5248
    %v6283 = vpop.f32.mrf.mxu0
    %v6284 = vadd.f32 %v6171, %v6283
    %6285 = vmatmul.f32.gmra.mxu0 %v5249
    %v6286 = vpop.f32.mrf.mxu0
    %v6287 = vadd.f32 %v6174, %v6286
    %6288 = vmatmul.f32.gmra.mxu0 %v5250
    %v6289 = vpop.f32.mrf.mxu0
    %v6290 = vadd.f32 %v6177, %v6289
    %6291 = vmatmul.f32.gmra.mxu0 %v5251
    %v6292 = vpop.f32.mrf.mxu0
    %v6293 = vadd.f32 %v6180, %v6292
    %6294 = vmatmul.f32.gmra.mxu0 %v5252
    %v6295 = vpop.f32.mrf.mxu0
    %v6296 = vadd.f32 %v6183, %v6295
    %6297 = vmatmul.f32.gmra.mxu0 %v5253
    %v6298 = vpop.f32.mrf.mxu0
    %v6299 = vadd.f32 %v6186, %v6298
    %6300 = vmatmul.f32.gmra.mxu0 %v5254
    %v6301 = vpop.f32.mrf.mxu0
    %v6302 = vadd.f32 %v6189, %v6301
    %6303 = vmatmul.f32.gmra.mxu0 %v5255
    %v6304 = vpop.f32.mrf.mxu0
    %v6305 = vadd.f32 %v6192, %v6304
    %6306 = vmatmul.f32.gmra.mxu0 %v5256
    %v6307 = vpop.f32.mrf.mxu0
    %v6308 = vadd.f32 %v6195, %v6307
    %6309 = vmatmul.f32.gmra.mxu0 %v5257
    %v6310 = vpop.f32.mrf.mxu0
    %v6311 = vadd.f32 %v6198, %v6310
    %6312 = vmatmul.f32.gmra.mxu0 %v5258
    %v6313 = vpop.f32.mrf.mxu0
    %v6314 = vadd.f32 %v6201, %v6313
    %6315 = vmatmul.f32.gmra.mxu0 %v5259
    %v6316 = vpop.f32.mrf.mxu0
    %v6317 = vadd.f32 %v6204, %v6316
    %6318 = vmatmul.f32.gmra.mxu0 %v5260
    %v6319 = vpop.f32.mrf.mxu0
    %v6320 = vadd.f32 %v6207, %v6319
    %6321 = vmatmul.f32.gmra.mxu0 %v5261
    %v6322 = vpop.f32.mrf.mxu0
    %v6323 = vadd.f32 %v6210, %v6322
    %6324 = vmatmul.f32.gmra.mxu0 %v5262
    %v6325 = vpop.f32.mrf.mxu0
    %v6326 = vadd.f32 %v6213, %v6325
    %6327 = vmatmul.f32.gmra.mxu0 %v5263
    %v6328 = vpop.f32.mrf.mxu0
    %v6329 = vadd.f32 %v6216, %v6328
    %6330 = vmatmul.f32.gmra.mxu0 %v5264
    %v6331 = vpop.f32.mrf.mxu0
    %v6332 = vadd.f32 %v6219, %v6331
    %6333 = vmatmul.f32.gmra.mxu0 %v5265
    %v6334 = vpop.f32.mrf.mxu0
    %v6335 = vadd.f32 %v6222, %v6334
    %6336 = vmatmul.f32.gmra.mxu0 %v5266
    %v6337 = vpop.f32.mrf.mxu0
    %v6338 = vadd.f32 %v6225, %v6337
    %6339 = vmatmul.f32.gmra.mxu0 %v5267
    %v6340 = vpop.f32.mrf.mxu0
    %v6341 = vadd.f32 %v6228, %v6340
    %6342 = vmatmul.f32.gmra.mxu0 %v5268
    %v6343 = vpop.f32.mrf.mxu0
    %v6344 = vadd.f32 %v6231, %v6343
    %6345 = vmatmul.f32.gmra.mxu0 %v5269
    %v6346 = vpop.f32.mrf.mxu0
    %v6347 = vadd.f32 %v6234, %v6346
    %6348 = vmatmul.f32.gmra.mxu0 %v5270
    %v6349 = vpop.f32.mrf.mxu0
    %v6350 = vadd.f32 %v6237, %v6349
    %6351 = vdwg.mxu0
    %6352 = vmatpush.msra.mxu0 %v5447
    %6353 = vmatpush.msra.mxu0 %v5446
    %6354 = vmatpush.msra.mxu0 %v5445
    %6355 = vmatpush.msra.mxu0 %v5444
    %6356 = vmatpush.msra.mxu0 %v5443
    %6357 = vmatpush.msra.mxu0 %v5442
    %6358 = vmatpush.msra.mxu0 %v5441
    %6359 = vmatpush.msra.mxu0 %v5440
    %6360 = vmatpush.msra.mxu0 %v5439
    %6361 = vmatpush.msra.mxu0 %v5438
    %6362 = vmatpush.msra.mxu0 %v5437
    %6363 = vmatpush.msra.mxu0 %v5436
    %6364 = vmatpush.msra.mxu0 %v5435
    %6365 = vmatpush.msra.mxu0 %v5434
    %6366 = vmatpush.msra.mxu0 %v5433
    %6367 = vmatpush.msra.mxu0 %v5432
    %6368 = vmatmul.f32.gmra.mxu0 %v5271
    %v6369 = vpop.f32.mrf.mxu0
    %v6370 = vadd.f32 %v6257, %v6369
    %6371 = vmatmul.f32.gmra.mxu0 %v5272
    %v6372 = vpop.f32.mrf.mxu0
    %v6373 = vadd.f32 %v6260, %v6372
    %6374 = vmatmul.f32.gmra.mxu0 %v5273
    %v6375 = vpop.f32.mrf.mxu0
    %v6376 = vadd.f32 %v6263, %v6375
    %6377 = vmatmul.f32.gmra.mxu0 %v5274
    %v6378 = vpop.f32.mrf.mxu0
    %v6379 = vadd.f32 %v6266, %v6378
    %6380 = vmatmul.f32.gmra.mxu0 %v5275
    %v6381 = vpop.f32.mrf.mxu0
    %v6382 = vadd.f32 %v6269, %v6381
    %6383 = vmatmul.f32.gmra.mxu0 %v5276
    %v6384 = vpop.f32.mrf.mxu0
    %v6385 = vadd.f32 %v6272, %v6384
    %6386 = vmatmul.f32.gmra.mxu0 %v5277
    %v6387 = vpop.f32.mrf.mxu0
    %v6388 = vadd.f32 %v6275, %v6387
    %6389 = vmatmul.f32.gmra.mxu0 %v5278
    %v6390 = vpop.f32.mrf.mxu0
    %v6391 = vadd.f32 %v6278, %v6390
    %6392 = vmatmul.f32.gmra.mxu0 %v5279
    %v6393 = vpop.f32.mrf.mxu0
    %v6394 = vadd.f32 %v6281, %v6393
    %6395 = vmatmul.f32.gmra.mxu0 %v5280
    %v6396 = vpop.f32.mrf.mxu0
    %v6397 = vadd.f32 %v6284, %v6396
    %6398 = vmatmul.f32.gmra.mxu0 %v5281
    %v6399 = vpop.f32.mrf.mxu0
    %v6400 = vadd.f32 %v6287, %v6399
    %6401 = vmatmul.f32.gmra.mxu0 %v5282
    %v6402 = vpop.f32.mrf.mxu0
    %v6403 = vadd.f32 %v6290, %v6402
    %6404 = vmatmul.f32.gmra.mxu0 %v5283
    %v6405 = vpop.f32.mrf.mxu0
    %v6406 = vadd.f32 %v6293, %v6405
    %6407 = vmatmul.f32.gmra.mxu0 %v5284
    %v6408 = vpop.f32.mrf.mxu0
    %v6409 = vadd.f32 %v6296, %v6408
    %6410 = vmatmul.f32.gmra.mxu0 %v5285
    %v6411 = vpop.f32.mrf.mxu0
    %v6412 = vadd.f32 %v6299, %v6411
    %6413 = vmatmul.f32.gmra.mxu0 %v5286
    %v6414 = vpop.f32.mrf.mxu0
    %v6415 = vadd.f32 %v6302, %v6414
    %6416 = vmatmul.f32.gmra.mxu0 %v5287
    %v6417 = vpop.f32.mrf.mxu0
    %v6418 = vadd.f32 %v6305, %v6417
    %6419 = vmatmul.f32.gmra.mxu0 %v5288
    %v6420 = vpop.f32.mrf.mxu0
    %v6421 = vadd.f32 %v6308, %v6420
    %6422 = vmatmul.f32.gmra.mxu0 %v5289
    %v6423 = vpop.f32.mrf.mxu0
    %v6424 = vadd.f32 %v6311, %v6423
    %6425 = vmatmul.f32.gmra.mxu0 %v5290
    %v6426 = vpop.f32.mrf.mxu0
    %v6427 = vadd.f32 %v6314, %v6426
    %6428 = vmatmul.f32.gmra.mxu0 %v5291
    %v6429 = vpop.f32.mrf.mxu0
    %v6430 = vadd.f32 %v6317, %v6429
    %6431 = vmatmul.f32.gmra.mxu0 %v5292
    %v6432 = vpop.f32.mrf.mxu0
    %v6433 = vadd.f32 %v6320, %v6432
    %6434 = vmatmul.f32.gmra.mxu0 %v5293
    %v6435 = vpop.f32.mrf.mxu0
    %v6436 = vadd.f32 %v6323, %v6435
    %6437 = vmatmul.f32.gmra.mxu0 %v5294
    %v6438 = vpop.f32.mrf.mxu0
    %v6439 = vadd.f32 %v6326, %v6438
    %6440 = vmatmul.f32.gmra.mxu0 %v5295
    %v6441 = vpop.f32.mrf.mxu0
    %v6442 = vadd.f32 %v6329, %v6441
    %6443 = vmatmul.f32.gmra.mxu0 %v5296
    %v6444 = vpop.f32.mrf.mxu0
    %v6445 = vadd.f32 %v6332, %v6444
    %6446 = vmatmul.f32.gmra.mxu0 %v5297
    %v6447 = vpop.f32.mrf.mxu0
    %v6448 = vadd.f32 %v6335, %v6447
    %6449 = vmatmul.f32.gmra.mxu0 %v5298
    %v6450 = vpop.f32.mrf.mxu0
    %v6451 = vadd.f32 %v6338, %v6450
    %6452 = vmatmul.f32.gmra.mxu0 %v5299
    %v6453 = vpop.f32.mrf.mxu0
    %v6454 = vadd.f32 %v6341, %v6453
    %6455 = vmatmul.f32.gmra.mxu0 %v5300
    %v6456 = vpop.f32.mrf.mxu0
    %v6457 = vadd.f32 %v6344, %v6456
    %6458 = vmatmul.f32.gmra.mxu0 %v5301
    %v6459 = vpop.f32.mrf.mxu0
    %v6460 = vadd.f32 %v6347, %v6459
    %6461 = vmatmul.f32.gmra.mxu0 %v5302
    %v6462 = vpop.f32.mrf.mxu0
    %v6463 = vadd.f32 %v6350, %v6462
    %6464 = vdwg.mxu0
    %s6465 = scalar_lea.vmem %s2, 2
    %v6466 = vld [vmem:[%s6465] sm:$0x1]
    %v6468 = vperm.slane %v6466, 0
    %v6470 = vmul.f32 %v6370, %v6468
    %v6471 = vmul.f32 %v6373, %v6468
    %v6472 = vmul.f32 %v6376, %v6468
    %v6473 = vmul.f32 %v6379, %v6468
    %v6474 = vmul.f32 %v6382, %v6468
    %v6475 = vmul.f32 %v6385, %v6468
    %v6476 = vmul.f32 %v6388, %v6468
    %v6477 = vmul.f32 %v6391, %v6468
    %v6478 = vmul.f32 %v6394, %v6468
    %v6479 = vmul.f32 %v6397, %v6468
    %v6480 = vmul.f32 %v6400, %v6468
    %v6481 = vmul.f32 %v6403, %v6468
    %v6482 = vmul.f32 %v6406, %v6468
    %v6483 = vmul.f32 %v6409, %v6468
    %v6484 = vmul.f32 %v6412, %v6468
    %v6485 = vmul.f32 %v6415, %v6468
    %v6486 = vmul.f32 %v6418, %v6468
    %v6487 = vmul.f32 %v6421, %v6468
    %v6488 = vmul.f32 %v6424, %v6468
    %v6489 = vmul.f32 %v6427, %v6468
    %v6490 = vmul.f32 %v6430, %v6468
    %v6491 = vmul.f32 %v6433, %v6468
    %v6492 = vmul.f32 %v6436, %v6468
    %v6493 = vmul.f32 %v6439, %v6468
    %v6494 = vmul.f32 %v6442, %v6468
    %v6495 = vmul.f32 %v6445, %v6468
    %v6496 = vmul.f32 %v6448, %v6468
    %v6497 = vmul.f32 %v6451, %v6468
    %v6498 = vmul.f32 %v6454, %v6468
    %v6499 = vmul.f32 %v6457, %v6468
    %v6500 = vmul.f32 %v6460, %v6468
    %v6501 = vmul.f32 %v6463, %v6468
    %s6502 = scalar_lea.vmem %s3, 2
    %v6503 = vld [vmem:[%s6502] sm:$0x1]
    %v6505 = vperm.slane %v6503, 0
    %v6507 = vadd.f32 %v6470, %v6505
    %v6508 = vadd.f32 %v6471, %v6505
    %v6509 = vadd.f32 %v6472, %v6505
    %v6510 = vadd.f32 %v6473, %v6505
    %v6511 = vadd.f32 %v6474, %v6505
    %v6512 = vadd.f32 %v6475, %v6505
    %v6513 = vadd.f32 %v6476, %v6505
    %v6514 = vadd.f32 %v6477, %v6505
    %v6515 = vadd.f32 %v6478, %v6505
    %v6516 = vadd.f32 %v6479, %v6505
    %v6517 = vadd.f32 %v6480, %v6505
    %v6518 = vadd.f32 %v6481, %v6505
    %v6519 = vadd.f32 %v6482, %v6505
    %v6520 = vadd.f32 %v6483, %v6505
    %v6521 = vadd.f32 %v6484, %v6505
    %v6522 = vadd.f32 %v6485, %v6505
    %v6523 = vadd.f32 %v6486, %v6505
    %v6524 = vadd.f32 %v6487, %v6505
    %v6525 = vadd.f32 %v6488, %v6505
    %v6526 = vadd.f32 %v6489, %v6505
    %v6527 = vadd.f32 %v6490, %v6505
    %v6528 = vadd.f32 %v6491, %v6505
    %v6529 = vadd.f32 %v6492, %v6505
    %v6530 = vadd.f32 %v6493, %v6505
    %v6531 = vadd.f32 %v6494, %v6505
    %v6532 = vadd.f32 %v6495, %v6505
    %v6533 = vadd.f32 %v6496, %v6505
    %v6534 = vadd.f32 %v6497, %v6505
    %v6535 = vadd.f32 %v6498, %v6505
    %v6536 = vadd.f32 %v6499, %v6505
    %v6537 = vadd.f32 %v6500, %v6505
    %v6538 = vadd.f32 %v6501, %v6505
    %v6539 = vmax.f32 %v6507, 0.0
    %v6540 = vmax.f32 %v6508, 0.0
    %v6541 = vmax.f32 %v6509, 0.0
    %v6542 = vmax.f32 %v6510, 0.0
    %v6543 = vmax.f32 %v6511, 0.0
    %v6544 = vmax.f32 %v6512, 0.0
    %v6545 = vmax.f32 %v6513, 0.0
    %v6546 = vmax.f32 %v6514, 0.0
    %v6547 = vmax.f32 %v6515, 0.0
    %v6548 = vmax.f32 %v6516, 0.0
    %v6549 = vmax.f32 %v6517, 0.0
    %v6550 = vmax.f32 %v6518, 0.0
    %v6551 = vmax.f32 %v6519, 0.0
    %v6552 = vmax.f32 %v6520, 0.0
    %v6553 = vmax.f32 %v6521, 0.0
    %v6554 = vmax.f32 %v6522, 0.0
    %v6555 = vmax.f32 %v6523, 0.0
    %v6556 = vmax.f32 %v6524, 0.0
    %v6557 = vmax.f32 %v6525, 0.0
    %v6558 = vmax.f32 %v6526, 0.0
    %v6559 = vmax.f32 %v6527, 0.0
    %v6560 = vmax.f32 %v6528, 0.0
    %v6561 = vmax.f32 %v6529, 0.0
    %v6562 = vmax.f32 %v6530, 0.0
    %v6563 = vmax.f32 %v6531, 0.0
    %v6564 = vmax.f32 %v6532, 0.0
    %v6565 = vmax.f32 %v6533, 0.0
    %v6566 = vmax.f32 %v6534, 0.0
    %v6567 = vmax.f32 %v6535, 0.0
    %v6568 = vmax.f32 %v6536, 0.0
    %v6569 = vmax.f32 %v6537, 0.0
    %v6570 = vmax.f32 %v6538, 0.0
    %v6571 = vadd.f32 %v6539, %v39
    %v6572 = vadd.f32 %v6540, %v40
    %v6573 = vadd.f32 %v6541, %v41
    %v6574 = vadd.f32 %v6542, %v42
    %v6575 = vadd.f32 %v6543, %v43
    %v6576 = vadd.f32 %v6544, %v44
    %v6577 = vadd.f32 %v6545, %v45
    %v6578 = vadd.f32 %v6546, %v46
    %v6579 = vadd.f32 %v6547, %v47
    %v6580 = vadd.f32 %v6548, %v48
    %v6581 = vadd.f32 %v6549, %v49
    %v6582 = vadd.f32 %v6550, %v50
    %v6583 = vadd.f32 %v6551, %v51
    %v6584 = vadd.f32 %v6552, %v52
    %v6585 = vadd.f32 %v6553, %v53
    %v6586 = vadd.f32 %v6554, %v54
    %v6587 = vadd.f32 %v6555, %v55
    %v6588 = vadd.f32 %v6556, %v56
    %v6589 = vadd.f32 %v6557, %v57
    %v6590 = vadd.f32 %v6558, %v58
    %v6591 = vadd.f32 %v6559, %v59
    %v6592 = vadd.f32 %v6560, %v60
    %v6593 = vadd.f32 %v6561, %v61
    %v6594 = vadd.f32 %v6562, %v62
    %v6595 = vadd.f32 %v6563, %v63
    %v6596 = vadd.f32 %v6564, %v64
    %v6597 = vadd.f32 %v6565, %v65
    %v6598 = vadd.f32 %v6566, %v66
    %v6599 = vadd.f32 %v6567, %v67
    %v6600 = vadd.f32 %v6568, %v68
    %v6601 = vadd.f32 %v6569, %v69
    %v6602 = vadd.f32 %v6570, %v70
    %v6603 = vld [vmem:[%s5] sm:$0xff]
    %v6604 = vld [vmem:[%s5 + $0x8] sm:$0xff]
    %v6605 = vld [vmem:[%s5 + $0x10] sm:$0xff]
    %v6606 = vld [vmem:[%s5 + $0x18] sm:$0xff]
    %v6607 = vld [vmem:[%s5 + $0x20] sm:$0xff]
    %v6608 = vld [vmem:[%s5 + $0x28] sm:$0xff]
    %v6609 = vld [vmem:[%s5 + $0x30] sm:$0xff]
    %v6610 = vld [vmem:[%s5 + $0x38] sm:$0xff]
    %v6611 = vld [vmem:[%s5 + $0x40] sm:$0xff]
    %v6612 = vld [vmem:[%s5 + $0x48] sm:$0xff]
    %v6613 = vld [vmem:[%s5 + $0x50] sm:$0xff]
    %v6614 = vld [vmem:[%s5 + $0x58] sm:$0xff]
    %v6615 = vld [vmem:[%s5 + $0x60] sm:$0xff]
    %v6616 = vld [vmem:[%s5 + $0x68] sm:$0xff]
    %v6617 = vld [vmem:[%s5 + $0x70] sm:$0xff]
    %v6618 = vld [vmem:[%s5 + $0x78] sm:$0xff]
    %v6619 = vld [vmem:[%s5 + $0x80] sm:$0xff]
    %v6620 = vld [vmem:[%s5 + $0x88] sm:$0xff]
    %v6621 = vld [vmem:[%s5 + $0x90] sm:$0xff]
    %v6622 = vld [vmem:[%s5 + $0x98] sm:$0xff]
    %v6623 = vld [vmem:[%s5 + $0xa0] sm:$0x1]
    %v6624 = vld [vmem:[%s5 + $0xa8] sm:$0x1]
    %6625 = vmatpush.msra.mxu0 %v6586
    %6626 = vmatpush.msra.mxu0 %v6585
    %6627 = vmatpush.msra.mxu0 %v6584
    %6628 = vmatpush.msra.mxu0 %v6583
    %6629 = vmatpush.msra.mxu0 %v6582
    %6630 = vmatpush.msra.mxu0 %v6581
    %6631 = vmatpush.msra.mxu0 %v6580
    %6632 = vmatpush.msra.mxu0 %v6579
    %6633 = vmatpush.msra.mxu0 %v6578
    %6634 = vmatpush.msra.mxu0 %v6577
    %6635 = vmatpush.msra.mxu0 %v6576
    %6636 = vmatpush.msra.mxu0 %v6575
    %6637 = vmatpush.msra.mxu0 %v6574
    %6638 = vmatpush.msra.mxu0 %v6573
    %6639 = vmatpush.msra.mxu0 %v6572
    %6640 = vmatpush.msra.mxu0 %v6571
    %6641 = vmatmul.f32.gmra.mxu0 %v6603
    %v6642 = vpop.f32.mrf.mxu0
    %v6643 = vadd.f32 0.0, %v6642
    %6644 = vmatmul.f32.gmra.mxu0 %v6605
    %v6645 = vpop.f32.mrf.mxu0
    %v6646 = vadd.f32 0.0, %v6645
    %6647 = vmatmul.f32.gmra.mxu0 %v6607
    %v6648 = vpop.f32.mrf.mxu0
    %v6649 = vadd.f32 0.0, %v6648
    %6650 = vmatmul.f32.gmra.mxu0 %v6609
    %v6651 = vpop.f32.mrf.mxu0
    %v6652 = vadd.f32 0.0, %v6651
    %6653 = vmatmul.f32.gmra.mxu0 %v6611
    %v6654 = vpop.f32.mrf.mxu0
    %v6655 = vadd.f32 0.0, %v6654
    %6656 = vmatmul.f32.gmra.mxu0 %v6613
    %v6657 = vpop.f32.mrf.mxu0
    %v6658 = vadd.f32 0.0, %v6657
    %6659 = vmatmul.f32.gmra.mxu0 %v6615
    %v6660 = vpop.f32.mrf.mxu0
    %v6661 = vadd.f32 0.0, %v6660
    %6662 = vmatmul.f32.gmra.mxu0 %v6617
    %v6663 = vpop.f32.mrf.mxu0
    %v6664 = vadd.f32 0.0, %v6663
    %6665 = vmatmul.f32.gmra.mxu0 %v6619
    %v6666 = vpop.f32.mrf.mxu0
    %v6667 = vadd.f32 0.0, %v6666
    %6668 = vmatmul.f32.gmra.mxu0 %v6621
    %v6669 = vpop.f32.mrf.mxu0
    %v6670 = vadd.f32 0.0, %v6669
    %6671 = vmatmul.f32.gmra.mxu0 %v6623
    %v6672 = vpop.f32.mrf.mxu0
    %v6673 = vadd.f32 0.0, %v6672
    %6674 = vdwg.mxu0
    %6675 = vmatpush.msra.mxu0 %v6602
    %6676 = vmatpush.msra.mxu0 %v6601
    %6677 = vmatpush.msra.mxu0 %v6600
    %6678 = vmatpush.msra.mxu0 %v6599
    %6679 = vmatpush.msra.mxu0 %v6598
    %6680 = vmatpush.msra.mxu0 %v6597
    %6681 = vmatpush.msra.mxu0 %v6596
    %6682 = vmatpush.msra.mxu0 %v6595
    %6683 = vmatpush.msra.mxu0 %v6594
    %6684 = vmatpush.msra.mxu0 %v6593
    %6685 = vmatpush.msra.mxu0 %v6592
    %6686 = vmatpush.msra.mxu0 %v6591
    %6687 = vmatpush.msra.mxu0 %v6590
    %6688 = vmatpush.msra.mxu0 %v6589
    %6689 = vmatpush.msra.mxu0 %v6588
    %6690 = vmatpush.msra.mxu0 %v6587
    %6691 = vmatmul.f32.gmra.mxu0 %v6604
    %v6692 = vpop.f32.mrf.mxu0
    %v6693 = vadd.f32 %v6643, %v6692
    %6694 = vmatmul.f32.gmra.mxu0 %v6606
    %v6695 = vpop.f32.mrf.mxu0
    %v6696 = vadd.f32 %v6646, %v6695
    %6697 = vmatmul.f32.gmra.mxu0 %v6608
    %v6698 = vpop.f32.mrf.mxu0
    %v6699 = vadd.f32 %v6649, %v6698
    %6700 = vmatmul.f32.gmra.mxu0 %v6610
    %v6701 = vpop.f32.mrf.mxu0
    %v6702 = vadd.f32 %v6652, %v6701
    %6703 = vmatmul.f32.gmra.mxu0 %v6612
    %v6704 = vpop.f32.mrf.mxu0
    %v6705 = vadd.f32 %v6655, %v6704
    %6706 = vmatmul.f32.gmra.mxu0 %v6614
    %v6707 = vpop.f32.mrf.mxu0
    %v6708 = vadd.f32 %v6658, %v6707
    %6709 = vmatmul.f32.gmra.mxu0 %v6616
    %v6710 = vpop.f32.mrf.mxu0
    %v6711 = vadd.f32 %v6661, %v6710
    %6712 = vmatmul.f32.gmra.mxu0 %v6618
    %v6713 = vpop.f32.mrf.mxu0
    %v6714 = vadd.f32 %v6664, %v6713
    %6715 = vmatmul.f32.gmra.mxu0 %v6620
    %v6716 = vpop.f32.mrf.mxu0
    %v6717 = vadd.f32 %v6667, %v6716
    %6718 = vmatmul.f32.gmra.mxu0 %v6622
    %v6719 = vpop.f32.mrf.mxu0
    %v6720 = vadd.f32 %v6670, %v6719
    %6721 = vmatmul.f32.gmra.mxu0 %v6624
    %v6722 = vpop.f32.mrf.mxu0
    %v6723 = vadd.f32 %v6673, %v6722
    %6724 = vdwg.mxu0
    %s6725 = scalar_lea.vmem %s5, 176
    %v6726 = vld [vmem:[%s6725] sm:$0xff]
    %v6727 = vld [vmem:[%s6725 + $0x8] sm:$0xff]
    %v6728 = vld [vmem:[%s6725 + $0x10] sm:$0xff]
    %v6729 = vld [vmem:[%s6725 + $0x18] sm:$0xff]
    %v6730 = vld [vmem:[%s6725 + $0x20] sm:$0xff]
    %v6731 = vld [vmem:[%s6725 + $0x28] sm:$0xff]
    %v6732 = vld [vmem:[%s6725 + $0x30] sm:$0xff]
    %v6733 = vld [vmem:[%s6725 + $0x38] sm:$0xff]
    %v6734 = vld [vmem:[%s6725 + $0x40] sm:$0xff]
    %v6735 = vld [vmem:[%s6725 + $0x48] sm:$0xff]
    %v6736 = vld [vmem:[%s6725 + $0x50] sm:$0xff]
    %v6737 = vld [vmem:[%s6725 + $0x58] sm:$0xff]
    %v6738 = vld [vmem:[%s6725 + $0x60] sm:$0xff]
    %v6739 = vld [vmem:[%s6725 + $0x68] sm:$0xff]
    %v6740 = vld [vmem:[%s6725 + $0x70] sm:$0xff]
    %v6741 = vld [vmem:[%s6725 + $0x78] sm:$0xff]
    %v6742 = vld [vmem:[%s6725 + $0x80] sm:$0xff]
    %v6743 = vld [vmem:[%s6725 + $0x88] sm:$0xff]
    %v6744 = vld [vmem:[%s6725 + $0x90] sm:$0xff]
    %v6745 = vld [vmem:[%s6725 + $0x98] sm:$0xff]
    %v6746 = vld [vmem:[%s6725 + $0xa0] sm:$0x1]
    %v6747 = vld [vmem:[%s6725 + $0xa8] sm:$0x1]
    %6748 = vmatpush.msra.mxu0 %v6586
    %6749 = vmatpush.msra.mxu0 %v6585
    %6750 = vmatpush.msra.mxu0 %v6584
    %6751 = vmatpush.msra.mxu0 %v6583
    %6752 = vmatpush.msra.mxu0 %v6582
    %6753 = vmatpush.msra.mxu0 %v6581
    %6754 = vmatpush.msra.mxu0 %v6580
    %6755 = vmatpush.msra.mxu0 %v6579
    %6756 = vmatpush.msra.mxu0 %v6578
    %6757 = vmatpush.msra.mxu0 %v6577
    %6758 = vmatpush.msra.mxu0 %v6576
    %6759 = vmatpush.msra.mxu0 %v6575
    %6760 = vmatpush.msra.mxu0 %v6574
    %6761 = vmatpush.msra.mxu0 %v6573
    %6762 = vmatpush.msra.mxu0 %v6572
    %6763 = vmatpush.msra.mxu0 %v6571
    %6764 = vmatmul.f32.gmra.mxu0 %v6726
    %v6765 = vpop.f32.mrf.mxu0
    %v6766 = vadd.f32 0.0, %v6765
    %6767 = vmatmul.f32.gmra.mxu0 %v6728
    %v6768 = vpop.f32.mrf.mxu0
    %v6769 = vadd.f32 0.0, %v6768
    %6770 = vmatmul.f32.gmra.mxu0 %v6730
    %v6771 = vpop.f32.mrf.mxu0
    %v6772 = vadd.f32 0.0, %v6771
    %6773 = vmatmul.f32.gmra.mxu0 %v6732
    %v6774 = vpop.f32.mrf.mxu0
    %v6775 = vadd.f32 0.0, %v6774
    %6776 = vmatmul.f32.gmra.mxu0 %v6734
    %v6777 = vpop.f32.mrf.mxu0
    %v6778 = vadd.f32 0.0, %v6777
    %6779 = vmatmul.f32.gmra.mxu0 %v6736
    %v6780 = vpop.f32.mrf.mxu0
    %v6781 = vadd.f32 0.0, %v6780
    %6782 = vmatmul.f32.gmra.mxu0 %v6738
    %v6783 = vpop.f32.mrf.mxu0
    %v6784 = vadd.f32 0.0, %v6783
    %6785 = vmatmul.f32.gmra.mxu0 %v6740
    %v6786 = vpop.f32.mrf.mxu0
    %v6787 = vadd.f32 0.0, %v6786
    %6788 = vmatmul.f32.gmra.mxu0 %v6742
    %v6789 = vpop.f32.mrf.mxu0
    %v6790 = vadd.f32 0.0, %v6789
    %6791 = vmatmul.f32.gmra.mxu0 %v6744
    %v6792 = vpop.f32.mrf.mxu0
    %v6793 = vadd.f32 0.0, %v6792
    %6794 = vmatmul.f32.gmra.mxu0 %v6746
    %v6795 = vpop.f32.mrf.mxu0
    %v6796 = vadd.f32 0.0, %v6795
    %6797 = vdwg.mxu0
    %6798 = vmatpush.msra.mxu0 %v6602
    %6799 = vmatpush.msra.mxu0 %v6601
    %6800 = vmatpush.msra.mxu0 %v6600
    %6801 = vmatpush.msra.mxu0 %v6599
    %6802 = vmatpush.msra.mxu0 %v6598
    %6803 = vmatpush.msra.mxu0 %v6597
    %6804 = vmatpush.msra.mxu0 %v6596
    %6805 = vmatpush.msra.mxu0 %v6595
    %6806 = vmatpush.msra.mxu0 %v6594
    %6807 = vmatpush.msra.mxu0 %v6593
    %6808 = vmatpush.msra.mxu0 %v6592
    %6809 = vmatpush.msra.mxu0 %v6591
    %6810 = vmatpush.msra.mxu0 %v6590
    %6811 = vmatpush.msra.mxu0 %v6589
    %6812 = vmatpush.msra.mxu0 %v6588
    %6813 = vmatpush.msra.mxu0 %v6587
    %6814 = vmatmul.f32.gmra.mxu0 %v6727
    %v6815 = vpop.f32.mrf.mxu0
    %v6816 = vadd.f32 %v6766, %v6815
    %6817 = vmatmul.f32.gmra.mxu0 %v6729
    %v6818 = vpop.f32.mrf.mxu0
    %v6819 = vadd.f32 %v6769, %v6818
    %6820 = vmatmul.f32.gmra.mxu0 %v6731
    %v6821 = vpop.f32.mrf.mxu0
    %v6822 = vadd.f32 %v6772, %v6821
    %6823 = vmatmul.f32.gmra.mxu0 %v6733
    %v6824 = vpop.f32.mrf.mxu0
    %v6825 = vadd.f32 %v6775, %v6824
    %6826 = vmatmul.f32.gmra.mxu0 %v6735
    %v6827 = vpop.f32.mrf.mxu0
    %v6828 = vadd.f32 %v6778, %v6827
    %6829 = vmatmul.f32.gmra.mxu0 %v6737
    %v6830 = vpop.f32.mrf.mxu0
    %v6831 = vadd.f32 %v6781, %v6830
    %6832 = vmatmul.f32.gmra.mxu0 %v6739
    %v6833 = vpop.f32.mrf.mxu0
    %v6834 = vadd.f32 %v6784, %v6833
    %6835 = vmatmul.f32.gmra.mxu0 %v6741
    %v6836 = vpop.f32.mrf.mxu0
    %v6837 = vadd.f32 %v6787, %v6836
    %6838 = vmatmul.f32.gmra.mxu0 %v6743
    %v6839 = vpop.f32.mrf.mxu0
    %v6840 = vadd.f32 %v6790, %v6839
    %6841 = vmatmul.f32.gmra.mxu0 %v6745
    %v6842 = vpop.f32.mrf.mxu0
    %v6843 = vadd.f32 %v6793, %v6842
    %6844 = vmatmul.f32.gmra.mxu0 %v6747
    %v6845 = vpop.f32.mrf.mxu0
    %v6846 = vadd.f32 %v6796, %v6845
    %6847 = vdwg.mxu0
    %v6848 = vmax.f32 %v6693, %v6816
    %v6849 = vmax.f32 %v6696, %v6819
    %v6850 = vmax.f32 %v6699, %v6822
    %v6851 = vmax.f32 %v6702, %v6825
    %v6852 = vmax.f32 %v6705, %v6828
    %v6853 = vmax.f32 %v6708, %v6831
    %v6854 = vmax.f32 %v6711, %v6834
    %v6855 = vmax.f32 %v6714, %v6837
    %v6856 = vmax.f32 %v6717, %v6840
    %v6857 = vmax.f32 %v6720, %v6843
    %v6858 = vmax.f32 %v6723, %v6846
    %s6859 = scalar_lea.vmem %s5, 352
    %v6860 = vld [vmem:[%s6859] sm:$0xff]
    %v6861 = vld [vmem:[%s6859 + $0x8] sm:$0xff]
    %v6862 = vld [vmem:[%s6859 + $0x10] sm:$0xff]
    %v6863 = vld [vmem:[%s6859 + $0x18] sm:$0xff]
    %v6864 = vld [vmem:[%s6859 + $0x20] sm:$0xff]
    %v6865 = vld [vmem:[%s6859 + $0x28] sm:$0xff]
    %v6866 = vld [vmem:[%s6859 + $0x30] sm:$0xff]
    %v6867 = vld [vmem:[%s6859 + $0x38] sm:$0xff]
    %v6868 = vld [vmem:[%s6859 + $0x40] sm:$0xff]
    %v6869 = vld [vmem:[%s6859 + $0x48] sm:$0xff]
    %v6870 = vld [vmem:[%s6859 + $0x50] sm:$0xff]
    %v6871 = vld [vmem:[%s6859 + $0x58] sm:$0xff]
    %v6872 = vld [vmem:[%s6859 + $0x60] sm:$0xff]
    %v6873 = vld [vmem:[%s6859 + $0x68] sm:$0xff]
    %v6874 = vld [vmem:[%s6859 + $0x70] sm:$0xff]
    %v6875 = vld [vmem:[%s6859 + $0x78] sm:$0xff]
    %v6876 = vld [vmem:[%s6859 + $0x80] sm:$0xff]
    %v6877 = vld [vmem:[%s6859 + $0x88] sm:$0xff]
    %v6878 = vld [vmem:[%s6859 + $0x90] sm:$0xff]
    %v6879 = vld [vmem:[%s6859 + $0x98] sm:$0xff]
    %v6880 = vld [vmem:[%s6859 + $0xa0] sm:$0x1]
    %v6881 = vld [vmem:[%s6859 + $0xa8] sm:$0x1]
    %6882 = vmatpush.msra.mxu0 %v6586
    %6883 = vmatpush.msra.mxu0 %v6585
    %6884 = vmatpush.msra.mxu0 %v6584
    %6885 = vmatpush.msra.mxu0 %v6583
    %6886 = vmatpush.msra.mxu0 %v6582
    %6887 = vmatpush.msra.mxu0 %v6581
    %6888 = vmatpush.msra.mxu0 %v6580
    %6889 = vmatpush.msra.mxu0 %v6579
    %6890 = vmatpush.msra.mxu0 %v6578
    %6891 = vmatpush.msra.mxu0 %v6577
    %6892 = vmatpush.msra.mxu0 %v6576
    %6893 = vmatpush.msra.mxu0 %v6575
    %6894 = vmatpush.msra.mxu0 %v6574
    %6895 = vmatpush.msra.mxu0 %v6573
    %6896 = vmatpush.msra.mxu0 %v6572
    %6897 = vmatpush.msra.mxu0 %v6571
    %6898 = vmatmul.f32.gmra.mxu0 %v6860
    %v6899 = vpop.f32.mrf.mxu0
    %v6900 = vadd.f32 0.0, %v6899
    %6901 = vmatmul.f32.gmra.mxu0 %v6862
    %v6902 = vpop.f32.mrf.mxu0
    %v6903 = vadd.f32 0.0, %v6902
    %6904 = vmatmul.f32.gmra.mxu0 %v6864
    %v6905 = vpop.f32.mrf.mxu0
    %v6906 = vadd.f32 0.0, %v6905
    %6907 = vmatmul.f32.gmra.mxu0 %v6866
    %v6908 = vpop.f32.mrf.mxu0
    %v6909 = vadd.f32 0.0, %v6908
    %6910 = vmatmul.f32.gmra.mxu0 %v6868
    %v6911 = vpop.f32.mrf.mxu0
    %v6912 = vadd.f32 0.0, %v6911
    %6913 = vmatmul.f32.gmra.mxu0 %v6870
    %v6914 = vpop.f32.mrf.mxu0
    %v6915 = vadd.f32 0.0, %v6914
    %6916 = vmatmul.f32.gmra.mxu0 %v6872
    %v6917 = vpop.f32.mrf.mxu0
    %v6918 = vadd.f32 0.0, %v6917
    %6919 = vmatmul.f32.gmra.mxu0 %v6874
    %v6920 = vpop.f32.mrf.mxu0
    %v6921 = vadd.f32 0.0, %v6920
    %6922 = vmatmul.f32.gmra.mxu0 %v6876
    %v6923 = vpop.f32.mrf.mxu0
    %v6924 = vadd.f32 0.0, %v6923
    %6925 = vmatmul.f32.gmra.mxu0 %v6878
    %v6926 = vpop.f32.mrf.mxu0
    %v6927 = vadd.f32 0.0, %v6926
    %6928 = vmatmul.f32.gmra.mxu0 %v6880
    %v6929 = vpop.f32.mrf.mxu0
    %v6930 = vadd.f32 0.0, %v6929
    %6931 = vdwg.mxu0
    %6932 = vmatpush.msra.mxu0 %v6602
    %6933 = vmatpush.msra.mxu0 %v6601
    %6934 = vmatpush.msra.mxu0 %v6600
    %6935 = vmatpush.msra.mxu0 %v6599
    %6936 = vmatpush.msra.mxu0 %v6598
    %6937 = vmatpush.msra.mxu0 %v6597
    %6938 = vmatpush.msra.mxu0 %v6596
    %6939 = vmatpush.msra.mxu0 %v6595
    %6940 = vmatpush.msra.mxu0 %v6594
    %6941 = vmatpush.msra.mxu0 %v6593
    %6942 = vmatpush.msra.mxu0 %v6592
    %6943 = vmatpush.msra.mxu0 %v6591
    %6944 = vmatpush.msra.mxu0 %v6590
    %6945 = vmatpush.msra.mxu0 %v6589
    %6946 = vmatpush.msra.mxu0 %v6588
    %6947 = vmatpush.msra.mxu0 %v6587
    %6948 = vmatmul.f32.gmra.mxu0 %v6861
    %v6949 = vpop.f32.mrf.mxu0
    %v6950 = vadd.f32 %v6900, %v6949
    %6951 = vmatmul.f32.gmra.mxu0 %v6863
    %v6952 = vpop.f32.mrf.mxu0
    %v6953 = vadd.f32 %v6903, %v6952
    %6954 = vmatmul.f32.gmra.mxu0 %v6865
    %v6955 = vpop.f32.mrf.mxu0
    %v6956 = vadd.f32 %v6906, %v6955
    %6957 = vmatmul.f32.gmra.mxu0 %v6867
    %v6958 = vpop.f32.mrf.mxu0
    %v6959 = vadd.f32 %v6909, %v6958
    %6960 = vmatmul.f32.gmra.mxu0 %v6869
    %v6961 = vpop.f32.mrf.mxu0
    %v6962 = vadd.f32 %v6912, %v6961
    %6963 = vmatmul.f32.gmra.mxu0 %v6871
    %v6964 = vpop.f32.mrf.mxu0
    %v6965 = vadd.f32 %v6915, %v6964
    %6966 = vmatmul.f32.gmra.mxu0 %v6873
    %v6967 = vpop.f32.mrf.mxu0
    %v6968 = vadd.f32 %v6918, %v6967
    %6969 = vmatmul.f32.gmra.mxu0 %v6875
    %v6970 = vpop.f32.mrf.mxu0
    %v6971 = vadd.f32 %v6921, %v6970
    %6972 = vmatmul.f32.gmra.mxu0 %v6877
    %v6973 = vpop.f32.mrf.mxu0
    %v6974 = vadd.f32 %v6924, %v6973
    %6975 = vmatmul.f32.gmra.mxu0 %v6879
    %v6976 = vpop.f32.mrf.mxu0
    %v6977 = vadd.f32 %v6927, %v6976
    %6978 = vmatmul.f32.gmra.mxu0 %v6881
    %v6979 = vpop.f32.mrf.mxu0
    %v6980 = vadd.f32 %v6930, %v6979
    %6981 = vdwg.mxu0
    %v6982 = vmax.f32 %v6848, %v6950
    %v6983 = vmax.f32 %v6849, %v6953
    %v6984 = vmax.f32 %v6850, %v6956
    %v6985 = vmax.f32 %v6851, %v6959
    %v6986 = vmax.f32 %v6852, %v6962
    %v6987 = vmax.f32 %v6853, %v6965
    %v6988 = vmax.f32 %v6854, %v6968
    %v6989 = vmax.f32 %v6855, %v6971
    %v6990 = vmax.f32 %v6856, %v6974
    %v6991 = vmax.f32 %v6857, %v6977
    %v6992 = vmax.f32 %v6858, %v6980
    %s6993 = scalar_lea.vmem %s5, 528
    %v6994 = vld [vmem:[%s6993] sm:$0xff]
    %v6995 = vld [vmem:[%s6993 + $0x8] sm:$0xff]
    %v6996 = vld [vmem:[%s6993 + $0x10] sm:$0xff]
    %v6997 = vld [vmem:[%s6993 + $0x18] sm:$0xff]
    %v6998 = vld [vmem:[%s6993 + $0x20] sm:$0xff]
    %v6999 = vld [vmem:[%s6993 + $0x28] sm:$0xff]
    %v7000 = vld [vmem:[%s6993 + $0x30] sm:$0xff]
    %v7001 = vld [vmem:[%s6993 + $0x38] sm:$0xff]
    %v7002 = vld [vmem:[%s6993 + $0x40] sm:$0xff]
    %v7003 = vld [vmem:[%s6993 + $0x48] sm:$0xff]
    %v7004 = vld [vmem:[%s6993 + $0x50] sm:$0xff]
    %v7005 = vld [vmem:[%s6993 + $0x58] sm:$0xff]
    %v7006 = vld [vmem:[%s6993 + $0x60] sm:$0xff]
    %v7007 = vld [vmem:[%s6993 + $0x68] sm:$0xff]
    %v7008 = vld [vmem:[%s6993 + $0x70] sm:$0xff]
    %v7009 = vld [vmem:[%s6993 + $0x78] sm:$0xff]
    %v7010 = vld [vmem:[%s6993 + $0x80] sm:$0xff]
    %v7011 = vld [vmem:[%s6993 + $0x88] sm:$0xff]
    %v7012 = vld [vmem:[%s6993 + $0x90] sm:$0xff]
    %v7013 = vld [vmem:[%s6993 + $0x98] sm:$0xff]
    %v7014 = vld [vmem:[%s6993 + $0xa0] sm:$0x1]
    %v7015 = vld [vmem:[%s6993 + $0xa8] sm:$0x1]
    %7016 = vmatpush.msra.mxu0 %v6586
    %7017 = vmatpush.msra.mxu0 %v6585
    %7018 = vmatpush.msra.mxu0 %v6584
    %7019 = vmatpush.msra.mxu0 %v6583
    %7020 = vmatpush.msra.mxu0 %v6582
    %7021 = vmatpush.msra.mxu0 %v6581
    %7022 = vmatpush.msra.mxu0 %v6580
    %7023 = vmatpush.msra.mxu0 %v6579
    %7024 = vmatpush.msra.mxu0 %v6578
    %7025 = vmatpush.msra.mxu0 %v6577
    %7026 = vmatpush.msra.mxu0 %v6576
    %7027 = vmatpush.msra.mxu0 %v6575
    %7028 = vmatpush.msra.mxu0 %v6574
    %7029 = vmatpush.msra.mxu0 %v6573
    %7030 = vmatpush.msra.mxu0 %v6572
    %7031 = vmatpush.msra.mxu0 %v6571
    %7032 = vmatmul.f32.gmra.mxu0 %v6994
    %v7033 = vpop.f32.mrf.mxu0
    %v7034 = vadd.f32 0.0, %v7033
    %7035 = vmatmul.f32.gmra.mxu0 %v6996
    %v7036 = vpop.f32.mrf.mxu0
    %v7037 = vadd.f32 0.0, %v7036
    %7038 = vmatmul.f32.gmra.mxu0 %v6998
    %v7039 = vpop.f32.mrf.mxu0
    %v7040 = vadd.f32 0.0, %v7039
    %7041 = vmatmul.f32.gmra.mxu0 %v7000
    %v7042 = vpop.f32.mrf.mxu0
    %v7043 = vadd.f32 0.0, %v7042
    %7044 = vmatmul.f32.gmra.mxu0 %v7002
    %v7045 = vpop.f32.mrf.mxu0
    %v7046 = vadd.f32 0.0, %v7045
    %7047 = vmatmul.f32.gmra.mxu0 %v7004
    %v7048 = vpop.f32.mrf.mxu0
    %v7049 = vadd.f32 0.0, %v7048
    %7050 = vmatmul.f32.gmra.mxu0 %v7006
    %v7051 = vpop.f32.mrf.mxu0
    %v7052 = vadd.f32 0.0, %v7051
    %7053 = vmatmul.f32.gmra.mxu0 %v7008
    %v7054 = vpop.f32.mrf.mxu0
    %v7055 = vadd.f32 0.0, %v7054
    %7056 = vmatmul.f32.gmra.mxu0 %v7010
    %v7057 = vpop.f32.mrf.mxu0
    %v7058 = vadd.f32 0.0, %v7057
    %7059 = vmatmul.f32.gmra.mxu0 %v7012
    %v7060 = vpop.f32.mrf.mxu0
    %v7061 = vadd.f32 0.0, %v7060
    %7062 = vmatmul.f32.gmra.mxu0 %v7014
    %v7063 = vpop.f32.mrf.mxu0
    %v7064 = vadd.f32 0.0, %v7063
    %7065 = vdwg.mxu0
    %7066 = vmatpush.msra.mxu0 %v6602
    %7067 = vmatpush.msra.mxu0 %v6601
    %7068 = vmatpush.msra.mxu0 %v6600
    %7069 = vmatpush.msra.mxu0 %v6599
    %7070 = vmatpush.msra.mxu0 %v6598
    %7071 = vmatpush.msra.mxu0 %v6597
    %7072 = vmatpush.msra.mxu0 %v6596
    %7073 = vmatpush.msra.mxu0 %v6595
    %7074 = vmatpush.msra.mxu0 %v6594
    %7075 = vmatpush.msra.mxu0 %v6593
    %7076 = vmatpush.msra.mxu0 %v6592
    %7077 = vmatpush.msra.mxu0 %v6591
    %7078 = vmatpush.msra.mxu0 %v6590
    %7079 = vmatpush.msra.mxu0 %v6589
    %7080 = vmatpush.msra.mxu0 %v6588
    %7081 = vmatpush.msra.mxu0 %v6587
    %7082 = vmatmul.f32.gmra.mxu0 %v6995
    %v7083 = vpop.f32.mrf.mxu0
    %v7084 = vadd.f32 %v7034, %v7083
    %7085 = vmatmul.f32.gmra.mxu0 %v6997
    %v7086 = vpop.f32.mrf.mxu0
    %v7087 = vadd.f32 %v7037, %v7086
    %7088 = vmatmul.f32.gmra.mxu0 %v6999
    %v7089 = vpop.f32.mrf.mxu0
    %v7090 = vadd.f32 %v7040, %v7089
    %7091 = vmatmul.f32.gmra.mxu0 %v7001
    %v7092 = vpop.f32.mrf.mxu0
    %v7093 = vadd.f32 %v7043, %v7092
    %7094 = vmatmul.f32.gmra.mxu0 %v7003
    %v7095 = vpop.f32.mrf.mxu0
    %v7096 = vadd.f32 %v7046, %v7095
    %7097 = vmatmul.f32.gmra.mxu0 %v7005
    %v7098 = vpop.f32.mrf.mxu0
    %v7099 = vadd.f32 %v7049, %v7098
    %7100 = vmatmul.f32.gmra.mxu0 %v7007
    %v7101 = vpop.f32.mrf.mxu0
    %v7102 = vadd.f32 %v7052, %v7101
    %7103 = vmatmul.f32.gmra.mxu0 %v7009
    %v7104 = vpop.f32.mrf.mxu0
    %v7105 = vadd.f32 %v7055, %v7104
    %7106 = vmatmul.f32.gmra.mxu0 %v7011
    %v7107 = vpop.f32.mrf.mxu0
    %v7108 = vadd.f32 %v7058, %v7107
    %7109 = vmatmul.f32.gmra.mxu0 %v7013
    %v7110 = vpop.f32.mrf.mxu0
    %v7111 = vadd.f32 %v7061, %v7110
    %7112 = vmatmul.f32.gmra.mxu0 %v7015
    %v7113 = vpop.f32.mrf.mxu0
    %v7114 = vadd.f32 %v7064, %v7113
    %7115 = vdwg.mxu0
    %v7116 = vmax.f32 %v6982, %v7084
    %v7117 = vmax.f32 %v6983, %v7087
    %v7118 = vmax.f32 %v6984, %v7090
    %v7119 = vmax.f32 %v6985, %v7093
    %v7120 = vmax.f32 %v6986, %v7096
    %v7121 = vmax.f32 %v6987, %v7099
    %v7122 = vmax.f32 %v6988, %v7102
    %v7123 = vmax.f32 %v6989, %v7105
    %v7124 = vmax.f32 %v6990, %v7108
    %v7125 = vmax.f32 %v6991, %v7111
    %v7126 = vmax.f32 %v6992, %v7114
    %7127 = vst [vmem:[%s6] sm:$0xff] %v7116
    %7128 = vst [vmem:[%s6 + $0x8] sm:$0xff] %v7117
    %7129 = vst [vmem:[%s6 + $0x10] sm:$0xff] %v7118
    %7130 = vst [vmem:[%s6 + $0x18] sm:$0xff] %v7119
    %7131 = vst [vmem:[%s6 + $0x20] sm:$0xff] %v7120
    %7132 = vst [vmem:[%s6 + $0x28] sm:$0xff] %v7121
    %7133 = vst [vmem:[%s6 + $0x30] sm:$0xff] %v7122
    %7134 = vst [vmem:[%s6 + $0x38] sm:$0xff] %v7123
    %7135 = vst [vmem:[%s6 + $0x40] sm:$0xff] %v7124
    %7136 = vst [vmem:[%s6 + $0x48] sm:$0xff] %v7125
    %7137 = vst [vmem:[%s6 + $0x50] sm:$0x1] %v7126
    // Predicated region
    $region30: #{tpu_custom_call.1} parent=1 // pred_check
      _
    $region31: #{tpu_custom_call.1} parent=1 // pred_check_branch
      %7139 = sbr.rel (0) target = $region33
    $region32: #{tpu_custom_call.1} parent=1 // pred_region
      _
    $region33: #{tpu_custom_call.1} parent=1 // pred_fallthru
      _
    // Predicated region
    $region34: #{tpu_custom_call.1} parent=1 // pred_check
      _
    $region35: #{tpu_custom_call.1} parent=1 // pred_check_branch
      %7141 = sbr.rel (0) target = $region37
    $region36: #{tpu_custom_call.1} parent=1 // pred_region
      _
    $region37: #{tpu_custom_call.1} parent=1 // pred_fallthru
      _
    %7142 = vsyncpa [#allocation3], 1

</llo_original>
